<compile_context>
chip_gen: v7x
topology: tpu7x:2x2x1
jax: 0.10.0
libtpu: 0.0.40
codegen_flags: <defaults>
</compile_context>

<pallas_src>
import functools

import jax
import jax.numpy as jnp
from jax.experimental import pallas as pl
from jax.experimental.pallas import tpu as pltpu


_VMEM_LIMIT = 32 * 1024 * 1024  # modest, fits all generations (v7x physical = 64 MiB)


# ----------------------------------------------------------------------------
# Kernel A: conv1 (3x3, pad=1) + bias + ReLU + maxpool(2x2) on an M block.
# ----------------------------------------------------------------------------
def conv_relu_pool_kernel(p_ref, w_ref, b_ref, o_ref):
    """p_ref: [4, Mblk, K] bf16 im2col patches (axis 0 = 2x2 pool candidate),
    w_ref: [K, CoutPad] bf16, b_ref: [1, CoutPad] f32, o_ref: [Mblk, CoutPad] bf16."""
    s, mblk, kdim = p_ref.shape
    # One MXU matmul over all 4 pooling candidates (amortizes fill/drain).
    p = p_ref[...].reshape(s * mblk, kdim)          # leading-dim merge: layout-safe
    y = jnp.dot(p, w_ref[...], preferred_element_type=jnp.float32)
    y = jnp.maximum(y + b_ref[...], 0.0)            # bias + ReLU (VPU, f32)
    parts = [y[i * mblk:(i + 1) * mblk] for i in range(s)]
    pooled = functools.reduce(jnp.maximum, parts)   # 2x2 max-pool
    o_ref[...] = pooled.astype(o_ref.dtype)


# ----------------------------------------------------------------------------
# Kernel B: conv2 + bias + ReLU + maxpool + flatten + fc1 + ReLU + dropout(eval) + fc2.
# ----------------------------------------------------------------------------
def conv2_mlp_kernel(p2_ref, w2_ref, b2_ref, wf1_ref, bf1_ref, wf2_ref, bf2_ref,
                     o_ref, fcin_ref):
    """p2_ref : [4, P*B, K2]  bf16 conv2 patches, rows ordered (hw-major, batch-minor)
    w2_ref : [K2, C2]       bf16 conv2 weight
    b2_ref : [1, C2]        f32
    wf1_ref: [P*C2, H]      bf16 fc1 weight, rows in (h, w, c) order
    bf1_ref: [1, H]         f32
    wf2_ref: [H, Npad]      bf16 fc2 weight (N padded to 128 -> lane-dense store)
    bf2_ref: [1, Npad]      f32
    o_ref  : [B, Npad]      f32 logits (padded)
    fcin_ref:[B, P*C2]      f32 VMEM scratch (flattened conv2 activation)
    """
    s, m2, k2 = p2_ref.shape
    c2 = w2_ref.shape[1]
    batch = fcin_ref.shape[0]
    n_pos = m2 // batch                              # pooled spatial positions (64)

    # ---- conv2 + bias + ReLU + 2x2 max-pool, one MXU dot over all candidates ----
    p = p2_ref[...].reshape(s * m2, k2)
    y = jnp.dot(p, w2_ref[...], preferred_element_type=jnp.float32)
    y = jnp.maximum(y + b2_ref[...], 0.0)
    parts = [y[i * m2:(i + 1) * m2] for i in range(s)]
    pooled = functools.reduce(jnp.maximum, parts)    # [P*B, C2] f32

    # ---- flatten to [B, P*C2] without a sublane->lane reshape: P static copies ----
    for pos in range(n_pos):
        fcin_ref[:, pos * c2:(pos + 1) * c2] = pooled[pos * batch:(pos + 1) * batch, :]

    # ---- fc1 + ReLU (single un-tiled contraction), dropout(eval) = identity ----
    # TODO(synk): training-mode dropout (random mask + 1/(1-p) scaling) not applied.
    h = jnp.dot(fcin_ref[...].astype(jnp.bfloat16), wf1_ref[...],
                preferred_element_type=jnp.float32)
    h = jnp.maximum(h + bf1_ref[...], 0.0)

    # ---- fc2 (padded N=128 -> lane-dense store) ----
    out = jnp.dot(h.astype(jnp.bfloat16), wf2_ref[...],
                  preferred_element_type=jnp.float32) + bf2_ref[...]
    o_ref[...] = out


# ----------------------------------------------------------------------------
# pallas_call wrappers
# ----------------------------------------------------------------------------
def _pick_m_block(m):
    # Largest block that divides M while keeping >= 2 grid steps (v7x megacore).
    for cand in (256, 128, 64, 32, 16, 8):
        if m % cand == 0 and m // cand >= 2:
            return cand
    return m


def conv_relu_pool(patches, w, b):
    """patches: [4, M, K] bf16, w: [K, CoutPad] bf16, b: [1, CoutPad] f32
    -> [M, CoutPad] bf16 (lane-dense)."""
    s, m, k = patches.shape
    cout = w.shape[1]
    mblk = _pick_m_block(m)
    return pl.pallas_call(
        conv_relu_pool_kernel,
        out_shape=jax.ShapeDtypeStruct((m, cout), jnp.bfloat16),
        grid=(m // mblk,),
        in_specs=[
            pl.BlockSpec((s, mblk, k), lambda i: (0, i, 0)),
            pl.BlockSpec((k, cout), lambda i: (0, 0)),
            pl.BlockSpec((1, cout), lambda i: (0, 0)),
        ],
        out_specs=pl.BlockSpec((mblk, cout), lambda i: (i, 0)),
        compiler_params=pltpu.CompilerParams(
            dimension_semantics=("parallel",),
            vmem_limit_bytes=_VMEM_LIMIT),
    )(patches, w, b)


def conv2_mlp(p2, w2, b2, wf1, bf1, wf2p, bf2p, batch):
    """Fused conv2+pool+fc1+fc2. p2: [4, P*B, K2] bf16 -> logits [B, Npad] f32."""
    s, m2, k2 = p2.shape
    c2 = w2.shape[1]
    kfc, hid = wf1.shape
    npad = wf2p.shape[1]
    # NOTE: grid=(1,): the MLP part cannot be split across cores without a
    # cross-core reduction, so the second v7x TensorCore idles for this kernel.
    return pl.pallas_call(
        conv2_mlp_kernel,
        out_shape=jax.ShapeDtypeStruct((batch, npad), jnp.float32),
        grid=(1,),
        in_specs=[
            pl.BlockSpec((s, m2, k2), lambda i: (0, 0, 0)),
            pl.BlockSpec((k2, c2), lambda i: (0, 0)),
            pl.BlockSpec((1, c2), lambda i: (0, 0)),
            pl.BlockSpec((kfc, hid), lambda i: (0, 0)),
            pl.BlockSpec((1, hid), lambda i: (0, 0)),
            pl.BlockSpec((hid, npad), lambda i: (0, 0)),
            pl.BlockSpec((1, npad), lambda i: (0, 0)),
        ],
        out_specs=pl.BlockSpec((batch, npad), lambda i: (0, 0)),
        scratch_shapes=[pltpu.VMEM((batch, kfc), jnp.float32)],
        compiler_params=pltpu.CompilerParams(
            dimension_semantics=("arbitrary",),
            vmem_limit_bytes=_VMEM_LIMIT),
    )(p2, w2, b2, wf1, bf1, wf2p, bf2p)


# ----------------------------------------------------------------------------
# Glue: im2col for a 3x3 / pad=1 conv fused with the 2x2 pooling grid.
# ----------------------------------------------------------------------------
def im2col_pooled(x_nhwc, hw_major=False):
    """x_nhwc: [B, H, W, Cin] -> patches [4, M, 9*Cin].

    hw_major=False: rows ordered (b, hp, wp)  (for conv1, so the output reshapes
                    straight back to NHWC).
    hw_major=True : rows ordered (hp, wp, b)  (for conv2, so the fused kernel can
                    flatten per pooled position with contiguous row slices).
    """
    B, H, W, Cin = x_nhwc.shape
    Hp, Wp = H // 2, W // 2
    xp = jnp.pad(x_nhwc, ((0, 0), (1, 1), (1, 1), (0, 0)))
    cols = jnp.stack(
        [xp[:, kh:kh + H, kw:kw + W, :] for kh in range(3) for kw in range(3)],
        axis=3,
    )                                              # [B, H, W, 9, Cin]
    cols = cols.reshape(B, Hp, 2, Wp, 2, 9 * Cin)  # axes: b, hp, a, wp, c, k
    if hw_major:
        cols = cols.transpose(2, 4, 1, 3, 0, 5)    # [2, 2, Hp, Wp, B, 9*Cin]
    else:
        cols = cols.transpose(2, 4, 0, 1, 3, 5)    # [2, 2, B, Hp, Wp, 9*Cin]
    return cols.reshape(4, -1, 9 * Cin)


def conv_w_to_matmul(w_oihw):
    """PyTorch [Cout, Cin, kh, kw] -> [kh*kw*Cin, Cout] (matches im2col K order)."""
    cout = w_oihw.shape[0]
    return w_oihw.transpose(2, 3, 1, 0).reshape(-1, cout)


# ----------------------------------------------------------------------------
# One-time parameter preparation (all transposes / pads / casts hoisted here).
# ----------------------------------------------------------------------------
def prepare_params(params):
    c1 = params["w1"].shape[0]                         # 32
    c1_pad = 128                                       # lane-dense conv1 store
    w1 = conv_w_to_matmul(params["w1"])                # (27, 32)
    w1p = jnp.zeros((w1.shape[0], c1_pad), jnp.float32).at[:, :c1].set(w1)
    b1p = jnp.zeros((1, c1_pad), jnp.float32).at[0, :c1].set(params["b1"])

    c2 = params["w2"].shape[0]                         # 64
    w2 = conv_w_to_matmul(params["w2"])                # (288, 64)
    b2 = params["b2"].reshape(1, -1)

    # fc1: PyTorch flatten order is (c, h, w); permute weight rows to (h, w, c),
    # which is what the fused kernel's flatten produces (no runtime transpose).
    hid, kin = params["wf1"].shape                     # (512, 4096)
    sp = int(round((kin // c2) ** 0.5))                # 8
    wf1 = params["wf1"].reshape(hid, c2, sp, sp).transpose(2, 3, 1, 0).reshape(kin, hid)
    bf1 = params["bf1"].reshape(1, -1)

    n_out, hid2 = params["wf2"].shape                  # (10, 512)
    n_pad = max(128, ((n_out + 127) // 128) * 128)     # lane-dense fc2 store
    wf2 = jnp.zeros((hid2, n_pad), jnp.float32).at[:, :n_out].set(params["wf2"].T)
    bf2 = jnp.zeros((1, n_pad), jnp.float32).at[0, :n_out].set(params["bf2"])

    return {
        "w1": w1p.astype(jnp.bfloat16),       # (27, 128)  Cout padded
        "b1": b1p.astype(jnp.float32),        # (1, 128)
        "w2": w2.astype(jnp.bfloat16),        # (288, 64)
        "b2": b2.astype(jnp.float32),         # (1, 64)
        "wf1": wf1.astype(jnp.bfloat16),      # (4096, 512) rows in (h, w, c) order
        "bf1": bf1.astype(jnp.float32),       # (1, 512)
        "wf2": wf2.astype(jnp.bfloat16),      # (512, 128)  N padded
        "bf2": bf2.astype(jnp.float32),       # (1, 128)
    }


# ----------------------------------------------------------------------------
# Full forward pass
# ----------------------------------------------------------------------------
@functools.partial(jax.jit, static_argnames=("n_classes",))
def cnn_forward(x_nchw, prep, n_classes=10):
    b = x_nchw.shape[0]
    c1 = prep["w2"].shape[0] // 9                            # true conv1 out channels (32)
    x = x_nchw.transpose(0, 2, 3, 1).astype(jnp.bfloat16)    # NCHW -> NHWC, bf16
    hsp, wsp = x.shape[1], x.shape[2]

    # conv1 (3->32, Cout padded to 128) + ReLU + maxpool : 32x32 -> 16x16
    p1 = im2col_pooled(x, hw_major=False)                    # (4, B*256, 27)
    y1 = conv_relu_pool(p1, prep["w1"], prep["b1"])          # (B*256, 128) bf16, lane-dense
    y1 = y1.reshape(b, hsp // 2, wsp // 2, -1)[..., :c1]     # slice fuses into im2col below

    # conv2 + ReLU + maxpool + flatten + fc1 + ReLU + dropout(eval) + fc2, one kernel.
    p2 = im2col_pooled(y1, hw_major=True)                    # (4, 64*B, 288), rows (hw, b)
    logits_pad = conv2_mlp(p2, prep["w2"], prep["b2"], prep["wf1"], prep["bf1"],
                           prep["wf2"], prep["bf2"], b)      # (B, 128) f32
    return logits_pad[:, :n_classes]


def init_params(key):
    ks = jax.random.split(key, 8)
    scale = 0.05
    return {
        "w1": scale * jax.random.normal(ks[0], (32, 3, 3, 3), jnp.float32),
        "b1": scale * jax.random.normal(ks[1], (32,), jnp.float32),
        "w2": scale * jax.random.normal(ks[2], (64, 32, 3, 3), jnp.float32),
        "b2": scale * jax.random.normal(ks[3], (64,), jnp.float32),
        "wf1": scale * jax.random.normal(ks[4], (512, 64 * 8 * 8), jnp.float32),
        "bf1": scale * jax.random.normal(ks[5], (512,), jnp.float32),
        "wf2": scale * jax.random.normal(ks[6], (10, 512), jnp.float32),
        "bf2": scale * jax.random.normal(ks[7], (10,), jnp.float32),
    }


if __name__ == "__main__":
    key = jax.random.PRNGKey(0)
    pkey, xkey = jax.random.split(key)
    params = init_params(pkey)
    prep = prepare_params(params)          # one-time weight layout / dtype prep

    # fc1 hard-codes 64*8*8 -> 3x32x32 inputs (CIFAR-style), batch=2.
    x = jax.random.normal(xkey, (2, 3, 32, 32), jnp.float32)   # NCHW, like PyTorch

    out = cnn_forward(x, prep)
    out = jax.block_until_ready(out)
    assert out.shape == (2, 10), out.shape
    print("KERNEL_OK")
</pallas_src>

<mosaic_0001>
module attributes {stable_mosaic.version = 11 : i64} {
  func.func @conv_relu_pool_kernel(%arg0: i32, %arg1: memref<4x256x27xbf16, #tpu.memory_space<vmem>>, %arg2: memref<27x128xbf16, #tpu.memory_space<vmem>>, %arg3: memref<1x128xf32, #tpu.memory_space<vmem>>, %arg4: memref<256x128xbf16, #tpu.memory_space<vmem>>) attributes {dimension_semantics = [#tpu.dimension_semantics<parallel>], iteration_bounds = array<i64: 2>, scalar_prefetch = 0 : i64, scratch_operands = 0 : i64, tpu.core_type = #tpu.core_type<tc>, window_params = [{transform_indices = @transform_0, window_bounds = array<i64: 4, 256, 27>}, {pipeline_mode = #tpu.pipeline_mode<synchronous>, transform_indices = @transform_1, window_bounds = array<i64: 27, 128>}, {pipeline_mode = #tpu.pipeline_mode<synchronous>, transform_indices = @transform_2, window_bounds = array<i64: 1, 128>}, {transform_indices = @transform_3, window_bounds = array<i64: 256, 128>}]} {
    %c0 = arith.constant 0 : index
    %c0_0 = arith.constant 0 : index
    %c0_1 = arith.constant 0 : index
    %0 = vector.load %arg1[%c0, %c0_0, %c0_1] : memref<4x256x27xbf16, #tpu.memory_space<vmem>>, vector<4x256x27xbf16>
    %1 = vector.shape_cast %0 : vector<4x256x27xbf16> to vector<1024x27xbf16>
    %c0_2 = arith.constant 0 : index
    %c0_3 = arith.constant 0 : index
    %2 = vector.load %arg2[%c0_2, %c0_3] : memref<27x128xbf16, #tpu.memory_space<vmem>>, vector<27x128xbf16>
    %cst = arith.constant dense<0.000000e+00> : vector<1024x128xf32>
    %3 = tpu.matmul %1, %2, %cst {dimension_numbers = #tpu.dot_dimension_numbers<[1], [0], [0], [1], [0, 0, 1, 1], [], []>} : vector<1024x27xbf16>, vector<27x128xbf16>, vector<1024x128xf32> -> vector<1024x128xf32>
    %c0_4 = arith.constant 0 : index
    %c0_5 = arith.constant 0 : index
    %4 = vector.load %arg3[%c0_4, %c0_5] : memref<1x128xf32, #tpu.memory_space<vmem>>, vector<1x128xf32>
    %5 = vector.broadcast %4 : vector<1x128xf32> to vector<1024x128xf32>
    %6 = arith.addf %3, %5 : vector<1024x128xf32>
    %cst_6 = arith.constant 0.000000e+00 : f32
    %7 = vector.broadcast %cst_6 : f32 to vector<1024x128xf32>
    %8 = arith.maximumf %6, %7 : vector<1024x128xf32>
    %9 = vector.extract_strided_slice %8 {offsets = [0, 0], sizes = [256, 128], strides = [1, 1]} : vector<1024x128xf32> to vector<256x128xf32>
    %10 = vector.extract_strided_slice %8 {offsets = [256, 0], sizes = [256, 128], strides = [1, 1]} : vector<1024x128xf32> to vector<256x128xf32>
    %11 = vector.extract_strided_slice %8 {offsets = [512, 0], sizes = [256, 128], strides = [1, 1]} : vector<1024x128xf32> to vector<256x128xf32>
    %12 = vector.extract_strided_slice %8 {offsets = [768, 0], sizes = [256, 128], strides = [1, 1]} : vector<1024x128xf32> to vector<256x128xf32>
    %13 = arith.maximumf %9, %10 : vector<256x128xf32>
    %14 = arith.maximumf %13, %11 : vector<256x128xf32>
    %15 = arith.maximumf %14, %12 : vector<256x128xf32>
    %16 = arith.truncf %15 : vector<256x128xf32> to vector<256x128xbf16>
    %c0_7 = arith.constant 0 : index
    %c0_8 = arith.constant 0 : index
    %17 = vector.load %arg4[%c0_7, %c0_8] : memref<256x128xbf16, #tpu.memory_space<vmem>>, vector<256x128xbf16>
    tpu.vector_store %arg4[%c0_7, %c0_8], %16 {strides = array<i32>} : memref<256x128xbf16, #tpu.memory_space<vmem>>, vector<256x128xbf16>,
    return
  }
  func.func @transform_0(%arg0: i32) -> (i32, i32, i32) {
    %c0_i32 = arith.constant 0 : i32
    %c0_i32_0 = arith.constant 0 : i32
    %c0_i32_1 = arith.constant 0 : i32
    return %c0_i32, %arg0, %c0_i32_0 : i32, i32, i32
  }
  func.func @transform_1(%arg0: i32) -> (i32, i32) {
    %c0_i32 = arith.constant 0 : i32
    %c0_i32_0 = arith.constant 0 : i32
    %c0_i32_1 = arith.constant 0 : i32
    return %c0_i32, %c0_i32_0 : i32, i32
  }
  func.func @transform_2(%arg0: i32) -> (i32, i32) {
    %c0_i32 = arith.constant 0 : i32
    %c0_i32_0 = arith.constant 0 : i32
    %c0_i32_1 = arith.constant 0 : i32
    return %c0_i32, %c0_i32_0 : i32, i32
  }
  func.func @transform_3(%arg0: i32) -> (i32, i32) {
    %c0_i32 = arith.constant 0 : i32
    %c0_i32_0 = arith.constant 0 : i32
    return %arg0, %c0_i32 : i32, i32
  }
}

module attributes {stable_mosaic.version = 11 : i64} {
  func.func @conv2_mlp_kernel(%arg0: i32, %arg1: memref<4x128x288xbf16, #tpu.memory_space<vmem>>, %arg2: memref<288x64xbf16, #tpu.memory_space<vmem>>, %arg3: memref<1x64xf32, #tpu.memory_space<vmem>>, %arg4: memref<4096x512xbf16, #tpu.memory_space<vmem>>, %arg5: memref<1x512xf32, #tpu.memory_space<vmem>>, %arg6: memref<512x128xbf16, #tpu.memory_space<vmem>>, %arg7: memref<1x128xf32, #tpu.memory_space<vmem>>, %arg8: memref<2x128xf32, #tpu.memory_space<vmem>>, %arg9: memref<2x4096xf32, #tpu.memory_space<vmem>>) attributes {dimension_semantics = [#tpu.dimension_semantics<arbitrary>], iteration_bounds = array<i64: 1>, scalar_prefetch = 0 : i64, scratch_operands = 1 : i64, tpu.core_type = #tpu.core_type<tc>, window_params = [{pipeline_mode = #tpu.pipeline_mode<synchronous>, transform_indices = @transform_0, window_bounds = array<i64: 4, 128, 288>}, {pipeline_mode = #tpu.pipeline_mode<synchronous>, transform_indices = @transform_1, window_bounds = array<i64: 288, 64>}, {pipeline_mode = #tpu.pipeline_mode<synchronous>, transform_indices = @transform_2, window_bounds = array<i64: 1, 64>}, {pipeline_mode = #tpu.pipeline_mode<synchronous>, transform_indices = @transform_3, window_bounds = array<i64: 4096, 512>}, {pipeline_mode = #tpu.pipeline_mode<synchronous>, transform_indices = @transform_4, window_bounds = array<i64: 1, 512>}, {pipeline_mode = #tpu.pipeline_mode<synchronous>, transform_indices = @transform_5, window_bounds = array<i64: 512, 128>}, {pipeline_mode = #tpu.pipeline_mode<synchronous>, transform_indices = @transform_6, window_bounds = array<i64: 1, 128>}, {pipeline_mode = #tpu.pipeline_mode<synchronous>, transform_indices = @transform_7, window_bounds = array<i64: 2, 128>}]} {
    %c0 = arith.constant 0 : index
    %c0_0 = arith.constant 0 : index
    %c0_1 = arith.constant 0 : index
    %0 = vector.load %arg1[%c0, %c0_0, %c0_1] : memref<4x128x288xbf16, #tpu.memory_space<vmem>>, vector<4x128x288xbf16>
    %1 = vector.shape_cast %0 : vector<4x128x288xbf16> to vector<512x288xbf16>
    %c0_2 = arith.constant 0 : index
    %c0_3 = arith.constant 0 : index
    %2 = vector.load %arg2[%c0_2, %c0_3] : memref<288x64xbf16, #tpu.memory_space<vmem>>, vector<288x64xbf16>
    %cst = arith.constant dense<0.000000e+00> : vector<512x64xf32>
    %3 = tpu.matmul %1, %2, %cst {dimension_numbers = #tpu.dot_dimension_numbers<[1], [0], [0], [1], [0, 0, 1, 1], [], []>} : vector<512x288xbf16>, vector<288x64xbf16>, vector<512x64xf32> -> vector<512x64xf32>
    %c0_4 = arith.constant 0 : index
    %c0_5 = arith.constant 0 : index
    %4 = vector.load %arg3[%c0_4, %c0_5] : memref<1x64xf32, #tpu.memory_space<vmem>>, vector<1x64xf32>
    %5 = vector.broadcast %4 : vector<1x64xf32> to vector<512x64xf32>
    %6 = arith.addf %3, %5 : vector<512x64xf32>
    %cst_6 = arith.constant 0.000000e+00 : f32
    %7 = vector.broadcast %cst_6 : f32 to vector<512x64xf32>
    %8 = arith.maximumf %6, %7 : vector<512x64xf32>
    %9 = vector.extract_strided_slice %8 {offsets = [0, 0], sizes = [128, 64], strides = [1, 1]} : vector<512x64xf32> to vector<128x64xf32>
    %10 = vector.extract_strided_slice %8 {offsets = [128, 0], sizes = [128, 64], strides = [1, 1]} : vector<512x64xf32> to vector<128x64xf32>
    %11 = vector.extract_strided_slice %8 {offsets = [256, 0], sizes = [128, 64], strides = [1, 1]} : vector<512x64xf32> to vector<128x64xf32>
    %12 = vector.extract_strided_slice %8 {offsets = [384, 0], sizes = [128, 64], strides = [1, 1]} : vector<512x64xf32> to vector<128x64xf32>
    %13 = arith.maximumf %9, %10 : vector<128x64xf32>
    %14 = arith.maximumf %13, %11 : vector<128x64xf32>
    %15 = arith.maximumf %14, %12 : vector<128x64xf32>
    %16 = vector.extract_strided_slice %15 {offsets = [0, 0], sizes = [2, 64], strides = [1, 1]} : vector<128x64xf32> to vector<2x64xf32>
    %c0_7 = arith.constant 0 : index
    %c0_8 = arith.constant 0 : index
    %17 = vector.load %arg9[%c0_7, %c0_8] : memref<2x4096xf32, #tpu.memory_space<vmem>>, vector<2x64xf32>
    tpu.vector_store %arg9[%c0_7, %c0_8], %16 {strides = array<i32>} : memref<2x4096xf32, #tpu.memory_space<vmem>>, vector<2x64xf32>,
    %18 = vector.extract_strided_slice %15 {offsets = [2, 0], sizes = [2, 64], strides = [1, 1]} : vector<128x64xf32> to vector<2x64xf32>
    %c0_9 = arith.constant 0 : index
    %c64 = arith.constant 64 : index
    %19 = vector.load %arg9[%c0_9, %c64] : memref<2x4096xf32, #tpu.memory_space<vmem>>, vector<2x64xf32>
    tpu.vector_store %arg9[%c0_9, %c64], %18 {strides = array<i32>} : memref<2x4096xf32, #tpu.memory_space<vmem>>, vector<2x64xf32>,
    %20 = vector.extract_strided_slice %15 {offsets = [4, 0], sizes = [2, 64], strides = [1, 1]} : vector<128x64xf32> to vector<2x64xf32>
    %c0_10 = arith.constant 0 : index
    %c128 = arith.constant 128 : index
    %21 = vector.load %arg9[%c0_10, %c128] : memref<2x4096xf32, #tpu.memory_space<vmem>>, vector<2x64xf32>
    tpu.vector_store %arg9[%c0_10, %c128], %20 {strides = array<i32>} : memref<2x4096xf32, #tpu.memory_space<vmem>>, vector<2x64xf32>,
    %22 = vector.extract_strided_slice %15 {offsets = [6, 0], sizes = [2, 64], strides = [1, 1]} : vector<128x64xf32> to vector<2x64xf32>
    %c0_11 = arith.constant 0 : index
    %c192 = arith.constant 192 : index
    %23 = vector.load %arg9[%c0_11, %c192] : memref<2x4096xf32, #tpu.memory_space<vmem>>, vector<2x64xf32>
    tpu.vector_store %arg9[%c0_11, %c192], %22 {strides = array<i32>} : memref<2x4096xf32, #tpu.memory_space<vmem>>, vector<2x64xf32>,
    %24 = vector.extract_strided_slice %15 {offsets = [8, 0], sizes = [2, 64], strides = [1, 1]} : vector<128x64xf32> to vector<2x64xf32>
    %c0_12 = arith.constant 0 : index
    %c256 = arith.constant 256 : index
    %25 = vector.load %arg9[%c0_12, %c256] : memref<2x4096xf32, #tpu.memory_space<vmem>>, vector<2x64xf32>
    tpu.vector_store %arg9[%c0_12, %c256], %24 {strides = array<i32>} : memref<2x4096xf32, #tpu.memory_space<vmem>>, vector<2x64xf32>,
    %26 = vector.extract_strided_slice %15 {offsets = [10, 0], sizes = [2, 64], strides = [1, 1]} : vector<128x64xf32> to vector<2x64xf32>
    %c0_13 = arith.constant 0 : index
    %c320 = arith.constant 320 : index
    %27 = vector.load %arg9[%c0_13, %c320] : memref<2x4096xf32, #tpu.memory_space<vmem>>, vector<2x64xf32>
    tpu.vector_store %arg9[%c0_13, %c320], %26 {strides = array<i32>} : memref<2x4096xf32, #tpu.memory_space<vmem>>, vector<2x64xf32>,
    %28 = vector.extract_strided_slice %15 {offsets = [12, 0], sizes = [2, 64], strides = [1, 1]} : vector<128x64xf32> to vector<2x64xf32>
    %c0_14 = arith.constant 0 : index
    %c384 = arith.constant 384 : index
    %29 = vector.load %arg9[%c0_14, %c384] : memref<2x4096xf32, #tpu.memory_space<vmem>>, vector<2x64xf32>
    tpu.vector_store %arg9[%c0_14, %c384], %28 {strides = array<i32>} : memref<2x4096xf32, #tpu.memory_space<vmem>>, vector<2x64xf32>,
    %30 = vector.extract_strided_slice %15 {offsets = [14, 0], sizes = [2, 64], strides = [1, 1]} : vector<128x64xf32> to vector<2x64xf32>
    %c0_15 = arith.constant 0 : index
    %c448 = arith.constant 448 : index
    %31 = vector.load %arg9[%c0_15, %c448] : memref<2x4096xf32, #tpu.memory_space<vmem>>, vector<2x64xf32>
    tpu.vector_store %arg9[%c0_15, %c448], %30 {strides = array<i32>} : memref<2x4096xf32, #tpu.memory_space<vmem>>, vector<2x64xf32>,
    %32 = vector.extract_strided_slice %15 {offsets = [16, 0], sizes = [2, 64], strides = [1, 1]} : vector<128x64xf32> to vector<2x64xf32>
    %c0_16 = arith.constant 0 : index
    %c512 = arith.constant 512 : index
    %33 = vector.load %arg9[%c0_16, %c512] : memref<2x4096xf32, #tpu.memory_space<vmem>>, vector<2x64xf32>
    tpu.vector_store %arg9[%c0_16, %c512], %32 {strides = array<i32>} : memref<2x4096xf32, #tpu.memory_space<vmem>>, vector<2x64xf32>,
    %34 = vector.extract_strided_slice %15 {offsets = [18, 0], sizes = [2, 64], strides = [1, 1]} : vector<128x64xf32> to vector<2x64xf32>
    %c0_17 = arith.constant 0 : index
    %c576 = arith.constant 576 : index
    %35 = vector.load %arg9[%c0_17, %c576] : memref<2x4096xf32, #tpu.memory_space<vmem>>, vector<2x64xf32>
    tpu.vector_store %arg9[%c0_17, %c576], %34 {strides = array<i32>} : memref<2x4096xf32, #tpu.memory_space<vmem>>, vector<2x64xf32>,
    %36 = vector.extract_strided_slice %15 {offsets = [20, 0], sizes = [2, 64], strides = [1, 1]} : vector<128x64xf32> to vector<2x64xf32>
    %c0_18 = arith.constant 0 : index
    %c640 = arith.constant 640 : index
    %37 = vector.load %arg9[%c0_18, %c640] : memref<2x4096xf32, #tpu.memory_space<vmem>>, vector<2x64xf32>
    tpu.vector_store %arg9[%c0_18, %c640], %36 {strides = array<i32>} : memref<2x4096xf32, #tpu.memory_space<vmem>>, vector<2x64xf32>,
    %38 = vector.extract_strided_slice %15 {offsets = [22, 0], sizes = [2, 64], strides = [1, 1]} : vector<128x64xf32> to vector<2x64xf32>
    %c0_19 = arith.constant 0 : index
    %c704 = arith.constant 704 : index
    %39 = vector.load %arg9[%c0_19, %c704] : memref<2x4096xf32, #tpu.memory_space<vmem>>, vector<2x64xf32>
    tpu.vector_store %arg9[%c0_19, %c704], %38 {strides = array<i32>} : memref<2x4096xf32, #tpu.memory_space<vmem>>, vector<2x64xf32>,
    %40 = vector.extract_strided_slice %15 {offsets = [24, 0], sizes = [2, 64], strides = [1, 1]} : vector<128x64xf32> to vector<2x64xf32>
    %c0_20 = arith.constant 0 : index
    %c768 = arith.constant 768 : index
    %41 = vector.load %arg9[%c0_20, %c768] : memref<2x4096xf32, #tpu.memory_space<vmem>>, vector<2x64xf32>
    tpu.vector_store %arg9[%c0_20, %c768], %40 {strides = array<i32>} : memref<2x4096xf32, #tpu.memory_space<vmem>>, vector<2x64xf32>,
    %42 = vector.extract_strided_slice %15 {offsets = [26, 0], sizes = [2, 64], strides = [1, 1]} : vector<128x64xf32> to vector<2x64xf32>
    %c0_21 = arith.constant 0 : index
    %c832 = arith.constant 832 : index
    %43 = vector.load %arg9[%c0_21, %c832] : memref<2x4096xf32, #tpu.memory_space<vmem>>, vector<2x64xf32>
    tpu.vector_store %arg9[%c0_21, %c832], %42 {strides = array<i32>} : memref<2x4096xf32, #tpu.memory_space<vmem>>, vector<2x64xf32>,
    %44 = vector.extract_strided_slice %15 {offsets = [28, 0], sizes = [2, 64], strides = [1, 1]} : vector<128x64xf32> to vector<2x64xf32>
    %c0_22 = arith.constant 0 : index
    %c896 = arith.constant 896 : index
    %45 = vector.load %arg9[%c0_22, %c896] : memref<2x4096xf32, #tpu.memory_space<vmem>>, vector<2x64xf32>
    tpu.vector_store %arg9[%c0_22, %c896], %44 {strides = array<i32>} : memref<2x4096xf32, #tpu.memory_space<vmem>>, vector<2x64xf32>,
    %46 = vector.extract_strided_slice %15 {offsets = [30, 0], sizes = [2, 64], strides = [1, 1]} : vector<128x64xf32> to vector<2x64xf32>
    %c0_23 = arith.constant 0 : index
    %c960 = arith.constant 960 : index
    %47 = vector.load %arg9[%c0_23, %c960] : memref<2x4096xf32, #tpu.memory_space<vmem>>, vector<2x64xf32>
    tpu.vector_store %arg9[%c0_23, %c960], %46 {strides = array<i32>} : memref<2x4096xf32, #tpu.memory_space<vmem>>, vector<2x64xf32>,
    %48 = vector.extract_strided_slice %15 {offsets = [32, 0], sizes = [2, 64], strides = [1, 1]} : vector<128x64xf32> to vector<2x64xf32>
    %c0_24 = arith.constant 0 : index
    %c1024 = arith.constant 1024 : index
    %49 = vector.load %arg9[%c0_24, %c1024] : memref<2x4096xf32, #tpu.memory_space<vmem>>, vector<2x64xf32>
    tpu.vector_store %arg9[%c0_24, %c1024], %48 {strides = array<i32>} : memref<2x4096xf32, #tpu.memory_space<vmem>>, vector<2x64xf32>,
    %50 = vector.extract_strided_slice %15 {offsets = [34, 0], sizes = [2, 64], strides = [1, 1]} : vector<128x64xf32> to vector<2x64xf32>
    %c0_25 = arith.constant 0 : index
    %c1088 = arith.constant 1088 : index
    %51 = vector.load %arg9[%c0_25, %c1088] : memref<2x4096xf32, #tpu.memory_space<vmem>>, vector<2x64xf32>
    tpu.vector_store %arg9[%c0_25, %c1088], %50 {strides = array<i32>} : memref<2x4096xf32, #tpu.memory_space<vmem>>, vector<2x64xf32>,
    %52 = vector.extract_strided_slice %15 {offsets = [36, 0], sizes = [2, 64], strides = [1, 1]} : vector<128x64xf32> to vector<2x64xf32>
    %c0_26 = arith.constant 0 : index
    %c1152 = arith.constant 1152 : index
    %53 = vector.load %arg9[%c0_26, %c1152] : memref<2x4096xf32, #tpu.memory_space<vmem>>, vector<2x64xf32>
    tpu.vector_store %arg9[%c0_26, %c1152], %52 {strides = array<i32>} : memref<2x4096xf32, #tpu.memory_space<vmem>>, vector<2x64xf32>,
    %54 = vector.extract_strided_slice %15 {offsets = [38, 0], sizes = [2, 64], strides = [1, 1]} : vector<128x64xf32> to vector<2x64xf32>
    %c0_27 = arith.constant 0 : index
    %c1216 = arith.constant 1216 : index
    %55 = vector.load %arg9[%c0_27, %c1216] : memref<2x4096xf32, #tpu.memory_space<vmem>>, vector<2x64xf32>
    tpu.vector_store %arg9[%c0_27, %c1216], %54 {strides = array<i32>} : memref<2x4096xf32, #tpu.memory_space<vmem>>, vector<2x64xf32>,
    %56 = vector.extract_strided_slice %15 {offsets = [40, 0], sizes = [2, 64], strides = [1, 1]} : vector<128x64xf32> to vector<2x64xf32>
    %c0_28 = arith.constant 0 : index
    %c1280 = arith.constant 1280 : index
    %57 = vector.load %arg9[%c0_28, %c1280] : memref<2x4096xf32, #tpu.memory_space<vmem>>, vector<2x64xf32>
    tpu.vector_store %arg9[%c0_28, %c1280], %56 {strides = array<i32>} : memref<2x4096xf32, #tpu.memory_space<vmem>>, vector<2x64xf32>,
    %58 = vector.extract_strided_slice %15 {offsets = [42, 0], sizes = [2, 64], strides = [1, 1]} : vector<128x64xf32> to vector<2x64xf32>
    %c0_29 = arith.constant 0 : index
    %c1344 = arith.constant 1344 : index
    %59 = vector.load %arg9[%c0_29, %c1344] : memref<2x4096xf32, #tpu.memory_space<vmem>>, vector<2x64xf32>
    tpu.vector_store %arg9[%c0_29, %c1344], %58 {strides = array<i32>} : memref<2x4096xf32, #tpu.memory_space<vmem>>, vector<2x64xf32>,
    %60 = vector.extract_strided_slice %15 {offsets = [44, 0], sizes = [2, 64], strides = [1, 1]} : vector<128x64xf32> to vector<2x64xf32>
    %c0_30 = arith.constant 0 : index
    %c1408 = arith.constant 1408 : index
    %61 = vector.load %arg9[%c0_30, %c1408] : memref<2x4096xf32, #tpu.memory_space<vmem>>, vector<2x64xf32>
    tpu.vector_store %arg9[%c0_30, %c1408], %60 {strides = array<i32>} : memref<2x4096xf32, #tpu.memory_space<vmem>>, vector<2x64xf32>,
    %62 = vector.extract_strided_slice %15 {offsets = [46, 0], sizes = [2, 64], strides = [1, 1]} : vector<128x64xf32> to vector<2x64xf32>
    %c0_31 = arith.constant 0 : index
    %c1472 = arith.constant 1472 : index
    %63 = vector.load %arg9[%c0_31, %c1472] : memref<2x4096xf32, #tpu.memory_space<vmem>>, vector<2x64xf32>
    tpu.vector_store %arg9[%c0_31, %c1472], %62 {strides = array<i32>} : memref<2x4096xf32, #tpu.memory_space<vmem>>, vector<2x64xf32>,
    %64 = vector.extract_strided_slice %15 {offsets = [48, 0], sizes = [2, 64], strides = [1, 1]} : vector<128x64xf32> to vector<2x64xf32>
    %c0_32 = arith.constant 0 : index
    %c1536 = arith.constant 1536 : index
    %65 = vector.load %arg9[%c0_32, %c1536] : memref<2x4096xf32, #tpu.memory_space<vmem>>, vector<2x64xf32>
    tpu.vector_store %arg9[%c0_32, %c1536], %64 {strides = array<i32>} : memref<2x4096xf32, #tpu.memory_space<vmem>>, vector<2x64xf32>,
    %66 = vector.extract_strided_slice %15 {offsets = [50, 0], sizes = [2, 64], strides = [1, 1]} : vector<128x64xf32> to vector<2x64xf32>
    %c0_33 = arith.constant 0 : index
    %c1600 = arith.constant 1600 : index
    %67 = vector.load %arg9[%c0_33, %c1600] : memref<2x4096xf32, #tpu.memory_space<vmem>>, vector<2x64xf32>
    tpu.vector_store %arg9[%c0_33, %c1600], %66 {strides = array<i32>} : memref<2x4096xf32, #tpu.memory_space<vmem>>, vector<2x64xf32>,
    %68 = vector.extract_strided_slice %15 {offsets = [52, 0], sizes = [2, 64], strides = [1, 1]} : vector<128x64xf32> to vector<2x64xf32>
    %c0_34 = arith.constant 0 : index
    %c1664 = arith.constant 1664 : index
    %69 = vector.load %arg9[%c0_34, %c1664] : memref<2x4096xf32, #tpu.memory_space<vmem>>, vector<2x64xf32>
    tpu.vector_store %arg9[%c0_34, %c1664], %68 {strides = array<i32>} : memref<2x4096xf32, #tpu.memory_space<vmem>>, vector<2x64xf32>,
    %70 = vector.extract_strided_slice %15 {offsets = [54, 0], sizes = [2, 64], strides = [1, 1]} : vector<128x64xf32> to vector<2x64xf32>
    %c0_35 = arith.constant 0 : index
    %c1728 = arith.constant 1728 : index
    %71 = vector.load %arg9[%c0_35, %c1728] : memref<2x4096xf32, #tpu.memory_space<vmem>>, vector<2x64xf32>
    tpu.vector_store %arg9[%c0_35, %c1728], %70 {strides = array<i32>} : memref<2x4096xf32, #tpu.memory_space<vmem>>, vector<2x64xf32>,
    %72 = vector.extract_strided_slice %15 {offsets = [56, 0], sizes = [2, 64], strides = [1, 1]} : vector<128x64xf32> to vector<2x64xf32>
    %c0_36 = arith.constant 0 : index
    %c1792 = arith.constant 1792 : index
    %73 = vector.load %arg9[%c0_36, %c1792] : memref<2x4096xf32, #tpu.memory_space<vmem>>, vector<2x64xf32>
    tpu.vector_store %arg9[%c0_36, %c1792], %72 {strides = array<i32>} : memref<2x4096xf32, #tpu.memory_space<vmem>>, vector<2x64xf32>,
    %74 = vector.extract_strided_slice %15 {offsets = [58, 0], sizes = [2, 64], strides = [1, 1]} : vector<128x64xf32> to vector<2x64xf32>
    %c0_37 = arith.constant 0 : index
    %c1856 = arith.constant 1856 : index
    %75 = vector.load %arg9[%c0_37, %c1856] : memref<2x4096xf32, #tpu.memory_space<vmem>>, vector<2x64xf32>
    tpu.vector_store %arg9[%c0_37, %c1856], %74 {strides = array<i32>} : memref<2x4096xf32, #tpu.memory_space<vmem>>, vector<2x64xf32>,
    %76 = vector.extract_strided_slice %15 {offsets = [60, 0], sizes = [2, 64], strides = [1, 1]} : vector<128x64xf32> to vector<2x64xf32>
    %c0_38 = arith.constant 0 : index
    %c1920 = arith.constant 1920 : index
    %77 = vector.load %arg9[%c0_38, %c1920] : memref<2x4096xf32, #tpu.memory_space<vmem>>, vector<2x64xf32>
    tpu.vector_store %arg9[%c0_38, %c1920], %76 {strides = array<i32>} : memref<2x4096xf32, #tpu.memory_space<vmem>>, vector<2x64xf32>,
    %78 = vector.extract_strided_slice %15 {offsets = [62, 0], sizes = [2, 64], strides = [1, 1]} : vector<128x64xf32> to vector<2x64xf32>
    %c0_39 = arith.constant 0 : index
    %c1984 = arith.constant 1984 : index
    %79 = vector.load %arg9[%c0_39, %c1984] : memref<2x4096xf32, #tpu.memory_space<vmem>>, vector<2x64xf32>
    tpu.vector_store %arg9[%c0_39, %c1984], %78 {strides = array<i32>} : memref<2x4096xf32, #tpu.memory_space<vmem>>, vector<2x64xf32>,
    %80 = vector.extract_strided_slice %15 {offsets = [64, 0], sizes = [2, 64], strides = [1, 1]} : vector<128x64xf32> to vector<2x64xf32>
    %c0_40 = arith.constant 0 : index
    %c2048 = arith.constant 2048 : index
    %81 = vector.load %arg9[%c0_40, %c2048] : memref<2x4096xf32, #tpu.memory_space<vmem>>, vector<2x64xf32>
    tpu.vector_store %arg9[%c0_40, %c2048], %80 {strides = array<i32>} : memref<2x4096xf32, #tpu.memory_space<vmem>>, vector<2x64xf32>,
    %82 = vector.extract_strided_slice %15 {offsets = [66, 0], sizes = [2, 64], strides = [1, 1]} : vector<128x64xf32> to vector<2x64xf32>
    %c0_41 = arith.constant 0 : index
    %c2112 = arith.constant 2112 : index
    %83 = vector.load %arg9[%c0_41, %c2112] : memref<2x4096xf32, #tpu.memory_space<vmem>>, vector<2x64xf32>
    tpu.vector_store %arg9[%c0_41, %c2112], %82 {strides = array<i32>} : memref<2x4096xf32, #tpu.memory_space<vmem>>, vector<2x64xf32>,
    %84 = vector.extract_strided_slice %15 {offsets = [68, 0], sizes = [2, 64], strides = [1, 1]} : vector<128x64xf32> to vector<2x64xf32>
    %c0_42 = arith.constant 0 : index
    %c2176 = arith.constant 2176 : index
    %85 = vector.load %arg9[%c0_42, %c2176] : memref<2x4096xf32, #tpu.memory_space<vmem>>, vector<2x64xf32>
    tpu.vector_store %arg9[%c0_42, %c2176], %84 {strides = array<i32>} : memref<2x4096xf32, #tpu.memory_space<vmem>>, vector<2x64xf32>,
    %86 = vector.extract_strided_slice %15 {offsets = [70, 0], sizes = [2, 64], strides = [1, 1]} : vector<128x64xf32> to vector<2x64xf32>
    %c0_43 = arith.constant 0 : index
    %c2240 = arith.constant 2240 : index
    %87 = vector.load %arg9[%c0_43, %c2240] : memref<2x4096xf32, #tpu.memory_space<vmem>>, vector<2x64xf32>
    tpu.vector_store %arg9[%c0_43, %c2240], %86 {strides = array<i32>} : memref<2x4096xf32, #tpu.memory_space<vmem>>, vector<2x64xf32>,
    %88 = vector.extract_strided_slice %15 {offsets = [72, 0], sizes = [2, 64], strides = [1, 1]} : vector<128x64xf32> to vector<2x64xf32>
    %c0_44 = arith.constant 0 : index
    %c2304 = arith.constant 2304 : index
    %89 = vector.load %arg9[%c0_44, %c2304] : memref<2x4096xf32, #tpu.memory_space<vmem>>, vector<2x64xf32>
    tpu.vector_store %arg9[%c0_44, %c2304], %88 {strides = array<i32>} : memref<2x4096xf32, #tpu.memory_space<vmem>>, vector<2x64xf32>,
    %90 = vector.extract_strided_slice %15 {offsets = [74, 0], sizes = [2, 64], strides = [1, 1]} : vector<128x64xf32> to vector<2x64xf32>
    %c0_45 = arith.constant 0 : index
    %c2368 = arith.constant 2368 : index
    %91 = vector.load %arg9[%c0_45, %c2368] : memref<2x4096xf32, #tpu.memory_space<vmem>>, vector<2x64xf32>
    tpu.vector_store %arg9[%c0_45, %c2368], %90 {strides = array<i32>} : memref<2x4096xf32, #tpu.memory_space<vmem>>, vector<2x64xf32>,
    %92 = vector.extract_strided_slice %15 {offsets = [76, 0], sizes = [2, 64], strides = [1, 1]} : vector<128x64xf32> to vector<2x64xf32>
    %c0_46 = arith.constant 0 : index
    %c2432 = arith.constant 2432 : index
    %93 = vector.load %arg9[%c0_46, %c2432] : memref<2x4096xf32, #tpu.memory_space<vmem>>, vector<2x64xf32>
    tpu.vector_store %arg9[%c0_46, %c2432], %92 {strides = array<i32>} : memref<2x4096xf32, #tpu.memory_space<vmem>>, vector<2x64xf32>,
    %94 = vector.extract_strided_slice %15 {offsets = [78, 0], sizes = [2, 64], strides = [1, 1]} : vector<128x64xf32> to vector<2x64xf32>
    %c0_47 = arith.constant 0 : index
    %c2496 = arith.constant 2496 : index
    %95 = vector.load %arg9[%c0_47, %c2496] : memref<2x4096xf32, #tpu.memory_space<vmem>>, vector<2x64xf32>
    tpu.vector_store %arg9[%c0_47, %c2496], %94 {strides = array<i32>} : memref<2x4096xf32, #tpu.memory_space<vmem>>, vector<2x64xf32>,
    %96 = vector.extract_strided_slice %15 {offsets = [80, 0], sizes = [2, 64], strides = [1, 1]} : vector<128x64xf32> to vector<2x64xf32>
    %c0_48 = arith.constant 0 : index
    %c2560 = arith.constant 2560 : index
    %97 = vector.load %arg9[%c0_48, %c2560] : memref<2x4096xf32, #tpu.memory_space<vmem>>, vector<2x64xf32>
    tpu.vector_store %arg9[%c0_48, %c2560], %96 {strides = array<i32>} : memref<2x4096xf32, #tpu.memory_space<vmem>>, vector<2x64xf32>,
    %98 = vector.extract_strided_slice %15 {offsets = [82, 0], sizes = [2, 64], strides = [1, 1]} : vector<128x64xf32> to vector<2x64xf32>
    %c0_49 = arith.constant 0 : index
    %c2624 = arith.constant 2624 : index
    %99 = vector.load %arg9[%c0_49, %c2624] : memref<2x4096xf32, #tpu.memory_space<vmem>>, vector<2x64xf32>
    tpu.vector_store %arg9[%c0_49, %c2624], %98 {strides = array<i32>} : memref<2x4096xf32, #tpu.memory_space<vmem>>, vector<2x64xf32>,
    %100 = vector.extract_strided_slice %15 {offsets = [84, 0], sizes = [2, 64], strides = [1, 1]} : vector<128x64xf32> to vector<2x64xf32>
    %c0_50 = arith.constant 0 : index
    %c2688 = arith.constant 2688 : index
    %101 = vector.load %arg9[%c0_50, %c2688] : memref<2x4096xf32, #tpu.memory_space<vmem>>, vector<2x64xf32>
    tpu.vector_store %arg9[%c0_50, %c2688], %100 {strides = array<i32>} : memref<2x4096xf32, #tpu.memory_space<vmem>>, vector<2x64xf32>,
    %102 = vector.extract_strided_slice %15 {offsets = [86, 0], sizes = [2, 64], strides = [1, 1]} : vector<128x64xf32> to vector<2x64xf32>
    %c0_51 = arith.constant 0 : index
    %c2752 = arith.constant 2752 : index
    %103 = vector.load %arg9[%c0_51, %c2752] : memref<2x4096xf32, #tpu.memory_space<vmem>>, vector<2x64xf32>
    tpu.vector_store %arg9[%c0_51, %c2752], %102 {strides = array<i32>} : memref<2x4096xf32, #tpu.memory_space<vmem>>, vector<2x64xf32>,
    %104 = vector.extract_strided_slice %15 {offsets = [88, 0], sizes = [2, 64], strides = [1, 1]} : vector<128x64xf32> to vector<2x64xf32>
    %c0_52 = arith.constant 0 : index
    %c2816 = arith.constant 2816 : index
    %105 = vector.load %arg9[%c0_52, %c2816] : memref<2x4096xf32, #tpu.memory_space<vmem>>, vector<2x64xf32>
    tpu.vector_store %arg9[%c0_52, %c2816], %104 {strides = array<i32>} : memref<2x4096xf32, #tpu.memory_space<vmem>>, vector<2x64xf32>,
    %106 = vector.extract_strided_slice %15 {offsets = [90, 0], sizes = [2, 64], strides = [1, 1]} : vector<128x64xf32> to vector<2x64xf32>
    %c0_53 = arith.constant 0 : index
    %c2880 = arith.constant 2880 : index
    %107 = vector.load %arg9[%c0_53, %c2880] : memref<2x4096xf32, #tpu.memory_space<vmem>>, vector<2x64xf32>
    tpu.vector_store %arg9[%c0_53, %c2880], %106 {strides = array<i32>} : memref<2x4096xf32, #tpu.memory_space<vmem>>, vector<2x64xf32>,
    %108 = vector.extract_strided_slice %15 {offsets = [92, 0], sizes = [2, 64], strides = [1, 1]} : vector<128x64xf32> to vector<2x64xf32>
    %c0_54 = arith.constant 0 : index
    %c2944 = arith.constant 2944 : index
    %109 = vector.load %arg9[%c0_54, %c2944] : memref<2x4096xf32, #tpu.memory_space<vmem>>, vector<2x64xf32>
    tpu.vector_store %arg9[%c0_54, %c2944], %108 {strides = array<i32>} : memref<2x4096xf32, #tpu.memory_space<vmem>>, vector<2x64xf32>,
    %110 = vector.extract_strided_slice %15 {offsets = [94, 0], sizes = [2, 64], strides = [1, 1]} : vector<128x64xf32> to vector<2x64xf32>
    %c0_55 = arith.constant 0 : index
    %c3008 = arith.constant 3008 : index
    %111 = vector.load %arg9[%c0_55, %c3008] : memref<2x4096xf32, #tpu.memory_space<vmem>>, vector<2x64xf32>
    tpu.vector_store %arg9[%c0_55, %c3008], %110 {strides = array<i32>} : memref<2x4096xf32, #tpu.memory_space<vmem>>, vector<2x64xf32>,
    %112 = vector.extract_strided_slice %15 {offsets = [96, 0], sizes = [2, 64], strides = [1, 1]} : vector<128x64xf32> to vector<2x64xf32>
    %c0_56 = arith.constant 0 : index
    %c3072 = arith.constant 3072 : index
    %113 = vector.load %arg9[%c0_56, %c3072] : memref<2x4096xf32, #tpu.memory_space<vmem>>, vector<2x64xf32>
    tpu.vector_store %arg9[%c0_56, %c3072], %112 {strides = array<i32>} : memref<2x4096xf32, #tpu.memory_space<vmem>>, vector<2x64xf32>,
    %114 = vector.extract_strided_slice %15 {offsets = [98, 0], sizes = [2, 64], strides = [1, 1]} : vector<128x64xf32> to vector<2x64xf32>
    %c0_57 = arith.constant 0 : index
    %c3136 = arith.constant 3136 : index
    %115 = vector.load %arg9[%c0_57, %c3136] : memref<2x4096xf32, #tpu.memory_space<vmem>>, vector<2x64xf32>
    tpu.vector_store %arg9[%c0_57, %c3136], %114 {strides = array<i32>} : memref<2x4096xf32, #tpu.memory_space<vmem>>, vector<2x64xf32>,
    %116 = vector.extract_strided_slice %15 {offsets = [100, 0], sizes = [2, 64], strides = [1, 1]} : vector<128x64xf32> to vector<2x64xf32>
    %c0_58 = arith.constant 0 : index
    %c3200 = arith.constant 3200 : index
    %117 = vector.load %arg9[%c0_58, %c3200] : memref<2x4096xf32, #tpu.memory_space<vmem>>, vector<2x64xf32>
    tpu.vector_store %arg9[%c0_58, %c3200], %116 {strides = array<i32>} : memref<2x4096xf32, #tpu.memory_space<vmem>>, vector<2x64xf32>,
    %118 = vector.extract_strided_slice %15 {offsets = [102, 0], sizes = [2, 64], strides = [1, 1]} : vector<128x64xf32> to vector<2x64xf32>
    %c0_59 = arith.constant 0 : index
    %c3264 = arith.constant 3264 : index
    %119 = vector.load %arg9[%c0_59, %c3264] : memref<2x4096xf32, #tpu.memory_space<vmem>>, vector<2x64xf32>
    tpu.vector_store %arg9[%c0_59, %c3264], %118 {strides = array<i32>} : memref<2x4096xf32, #tpu.memory_space<vmem>>, vector<2x64xf32>,
    %120 = vector.extract_strided_slice %15 {offsets = [104, 0], sizes = [2, 64], strides = [1, 1]} : vector<128x64xf32> to vector<2x64xf32>
    %c0_60 = arith.constant 0 : index
    %c3328 = arith.constant 3328 : index
    %121 = vector.load %arg9[%c0_60, %c3328] : memref<2x4096xf32, #tpu.memory_space<vmem>>, vector<2x64xf32>
    tpu.vector_store %arg9[%c0_60, %c3328], %120 {strides = array<i32>} : memref<2x4096xf32, #tpu.memory_space<vmem>>, vector<2x64xf32>,
    %122 = vector.extract_strided_slice %15 {offsets = [106, 0], sizes = [2, 64], strides = [1, 1]} : vector<128x64xf32> to vector<2x64xf32>
    %c0_61 = arith.constant 0 : index
    %c3392 = arith.constant 3392 : index
    %123 = vector.load %arg9[%c0_61, %c3392] : memref<2x4096xf32, #tpu.memory_space<vmem>>, vector<2x64xf32>
    tpu.vector_store %arg9[%c0_61, %c3392], %122 {strides = array<i32>} : memref<2x4096xf32, #tpu.memory_space<vmem>>, vector<2x64xf32>,
    %124 = vector.extract_strided_slice %15 {offsets = [108, 0], sizes = [2, 64], strides = [1, 1]} : vector<128x64xf32> to vector<2x64xf32>
    %c0_62 = arith.constant 0 : index
    %c3456 = arith.constant 3456 : index
    %125 = vector.load %arg9[%c0_62, %c3456] : memref<2x4096xf32, #tpu.memory_space<vmem>>, vector<2x64xf32>
    tpu.vector_store %arg9[%c0_62, %c3456], %124 {strides = array<i32>} : memref<2x4096xf32, #tpu.memory_space<vmem>>, vector<2x64xf32>,
    %126 = vector.extract_strided_slice %15 {offsets = [110, 0], sizes = [2, 64], strides = [1, 1]} : vector<128x64xf32> to vector<2x64xf32>
    %c0_63 = arith.constant 0 : index
    %c3520 = arith.constant 3520 : index
    %127 = vector.load %arg9[%c0_63, %c3520] : memref<2x4096xf32, #tpu.memory_space<vmem>>, vector<2x64xf32>
    tpu.vector_store %arg9[%c0_63, %c3520], %126 {strides = array<i32>} : memref<2x4096xf32, #tpu.memory_space<vmem>>, vector<2x64xf32>,
    %128 = vector.extract_strided_slice %15 {offsets = [112, 0], sizes = [2, 64], strides = [1, 1]} : vector<128x64xf32> to vector<2x64xf32>
    %c0_64 = arith.constant 0 : index
    %c3584 = arith.constant 3584 : index
    %129 = vector.load %arg9[%c0_64, %c3584] : memref<2x4096xf32, #tpu.memory_space<vmem>>, vector<2x64xf32>
    tpu.vector_store %arg9[%c0_64, %c3584], %128 {strides = array<i32>} : memref<2x4096xf32, #tpu.memory_space<vmem>>, vector<2x64xf32>,
    %130 = vector.extract_strided_slice %15 {offsets = [114, 0], sizes = [2, 64], strides = [1, 1]} : vector<128x64xf32> to vector<2x64xf32>
    %c0_65 = arith.constant 0 : index
    %c3648 = arith.constant 3648 : index
    %131 = vector.load %arg9[%c0_65, %c3648] : memref<2x4096xf32, #tpu.memory_space<vmem>>, vector<2x64xf32>
    tpu.vector_store %arg9[%c0_65, %c3648], %130 {strides = array<i32>} : memref<2x4096xf32, #tpu.memory_space<vmem>>, vector<2x64xf32>,
    %132 = vector.extract_strided_slice %15 {offsets = [116, 0], sizes = [2, 64], strides = [1, 1]} : vector<128x64xf32> to vector<2x64xf32>
    %c0_66 = arith.constant 0 : index
    %c3712 = arith.constant 3712 : index
    %133 = vector.load %arg9[%c0_66, %c3712] : memref<2x4096xf32, #tpu.memory_space<vmem>>, vector<2x64xf32>
    tpu.vector_store %arg9[%c0_66, %c3712], %132 {strides = array<i32>} : memref<2x4096xf32, #tpu.memory_space<vmem>>, vector<2x64xf32>,
    %134 = vector.extract_strided_slice %15 {offsets = [118, 0], sizes = [2, 64], strides = [1, 1]} : vector<128x64xf32> to vector<2x64xf32>
    %c0_67 = arith.constant 0 : index
    %c3776 = arith.constant 3776 : index
    %135 = vector.load %arg9[%c0_67, %c3776] : memref<2x4096xf32, #tpu.memory_space<vmem>>, vector<2x64xf32>
    tpu.vector_store %arg9[%c0_67, %c3776], %134 {strides = array<i32>} : memref<2x4096xf32, #tpu.memory_space<vmem>>, vector<2x64xf32>,
    %136 = vector.extract_strided_slice %15 {offsets = [120, 0], sizes = [2, 64], strides = [1, 1]} : vector<128x64xf32> to vector<2x64xf32>
    %c0_68 = arith.constant 0 : index
    %c3840 = arith.constant 3840 : index
    %137 = vector.load %arg9[%c0_68, %c3840] : memref<2x4096xf32, #tpu.memory_space<vmem>>, vector<2x64xf32>
    tpu.vector_store %arg9[%c0_68, %c3840], %136 {strides = array<i32>} : memref<2x4096xf32, #tpu.memory_space<vmem>>, vector<2x64xf32>,
    %138 = vector.extract_strided_slice %15 {offsets = [122, 0], sizes = [2, 64], strides = [1, 1]} : vector<128x64xf32> to vector<2x64xf32>
    %c0_69 = arith.constant 0 : index
    %c3904 = arith.constant 3904 : index
    %139 = vector.load %arg9[%c0_69, %c3904] : memref<2x4096xf32, #tpu.memory_space<vmem>>, vector<2x64xf32>
    tpu.vector_store %arg9[%c0_69, %c3904], %138 {strides = array<i32>} : memref<2x4096xf32, #tpu.memory_space<vmem>>, vector<2x64xf32>,
    %140 = vector.extract_strided_slice %15 {offsets = [124, 0], sizes = [2, 64], strides = [1, 1]} : vector<128x64xf32> to vector<2x64xf32>
    %c0_70 = arith.constant 0 : index
    %c3968 = arith.constant 3968 : index
    %141 = vector.load %arg9[%c0_70, %c3968] : memref<2x4096xf32, #tpu.memory_space<vmem>>, vector<2x64xf32>
    tpu.vector_store %arg9[%c0_70, %c3968], %140 {strides = array<i32>} : memref<2x4096xf32, #tpu.memory_space<vmem>>, vector<2x64xf32>,
    %142 = vector.extract_strided_slice %15 {offsets = [126, 0], sizes = [2, 64], strides = [1, 1]} : vector<128x64xf32> to vector<2x64xf32>
    %c0_71 = arith.constant 0 : index
    %c4032 = arith.constant 4032 : index
    %143 = vector.load %arg9[%c0_71, %c4032] : memref<2x4096xf32, #tpu.memory_space<vmem>>, vector<2x64xf32>
    tpu.vector_store %arg9[%c0_71, %c4032], %142 {strides = array<i32>} : memref<2x4096xf32, #tpu.memory_space<vmem>>, vector<2x64xf32>,
    %c0_72 = arith.constant 0 : index
    %c0_73 = arith.constant 0 : index
    %144 = vector.load %arg9[%c0_72, %c0_73] : memref<2x4096xf32, #tpu.memory_space<vmem>>, vector<2x4096xf32>
    %145 = arith.truncf %144 : vector<2x4096xf32> to vector<2x4096xbf16>
    %c0_74 = arith.constant 0 : index
    %c0_75 = arith.constant 0 : index
    %146 = vector.load %arg4[%c0_74, %c0_75] : memref<4096x512xbf16, #tpu.memory_space<vmem>>, vector<4096x512xbf16>
    %cst_76 = arith.constant dense<0.000000e+00> : vector<2x512xf32>
    %147 = tpu.matmul %145, %146, %cst_76 {dimension_numbers = #tpu.dot_dimension_numbers<[1], [0], [0], [1], [0, 0, 1, 1], [], []>} : vector<2x4096xbf16>, vector<4096x512xbf16>, vector<2x512xf32> -> vector<2x512xf32>
    %c0_77 = arith.constant 0 : index
    %c0_78 = arith.constant 0 : index
    %148 = vector.load %arg5[%c0_77, %c0_78] : memref<1x512xf32, #tpu.memory_space<vmem>>, vector<1x512xf32>
    %149 = vector.broadcast %148 : vector<1x512xf32> to vector<2x512xf32>
    %150 = arith.addf %147, %149 : vector<2x512xf32>
    %cst_79 = arith.constant 0.000000e+00 : f32
    %151 = vector.broadcast %cst_79 : f32 to vector<2x512xf32>
    %152 = arith.maximumf %150, %151 : vector<2x512xf32>
    %153 = arith.truncf %152 : vector<2x512xf32> to vector<2x512xbf16>
    %c0_80 = arith.constant 0 : index
    %c0_81 = arith.constant 0 : index
    %154 = vector.load %arg6[%c0_80, %c0_81] : memref<512x128xbf16, #tpu.memory_space<vmem>>, vector<512x128xbf16>
    %cst_82 = arith.constant dense<0.000000e+00> : vector<2x128xf32>
    %155 = tpu.matmul %153, %154, %cst_82 {dimension_numbers = #tpu.dot_dimension_numbers<[1], [0], [0], [1], [0, 0, 1, 1], [], []>} : vector<2x512xbf16>, vector<512x128xbf16>, vector<2x128xf32> -> vector<2x128xf32>
    %c0_83 = arith.constant 0 : index
    %c0_84 = arith.constant 0 : index
    %156 = vector.load %arg7[%c0_83, %c0_84] : memref<1x128xf32, #tpu.memory_space<vmem>>, vector<1x128xf32>
    %157 = vector.broadcast %156 : vector<1x128xf32> to vector<2x128xf32>
    %158 = arith.addf %155, %157 : vector<2x128xf32>
    %c0_85 = arith.constant 0 : index
    %c0_86 = arith.constant 0 : index
    %159 = vector.load %arg8[%c0_85, %c0_86] : memref<2x128xf32, #tpu.memory_space<vmem>>, vector<2x128xf32>
    tpu.vector_store %arg8[%c0_85, %c0_86], %158 {strides = array<i32>} : memref<2x128xf32, #tpu.memory_space<vmem>>, vector<2x128xf32>,
    return
  }
  func.func @transform_0(%arg0: i32) -> (i32, i32, i32) {
    %c0_i32 = arith.constant 0 : i32
    %c0_i32_0 = arith.constant 0 : i32
    %c0_i32_1 = arith.constant 0 : i32
    %c0_i32_2 = arith.constant 0 : i32
    return %c0_i32, %c0_i32_0, %c0_i32_1 : i32, i32, i32
  }
  func.func @transform_1(%arg0: i32) -> (i32, i32) {
    %c0_i32 = arith.constant 0 : i32
    %c0_i32_0 = arith.constant 0 : i32
    %c0_i32_1 = arith.constant 0 : i32
    return %c0_i32, %c0_i32_0 : i32, i32
  }
  func.func @transform_2(%arg0: i32) -> (i32, i32) {
    %c0_i32 = arith.constant 0 : i32
    %c0_i32_0 = arith.constant 0 : i32
    %c0_i32_1 = arith.constant 0 : i32
    return %c0_i32, %c0_i32_0 : i32, i32
  }
  func.func @transform_3(%arg0: i32) -> (i32, i32) {
    %c0_i32 = arith.constant 0 : i32
    %c0_i32_0 = arith.constant 0 : i32
    %c0_i32_1 = arith.constant 0 : i32
    return %c0_i32, %c0_i32_0 : i32, i32
  }
  func.func @transform_4(%arg0: i32) -> (i32, i32) {
    %c0_i32 = arith.constant 0 : i32
    %c0_i32_0 = arith.constant 0 : i32
    %c0_i32_1 = arith.constant 0 : i32
    return %c0_i32, %c0_i32_0 : i32, i32
  }
  func.func @transform_5(%arg0: i32) -> (i32, i32) {
    %c0_i32 = arith.constant 0 : i32
    %c0_i32_0 = arith.constant 0 : i32
    %c0_i32_1 = arith.constant 0 : i32
    return %c0_i32, %c0_i32_0 : i32, i32
  }
  func.func @transform_6(%arg0: i32) -> (i32, i32) {
    %c0_i32 = arith.constant 0 : i32
    %c0_i32_0 = arith.constant 0 : i32
    %c0_i32_1 = arith.constant 0 : i32
    return %c0_i32, %c0_i32_0 : i32, i32
  }
  func.func @transform_7(%arg0: i32) -> (i32, i32) {
    %c0_i32 = arith.constant 0 : i32
    %c0_i32_0 = arith.constant 0 : i32
    %c0_i32_1 = arith.constant 0 : i32
    return %c0_i32, %c0_i32_0 : i32, i32
  }
}

</mosaic_0001>

<llo_original>
// kernel: cnn_forward.2
$region0: #{cnn_forward.2}
  #allocation0 [shape = 'u32[]', space=smem, size = 0x4, offset = 0x4, fixed_abs, tag = 'smem constant byte address 0x4 - core index']
  #allocation1 [shape = 'u32[144,128]{1,0:T(1,128)}', space=vmem, size = 0x12000, scoped, tag = 'internal scratch']
  %s0 = inlined_call_operand.vmem [shape: bf16[4,512,27], index: 0, kind: input, shape index: {}]
  %s1 = inlined_call_operand.vmem [shape: bf16[27,128], index: 1, kind: input, shape index: {}]
  %s2 = inlined_call_operand.vmem [shape: f32[1,128], index: 2, kind: input, shape index: {}]
  %s3 = inlined_call_operand.vmem [shape: bf16[512,128], index: 3, kind: output, shape index: {}]
  %s4 = sld [smem:[#allocation0]]
  $region86: #{cnn_forward.2} parent=0
    _
  %s6 = ssub.s32 1, %s4
  %s7 = scalar_select 0, %s6, %s4
  $region1: #{cnn_forward.2} parent=0
    #allocation2 [shape = 'u8[524288]{0}', space=vmem, size = 0x80000, scoped, tag = 'input window, operand 0']
    loop: start=0, step=1, limit=4
    $region2: #{cnn_forward.2} parent=1 // loop_pre_header
      _
    $region3: #{cnn_forward.2} parent=1 // loop_header
      %s9 = sphi 0, %s13
      %p10 = scmp.ge.s32.totalorder %s9, 4
      %s19 = sphi 0, %s21
      %s22 = sphi 0, %s19
      %s23 = sphi 0, %s22
      %s39 = sphi 0, %s23
      %s43 = sphi 0, %s43
      %s45 = sphi 0, %s43
      %s46 = sphi 0, %s45
      %s60 = sphi 0, %s46
      %s64 = sphi 0, %s64
      %s66 = sphi 0, %s64
      %s67 = sphi 0, %s66
      %s81 = sphi 0, %s67
      %s87 = sphi 0, %s89
      %s90 = sphi 0, %s87
      %s91 = sphi 0, %s90
      %s107 = sphi 0, %s91
    $region4: #{cnn_forward.2} parent=1 // loop_header_branch
      %12 = sbr.rel (%p10) target = $region8
    $region5: #{cnn_forward.2} parent=1 // loop_body
      %s14 = ssub.s32 %s9, 1
      %s15 = ssub.s32 %s9, 2
      %s16 = sadd.s32 %s9, 1
      %s17 = ssub.s32 %s9, %s16
      %p18 = scmp.eq.s32.totalorder %s17, 0
      %s20 = sadd.s32 %s19, 1
      %s21 = scalar_select %p18, %s19, %s20
      %p24 = pneg %p18
      %p25 = scmp.eq.s32.totalorder %s9, 1
      %p26 = por %p24, %p25
      %p27 = scmp.ne.s32.totalorder %s19, %s22
      %p28 = scmp.eq.s32.totalorder %s9, 0
      %p29 = por %p27, %p28
      %p30 = scmp.ne.s32.totalorder %s19, %s22
      %p31 = scmp.eq.s32.totalorder %s14, 1
      %p32 = por %p30, %p31
      %p33 = scmp.ne.s32.totalorder %s22, %s23
      %p34 = scmp.eq.s32.totalorder %s14, 0
      %p35 = por %p33, %p34
      %p36 = scmp.ne.s32.totalorder %s22, %s23
      %p37 = scmp.eq.s32.totalorder %s15, 1
      %p38 = por %p36, %p37
      %p40 = scmp.ne.s32.totalorder %s23, %s39
      %p41 = scmp.eq.s32.totalorder %s15, 0
      %p42 = por %p40, %p41
      %s44 = sadd.s32 %s43, 1
      %p47 = scmp.eq.s32.totalorder %s9, 1
      %p48 = scmp.ne.s32.totalorder %s43, %s45
      %p49 = scmp.eq.s32.totalorder %s9, 0
      %p50 = por %p48, %p49
      %p51 = scmp.ne.s32.totalorder %s43, %s45
      %p52 = scmp.eq.s32.totalorder %s14, 1
      %p53 = por %p51, %p52
      %p54 = scmp.ne.s32.totalorder %s45, %s46
      %p55 = scmp.eq.s32.totalorder %s14, 0
      %p56 = por %p54, %p55
      %p57 = scmp.ne.s32.totalorder %s45, %s46
      %p58 = scmp.eq.s32.totalorder %s15, 1
      %p59 = por %p57, %p58
      %p61 = scmp.ne.s32.totalorder %s46, %s60
      %p62 = scmp.eq.s32.totalorder %s15, 0
      %p63 = por %p61, %p62
      %s65 = sadd.s32 %s64, 1
      %p68 = scmp.eq.s32.totalorder %s9, 1
      %p69 = scmp.ne.s32.totalorder %s64, %s66
      %p70 = scmp.eq.s32.totalorder %s9, 0
      %p71 = por %p69, %p70
      %p72 = scmp.ne.s32.totalorder %s64, %s66
      %p73 = scmp.eq.s32.totalorder %s14, 1
      %p74 = por %p72, %p73
      %p75 = scmp.ne.s32.totalorder %s66, %s67
      %p76 = scmp.eq.s32.totalorder %s14, 0
      %p77 = por %p75, %p76
      %p78 = scmp.ne.s32.totalorder %s66, %s67
      %p79 = scmp.eq.s32.totalorder %s15, 1
      %p80 = por %p78, %p79
      %p82 = scmp.ne.s32.totalorder %s67, %s81
      %p83 = scmp.eq.s32.totalorder %s15, 0
      %p84 = por %p82, %p83
      %s85 = ssub.s32 %s9, %s16
      %p86 = scmp.eq.s32.totalorder %s85, 0
      %s88 = sadd.s32 %s87, 1
      %s89 = scalar_select %p86, %s87, %s88
      %p92 = pneg %p86
      %p93 = scmp.eq.s32.totalorder %s9, 1
      %p94 = por %p92, %p93
      %p95 = scmp.ne.s32.totalorder %s87, %s90
      %p96 = scmp.eq.s32.totalorder %s9, 0
      %p97 = por %p95, %p96
      %p98 = scmp.ne.s32.totalorder %s87, %s90
      %p99 = scmp.eq.s32.totalorder %s14, 1
      %p100 = por %p98, %p99
      %p101 = scmp.ne.s32.totalorder %s90, %s91
      %p102 = scmp.eq.s32.totalorder %s14, 0
      %p103 = por %p101, %p102
      %p104 = scmp.ne.s32.totalorder %s90, %s91
      %p105 = scmp.eq.s32.totalorder %s15, 1
      %p106 = por %p104, %p105
      %p108 = scmp.ne.s32.totalorder %s91, %s107
      %p109 = scmp.eq.s32.totalorder %s15, 0
      %p110 = por %p108, %p109
      %p111 = scmp.le.s32.totalorder 1, %s9
      %p112 = scmp.lt.s32.totalorder %s9, 3
      %p113 = pnand %p111, %p112
      %p114 = pneg %p113
      // Predicated region
      $region9: #{cnn_forward.2} parent=5 // pred_check
        _
      $region10: #{cnn_forward.2} parent=5 // pred_check_branch
        %116 = sbr.rel (%p113) target = $region12
      $region11: #{cnn_forward.2} parent=5 // pred_region
        %s117 = ssub.s32 %s9, 1
        // Predicated region
        $region13: #{cnn_forward.2} parent=11 // pred_check
          %p118 = pneg %p56
        $region14: #{cnn_forward.2} parent=11 // pred_check_branch
          %120 = sbr.rel (%p118) target = $region16
        $region15: #{cnn_forward.2} parent=11 // pred_region
          _
        $region16: #{cnn_forward.2} parent=11 // pred_fallthru
          _
        // Predicated region
        $region17: #{cnn_forward.2} parent=11 // pred_check
          %p121 = pneg %p77
        $region18: #{cnn_forward.2} parent=11 // pred_check_branch
          %123 = sbr.rel (%p121) target = $region20
        $region19: #{cnn_forward.2} parent=11 // pred_region
          _
        $region20: #{cnn_forward.2} parent=11 // pred_fallthru
          _
      $region12: #{cnn_forward.2} parent=5 // pred_fallthru
        _
      %p124 = scmp.lt.s32.totalorder %s9, 2
      // Predicated region
      $region21: #{cnn_forward.2} parent=5 // pred_check
        %p125 = pneg %p124
      $region22: #{cnn_forward.2} parent=5 // pred_check_branch
        %127 = sbr.rel (%p125) target = $region24
      $region23: #{cnn_forward.2} parent=5 // pred_region
        // Predicated region
        $region25: #{cnn_forward.2} parent=23 // pred_check
          %p128 = pneg %p29
        $region26: #{cnn_forward.2} parent=23 // pred_check_branch
          %130 = sbr.rel (%p128) target = $region28
        $region27: #{cnn_forward.2} parent=23 // pred_region
          %s131 = sand.u32 %s19, 1
          %s132 = sand.u32 %s19, 1
          %s133 = smul.addr %s132, 512
          %s134 = scalar_lea.vmem [#allocation2], %s133
          %s135 = smul.u32 32, %s9
          %s136 = smul.addr %s135, 4
          %s137 = scalar_lea.vmem %s0, %s136
          // Predicated region
          $region29: #{cnn_forward.2} parent=27 // pred_check
            _
          $region30: #{cnn_forward.2} parent=27 // pred_check_branch
            %139 = sbr.rel (0) target = $region32
          $region31: #{cnn_forward.2} parent=27 // pred_region
            // Predicated region
            $region33: #{cnn_forward.2} parent=31 // pred_check
              _
            $region34: #{cnn_forward.2} parent=31 // pred_check_branch
              %141 = sbr.rel target = $region36
            $region35: #{cnn_forward.2} parent=31 // pred_region
              // Predicated region
              $region48: #{cnn_forward.2} parent=35 // pred_check
                _
              $region49: #{cnn_forward.2} parent=35 // pred_check_branch
                %410 = sbr.rel (0) target = $region51
              $region50: #{cnn_forward.2} parent=35 // pred_region
                loop: start=0, step=1, limit=1
                $region52: #{cnn_forward.2} parent=50 // loop_pre_header
                  _
                $region53: #{cnn_forward.2} parent=50 // loop_header
                  %s412 = sphi 0, %s416
                  %p413 = scmp.ge.s32.totalorder %s412, 1
                  %s417 = sphi %s137, %s137
                  %s418 = sphi %s134, %s134
                $region54: #{cnn_forward.2} parent=50 // loop_header_branch
                  %415 = sbr.rel (%p413) target = $region58
                $region55: #{cnn_forward.2} parent=50 // loop_body
                  _
                $region56: #{cnn_forward.2} parent=50 // loop_footer
                  %s416 = sadd.s32 1, %s412
                $region57: #{cnn_forward.2} parent=50 // loop_footer_branch
                  %411 = sbr.rel target = $region53
                $region58: #{cnn_forward.2} parent=50 // loop_exit
                  _
                loop: start=0, step=1, limit=1
                $region59: #{cnn_forward.2} parent=50 // loop_pre_header
                  _
                $region60: #{cnn_forward.2} parent=50 // loop_header
                  %s421 = sphi 0, %s425
                  %p422 = scmp.ge.s32.totalorder %s421, 1
                  %s426 = sphi %s137, %s137
                  %s427 = sphi %s134, %s134
                $region61: #{cnn_forward.2} parent=50 // loop_header_branch
                  %424 = sbr.rel (%p422) target = $region65
                $region62: #{cnn_forward.2} parent=50 // loop_body
                  %v428 = vld [vmem:[%s426] sm:$0xf]
                  %429 = vst [vmem:[%s427] sm:$0xf] %v428
                  %v430 = vld [vmem:[%s426 + $0x4] sm:$0xf]
                  %431 = vst [vmem:[%s427 + $0x4] sm:$0xf] %v430
                  %v432 = vld [vmem:[%s426 + $0x8] sm:$0xf]
                  %433 = vst [vmem:[%s427 + $0x8] sm:$0xf] %v432
                  %v434 = vld [vmem:[%s426 + $0xc] sm:$0xf]
                  %435 = vst [vmem:[%s427 + $0xc] sm:$0xf] %v434
                  %v436 = vld [vmem:[%s426 + $0x10] sm:$0xf]
                  %437 = vst [vmem:[%s427 + $0x10] sm:$0xf] %v436
                  %v438 = vld [vmem:[%s426 + $0x14] sm:$0xf]
                  %439 = vst [vmem:[%s427 + $0x14] sm:$0xf] %v438
                  %v440 = vld [vmem:[%s426 + $0x18] sm:$0xf]
                  %441 = vst [vmem:[%s427 + $0x18] sm:$0xf] %v440
                  %v442 = vld [vmem:[%s426 + $0x1c] sm:$0xf]
                  %443 = vst [vmem:[%s427 + $0x1c] sm:$0xf] %v442
                  %v444 = vld [vmem:[%s426 + $0x20] sm:$0xf]
                  %445 = vst [vmem:[%s427 + $0x20] sm:$0xf] %v444
                  %v446 = vld [vmem:[%s426 + $0x24] sm:$0xf]
                  %447 = vst [vmem:[%s427 + $0x24] sm:$0xf] %v446
                  %v448 = vld [vmem:[%s426 + $0x28] sm:$0xf]
                  %449 = vst [vmem:[%s427 + $0x28] sm:$0xf] %v448
                  %v450 = vld [vmem:[%s426 + $0x2c] sm:$0xf]
                  %451 = vst [vmem:[%s427 + $0x2c] sm:$0xf] %v450
                  %v452 = vld [vmem:[%s426 + $0x30] sm:$0xf]
                  %453 = vst [vmem:[%s427 + $0x30] sm:$0xf] %v452
                  %v454 = vld [vmem:[%s426 + $0x34] sm:$0xf]
                  %455 = vst [vmem:[%s427 + $0x34] sm:$0xf] %v454
                  %v456 = vld [vmem:[%s426 + $0x38] sm:$0xf]
                  %457 = vst [vmem:[%s427 + $0x38] sm:$0xf] %v456
                  %v458 = vld [vmem:[%s426 + $0x3c] sm:$0xf]
                  %459 = vst [vmem:[%s427 + $0x3c] sm:$0xf] %v458
                  %v460 = vld [vmem:[%s426 + $0x40] sm:$0xf]
                  %461 = vst [vmem:[%s427 + $0x40] sm:$0xf] %v460
                  %v462 = vld [vmem:[%s426 + $0x44] sm:$0xf]
                  %463 = vst [vmem:[%s427 + $0x44] sm:$0xf] %v462
                  %v464 = vld [vmem:[%s426 + $0x48] sm:$0xf]
                  %465 = vst [vmem:[%s427 + $0x48] sm:$0xf] %v464
                  %v466 = vld [vmem:[%s426 + $0x4c] sm:$0xf]
                  %467 = vst [vmem:[%s427 + $0x4c] sm:$0xf] %v466
                  %v468 = vld [vmem:[%s426 + $0x50] sm:$0xf]
                  %469 = vst [vmem:[%s427 + $0x50] sm:$0xf] %v468
                  %v470 = vld [vmem:[%s426 + $0x54] sm:$0xf]
                  %471 = vst [vmem:[%s427 + $0x54] sm:$0xf] %v470
                  %v472 = vld [vmem:[%s426 + $0x58] sm:$0xf]
                  %473 = vst [vmem:[%s427 + $0x58] sm:$0xf] %v472
                  %v474 = vld [vmem:[%s426 + $0x5c] sm:$0xf]
                  %475 = vst [vmem:[%s427 + $0x5c] sm:$0xf] %v474
                  %v476 = vld [vmem:[%s426 + $0x60] sm:$0xf]
                  %477 = vst [vmem:[%s427 + $0x60] sm:$0xf] %v476
                  %v478 = vld [vmem:[%s426 + $0x64] sm:$0xf]
                  %479 = vst [vmem:[%s427 + $0x64] sm:$0xf] %v478
                  %v480 = vld [vmem:[%s426 + $0x68] sm:$0xf]
                  %481 = vst [vmem:[%s427 + $0x68] sm:$0xf] %v480
                  %v482 = vld [vmem:[%s426 + $0x6c] sm:$0xf]
                  %483 = vst [vmem:[%s427 + $0x6c] sm:$0xf] %v482
                  %v484 = vld [vmem:[%s426 + $0x70] sm:$0xf]
                  %485 = vst [vmem:[%s427 + $0x70] sm:$0xf] %v484
                  %v486 = vld [vmem:[%s426 + $0x74] sm:$0xf]
                  %487 = vst [vmem:[%s427 + $0x74] sm:$0xf] %v486
                  %v488 = vld [vmem:[%s426 + $0x78] sm:$0xf]
                  %489 = vst [vmem:[%s427 + $0x78] sm:$0xf] %v488
                  %v490 = vld [vmem:[%s426 + $0x7c] sm:$0xf]
                  %491 = vst [vmem:[%s427 + $0x7c] sm:$0xf] %v490
                  %v492 = vld [vmem:[%s426 + $0x100] sm:$0xf]
                  %493 = vst [vmem:[%s427 + $0x80] sm:$0xf] %v492
                  %v494 = vld [vmem:[%s426 + $0x104] sm:$0xf]
                  %495 = vst [vmem:[%s427 + $0x84] sm:$0xf] %v494
                  %v496 = vld [vmem:[%s426 + $0x108] sm:$0xf]
                  %497 = vst [vmem:[%s427 + $0x88] sm:$0xf] %v496
                  %v498 = vld [vmem:[%s426 + $0x10c] sm:$0xf]
                  %499 = vst [vmem:[%s427 + $0x8c] sm:$0xf] %v498
                  %v500 = vld [vmem:[%s426 + $0x110] sm:$0xf]
                  %501 = vst [vmem:[%s427 + $0x90] sm:$0xf] %v500
                  %v502 = vld [vmem:[%s426 + $0x114] sm:$0xf]
                  %503 = vst [vmem:[%s427 + $0x94] sm:$0xf] %v502
                  %v504 = vld [vmem:[%s426 + $0x118] sm:$0xf]
                  %505 = vst [vmem:[%s427 + $0x98] sm:$0xf] %v504
                  %v506 = vld [vmem:[%s426 + $0x11c] sm:$0xf]
                  %507 = vst [vmem:[%s427 + $0x9c] sm:$0xf] %v506
                  %v508 = vld [vmem:[%s426 + $0x120] sm:$0xf]
                  %509 = vst [vmem:[%s427 + $0xa0] sm:$0xf] %v508
                  %v510 = vld [vmem:[%s426 + $0x124] sm:$0xf]
                  %511 = vst [vmem:[%s427 + $0xa4] sm:$0xf] %v510
                  %v512 = vld [vmem:[%s426 + $0x128] sm:$0xf]
                  %513 = vst [vmem:[%s427 + $0xa8] sm:$0xf] %v512
                  %v514 = vld [vmem:[%s426 + $0x12c] sm:$0xf]
                  %515 = vst [vmem:[%s427 + $0xac] sm:$0xf] %v514
                  %v516 = vld [vmem:[%s426 + $0x130] sm:$0xf]
                  %517 = vst [vmem:[%s427 + $0xb0] sm:$0xf] %v516
                  %v518 = vld [vmem:[%s426 + $0x134] sm:$0xf]
                  %519 = vst [vmem:[%s427 + $0xb4] sm:$0xf] %v518
                  %v520 = vld [vmem:[%s426 + $0x138] sm:$0xf]
                  %521 = vst [vmem:[%s427 + $0xb8] sm:$0xf] %v520
                  %v522 = vld [vmem:[%s426 + $0x13c] sm:$0xf]
                  %523 = vst [vmem:[%s427 + $0xbc] sm:$0xf] %v522
                  %v524 = vld [vmem:[%s426 + $0x140] sm:$0xf]
                  %525 = vst [vmem:[%s427 + $0xc0] sm:$0xf] %v524
                  %v526 = vld [vmem:[%s426 + $0x144] sm:$0xf]
                  %527 = vst [vmem:[%s427 + $0xc4] sm:$0xf] %v526
                  %v528 = vld [vmem:[%s426 + $0x148] sm:$0xf]
                  %529 = vst [vmem:[%s427 + $0xc8] sm:$0xf] %v528
                  %v530 = vld [vmem:[%s426 + $0x14c] sm:$0xf]
                  %531 = vst [vmem:[%s427 + $0xcc] sm:$0xf] %v530
                  %v532 = vld [vmem:[%s426 + $0x150] sm:$0xf]
                  %533 = vst [vmem:[%s427 + $0xd0] sm:$0xf] %v532
                  %v534 = vld [vmem:[%s426 + $0x154] sm:$0xf]
                  %535 = vst [vmem:[%s427 + $0xd4] sm:$0xf] %v534
                  %v536 = vld [vmem:[%s426 + $0x158] sm:$0xf]
                  %537 = vst [vmem:[%s427 + $0xd8] sm:$0xf] %v536
                  %v538 = vld [vmem:[%s426 + $0x15c] sm:$0xf]
                  %539 = vst [vmem:[%s427 + $0xdc] sm:$0xf] %v538
                  %v540 = vld [vmem:[%s426 + $0x160] sm:$0xf]
                  %541 = vst [vmem:[%s427 + $0xe0] sm:$0xf] %v540
                  %v542 = vld [vmem:[%s426 + $0x164] sm:$0xf]
                  %543 = vst [vmem:[%s427 + $0xe4] sm:$0xf] %v542
                  %v544 = vld [vmem:[%s426 + $0x168] sm:$0xf]
                  %545 = vst [vmem:[%s427 + $0xe8] sm:$0xf] %v544
                  %v546 = vld [vmem:[%s426 + $0x16c] sm:$0xf]
                  %547 = vst [vmem:[%s427 + $0xec] sm:$0xf] %v546
                  %v548 = vld [vmem:[%s426 + $0x170] sm:$0xf]
                  %549 = vst [vmem:[%s427 + $0xf0] sm:$0xf] %v548
                  %v550 = vld [vmem:[%s426 + $0x174] sm:$0xf]
                  %551 = vst [vmem:[%s427 + $0xf4] sm:$0xf] %v550
                  %v552 = vld [vmem:[%s426 + $0x178] sm:$0xf]
                  %553 = vst [vmem:[%s427 + $0xf8] sm:$0xf] %v552
                  %v554 = vld [vmem:[%s426 + $0x17c] sm:$0xf]
                  %555 = vst [vmem:[%s427 + $0xfc] sm:$0xf] %v554
                  %v556 = vld [vmem:[%s426 + $0x200] sm:$0xf]
                  %557 = vst [vmem:[%s427 + $0x100] sm:$0xf] %v556
                  %v558 = vld [vmem:[%s426 + $0x204] sm:$0xf]
                  %559 = vst [vmem:[%s427 + $0x104] sm:$0xf] %v558
                  %v560 = vld [vmem:[%s426 + $0x208] sm:$0xf]
                  %561 = vst [vmem:[%s427 + $0x108] sm:$0xf] %v560
                  %v562 = vld [vmem:[%s426 + $0x20c] sm:$0xf]
                  %563 = vst [vmem:[%s427 + $0x10c] sm:$0xf] %v562
                  %v564 = vld [vmem:[%s426 + $0x210] sm:$0xf]
                  %565 = vst [vmem:[%s427 + $0x110] sm:$0xf] %v564
                  %v566 = vld [vmem:[%s426 + $0x214] sm:$0xf]
                  %567 = vst [vmem:[%s427 + $0x114] sm:$0xf] %v566
                  %v568 = vld [vmem:[%s426 + $0x218] sm:$0xf]
                  %569 = vst [vmem:[%s427 + $0x118] sm:$0xf] %v568
                  %v570 = vld [vmem:[%s426 + $0x21c] sm:$0xf]
                  %571 = vst [vmem:[%s427 + $0x11c] sm:$0xf] %v570
                  %v572 = vld [vmem:[%s426 + $0x220] sm:$0xf]
                  %573 = vst [vmem:[%s427 + $0x120] sm:$0xf] %v572
                  %v574 = vld [vmem:[%s426 + $0x224] sm:$0xf]
                  %575 = vst [vmem:[%s427 + $0x124] sm:$0xf] %v574
                  %v576 = vld [vmem:[%s426 + $0x228] sm:$0xf]
                  %577 = vst [vmem:[%s427 + $0x128] sm:$0xf] %v576
                  %v578 = vld [vmem:[%s426 + $0x22c] sm:$0xf]
                  %579 = vst [vmem:[%s427 + $0x12c] sm:$0xf] %v578
                  %v580 = vld [vmem:[%s426 + $0x230] sm:$0xf]
                  %581 = vst [vmem:[%s427 + $0x130] sm:$0xf] %v580
                  %v582 = vld [vmem:[%s426 + $0x234] sm:$0xf]
                  %583 = vst [vmem:[%s427 + $0x134] sm:$0xf] %v582
                  %v584 = vld [vmem:[%s426 + $0x238] sm:$0xf]
                  %585 = vst [vmem:[%s427 + $0x138] sm:$0xf] %v584
                  %v586 = vld [vmem:[%s426 + $0x23c] sm:$0xf]
                  %587 = vst [vmem:[%s427 + $0x13c] sm:$0xf] %v586
                  %v588 = vld [vmem:[%s426 + $0x240] sm:$0xf]
                  %589 = vst [vmem:[%s427 + $0x140] sm:$0xf] %v588
                  %v590 = vld [vmem:[%s426 + $0x244] sm:$0xf]
                  %591 = vst [vmem:[%s427 + $0x144] sm:$0xf] %v590
                  %v592 = vld [vmem:[%s426 + $0x248] sm:$0xf]
                  %593 = vst [vmem:[%s427 + $0x148] sm:$0xf] %v592
                  %v594 = vld [vmem:[%s426 + $0x24c] sm:$0xf]
                  %595 = vst [vmem:[%s427 + $0x14c] sm:$0xf] %v594
                  %v596 = vld [vmem:[%s426 + $0x250] sm:$0xf]
                  %597 = vst [vmem:[%s427 + $0x150] sm:$0xf] %v596
                  %v598 = vld [vmem:[%s426 + $0x254] sm:$0xf]
                  %599 = vst [vmem:[%s427 + $0x154] sm:$0xf] %v598
                  %v600 = vld [vmem:[%s426 + $0x258] sm:$0xf]
                  %601 = vst [vmem:[%s427 + $0x158] sm:$0xf] %v600
                  %v602 = vld [vmem:[%s426 + $0x25c] sm:$0xf]
                  %603 = vst [vmem:[%s427 + $0x15c] sm:$0xf] %v602
                  %v604 = vld [vmem:[%s426 + $0x260] sm:$0xf]
                  %605 = vst [vmem:[%s427 + $0x160] sm:$0xf] %v604
                  %v606 = vld [vmem:[%s426 + $0x264] sm:$0xf]
                  %607 = vst [vmem:[%s427 + $0x164] sm:$0xf] %v606
                  %v608 = vld [vmem:[%s426 + $0x268] sm:$0xf]
                  %609 = vst [vmem:[%s427 + $0x168] sm:$0xf] %v608
                  %v610 = vld [vmem:[%s426 + $0x26c] sm:$0xf]
                  %611 = vst [vmem:[%s427 + $0x16c] sm:$0xf] %v610
                  %v612 = vld [vmem:[%s426 + $0x270] sm:$0xf]
                  %613 = vst [vmem:[%s427 + $0x170] sm:$0xf] %v612
                  %v614 = vld [vmem:[%s426 + $0x274] sm:$0xf]
                  %615 = vst [vmem:[%s427 + $0x174] sm:$0xf] %v614
                  %v616 = vld [vmem:[%s426 + $0x278] sm:$0xf]
                  %617 = vst [vmem:[%s427 + $0x178] sm:$0xf] %v616
                  %v618 = vld [vmem:[%s426 + $0x27c] sm:$0xf]
                  %619 = vst [vmem:[%s427 + $0x17c] sm:$0xf] %v618
                  %v620 = vld [vmem:[%s426 + $0x300] sm:$0xf]
                  %621 = vst [vmem:[%s427 + $0x180] sm:$0xf] %v620
                  %v622 = vld [vmem:[%s426 + $0x304] sm:$0xf]
                  %623 = vst [vmem:[%s427 + $0x184] sm:$0xf] %v622
                  %v624 = vld [vmem:[%s426 + $0x308] sm:$0xf]
                  %625 = vst [vmem:[%s427 + $0x188] sm:$0xf] %v624
                  %v626 = vld [vmem:[%s426 + $0x30c] sm:$0xf]
                  %627 = vst [vmem:[%s427 + $0x18c] sm:$0xf] %v626
                  %v628 = vld [vmem:[%s426 + $0x310] sm:$0xf]
                  %629 = vst [vmem:[%s427 + $0x190] sm:$0xf] %v628
                  %v630 = vld [vmem:[%s426 + $0x314] sm:$0xf]
                  %631 = vst [vmem:[%s427 + $0x194] sm:$0xf] %v630
                  %v632 = vld [vmem:[%s426 + $0x318] sm:$0xf]
                  %633 = vst [vmem:[%s427 + $0x198] sm:$0xf] %v632
                  %v634 = vld [vmem:[%s426 + $0x31c] sm:$0xf]
                  %635 = vst [vmem:[%s427 + $0x19c] sm:$0xf] %v634
                  %v636 = vld [vmem:[%s426 + $0x320] sm:$0xf]
                  %637 = vst [vmem:[%s427 + $0x1a0] sm:$0xf] %v636
                  %v638 = vld [vmem:[%s426 + $0x324] sm:$0xf]
                  %639 = vst [vmem:[%s427 + $0x1a4] sm:$0xf] %v638
                  %v640 = vld [vmem:[%s426 + $0x328] sm:$0xf]
                  %641 = vst [vmem:[%s427 + $0x1a8] sm:$0xf] %v640
                  %v642 = vld [vmem:[%s426 + $0x32c] sm:$0xf]
                  %643 = vst [vmem:[%s427 + $0x1ac] sm:$0xf] %v642
                  %v644 = vld [vmem:[%s426 + $0x330] sm:$0xf]
                  %645 = vst [vmem:[%s427 + $0x1b0] sm:$0xf] %v644
                  %v646 = vld [vmem:[%s426 + $0x334] sm:$0xf]
                  %647 = vst [vmem:[%s427 + $0x1b4] sm:$0xf] %v646
                  %v648 = vld [vmem:[%s426 + $0x338] sm:$0xf]
                  %649 = vst [vmem:[%s427 + $0x1b8] sm:$0xf] %v648
                  %v650 = vld [vmem:[%s426 + $0x33c] sm:$0xf]
                  %651 = vst [vmem:[%s427 + $0x1bc] sm:$0xf] %v650
                  %v652 = vld [vmem:[%s426 + $0x340] sm:$0xf]
                  %653 = vst [vmem:[%s427 + $0x1c0] sm:$0xf] %v652
                  %v654 = vld [vmem:[%s426 + $0x344] sm:$0xf]
                  %655 = vst [vmem:[%s427 + $0x1c4] sm:$0xf] %v654
                  %v656 = vld [vmem:[%s426 + $0x348] sm:$0xf]
                  %657 = vst [vmem:[%s427 + $0x1c8] sm:$0xf] %v656
                  %v658 = vld [vmem:[%s426 + $0x34c] sm:$0xf]
                  %659 = vst [vmem:[%s427 + $0x1cc] sm:$0xf] %v658
                  %v660 = vld [vmem:[%s426 + $0x350] sm:$0xf]
                  %661 = vst [vmem:[%s427 + $0x1d0] sm:$0xf] %v660
                  %v662 = vld [vmem:[%s426 + $0x354] sm:$0xf]
                  %663 = vst [vmem:[%s427 + $0x1d4] sm:$0xf] %v662
                  %v664 = vld [vmem:[%s426 + $0x358] sm:$0xf]
                  %665 = vst [vmem:[%s427 + $0x1d8] sm:$0xf] %v664
                  %v666 = vld [vmem:[%s426 + $0x35c] sm:$0xf]
                  %667 = vst [vmem:[%s427 + $0x1dc] sm:$0xf] %v666
                  %v668 = vld [vmem:[%s426 + $0x360] sm:$0xf]
                  %669 = vst [vmem:[%s427 + $0x1e0] sm:$0xf] %v668
                  %v670 = vld [vmem:[%s426 + $0x364] sm:$0xf]
                  %671 = vst [vmem:[%s427 + $0x1e4] sm:$0xf] %v670
                  %v672 = vld [vmem:[%s426 + $0x368] sm:$0xf]
                  %673 = vst [vmem:[%s427 + $0x1e8] sm:$0xf] %v672
                  %v674 = vld [vmem:[%s426 + $0x36c] sm:$0xf]
                  %675 = vst [vmem:[%s427 + $0x1ec] sm:$0xf] %v674
                  %v676 = vld [vmem:[%s426 + $0x370] sm:$0xf]
                  %677 = vst [vmem:[%s427 + $0x1f0] sm:$0xf] %v676
                  %v678 = vld [vmem:[%s426 + $0x374] sm:$0xf]
                  %679 = vst [vmem:[%s427 + $0x1f4] sm:$0xf] %v678
                  %v680 = vld [vmem:[%s426 + $0x378] sm:$0xf]
                  %681 = vst [vmem:[%s427 + $0x1f8] sm:$0xf] %v680
                  %v682 = vld [vmem:[%s426 + $0x37c] sm:$0xf]
                  %683 = vst [vmem:[%s427 + $0x1fc] sm:$0xf] %v682
                $region63: #{cnn_forward.2} parent=50 // loop_footer
                  %s425 = sadd.s32 1, %s421
                $region64: #{cnn_forward.2} parent=50 // loop_footer_branch
                  %420 = sbr.rel target = $region60
                $region65: #{cnn_forward.2} parent=50 // loop_exit
                  _
              $region51: #{cnn_forward.2} parent=35 // pred_fallthru
                _
            $region36: #{cnn_forward.2} parent=31 // pred_fallthru
              _
            // Predicated region
            $region37: #{cnn_forward.2} parent=31 // pred_check
              _
            $region38: #{cnn_forward.2} parent=31 // pred_check_branch
              %143 = sbr.rel (0) target = $region40
            $region39: #{cnn_forward.2} parent=31 // pred_region
              loop: start=0, step=1, limit=1
              $region41: #{cnn_forward.2} parent=39 // loop_pre_header
                _
              $region42: #{cnn_forward.2} parent=39 // loop_header
                %s146 = sphi 0, %s150
                %p147 = scmp.ge.s32.totalorder %s146, 1
                %s151 = sphi %s137, %s137
                %s152 = sphi %s134, %s134
              $region43: #{cnn_forward.2} parent=39 // loop_header_branch
                %149 = sbr.rel (%p147) target = $region47
              $region44: #{cnn_forward.2} parent=39 // loop_body
                %v153 = vld [vmem:[%s151] sm:$0xf]
                %154 = vst [vmem:[%s152] sm:$0xf] %v153
                %v155 = vld [vmem:[%s151 + $0x4] sm:$0xf]
                %156 = vst [vmem:[%s152 + $0x4] sm:$0xf] %v155
                %v157 = vld [vmem:[%s151 + $0x8] sm:$0xf]
                %158 = vst [vmem:[%s152 + $0x8] sm:$0xf] %v157
                %v159 = vld [vmem:[%s151 + $0xc] sm:$0xf]
                %160 = vst [vmem:[%s152 + $0xc] sm:$0xf] %v159
                %v161 = vld [vmem:[%s151 + $0x10] sm:$0xf]
                %162 = vst [vmem:[%s152 + $0x10] sm:$0xf] %v161
                %v163 = vld [vmem:[%s151 + $0x14] sm:$0xf]
                %164 = vst [vmem:[%s152 + $0x14] sm:$0xf] %v163
                %v165 = vld [vmem:[%s151 + $0x18] sm:$0xf]
                %166 = vst [vmem:[%s152 + $0x18] sm:$0xf] %v165
                %v167 = vld [vmem:[%s151 + $0x1c] sm:$0xf]
                %168 = vst [vmem:[%s152 + $0x1c] sm:$0xf] %v167
                %v169 = vld [vmem:[%s151 + $0x20] sm:$0xf]
                %170 = vst [vmem:[%s152 + $0x20] sm:$0xf] %v169
                %v171 = vld [vmem:[%s151 + $0x24] sm:$0xf]
                %172 = vst [vmem:[%s152 + $0x24] sm:$0xf] %v171
                %v173 = vld [vmem:[%s151 + $0x28] sm:$0xf]
                %174 = vst [vmem:[%s152 + $0x28] sm:$0xf] %v173
                %v175 = vld [vmem:[%s151 + $0x2c] sm:$0xf]
                %176 = vst [vmem:[%s152 + $0x2c] sm:$0xf] %v175
                %v177 = vld [vmem:[%s151 + $0x30] sm:$0xf]
                %178 = vst [vmem:[%s152 + $0x30] sm:$0xf] %v177
                %v179 = vld [vmem:[%s151 + $0x34] sm:$0xf]
                %180 = vst [vmem:[%s152 + $0x34] sm:$0xf] %v179
                %v181 = vld [vmem:[%s151 + $0x38] sm:$0xf]
                %182 = vst [vmem:[%s152 + $0x38] sm:$0xf] %v181
                %v183 = vld [vmem:[%s151 + $0x3c] sm:$0xf]
                %184 = vst [vmem:[%s152 + $0x3c] sm:$0xf] %v183
                %v185 = vld [vmem:[%s151 + $0x40] sm:$0xf]
                %186 = vst [vmem:[%s152 + $0x40] sm:$0xf] %v185
                %v187 = vld [vmem:[%s151 + $0x44] sm:$0xf]
                %188 = vst [vmem:[%s152 + $0x44] sm:$0xf] %v187
                %v189 = vld [vmem:[%s151 + $0x48] sm:$0xf]
                %190 = vst [vmem:[%s152 + $0x48] sm:$0xf] %v189
                %v191 = vld [vmem:[%s151 + $0x4c] sm:$0xf]
                %192 = vst [vmem:[%s152 + $0x4c] sm:$0xf] %v191
                %v193 = vld [vmem:[%s151 + $0x50] sm:$0xf]
                %194 = vst [vmem:[%s152 + $0x50] sm:$0xf] %v193
                %v195 = vld [vmem:[%s151 + $0x54] sm:$0xf]
                %196 = vst [vmem:[%s152 + $0x54] sm:$0xf] %v195
                %v197 = vld [vmem:[%s151 + $0x58] sm:$0xf]
                %198 = vst [vmem:[%s152 + $0x58] sm:$0xf] %v197
                %v199 = vld [vmem:[%s151 + $0x5c] sm:$0xf]
                %200 = vst [vmem:[%s152 + $0x5c] sm:$0xf] %v199
                %v201 = vld [vmem:[%s151 + $0x60] sm:$0xf]
                %202 = vst [vmem:[%s152 + $0x60] sm:$0xf] %v201
                %v203 = vld [vmem:[%s151 + $0x64] sm:$0xf]
                %204 = vst [vmem:[%s152 + $0x64] sm:$0xf] %v203
                %v205 = vld [vmem:[%s151 + $0x68] sm:$0xf]
                %206 = vst [vmem:[%s152 + $0x68] sm:$0xf] %v205
                %v207 = vld [vmem:[%s151 + $0x6c] sm:$0xf]
                %208 = vst [vmem:[%s152 + $0x6c] sm:$0xf] %v207
                %v209 = vld [vmem:[%s151 + $0x70] sm:$0xf]
                %210 = vst [vmem:[%s152 + $0x70] sm:$0xf] %v209
                %v211 = vld [vmem:[%s151 + $0x74] sm:$0xf]
                %212 = vst [vmem:[%s152 + $0x74] sm:$0xf] %v211
                %v213 = vld [vmem:[%s151 + $0x78] sm:$0xf]
                %214 = vst [vmem:[%s152 + $0x78] sm:$0xf] %v213
                %v215 = vld [vmem:[%s151 + $0x7c] sm:$0xf]
                %216 = vst [vmem:[%s152 + $0x7c] sm:$0xf] %v215
                %v217 = vld [vmem:[%s151 + $0x100] sm:$0xf]
                %218 = vst [vmem:[%s152 + $0x80] sm:$0xf] %v217
                %v219 = vld [vmem:[%s151 + $0x104] sm:$0xf]
                %220 = vst [vmem:[%s152 + $0x84] sm:$0xf] %v219
                %v221 = vld [vmem:[%s151 + $0x108] sm:$0xf]
                %222 = vst [vmem:[%s152 + $0x88] sm:$0xf] %v221
                %v223 = vld [vmem:[%s151 + $0x10c] sm:$0xf]
                %224 = vst [vmem:[%s152 + $0x8c] sm:$0xf] %v223
                %v225 = vld [vmem:[%s151 + $0x110] sm:$0xf]
                %226 = vst [vmem:[%s152 + $0x90] sm:$0xf] %v225
                %v227 = vld [vmem:[%s151 + $0x114] sm:$0xf]
                %228 = vst [vmem:[%s152 + $0x94] sm:$0xf] %v227
                %v229 = vld [vmem:[%s151 + $0x118] sm:$0xf]
                %230 = vst [vmem:[%s152 + $0x98] sm:$0xf] %v229
                %v231 = vld [vmem:[%s151 + $0x11c] sm:$0xf]
                %232 = vst [vmem:[%s152 + $0x9c] sm:$0xf] %v231
                %v233 = vld [vmem:[%s151 + $0x120] sm:$0xf]
                %234 = vst [vmem:[%s152 + $0xa0] sm:$0xf] %v233
                %v235 = vld [vmem:[%s151 + $0x124] sm:$0xf]
                %236 = vst [vmem:[%s152 + $0xa4] sm:$0xf] %v235
                %v237 = vld [vmem:[%s151 + $0x128] sm:$0xf]
                %238 = vst [vmem:[%s152 + $0xa8] sm:$0xf] %v237
                %v239 = vld [vmem:[%s151 + $0x12c] sm:$0xf]
                %240 = vst [vmem:[%s152 + $0xac] sm:$0xf] %v239
                %v241 = vld [vmem:[%s151 + $0x130] sm:$0xf]
                %242 = vst [vmem:[%s152 + $0xb0] sm:$0xf] %v241
                %v243 = vld [vmem:[%s151 + $0x134] sm:$0xf]
                %244 = vst [vmem:[%s152 + $0xb4] sm:$0xf] %v243
                %v245 = vld [vmem:[%s151 + $0x138] sm:$0xf]
                %246 = vst [vmem:[%s152 + $0xb8] sm:$0xf] %v245
                %v247 = vld [vmem:[%s151 + $0x13c] sm:$0xf]
                %248 = vst [vmem:[%s152 + $0xbc] sm:$0xf] %v247
                %v249 = vld [vmem:[%s151 + $0x140] sm:$0xf]
                %250 = vst [vmem:[%s152 + $0xc0] sm:$0xf] %v249
                %v251 = vld [vmem:[%s151 + $0x144] sm:$0xf]
                %252 = vst [vmem:[%s152 + $0xc4] sm:$0xf] %v251
                %v253 = vld [vmem:[%s151 + $0x148] sm:$0xf]
                %254 = vst [vmem:[%s152 + $0xc8] sm:$0xf] %v253
                %v255 = vld [vmem:[%s151 + $0x14c] sm:$0xf]
                %256 = vst [vmem:[%s152 + $0xcc] sm:$0xf] %v255
                %v257 = vld [vmem:[%s151 + $0x150] sm:$0xf]
                %258 = vst [vmem:[%s152 + $0xd0] sm:$0xf] %v257
                %v259 = vld [vmem:[%s151 + $0x154] sm:$0xf]
                %260 = vst [vmem:[%s152 + $0xd4] sm:$0xf] %v259
                %v261 = vld [vmem:[%s151 + $0x158] sm:$0xf]
                %262 = vst [vmem:[%s152 + $0xd8] sm:$0xf] %v261
                %v263 = vld [vmem:[%s151 + $0x15c] sm:$0xf]
                %264 = vst [vmem:[%s152 + $0xdc] sm:$0xf] %v263
                %v265 = vld [vmem:[%s151 + $0x160] sm:$0xf]
                %266 = vst [vmem:[%s152 + $0xe0] sm:$0xf] %v265
                %v267 = vld [vmem:[%s151 + $0x164] sm:$0xf]
                %268 = vst [vmem:[%s152 + $0xe4] sm:$0xf] %v267
                %v269 = vld [vmem:[%s151 + $0x168] sm:$0xf]
                %270 = vst [vmem:[%s152 + $0xe8] sm:$0xf] %v269
                %v271 = vld [vmem:[%s151 + $0x16c] sm:$0xf]
                %272 = vst [vmem:[%s152 + $0xec] sm:$0xf] %v271
                %v273 = vld [vmem:[%s151 + $0x170] sm:$0xf]
                %274 = vst [vmem:[%s152 + $0xf0] sm:$0xf] %v273
                %v275 = vld [vmem:[%s151 + $0x174] sm:$0xf]
                %276 = vst [vmem:[%s152 + $0xf4] sm:$0xf] %v275
                %v277 = vld [vmem:[%s151 + $0x178] sm:$0xf]
                %278 = vst [vmem:[%s152 + $0xf8] sm:$0xf] %v277
                %v279 = vld [vmem:[%s151 + $0x17c] sm:$0xf]
                %280 = vst [vmem:[%s152 + $0xfc] sm:$0xf] %v279
                %v281 = vld [vmem:[%s151 + $0x200] sm:$0xf]
                %282 = vst [vmem:[%s152 + $0x100] sm:$0xf] %v281
                %v283 = vld [vmem:[%s151 + $0x204] sm:$0xf]
                %284 = vst [vmem:[%s152 + $0x104] sm:$0xf] %v283
                %v285 = vld [vmem:[%s151 + $0x208] sm:$0xf]
                %286 = vst [vmem:[%s152 + $0x108] sm:$0xf] %v285
                %v287 = vld [vmem:[%s151 + $0x20c] sm:$0xf]
                %288 = vst [vmem:[%s152 + $0x10c] sm:$0xf] %v287
                %v289 = vld [vmem:[%s151 + $0x210] sm:$0xf]
                %290 = vst [vmem:[%s152 + $0x110] sm:$0xf] %v289
                %v291 = vld [vmem:[%s151 + $0x214] sm:$0xf]
                %292 = vst [vmem:[%s152 + $0x114] sm:$0xf] %v291
                %v293 = vld [vmem:[%s151 + $0x218] sm:$0xf]
                %294 = vst [vmem:[%s152 + $0x118] sm:$0xf] %v293
                %v295 = vld [vmem:[%s151 + $0x21c] sm:$0xf]
                %296 = vst [vmem:[%s152 + $0x11c] sm:$0xf] %v295
                %v297 = vld [vmem:[%s151 + $0x220] sm:$0xf]
                %298 = vst [vmem:[%s152 + $0x120] sm:$0xf] %v297
                %v299 = vld [vmem:[%s151 + $0x224] sm:$0xf]
                %300 = vst [vmem:[%s152 + $0x124] sm:$0xf] %v299
                %v301 = vld [vmem:[%s151 + $0x228] sm:$0xf]
                %302 = vst [vmem:[%s152 + $0x128] sm:$0xf] %v301
                %v303 = vld [vmem:[%s151 + $0x22c] sm:$0xf]
                %304 = vst [vmem:[%s152 + $0x12c] sm:$0xf] %v303
                %v305 = vld [vmem:[%s151 + $0x230] sm:$0xf]
                %306 = vst [vmem:[%s152 + $0x130] sm:$0xf] %v305
                %v307 = vld [vmem:[%s151 + $0x234] sm:$0xf]
                %308 = vst [vmem:[%s152 + $0x134] sm:$0xf] %v307
                %v309 = vld [vmem:[%s151 + $0x238] sm:$0xf]
                %310 = vst [vmem:[%s152 + $0x138] sm:$0xf] %v309
                %v311 = vld [vmem:[%s151 + $0x23c] sm:$0xf]
                %312 = vst [vmem:[%s152 + $0x13c] sm:$0xf] %v311
                %v313 = vld [vmem:[%s151 + $0x240] sm:$0xf]
                %314 = vst [vmem:[%s152 + $0x140] sm:$0xf] %v313
                %v315 = vld [vmem:[%s151 + $0x244] sm:$0xf]
                %316 = vst [vmem:[%s152 + $0x144] sm:$0xf] %v315
                %v317 = vld [vmem:[%s151 + $0x248] sm:$0xf]
                %318 = vst [vmem:[%s152 + $0x148] sm:$0xf] %v317
                %v319 = vld [vmem:[%s151 + $0x24c] sm:$0xf]
                %320 = vst [vmem:[%s152 + $0x14c] sm:$0xf] %v319
                %v321 = vld [vmem:[%s151 + $0x250] sm:$0xf]
                %322 = vst [vmem:[%s152 + $0x150] sm:$0xf] %v321
                %v323 = vld [vmem:[%s151 + $0x254] sm:$0xf]
                %324 = vst [vmem:[%s152 + $0x154] sm:$0xf] %v323
                %v325 = vld [vmem:[%s151 + $0x258] sm:$0xf]
                %326 = vst [vmem:[%s152 + $0x158] sm:$0xf] %v325
                %v327 = vld [vmem:[%s151 + $0x25c] sm:$0xf]
                %328 = vst [vmem:[%s152 + $0x15c] sm:$0xf] %v327
                %v329 = vld [vmem:[%s151 + $0x260] sm:$0xf]
                %330 = vst [vmem:[%s152 + $0x160] sm:$0xf] %v329
                %v331 = vld [vmem:[%s151 + $0x264] sm:$0xf]
                %332 = vst [vmem:[%s152 + $0x164] sm:$0xf] %v331
                %v333 = vld [vmem:[%s151 + $0x268] sm:$0xf]
                %334 = vst [vmem:[%s152 + $0x168] sm:$0xf] %v333
                %v335 = vld [vmem:[%s151 + $0x26c] sm:$0xf]
                %336 = vst [vmem:[%s152 + $0x16c] sm:$0xf] %v335
                %v337 = vld [vmem:[%s151 + $0x270] sm:$0xf]
                %338 = vst [vmem:[%s152 + $0x170] sm:$0xf] %v337
                %v339 = vld [vmem:[%s151 + $0x274] sm:$0xf]
                %340 = vst [vmem:[%s152 + $0x174] sm:$0xf] %v339
                %v341 = vld [vmem:[%s151 + $0x278] sm:$0xf]
                %342 = vst [vmem:[%s152 + $0x178] sm:$0xf] %v341
                %v343 = vld [vmem:[%s151 + $0x27c] sm:$0xf]
                %344 = vst [vmem:[%s152 + $0x17c] sm:$0xf] %v343
                %v345 = vld [vmem:[%s151 + $0x300] sm:$0xf]
                %346 = vst [vmem:[%s152 + $0x180] sm:$0xf] %v345
                %v347 = vld [vmem:[%s151 + $0x304] sm:$0xf]
                %348 = vst [vmem:[%s152 + $0x184] sm:$0xf] %v347
                %v349 = vld [vmem:[%s151 + $0x308] sm:$0xf]
                %350 = vst [vmem:[%s152 + $0x188] sm:$0xf] %v349
                %v351 = vld [vmem:[%s151 + $0x30c] sm:$0xf]
                %352 = vst [vmem:[%s152 + $0x18c] sm:$0xf] %v351
                %v353 = vld [vmem:[%s151 + $0x310] sm:$0xf]
                %354 = vst [vmem:[%s152 + $0x190] sm:$0xf] %v353
                %v355 = vld [vmem:[%s151 + $0x314] sm:$0xf]
                %356 = vst [vmem:[%s152 + $0x194] sm:$0xf] %v355
                %v357 = vld [vmem:[%s151 + $0x318] sm:$0xf]
                %358 = vst [vmem:[%s152 + $0x198] sm:$0xf] %v357
                %v359 = vld [vmem:[%s151 + $0x31c] sm:$0xf]
                %360 = vst [vmem:[%s152 + $0x19c] sm:$0xf] %v359
                %v361 = vld [vmem:[%s151 + $0x320] sm:$0xf]
                %362 = vst [vmem:[%s152 + $0x1a0] sm:$0xf] %v361
                %v363 = vld [vmem:[%s151 + $0x324] sm:$0xf]
                %364 = vst [vmem:[%s152 + $0x1a4] sm:$0xf] %v363
                %v365 = vld [vmem:[%s151 + $0x328] sm:$0xf]
                %366 = vst [vmem:[%s152 + $0x1a8] sm:$0xf] %v365
                %v367 = vld [vmem:[%s151 + $0x32c] sm:$0xf]
                %368 = vst [vmem:[%s152 + $0x1ac] sm:$0xf] %v367
                %v369 = vld [vmem:[%s151 + $0x330] sm:$0xf]
                %370 = vst [vmem:[%s152 + $0x1b0] sm:$0xf] %v369
                %v371 = vld [vmem:[%s151 + $0x334] sm:$0xf]
                %372 = vst [vmem:[%s152 + $0x1b4] sm:$0xf] %v371
                %v373 = vld [vmem:[%s151 + $0x338] sm:$0xf]
                %374 = vst [vmem:[%s152 + $0x1b8] sm:$0xf] %v373
                %v375 = vld [vmem:[%s151 + $0x33c] sm:$0xf]
                %376 = vst [vmem:[%s152 + $0x1bc] sm:$0xf] %v375
                %v377 = vld [vmem:[%s151 + $0x340] sm:$0xf]
                %378 = vst [vmem:[%s152 + $0x1c0] sm:$0xf] %v377
                %v379 = vld [vmem:[%s151 + $0x344] sm:$0xf]
                %380 = vst [vmem:[%s152 + $0x1c4] sm:$0xf] %v379
                %v381 = vld [vmem:[%s151 + $0x348] sm:$0xf]
                %382 = vst [vmem:[%s152 + $0x1c8] sm:$0xf] %v381
                %v383 = vld [vmem:[%s151 + $0x34c] sm:$0xf]
                %384 = vst [vmem:[%s152 + $0x1cc] sm:$0xf] %v383
                %v385 = vld [vmem:[%s151 + $0x350] sm:$0xf]
                %386 = vst [vmem:[%s152 + $0x1d0] sm:$0xf] %v385
                %v387 = vld [vmem:[%s151 + $0x354] sm:$0xf]
                %388 = vst [vmem:[%s152 + $0x1d4] sm:$0xf] %v387
                %v389 = vld [vmem:[%s151 + $0x358] sm:$0xf]
                %390 = vst [vmem:[%s152 + $0x1d8] sm:$0xf] %v389
                %v391 = vld [vmem:[%s151 + $0x35c] sm:$0xf]
                %392 = vst [vmem:[%s152 + $0x1dc] sm:$0xf] %v391
                %v393 = vld [vmem:[%s151 + $0x360] sm:$0xf]
                %394 = vst [vmem:[%s152 + $0x1e0] sm:$0xf] %v393
                %v395 = vld [vmem:[%s151 + $0x364] sm:$0xf]
                %396 = vst [vmem:[%s152 + $0x1e4] sm:$0xf] %v395
                %v397 = vld [vmem:[%s151 + $0x368] sm:$0xf]
                %398 = vst [vmem:[%s152 + $0x1e8] sm:$0xf] %v397
                %v399 = vld [vmem:[%s151 + $0x36c] sm:$0xf]
                %400 = vst [vmem:[%s152 + $0x1ec] sm:$0xf] %v399
                %v401 = vld [vmem:[%s151 + $0x370] sm:$0xf]
                %402 = vst [vmem:[%s152 + $0x1f0] sm:$0xf] %v401
                %v403 = vld [vmem:[%s151 + $0x374] sm:$0xf]
                %404 = vst [vmem:[%s152 + $0x1f4] sm:$0xf] %v403
                %v405 = vld [vmem:[%s151 + $0x378] sm:$0xf]
                %406 = vst [vmem:[%s152 + $0x1f8] sm:$0xf] %v405
                %v407 = vld [vmem:[%s151 + $0x37c] sm:$0xf]
                %408 = vst [vmem:[%s152 + $0x1fc] sm:$0xf] %v407
              $region45: #{cnn_forward.2} parent=39 // loop_footer
                %s150 = sadd.s32 1, %s146
              $region46: #{cnn_forward.2} parent=39 // loop_footer_branch
                %145 = sbr.rel target = $region42
              $region47: #{cnn_forward.2} parent=39 // loop_exit
                _
            $region40: #{cnn_forward.2} parent=31 // pred_fallthru
              _
          $region32: #{cnn_forward.2} parent=27 // pred_fallthru
            _
          %684 = vnop
        $region28: #{cnn_forward.2} parent=23 // pred_fallthru
          _
      $region24: #{cnn_forward.2} parent=5 // pred_fallthru
        _
      %p685 = scmp.le.s32.totalorder 1, %s9
      %p686 = scmp.lt.s32.totalorder %s9, 3
      %p687 = pnand %p685, %p686
      %p688 = pneg %p687
      // Predicated region
      $region66: #{cnn_forward.2} parent=5 // pred_check
        _
      $region67: #{cnn_forward.2} parent=5 // pred_check_branch
        %690 = sbr.rel (%p687) target = $region69
      $region68: #{cnn_forward.2} parent=5 // pred_region
        %s691 = ssub.s32 %s9, 1
        %s692 = sand.u32 %s22, 1
        %s693 = sand.u32 %s22, 1
        %s694 = smul.addr %s693, 512
        %s695 = scalar_lea.vmem [#allocation2], %s694
        // Predicated region
        $region70: #{cnn_forward.2} parent=68 // pred_check
          %p696 = pneg %p35
        $region71: #{cnn_forward.2} parent=68 // pred_check_branch
          %698 = sbr.rel (%p696) target = $region73
        $region72: #{cnn_forward.2} parent=68 // pred_region
          _
        $region73: #{cnn_forward.2} parent=68 // pred_fallthru
          _
        %s699 = sand.u32 %s22, 1
        %s700 = sand.u32 %s22, 1
        %s701 = smul.addr %s700, 512
        %s702 = scalar_lea.vmem [#allocation2], %s701
        %p703 = pneg %p35
        %p704 = pneg %p32
        %p705 = pneg %p56
        %p706 = pneg %p53
        %p707 = pneg %p77
        %p708 = pneg %p74
        %p709 = pneg %p103
        %p710 = pneg %p100
        %s711 = smul.u32 32, %s14
        %p712 = scmp.lt.s32.totalorder %s711, 63
        %s713 = scalar_select %p712, %s711, 63
        %s714 = smul.addr %s713, 4
        %s715 = scalar_lea.vmem %s3, %s714
        %s716 = smul.u32 32, %s14
        %s717 = smul.u32 32, %s14
        %p718 = scmp.lt.s32.totalorder %s717, 63
        %s719 = scalar_select %p718, %s717, 63
        %s720 = smul.addr %s719, 4
        %s721 = scalar_lea.vmem %s3, %s720
        %s722 = smul.u32 32, %s14
        %v724 = vld [vmem:[%s695] sm:$0xf]
        %v725 = vld [vmem:[%s695 + $0x4] sm:$0xf]
        %v726 = vld [vmem:[%s695 + $0x8] sm:$0xf]
        %v727 = vld [vmem:[%s695 + $0xc] sm:$0xf]
        %v728 = vld [vmem:[%s695 + $0x10] sm:$0xf]
        %v729 = vld [vmem:[%s695 + $0x14] sm:$0xf]
        %v730 = vld [vmem:[%s695 + $0x18] sm:$0xf]
        %v731 = vld [vmem:[%s695 + $0x1c] sm:$0xf]
        %v732 = vld [vmem:[%s695 + $0x20] sm:$0xf]
        %v733 = vld [vmem:[%s695 + $0x24] sm:$0xf]
        %v734 = vld [vmem:[%s695 + $0x28] sm:$0xf]
        %v735 = vld [vmem:[%s695 + $0x2c] sm:$0xf]
        %v736 = vld [vmem:[%s695 + $0x30] sm:$0xf]
        %v737 = vld [vmem:[%s695 + $0x34] sm:$0xf]
        %v738 = vld [vmem:[%s695 + $0x38] sm:$0xf]
        %v739 = vld [vmem:[%s695 + $0x3c] sm:$0xf]
        %v740 = vld [vmem:[%s695 + $0x40] sm:$0xf]
        %v741 = vld [vmem:[%s695 + $0x44] sm:$0xf]
        %v742 = vld [vmem:[%s695 + $0x48] sm:$0xf]
        %v743 = vld [vmem:[%s695 + $0x4c] sm:$0xf]
        %v744 = vld [vmem:[%s695 + $0x50] sm:$0xf]
        %v745 = vld [vmem:[%s695 + $0x54] sm:$0xf]
        %v746 = vld [vmem:[%s695 + $0x58] sm:$0xf]
        %v747 = vld [vmem:[%s695 + $0x5c] sm:$0xf]
        %v748 = vld [vmem:[%s695 + $0x60] sm:$0xf]
        %v749 = vld [vmem:[%s695 + $0x64] sm:$0xf]
        %v750 = vld [vmem:[%s695 + $0x68] sm:$0xf]
        %v751 = vld [vmem:[%s695 + $0x6c] sm:$0xf]
        %v752 = vld [vmem:[%s695 + $0x70] sm:$0xf]
        %v753 = vld [vmem:[%s695 + $0x74] sm:$0xf]
        %v754 = vld [vmem:[%s695 + $0x78] sm:$0xf]
        %v755 = vld [vmem:[%s695 + $0x7c] sm:$0xf]
        %v756 = vld [vmem:[%s695 + $0x80] sm:$0xf]
        %v757 = vld [vmem:[%s695 + $0x84] sm:$0xf]
        %v758 = vld [vmem:[%s695 + $0x88] sm:$0xf]
        %v759 = vld [vmem:[%s695 + $0x8c] sm:$0xf]
        %v760 = vld [vmem:[%s695 + $0x90] sm:$0xf]
        %v761 = vld [vmem:[%s695 + $0x94] sm:$0xf]
        %v762 = vld [vmem:[%s695 + $0x98] sm:$0xf]
        %v763 = vld [vmem:[%s695 + $0x9c] sm:$0xf]
        %v764 = vld [vmem:[%s695 + $0xa0] sm:$0xf]
        %v765 = vld [vmem:[%s695 + $0xa4] sm:$0xf]
        %v766 = vld [vmem:[%s695 + $0xa8] sm:$0xf]
        %v767 = vld [vmem:[%s695 + $0xac] sm:$0xf]
        %v768 = vld [vmem:[%s695 + $0xb0] sm:$0xf]
        %v769 = vld [vmem:[%s695 + $0xb4] sm:$0xf]
        %v770 = vld [vmem:[%s695 + $0xb8] sm:$0xf]
        %v771 = vld [vmem:[%s695 + $0xbc] sm:$0xf]
        %v772 = vld [vmem:[%s695 + $0xc0] sm:$0xf]
        %v773 = vld [vmem:[%s695 + $0xc4] sm:$0xf]
        %v774 = vld [vmem:[%s695 + $0xc8] sm:$0xf]
        %v775 = vld [vmem:[%s695 + $0xcc] sm:$0xf]
        %v776 = vld [vmem:[%s695 + $0xd0] sm:$0xf]
        %v777 = vld [vmem:[%s695 + $0xd4] sm:$0xf]
        %v778 = vld [vmem:[%s695 + $0xd8] sm:$0xf]
        %v779 = vld [vmem:[%s695 + $0xdc] sm:$0xf]
        %v780 = vld [vmem:[%s695 + $0xe0] sm:$0xf]
        %v781 = vld [vmem:[%s695 + $0xe4] sm:$0xf]
        %v782 = vld [vmem:[%s695 + $0xe8] sm:$0xf]
        %v783 = vld [vmem:[%s695 + $0xec] sm:$0xf]
        %v784 = vld [vmem:[%s695 + $0xf0] sm:$0xf]
        %v785 = vld [vmem:[%s695 + $0xf4] sm:$0xf]
        %v786 = vld [vmem:[%s695 + $0xf8] sm:$0xf]
        %v787 = vld [vmem:[%s695 + $0xfc] sm:$0xf]
        %v788 = vld [vmem:[%s695 + $0x100] sm:$0xf]
        %v789 = vld [vmem:[%s695 + $0x104] sm:$0xf]
        %v790 = vld [vmem:[%s695 + $0x108] sm:$0xf]
        %v791 = vld [vmem:[%s695 + $0x10c] sm:$0xf]
        %v792 = vld [vmem:[%s695 + $0x110] sm:$0xf]
        %v793 = vld [vmem:[%s695 + $0x114] sm:$0xf]
        %v794 = vld [vmem:[%s695 + $0x118] sm:$0xf]
        %v795 = vld [vmem:[%s695 + $0x11c] sm:$0xf]
        %v796 = vld [vmem:[%s695 + $0x120] sm:$0xf]
        %v797 = vld [vmem:[%s695 + $0x124] sm:$0xf]
        %v798 = vld [vmem:[%s695 + $0x128] sm:$0xf]
        %v799 = vld [vmem:[%s695 + $0x12c] sm:$0xf]
        %v800 = vld [vmem:[%s695 + $0x130] sm:$0xf]
        %v801 = vld [vmem:[%s695 + $0x134] sm:$0xf]
        %v802 = vld [vmem:[%s695 + $0x138] sm:$0xf]
        %v803 = vld [vmem:[%s695 + $0x13c] sm:$0xf]
        %v804 = vld [vmem:[%s695 + $0x140] sm:$0xf]
        %v805 = vld [vmem:[%s695 + $0x144] sm:$0xf]
        %v806 = vld [vmem:[%s695 + $0x148] sm:$0xf]
        %v807 = vld [vmem:[%s695 + $0x14c] sm:$0xf]
        %v808 = vld [vmem:[%s695 + $0x150] sm:$0xf]
        %v809 = vld [vmem:[%s695 + $0x154] sm:$0xf]
        %v810 = vld [vmem:[%s695 + $0x158] sm:$0xf]
        %v811 = vld [vmem:[%s695 + $0x15c] sm:$0xf]
        %v812 = vld [vmem:[%s695 + $0x160] sm:$0xf]
        %v813 = vld [vmem:[%s695 + $0x164] sm:$0xf]
        %v814 = vld [vmem:[%s695 + $0x168] sm:$0xf]
        %v815 = vld [vmem:[%s695 + $0x16c] sm:$0xf]
        %v816 = vld [vmem:[%s695 + $0x170] sm:$0xf]
        %v817 = vld [vmem:[%s695 + $0x174] sm:$0xf]
        %v818 = vld [vmem:[%s695 + $0x178] sm:$0xf]
        %v819 = vld [vmem:[%s695 + $0x17c] sm:$0xf]
        %v820 = vld [vmem:[%s695 + $0x180] sm:$0xf]
        %v821 = vld [vmem:[%s695 + $0x184] sm:$0xf]
        %v822 = vld [vmem:[%s695 + $0x188] sm:$0xf]
        %v823 = vld [vmem:[%s695 + $0x18c] sm:$0xf]
        %v824 = vld [vmem:[%s695 + $0x190] sm:$0xf]
        %v825 = vld [vmem:[%s695 + $0x194] sm:$0xf]
        %v826 = vld [vmem:[%s695 + $0x198] sm:$0xf]
        %v827 = vld [vmem:[%s695 + $0x19c] sm:$0xf]
        %v828 = vld [vmem:[%s695 + $0x1a0] sm:$0xf]
        %v829 = vld [vmem:[%s695 + $0x1a4] sm:$0xf]
        %v830 = vld [vmem:[%s695 + $0x1a8] sm:$0xf]
        %v831 = vld [vmem:[%s695 + $0x1ac] sm:$0xf]
        %v832 = vld [vmem:[%s695 + $0x1b0] sm:$0xf]
        %v833 = vld [vmem:[%s695 + $0x1b4] sm:$0xf]
        %v834 = vld [vmem:[%s695 + $0x1b8] sm:$0xf]
        %v835 = vld [vmem:[%s695 + $0x1bc] sm:$0xf]
        %v836 = vld [vmem:[%s695 + $0x1c0] sm:$0xf]
        %v837 = vld [vmem:[%s695 + $0x1c4] sm:$0xf]
        %v838 = vld [vmem:[%s695 + $0x1c8] sm:$0xf]
        %v839 = vld [vmem:[%s695 + $0x1cc] sm:$0xf]
        %v840 = vld [vmem:[%s695 + $0x1d0] sm:$0xf]
        %v841 = vld [vmem:[%s695 + $0x1d4] sm:$0xf]
        %v842 = vld [vmem:[%s695 + $0x1d8] sm:$0xf]
        %v843 = vld [vmem:[%s695 + $0x1dc] sm:$0xf]
        %v844 = vld [vmem:[%s695 + $0x1e0] sm:$0xf]
        %v845 = vld [vmem:[%s695 + $0x1e4] sm:$0xf]
        %v846 = vld [vmem:[%s695 + $0x1e8] sm:$0xf]
        %v847 = vld [vmem:[%s695 + $0x1ec] sm:$0xf]
        %v848 = vld [vmem:[%s695 + $0x1f0] sm:$0xf]
        %v849 = vld [vmem:[%s695 + $0x1f4] sm:$0xf]
        %v850 = vld [vmem:[%s695 + $0x1f8] sm:$0xf]
        %v851 = vld [vmem:[%s695 + $0x1fc] sm:$0xf]
        %v852 = vld [vmem:[%s1] sm:$0xf]
        %v853 = vld [vmem:[%s1 + $0x4] sm:$0xf]
        %v854 = vld [vmem:[%s1 + $0x8] sm:$0xf]
        %v855 = vld [vmem:[%s1 + $0xc] sm:$0x3]
        %v856 = vld [vmem:[%s2] sm:$0x1]
        %v858 = vlaneseq
        %v859 = vshrl.u32 %v858, 7
        %v860 = vsub.s32 0, %v859
        %v861 = vrot.slane %v856, %v860
        %v991 = vunpack.c.l.b16 %v724
        %v992 = vunpack.c.l.b16 %v725
        %v993 = vunpack.c.l.b16 %v726
        %v994 = vunpack.c.l.b16 %v727
        %v995 = vunpack.c.l.b16 %v728
        %v996 = vunpack.c.l.b16 %v729
        %v997 = vunpack.c.l.b16 %v730
        %v998 = vunpack.c.l.b16 %v731
        %v999 = vunpack.c.l.b16 %v732
        %v1000 = vunpack.c.l.b16 %v733
        %v1001 = vunpack.c.l.b16 %v734
        %v1002 = vunpack.c.l.b16 %v735
        %v1003 = vunpack.c.l.b16 %v736
        %v1004 = vunpack.c.l.b16 %v737
        %v1005 = vunpack.c.l.b16 %v738
        %v1006 = vunpack.c.l.b16 %v739
        %v1007 = vunpack.c.l.b16 %v740
        %v1008 = vunpack.c.l.b16 %v741
        %v1009 = vunpack.c.l.b16 %v742
        %v1010 = vunpack.c.l.b16 %v743
        %v1011 = vunpack.c.l.b16 %v744
        %v1012 = vunpack.c.l.b16 %v745
        %v1013 = vunpack.c.l.b16 %v746
        %v1014 = vunpack.c.l.b16 %v747
        %v1015 = vunpack.c.l.b16 %v748
        %v1016 = vunpack.c.l.b16 %v749
        %v1017 = vunpack.c.l.b16 %v750
        %v1018 = vunpack.c.l.b16 %v751
        %v1019 = vunpack.c.l.b16 %v752
        %v1020 = vunpack.c.l.b16 %v753
        %v1021 = vunpack.c.l.b16 %v754
        %v1022 = vunpack.c.l.b16 %v755
        %v1023 = vunpack.c.l.b16 %v756
        %v1024 = vunpack.c.l.b16 %v757
        %v1025 = vunpack.c.l.b16 %v758
        %v1026 = vunpack.c.l.b16 %v759
        %v1027 = vunpack.c.l.b16 %v760
        %v1028 = vunpack.c.l.b16 %v761
        %v1029 = vunpack.c.l.b16 %v762
        %v1030 = vunpack.c.l.b16 %v763
        %v1031 = vunpack.c.l.b16 %v764
        %v1032 = vunpack.c.l.b16 %v765
        %v1033 = vunpack.c.l.b16 %v766
        %v1034 = vunpack.c.l.b16 %v767
        %v1035 = vunpack.c.l.b16 %v768
        %v1036 = vunpack.c.l.b16 %v769
        %v1037 = vunpack.c.l.b16 %v770
        %v1038 = vunpack.c.l.b16 %v771
        %v1039 = vunpack.c.l.b16 %v772
        %v1040 = vunpack.c.l.b16 %v773
        %v1041 = vunpack.c.l.b16 %v774
        %v1042 = vunpack.c.l.b16 %v775
        %v1043 = vunpack.c.l.b16 %v776
        %v1044 = vunpack.c.l.b16 %v777
        %v1045 = vunpack.c.l.b16 %v778
        %v1046 = vunpack.c.l.b16 %v779
        %v1047 = vunpack.c.l.b16 %v780
        %v1048 = vunpack.c.l.b16 %v781
        %v1049 = vunpack.c.l.b16 %v782
        %v1050 = vunpack.c.l.b16 %v783
        %v1051 = vunpack.c.l.b16 %v784
        %v1052 = vunpack.c.l.b16 %v785
        %v1053 = vunpack.c.l.b16 %v786
        %v1054 = vunpack.c.l.b16 %v787
        %v1055 = vunpack.c.l.b16 %v788
        %v1056 = vunpack.c.l.b16 %v789
        %v1057 = vunpack.c.l.b16 %v790
        %v1058 = vunpack.c.l.b16 %v791
        %v1059 = vunpack.c.l.b16 %v792
        %v1060 = vunpack.c.l.b16 %v793
        %v1061 = vunpack.c.l.b16 %v794
        %v1062 = vunpack.c.l.b16 %v795
        %v1063 = vunpack.c.l.b16 %v796
        %v1064 = vunpack.c.l.b16 %v797
        %v1065 = vunpack.c.l.b16 %v798
        %v1066 = vunpack.c.l.b16 %v799
        %v1067 = vunpack.c.l.b16 %v800
        %v1068 = vunpack.c.l.b16 %v801
        %v1069 = vunpack.c.l.b16 %v802
        %v1070 = vunpack.c.l.b16 %v803
        %v1071 = vunpack.c.l.b16 %v804
        %v1072 = vunpack.c.l.b16 %v805
        %v1073 = vunpack.c.l.b16 %v806
        %v1074 = vunpack.c.l.b16 %v807
        %v1075 = vunpack.c.l.b16 %v808
        %v1076 = vunpack.c.l.b16 %v809
        %v1077 = vunpack.c.l.b16 %v810
        %v1078 = vunpack.c.l.b16 %v811
        %v1079 = vunpack.c.l.b16 %v812
        %v1080 = vunpack.c.l.b16 %v813
        %v1081 = vunpack.c.l.b16 %v814
        %v1082 = vunpack.c.l.b16 %v815
        %v1083 = vunpack.c.l.b16 %v816
        %v1084 = vunpack.c.l.b16 %v817
        %v1085 = vunpack.c.l.b16 %v818
        %v1086 = vunpack.c.l.b16 %v819
        %v1087 = vunpack.c.l.b16 %v820
        %v1088 = vunpack.c.l.b16 %v821
        %v1089 = vunpack.c.l.b16 %v822
        %v1090 = vunpack.c.l.b16 %v823
        %v1091 = vunpack.c.l.b16 %v824
        %v1092 = vunpack.c.l.b16 %v825
        %v1093 = vunpack.c.l.b16 %v826
        %v1094 = vunpack.c.l.b16 %v827
        %v1095 = vunpack.c.l.b16 %v828
        %v1096 = vunpack.c.l.b16 %v829
        %v1097 = vunpack.c.l.b16 %v830
        %v1098 = vunpack.c.l.b16 %v831
        %v1099 = vunpack.c.l.b16 %v832
        %v1100 = vunpack.c.l.b16 %v833
        %v1101 = vunpack.c.l.b16 %v834
        %v1102 = vunpack.c.l.b16 %v835
        %v1103 = vunpack.c.l.b16 %v836
        %v1104 = vunpack.c.l.b16 %v837
        %v1105 = vunpack.c.l.b16 %v838
        %v1106 = vunpack.c.l.b16 %v839
        %v1107 = vunpack.c.l.b16 %v840
        %v1108 = vunpack.c.l.b16 %v841
        %v1109 = vunpack.c.l.b16 %v842
        %v1110 = vunpack.c.l.b16 %v843
        %v1111 = vunpack.c.l.b16 %v844
        %v1112 = vunpack.c.l.b16 %v845
        %v1113 = vunpack.c.l.b16 %v846
        %v1114 = vunpack.c.l.b16 %v847
        %v1115 = vunpack.c.l.b16 %v848
        %v1116 = vunpack.c.l.b16 %v849
        %v1117 = vunpack.c.l.b16 %v850
        %v1118 = vunpack.c.l.b16 %v851
        %v1119 = vpack.c.b16 %v992, %v991
        %v1120 = vpack.c.b16 %v994, %v993
        %v1121 = vpack.c.b16 %v996, %v995
        %v1122 = vpack.c.b16 %v998, %v997
        %v1123 = vpack.c.b16 %v1000, %v999
        %v1124 = vpack.c.b16 %v1002, %v1001
        %v1125 = vpack.c.b16 %v1004, %v1003
        %v1126 = vpack.c.b16 %v1006, %v1005
        %v1127 = vpack.c.b16 %v1008, %v1007
        %v1128 = vpack.c.b16 %v1010, %v1009
        %v1129 = vpack.c.b16 %v1012, %v1011
        %v1130 = vpack.c.b16 %v1014, %v1013
        %v1131 = vpack.c.b16 %v1016, %v1015
        %v1132 = vpack.c.b16 %v1018, %v1017
        %v1133 = vpack.c.b16 %v1020, %v1019
        %v1134 = vpack.c.b16 %v1022, %v1021
        %v1135 = vpack.c.b16 %v1024, %v1023
        %v1136 = vpack.c.b16 %v1026, %v1025
        %v1137 = vpack.c.b16 %v1028, %v1027
        %v1138 = vpack.c.b16 %v1030, %v1029
        %v1139 = vpack.c.b16 %v1032, %v1031
        %v1140 = vpack.c.b16 %v1034, %v1033
        %v1141 = vpack.c.b16 %v1036, %v1035
        %v1142 = vpack.c.b16 %v1038, %v1037
        %v1143 = vpack.c.b16 %v1040, %v1039
        %v1144 = vpack.c.b16 %v1042, %v1041
        %v1145 = vpack.c.b16 %v1044, %v1043
        %v1146 = vpack.c.b16 %v1046, %v1045
        %v1147 = vpack.c.b16 %v1048, %v1047
        %v1148 = vpack.c.b16 %v1050, %v1049
        %v1149 = vpack.c.b16 %v1052, %v1051
        %v1150 = vpack.c.b16 %v1054, %v1053
        %v1151 = vpack.c.b16 %v1056, %v1055
        %v1152 = vpack.c.b16 %v1058, %v1057
        %v1153 = vpack.c.b16 %v1060, %v1059
        %v1154 = vpack.c.b16 %v1062, %v1061
        %v1155 = vpack.c.b16 %v1064, %v1063
        %v1156 = vpack.c.b16 %v1066, %v1065
        %v1157 = vpack.c.b16 %v1068, %v1067
        %v1158 = vpack.c.b16 %v1070, %v1069
        %v1159 = vpack.c.b16 %v1072, %v1071
        %v1160 = vpack.c.b16 %v1074, %v1073
        %v1161 = vpack.c.b16 %v1076, %v1075
        %v1162 = vpack.c.b16 %v1078, %v1077
        %v1163 = vpack.c.b16 %v1080, %v1079
        %v1164 = vpack.c.b16 %v1082, %v1081
        %v1165 = vpack.c.b16 %v1084, %v1083
        %v1166 = vpack.c.b16 %v1086, %v1085
        %v1167 = vpack.c.b16 %v1088, %v1087
        %v1168 = vpack.c.b16 %v1090, %v1089
        %v1169 = vpack.c.b16 %v1092, %v1091
        %v1170 = vpack.c.b16 %v1094, %v1093
        %v1171 = vpack.c.b16 %v1096, %v1095
        %v1172 = vpack.c.b16 %v1098, %v1097
        %v1173 = vpack.c.b16 %v1100, %v1099
        %v1174 = vpack.c.b16 %v1102, %v1101
        %v1175 = vpack.c.b16 %v1104, %v1103
        %v1176 = vpack.c.b16 %v1106, %v1105
        %v1177 = vpack.c.b16 %v1108, %v1107
        %v1178 = vpack.c.b16 %v1110, %v1109
        %v1179 = vpack.c.b16 %v1112, %v1111
        %v1180 = vpack.c.b16 %v1114, %v1113
        %v1181 = vpack.c.b16 %v1116, %v1115
        %v1182 = vpack.c.b16 %v1118, %v1117
        %v1187 = vunpack.c.l.b16 %v852
        %v1188 = vunpack.c.l.b16 %v853
        %v1189 = vunpack.c.l.b16 %v854
        %v1190 = vunpack.c.l.b16 %v855
        %v1191 = vpack.c.b16 %v1188, %v1187
        %v1192 = vpack.c.b16 %v1190, %v1189
        %vm1194 = vcmask 220160
        %v1196 = vsel %vm1194, %v1119, 0
        %v1199 = vsel %vm1194, %v1120, 0
        %v1202 = vsel %vm1194, %v1121, 0
        %v1205 = vsel %vm1194, %v1122, 0
        %v1208 = vsel %vm1194, %v1123, 0
        %v1211 = vsel %vm1194, %v1124, 0
        %v1214 = vsel %vm1194, %v1125, 0
        %v1217 = vsel %vm1194, %v1126, 0
        %v1220 = vsel %vm1194, %v1127, 0
        %v1223 = vsel %vm1194, %v1128, 0
        %v1226 = vsel %vm1194, %v1129, 0
        %v1229 = vsel %vm1194, %v1130, 0
        %v1232 = vsel %vm1194, %v1131, 0
        %v1235 = vsel %vm1194, %v1132, 0
        %v1238 = vsel %vm1194, %v1133, 0
        %v1241 = vsel %vm1194, %v1134, 0
        %v1244 = vsel %vm1194, %v1135, 0
        %v1247 = vsel %vm1194, %v1136, 0
        %v1250 = vsel %vm1194, %v1137, 0
        %v1253 = vsel %vm1194, %v1138, 0
        %v1256 = vsel %vm1194, %v1139, 0
        %v1259 = vsel %vm1194, %v1140, 0
        %v1262 = vsel %vm1194, %v1141, 0
        %v1265 = vsel %vm1194, %v1142, 0
        %v1268 = vsel %vm1194, %v1143, 0
        %v1271 = vsel %vm1194, %v1144, 0
        %v1274 = vsel %vm1194, %v1145, 0
        %v1277 = vsel %vm1194, %v1146, 0
        %v1280 = vsel %vm1194, %v1147, 0
        %v1283 = vsel %vm1194, %v1148, 0
        %v1286 = vsel %vm1194, %v1149, 0
        %v1289 = vsel %vm1194, %v1150, 0
        %v1292 = vsel %vm1194, %v1151, 0
        %v1295 = vsel %vm1194, %v1152, 0
        %v1298 = vsel %vm1194, %v1153, 0
        %v1301 = vsel %vm1194, %v1154, 0
        %v1304 = vsel %vm1194, %v1155, 0
        %v1307 = vsel %vm1194, %v1156, 0
        %v1310 = vsel %vm1194, %v1157, 0
        %v1313 = vsel %vm1194, %v1158, 0
        %v1316 = vsel %vm1194, %v1159, 0
        %v1319 = vsel %vm1194, %v1160, 0
        %v1322 = vsel %vm1194, %v1161, 0
        %v1325 = vsel %vm1194, %v1162, 0
        %v1328 = vsel %vm1194, %v1163, 0
        %v1331 = vsel %vm1194, %v1164, 0
        %v1334 = vsel %vm1194, %v1165, 0
        %v1337 = vsel %vm1194, %v1166, 0
        %v1340 = vsel %vm1194, %v1167, 0
        %v1343 = vsel %vm1194, %v1168, 0
        %v1346 = vsel %vm1194, %v1169, 0
        %v1349 = vsel %vm1194, %v1170, 0
        %v1352 = vsel %vm1194, %v1171, 0
        %v1355 = vsel %vm1194, %v1172, 0
        %v1358 = vsel %vm1194, %v1173, 0
        %v1361 = vsel %vm1194, %v1174, 0
        %v1364 = vsel %vm1194, %v1175, 0
        %v1367 = vsel %vm1194, %v1176, 0
        %v1370 = vsel %vm1194, %v1177, 0
        %v1373 = vsel %vm1194, %v1178, 0
        %v1376 = vsel %vm1194, %v1179, 0
        %v1379 = vsel %vm1194, %v1180, 0
        %v1382 = vsel %vm1194, %v1181, 0
        %v1385 = vsel %vm1194, %v1182, 0
        %vm1387 = vcmask 1044480
        %vm1388 = vcmask 1045504
        %v1389 = vsel %vm1387, 4294967295, 65535
        %v1390 = vsel %vm1388, %v1389, 0
        %v1392 = vand.u32 %v1192, %v1390
        %1394 = vmatprep.subr.bf16.mxu0 0
        %1395 = vmatpush1.bf16.msra.mxu0 %v1191
        %1396 = vmatprep.subr.bf16.mxu0 0
        %1397 = vmatpush1.bf16.msra.mxu0 %v1392
        %1398 = vmatprep.subr.bf16.mxu0 0
        %1399 = vmatpush1.bf16.msra.mxu0 0
        %1400 = vmatprep.subr.bf16.mxu0 0
        %1401 = vmatpush1.bf16.msra.mxu0 0
        %1402 = vmatprep.subr.bf16.mxu0 0
        %1403 = vmatpush1.bf16.msra.mxu0 0
        %1404 = vmatprep.subr.bf16.mxu0 0
        %1405 = vmatpush1.bf16.msra.mxu0 0
        %1406 = vmatprep.subr.bf16.mxu0 0
        %1407 = vmatpush1.bf16.msra.mxu0 0
        %1408 = vmatprep.subr.bf16.mxu0 0
        %1409 = vmatpush1.bf16.msra.mxu0 0
        %1410 = vmatprep.subr.bf16.mxu0 0
        %1411 = vmatpush1.bf16.msra.mxu0 0
        %1412 = vmatprep.subr.bf16.mxu0 0
        %1413 = vmatpush1.bf16.msra.mxu0 0
        %1414 = vmatprep.subr.bf16.mxu0 0
        %1415 = vmatpush1.bf16.msra.mxu0 0
        %1416 = vmatprep.subr.bf16.mxu0 0
        %1417 = vmatpush1.bf16.msra.mxu0 0
        %1418 = vmatprep.subr.bf16.mxu0 0
        %1419 = vmatpush1.bf16.msra.mxu0 0
        %1420 = vmatprep.subr.bf16.mxu0 0
        %1421 = vmatpush1.bf16.msra.mxu0 0
        %1422 = vmatprep.subr.bf16.mxu0 0
        %1423 = vmatpush1.bf16.msra.mxu0 0
        %1424 = vmatprep.subr.bf16.mxu0 0
        %1425 = vmatpush1.bf16.msra.mxu0 0
        %1426 = vmatprep.mubr.bf16.mxu0 0
        %1427 = vmatmul.mubr.bf16.gmra.mrb[0].mxu0 %v1196
        %v1428 = vpop.f32.mrb[0].mxu0
        %v1429 = vadd.f32 %v861, %v1428
        %v1430 = vpop.f32.mrb[0].mxu0
        %v1431 = vpop.f32.mrb[0].mxu0
        %v1432 = vadd.f32 %v861, %v1431
        %v1433 = vpop.f32.mrb[0].mxu0
        %1434 = vmatprep.mubr.bf16.mxu0 0
        %1435 = vmatmul.mubr.bf16.gmra.mrb[0].mxu0 %v1199
        %v1436 = vpop.f32.mrb[0].mxu0
        %v1437 = vadd.f32 %v861, %v1436
        %v1438 = vpop.f32.mrb[0].mxu0
        %v1439 = vpop.f32.mrb[0].mxu0
        %v1440 = vadd.f32 %v861, %v1439
        %v1441 = vpop.f32.mrb[0].mxu0
        %1442 = vmatprep.mubr.bf16.mxu0 0
        %1443 = vmatmul.mubr.bf16.gmra.mrb[0].mxu0 %v1202
        %v1444 = vpop.f32.mrb[0].mxu0
        %v1445 = vadd.f32 %v861, %v1444
        %v1446 = vpop.f32.mrb[0].mxu0
        %v1447 = vpop.f32.mrb[0].mxu0
        %v1448 = vadd.f32 %v861, %v1447
        %v1449 = vpop.f32.mrb[0].mxu0
        %1450 = vmatprep.mubr.bf16.mxu0 0
        %1451 = vmatmul.mubr.bf16.gmra.mrb[0].mxu0 %v1205
        %v1452 = vpop.f32.mrb[0].mxu0
        %v1453 = vadd.f32 %v861, %v1452
        %v1454 = vpop.f32.mrb[0].mxu0
        %v1455 = vpop.f32.mrb[0].mxu0
        %v1456 = vadd.f32 %v861, %v1455
        %v1457 = vpop.f32.mrb[0].mxu0
        %1458 = vmatprep.mubr.bf16.mxu0 0
        %1459 = vmatmul.mubr.bf16.gmra.mrb[0].mxu0 %v1208
        %v1460 = vpop.f32.mrb[0].mxu0
        %v1461 = vadd.f32 %v861, %v1460
        %v1462 = vpop.f32.mrb[0].mxu0
        %v1463 = vpop.f32.mrb[0].mxu0
        %v1464 = vadd.f32 %v861, %v1463
        %v1465 = vpop.f32.mrb[0].mxu0
        %1466 = vmatprep.mubr.bf16.mxu0 0
        %1467 = vmatmul.mubr.bf16.gmra.mrb[0].mxu0 %v1211
        %v1468 = vpop.f32.mrb[0].mxu0
        %v1469 = vadd.f32 %v861, %v1468
        %v1470 = vpop.f32.mrb[0].mxu0
        %v1471 = vpop.f32.mrb[0].mxu0
        %v1472 = vadd.f32 %v861, %v1471
        %v1473 = vpop.f32.mrb[0].mxu0
        %1474 = vmatprep.mubr.bf16.mxu0 0
        %1475 = vmatmul.mubr.bf16.gmra.mrb[0].mxu0 %v1214
        %v1476 = vpop.f32.mrb[0].mxu0
        %v1477 = vadd.f32 %v861, %v1476
        %v1478 = vpop.f32.mrb[0].mxu0
        %v1479 = vpop.f32.mrb[0].mxu0
        %v1480 = vadd.f32 %v861, %v1479
        %v1481 = vpop.f32.mrb[0].mxu0
        %1482 = vmatprep.mubr.bf16.mxu0 0
        %1483 = vmatmul.mubr.bf16.gmra.mrb[0].mxu0 %v1217
        %v1484 = vpop.f32.mrb[0].mxu0
        %v1485 = vadd.f32 %v861, %v1484
        %v1486 = vpop.f32.mrb[0].mxu0
        %v1487 = vpop.f32.mrb[0].mxu0
        %v1488 = vadd.f32 %v861, %v1487
        %v1489 = vpop.f32.mrb[0].mxu0
        %1490 = vmatprep.mubr.bf16.mxu0 0
        %1491 = vmatmul.mubr.bf16.gmra.mrb[0].mxu0 %v1220
        %v1492 = vpop.f32.mrb[0].mxu0
        %v1493 = vadd.f32 %v861, %v1492
        %v1494 = vpop.f32.mrb[0].mxu0
        %v1495 = vpop.f32.mrb[0].mxu0
        %v1496 = vadd.f32 %v861, %v1495
        %v1497 = vpop.f32.mrb[0].mxu0
        %1498 = vmatprep.mubr.bf16.mxu0 0
        %1499 = vmatmul.mubr.bf16.gmra.mrb[0].mxu0 %v1223
        %v1500 = vpop.f32.mrb[0].mxu0
        %v1501 = vadd.f32 %v861, %v1500
        %v1502 = vpop.f32.mrb[0].mxu0
        %v1503 = vpop.f32.mrb[0].mxu0
        %v1504 = vadd.f32 %v861, %v1503
        %v1505 = vpop.f32.mrb[0].mxu0
        %1506 = vmatprep.mubr.bf16.mxu0 0
        %1507 = vmatmul.mubr.bf16.gmra.mrb[0].mxu0 %v1226
        %v1508 = vpop.f32.mrb[0].mxu0
        %v1509 = vadd.f32 %v861, %v1508
        %v1510 = vpop.f32.mrb[0].mxu0
        %v1511 = vpop.f32.mrb[0].mxu0
        %v1512 = vadd.f32 %v861, %v1511
        %v1513 = vpop.f32.mrb[0].mxu0
        %1514 = vmatprep.mubr.bf16.mxu0 0
        %1515 = vmatmul.mubr.bf16.gmra.mrb[0].mxu0 %v1229
        %v1516 = vpop.f32.mrb[0].mxu0
        %v1517 = vadd.f32 %v861, %v1516
        %v1518 = vpop.f32.mrb[0].mxu0
        %v1519 = vpop.f32.mrb[0].mxu0
        %v1520 = vadd.f32 %v861, %v1519
        %v1521 = vpop.f32.mrb[0].mxu0
        %1522 = vmatprep.mubr.bf16.mxu0 0
        %1523 = vmatmul.mubr.bf16.gmra.mrb[0].mxu0 %v1232
        %v1524 = vpop.f32.mrb[0].mxu0
        %v1525 = vadd.f32 %v861, %v1524
        %v1526 = vpop.f32.mrb[0].mxu0
        %v1527 = vpop.f32.mrb[0].mxu0
        %v1528 = vadd.f32 %v861, %v1527
        %v1529 = vpop.f32.mrb[0].mxu0
        %1530 = vmatprep.mubr.bf16.mxu0 0
        %1531 = vmatmul.mubr.bf16.gmra.mrb[0].mxu0 %v1235
        %v1532 = vpop.f32.mrb[0].mxu0
        %v1533 = vadd.f32 %v861, %v1532
        %v1534 = vpop.f32.mrb[0].mxu0
        %v1535 = vpop.f32.mrb[0].mxu0
        %v1536 = vadd.f32 %v861, %v1535
        %v1537 = vpop.f32.mrb[0].mxu0
        %1538 = vmatprep.mubr.bf16.mxu0 0
        %1539 = vmatmul.mubr.bf16.gmra.mrb[0].mxu0 %v1238
        %v1540 = vpop.f32.mrb[0].mxu0
        %v1541 = vadd.f32 %v861, %v1540
        %v1542 = vpop.f32.mrb[0].mxu0
        %v1543 = vpop.f32.mrb[0].mxu0
        %v1544 = vadd.f32 %v861, %v1543
        %v1545 = vpop.f32.mrb[0].mxu0
        %1546 = vmatprep.mubr.bf16.mxu0 0
        %1547 = vmatmul.mubr.bf16.gmra.mrb[0].mxu0 %v1241
        %v1548 = vpop.f32.mrb[0].mxu0
        %v1549 = vadd.f32 %v861, %v1548
        %v1550 = vpop.f32.mrb[0].mxu0
        %v1551 = vpop.f32.mrb[0].mxu0
        %v1552 = vadd.f32 %v861, %v1551
        %v1553 = vpop.f32.mrb[0].mxu0
        %1554 = vmatprep.mubr.bf16.mxu0 0
        %1555 = vmatmul.mubr.bf16.gmra.mrb[0].mxu0 %v1244
        %v1556 = vpop.f32.mrb[0].mxu0
        %v1557 = vadd.f32 %v861, %v1556
        %v1558 = vpop.f32.mrb[0].mxu0
        %v1559 = vpop.f32.mrb[0].mxu0
        %v1560 = vadd.f32 %v861, %v1559
        %v1561 = vpop.f32.mrb[0].mxu0
        %1562 = vmatprep.mubr.bf16.mxu0 0
        %1563 = vmatmul.mubr.bf16.gmra.mrb[0].mxu0 %v1247
        %v1564 = vpop.f32.mrb[0].mxu0
        %v1565 = vadd.f32 %v861, %v1564
        %v1566 = vpop.f32.mrb[0].mxu0
        %v1567 = vpop.f32.mrb[0].mxu0
        %v1568 = vadd.f32 %v861, %v1567
        %v1569 = vpop.f32.mrb[0].mxu0
        %1570 = vmatprep.mubr.bf16.mxu0 0
        %1571 = vmatmul.mubr.bf16.gmra.mrb[0].mxu0 %v1250
        %v1572 = vpop.f32.mrb[0].mxu0
        %v1573 = vadd.f32 %v861, %v1572
        %v1574 = vpop.f32.mrb[0].mxu0
        %v1575 = vpop.f32.mrb[0].mxu0
        %v1576 = vadd.f32 %v861, %v1575
        %v1577 = vpop.f32.mrb[0].mxu0
        %1578 = vmatprep.mubr.bf16.mxu0 0
        %1579 = vmatmul.mubr.bf16.gmra.mrb[0].mxu0 %v1253
        %v1580 = vpop.f32.mrb[0].mxu0
        %v1581 = vadd.f32 %v861, %v1580
        %v1582 = vpop.f32.mrb[0].mxu0
        %v1583 = vpop.f32.mrb[0].mxu0
        %v1584 = vadd.f32 %v861, %v1583
        %v1585 = vpop.f32.mrb[0].mxu0
        %1586 = vmatprep.mubr.bf16.mxu0 0
        %1587 = vmatmul.mubr.bf16.gmra.mrb[0].mxu0 %v1256
        %v1588 = vpop.f32.mrb[0].mxu0
        %v1589 = vadd.f32 %v861, %v1588
        %v1590 = vpop.f32.mrb[0].mxu0
        %v1591 = vpop.f32.mrb[0].mxu0
        %v1592 = vadd.f32 %v861, %v1591
        %v1593 = vpop.f32.mrb[0].mxu0
        %1594 = vmatprep.mubr.bf16.mxu0 0
        %1595 = vmatmul.mubr.bf16.gmra.mrb[0].mxu0 %v1259
        %v1596 = vpop.f32.mrb[0].mxu0
        %v1597 = vadd.f32 %v861, %v1596
        %v1598 = vpop.f32.mrb[0].mxu0
        %v1599 = vpop.f32.mrb[0].mxu0
        %v1600 = vadd.f32 %v861, %v1599
        %v1601 = vpop.f32.mrb[0].mxu0
        %1602 = vmatprep.mubr.bf16.mxu0 0
        %1603 = vmatmul.mubr.bf16.gmra.mrb[0].mxu0 %v1262
        %v1604 = vpop.f32.mrb[0].mxu0
        %v1605 = vadd.f32 %v861, %v1604
        %v1606 = vpop.f32.mrb[0].mxu0
        %v1607 = vpop.f32.mrb[0].mxu0
        %v1608 = vadd.f32 %v861, %v1607
        %v1609 = vpop.f32.mrb[0].mxu0
        %1610 = vmatprep.mubr.bf16.mxu0 0
        %1611 = vmatmul.mubr.bf16.gmra.mrb[0].mxu0 %v1265
        %v1612 = vpop.f32.mrb[0].mxu0
        %v1613 = vadd.f32 %v861, %v1612
        %v1614 = vpop.f32.mrb[0].mxu0
        %v1615 = vpop.f32.mrb[0].mxu0
        %v1616 = vadd.f32 %v861, %v1615
        %v1617 = vpop.f32.mrb[0].mxu0
        %1618 = vmatprep.mubr.bf16.mxu0 0
        %1619 = vmatmul.mubr.bf16.gmra.mrb[0].mxu0 %v1268
        %v1620 = vpop.f32.mrb[0].mxu0
        %v1621 = vadd.f32 %v861, %v1620
        %v1622 = vpop.f32.mrb[0].mxu0
        %v1623 = vpop.f32.mrb[0].mxu0
        %v1624 = vadd.f32 %v861, %v1623
        %v1625 = vpop.f32.mrb[0].mxu0
        %1626 = vmatprep.mubr.bf16.mxu0 0
        %1627 = vmatmul.mubr.bf16.gmra.mrb[0].mxu0 %v1271
        %v1628 = vpop.f32.mrb[0].mxu0
        %v1629 = vadd.f32 %v861, %v1628
        %v1630 = vpop.f32.mrb[0].mxu0
        %v1631 = vpop.f32.mrb[0].mxu0
        %v1632 = vadd.f32 %v861, %v1631
        %v1633 = vpop.f32.mrb[0].mxu0
        %1634 = vmatprep.mubr.bf16.mxu0 0
        %1635 = vmatmul.mubr.bf16.gmra.mrb[0].mxu0 %v1274
        %v1636 = vpop.f32.mrb[0].mxu0
        %v1637 = vadd.f32 %v861, %v1636
        %v1638 = vpop.f32.mrb[0].mxu0
        %v1639 = vpop.f32.mrb[0].mxu0
        %v1640 = vadd.f32 %v861, %v1639
        %v1641 = vpop.f32.mrb[0].mxu0
        %1642 = vmatprep.mubr.bf16.mxu0 0
        %1643 = vmatmul.mubr.bf16.gmra.mrb[0].mxu0 %v1277
        %v1644 = vpop.f32.mrb[0].mxu0
        %v1645 = vadd.f32 %v861, %v1644
        %v1646 = vpop.f32.mrb[0].mxu0
        %v1647 = vpop.f32.mrb[0].mxu0
        %v1648 = vadd.f32 %v861, %v1647
        %v1649 = vpop.f32.mrb[0].mxu0
        %1650 = vmatprep.mubr.bf16.mxu0 0
        %1651 = vmatmul.mubr.bf16.gmra.mrb[0].mxu0 %v1280
        %v1652 = vpop.f32.mrb[0].mxu0
        %v1653 = vadd.f32 %v861, %v1652
        %v1654 = vpop.f32.mrb[0].mxu0
        %v1655 = vpop.f32.mrb[0].mxu0
        %v1656 = vadd.f32 %v861, %v1655
        %v1657 = vpop.f32.mrb[0].mxu0
        %1658 = vmatprep.mubr.bf16.mxu0 0
        %1659 = vmatmul.mubr.bf16.gmra.mrb[0].mxu0 %v1283
        %v1660 = vpop.f32.mrb[0].mxu0
        %v1661 = vadd.f32 %v861, %v1660
        %v1662 = vpop.f32.mrb[0].mxu0
        %v1663 = vpop.f32.mrb[0].mxu0
        %v1664 = vadd.f32 %v861, %v1663
        %v1665 = vpop.f32.mrb[0].mxu0
        %1666 = vmatprep.mubr.bf16.mxu0 0
        %1667 = vmatmul.mubr.bf16.gmra.mrb[0].mxu0 %v1286
        %v1668 = vpop.f32.mrb[0].mxu0
        %v1669 = vadd.f32 %v861, %v1668
        %v1670 = vpop.f32.mrb[0].mxu0
        %v1671 = vpop.f32.mrb[0].mxu0
        %v1672 = vadd.f32 %v861, %v1671
        %v1673 = vpop.f32.mrb[0].mxu0
        %1674 = vmatprep.mubr.bf16.mxu0 0
        %1675 = vmatmul.mubr.bf16.gmra.mrb[0].mxu0 %v1289
        %v1676 = vpop.f32.mrb[0].mxu0
        %v1677 = vadd.f32 %v861, %v1676
        %v1678 = vpop.f32.mrb[0].mxu0
        %v1679 = vpop.f32.mrb[0].mxu0
        %v1680 = vadd.f32 %v861, %v1679
        %v1681 = vpop.f32.mrb[0].mxu0
        %1682 = vmatprep.mubr.bf16.mxu0 0
        %1683 = vmatmul.mubr.bf16.gmra.mrb[0].mxu0 %v1292
        %v1684 = vpop.f32.mrb[0].mxu0
        %v1685 = vadd.f32 %v861, %v1684
        %v1686 = vpop.f32.mrb[0].mxu0
        %v1687 = vpop.f32.mrb[0].mxu0
        %v1688 = vadd.f32 %v861, %v1687
        %v1689 = vpop.f32.mrb[0].mxu0
        %1690 = vmatprep.mubr.bf16.mxu0 0
        %1691 = vmatmul.mubr.bf16.gmra.mrb[0].mxu0 %v1295
        %v1692 = vpop.f32.mrb[0].mxu0
        %v1693 = vadd.f32 %v861, %v1692
        %v1694 = vpop.f32.mrb[0].mxu0
        %v1695 = vpop.f32.mrb[0].mxu0
        %v1696 = vadd.f32 %v861, %v1695
        %v1697 = vpop.f32.mrb[0].mxu0
        %1698 = vmatprep.mubr.bf16.mxu0 0
        %1699 = vmatmul.mubr.bf16.gmra.mrb[0].mxu0 %v1298
        %v1700 = vpop.f32.mrb[0].mxu0
        %v1701 = vadd.f32 %v861, %v1700
        %v1702 = vpop.f32.mrb[0].mxu0
        %v1703 = vpop.f32.mrb[0].mxu0
        %v1704 = vadd.f32 %v861, %v1703
        %v1705 = vpop.f32.mrb[0].mxu0
        %1706 = vmatprep.mubr.bf16.mxu0 0
        %1707 = vmatmul.mubr.bf16.gmra.mrb[0].mxu0 %v1301
        %v1708 = vpop.f32.mrb[0].mxu0
        %v1709 = vadd.f32 %v861, %v1708
        %v1710 = vpop.f32.mrb[0].mxu0
        %v1711 = vpop.f32.mrb[0].mxu0
        %v1712 = vadd.f32 %v861, %v1711
        %v1713 = vpop.f32.mrb[0].mxu0
        %1714 = vmatprep.mubr.bf16.mxu0 0
        %1715 = vmatmul.mubr.bf16.gmra.mrb[0].mxu0 %v1304
        %v1716 = vpop.f32.mrb[0].mxu0
        %v1717 = vadd.f32 %v861, %v1716
        %v1718 = vpop.f32.mrb[0].mxu0
        %v1719 = vpop.f32.mrb[0].mxu0
        %v1720 = vadd.f32 %v861, %v1719
        %v1721 = vpop.f32.mrb[0].mxu0
        %1722 = vmatprep.mubr.bf16.mxu0 0
        %1723 = vmatmul.mubr.bf16.gmra.mrb[0].mxu0 %v1307
        %v1724 = vpop.f32.mrb[0].mxu0
        %v1725 = vadd.f32 %v861, %v1724
        %v1726 = vpop.f32.mrb[0].mxu0
        %v1727 = vpop.f32.mrb[0].mxu0
        %v1728 = vadd.f32 %v861, %v1727
        %v1729 = vpop.f32.mrb[0].mxu0
        %1730 = vmatprep.mubr.bf16.mxu0 0
        %1731 = vmatmul.mubr.bf16.gmra.mrb[0].mxu0 %v1310
        %v1732 = vpop.f32.mrb[0].mxu0
        %v1733 = vadd.f32 %v861, %v1732
        %v1734 = vpop.f32.mrb[0].mxu0
        %v1735 = vpop.f32.mrb[0].mxu0
        %v1736 = vadd.f32 %v861, %v1735
        %v1737 = vpop.f32.mrb[0].mxu0
        %1738 = vmatprep.mubr.bf16.mxu0 0
        %1739 = vmatmul.mubr.bf16.gmra.mrb[0].mxu0 %v1313
        %v1740 = vpop.f32.mrb[0].mxu0
        %v1741 = vadd.f32 %v861, %v1740
        %v1742 = vpop.f32.mrb[0].mxu0
        %v1743 = vpop.f32.mrb[0].mxu0
        %v1744 = vadd.f32 %v861, %v1743
        %v1745 = vpop.f32.mrb[0].mxu0
        %1746 = vmatprep.mubr.bf16.mxu0 0
        %1747 = vmatmul.mubr.bf16.gmra.mrb[0].mxu0 %v1316
        %v1748 = vpop.f32.mrb[0].mxu0
        %v1749 = vadd.f32 %v861, %v1748
        %v1750 = vpop.f32.mrb[0].mxu0
        %v1751 = vpop.f32.mrb[0].mxu0
        %v1752 = vadd.f32 %v861, %v1751
        %v1753 = vpop.f32.mrb[0].mxu0
        %1754 = vmatprep.mubr.bf16.mxu0 0
        %1755 = vmatmul.mubr.bf16.gmra.mrb[0].mxu0 %v1319
        %v1756 = vpop.f32.mrb[0].mxu0
        %v1757 = vadd.f32 %v861, %v1756
        %v1758 = vpop.f32.mrb[0].mxu0
        %v1759 = vpop.f32.mrb[0].mxu0
        %v1760 = vadd.f32 %v861, %v1759
        %v1761 = vpop.f32.mrb[0].mxu0
        %1762 = vmatprep.mubr.bf16.mxu0 0
        %1763 = vmatmul.mubr.bf16.gmra.mrb[0].mxu0 %v1322
        %v1764 = vpop.f32.mrb[0].mxu0
        %v1765 = vadd.f32 %v861, %v1764
        %v1766 = vpop.f32.mrb[0].mxu0
        %v1767 = vpop.f32.mrb[0].mxu0
        %v1768 = vadd.f32 %v861, %v1767
        %v1769 = vpop.f32.mrb[0].mxu0
        %1770 = vmatprep.mubr.bf16.mxu0 0
        %1771 = vmatmul.mubr.bf16.gmra.mrb[0].mxu0 %v1325
        %v1772 = vpop.f32.mrb[0].mxu0
        %v1773 = vadd.f32 %v861, %v1772
        %v1774 = vpop.f32.mrb[0].mxu0
        %v1775 = vpop.f32.mrb[0].mxu0
        %v1776 = vadd.f32 %v861, %v1775
        %v1777 = vpop.f32.mrb[0].mxu0
        %1778 = vmatprep.mubr.bf16.mxu0 0
        %1779 = vmatmul.mubr.bf16.gmra.mrb[0].mxu0 %v1328
        %v1780 = vpop.f32.mrb[0].mxu0
        %v1781 = vadd.f32 %v861, %v1780
        %v1782 = vpop.f32.mrb[0].mxu0
        %v1783 = vpop.f32.mrb[0].mxu0
        %v1784 = vadd.f32 %v861, %v1783
        %v1785 = vpop.f32.mrb[0].mxu0
        %1786 = vmatprep.mubr.bf16.mxu0 0
        %1787 = vmatmul.mubr.bf16.gmra.mrb[0].mxu0 %v1331
        %v1788 = vpop.f32.mrb[0].mxu0
        %v1789 = vadd.f32 %v861, %v1788
        %v1790 = vpop.f32.mrb[0].mxu0
        %v1791 = vpop.f32.mrb[0].mxu0
        %v1792 = vadd.f32 %v861, %v1791
        %v1793 = vpop.f32.mrb[0].mxu0
        %1794 = vmatprep.mubr.bf16.mxu0 0
        %1795 = vmatmul.mubr.bf16.gmra.mrb[0].mxu0 %v1334
        %v1796 = vpop.f32.mrb[0].mxu0
        %v1797 = vadd.f32 %v861, %v1796
        %v1798 = vpop.f32.mrb[0].mxu0
        %v1799 = vpop.f32.mrb[0].mxu0
        %v1800 = vadd.f32 %v861, %v1799
        %v1801 = vpop.f32.mrb[0].mxu0
        %1802 = vmatprep.mubr.bf16.mxu0 0
        %1803 = vmatmul.mubr.bf16.gmra.mrb[0].mxu0 %v1337
        %v1804 = vpop.f32.mrb[0].mxu0
        %v1805 = vadd.f32 %v861, %v1804
        %v1806 = vpop.f32.mrb[0].mxu0
        %v1807 = vpop.f32.mrb[0].mxu0
        %v1808 = vadd.f32 %v861, %v1807
        %v1809 = vpop.f32.mrb[0].mxu0
        %1810 = vmatprep.mubr.bf16.mxu0 0
        %1811 = vmatmul.mubr.bf16.gmra.mrb[0].mxu0 %v1340
        %v1812 = vpop.f32.mrb[0].mxu0
        %v1813 = vadd.f32 %v861, %v1812
        %v1814 = vpop.f32.mrb[0].mxu0
        %v1815 = vpop.f32.mrb[0].mxu0
        %v1816 = vadd.f32 %v861, %v1815
        %v1817 = vpop.f32.mrb[0].mxu0
        %1818 = vmatprep.mubr.bf16.mxu0 0
        %1819 = vmatmul.mubr.bf16.gmra.mrb[0].mxu0 %v1343
        %v1820 = vpop.f32.mrb[0].mxu0
        %v1821 = vadd.f32 %v861, %v1820
        %v1822 = vpop.f32.mrb[0].mxu0
        %v1823 = vpop.f32.mrb[0].mxu0
        %v1824 = vadd.f32 %v861, %v1823
        %v1825 = vpop.f32.mrb[0].mxu0
        %1826 = vmatprep.mubr.bf16.mxu0 0
        %1827 = vmatmul.mubr.bf16.gmra.mrb[0].mxu0 %v1346
        %v1828 = vpop.f32.mrb[0].mxu0
        %v1829 = vadd.f32 %v861, %v1828
        %v1830 = vpop.f32.mrb[0].mxu0
        %v1831 = vpop.f32.mrb[0].mxu0
        %v1832 = vadd.f32 %v861, %v1831
        %v1833 = vpop.f32.mrb[0].mxu0
        %1834 = vmatprep.mubr.bf16.mxu0 0
        %1835 = vmatmul.mubr.bf16.gmra.mrb[0].mxu0 %v1349
        %v1836 = vpop.f32.mrb[0].mxu0
        %v1837 = vadd.f32 %v861, %v1836
        %v1838 = vpop.f32.mrb[0].mxu0
        %v1839 = vpop.f32.mrb[0].mxu0
        %v1840 = vadd.f32 %v861, %v1839
        %v1841 = vpop.f32.mrb[0].mxu0
        %1842 = vmatprep.mubr.bf16.mxu0 0
        %1843 = vmatmul.mubr.bf16.gmra.mrb[0].mxu0 %v1352
        %v1844 = vpop.f32.mrb[0].mxu0
        %v1845 = vadd.f32 %v861, %v1844
        %v1846 = vpop.f32.mrb[0].mxu0
        %v1847 = vpop.f32.mrb[0].mxu0
        %v1848 = vadd.f32 %v861, %v1847
        %v1849 = vpop.f32.mrb[0].mxu0
        %1850 = vmatprep.mubr.bf16.mxu0 0
        %1851 = vmatmul.mubr.bf16.gmra.mrb[0].mxu0 %v1355
        %v1852 = vpop.f32.mrb[0].mxu0
        %v1853 = vadd.f32 %v861, %v1852
        %v1854 = vpop.f32.mrb[0].mxu0
        %v1855 = vpop.f32.mrb[0].mxu0
        %v1856 = vadd.f32 %v861, %v1855
        %v1857 = vpop.f32.mrb[0].mxu0
        %1858 = vmatprep.mubr.bf16.mxu0 0
        %1859 = vmatmul.mubr.bf16.gmra.mrb[0].mxu0 %v1358
        %v1860 = vpop.f32.mrb[0].mxu0
        %v1861 = vadd.f32 %v861, %v1860
        %v1862 = vpop.f32.mrb[0].mxu0
        %v1863 = vpop.f32.mrb[0].mxu0
        %v1864 = vadd.f32 %v861, %v1863
        %v1865 = vpop.f32.mrb[0].mxu0
        %1866 = vmatprep.mubr.bf16.mxu0 0
        %1867 = vmatmul.mubr.bf16.gmra.mrb[0].mxu0 %v1361
        %v1868 = vpop.f32.mrb[0].mxu0
        %v1869 = vadd.f32 %v861, %v1868
        %v1870 = vpop.f32.mrb[0].mxu0
        %v1871 = vpop.f32.mrb[0].mxu0
        %v1872 = vadd.f32 %v861, %v1871
        %v1873 = vpop.f32.mrb[0].mxu0
        %1874 = vmatprep.mubr.bf16.mxu0 0
        %1875 = vmatmul.mubr.bf16.gmra.mrb[0].mxu0 %v1364
        %v1876 = vpop.f32.mrb[0].mxu0
        %v1877 = vadd.f32 %v861, %v1876
        %v1878 = vpop.f32.mrb[0].mxu0
        %v1879 = vpop.f32.mrb[0].mxu0
        %v1880 = vadd.f32 %v861, %v1879
        %v1881 = vpop.f32.mrb[0].mxu0
        %1882 = vmatprep.mubr.bf16.mxu0 0
        %1883 = vmatmul.mubr.bf16.gmra.mrb[0].mxu0 %v1367
        %v1884 = vpop.f32.mrb[0].mxu0
        %v1885 = vadd.f32 %v861, %v1884
        %v1886 = vpop.f32.mrb[0].mxu0
        %v1887 = vpop.f32.mrb[0].mxu0
        %v1888 = vadd.f32 %v861, %v1887
        %v1889 = vpop.f32.mrb[0].mxu0
        %1890 = vmatprep.mubr.bf16.mxu0 0
        %1891 = vmatmul.mubr.bf16.gmra.mrb[0].mxu0 %v1370
        %v1892 = vpop.f32.mrb[0].mxu0
        %v1893 = vadd.f32 %v861, %v1892
        %v1894 = vpop.f32.mrb[0].mxu0
        %v1895 = vpop.f32.mrb[0].mxu0
        %v1896 = vadd.f32 %v861, %v1895
        %v1897 = vpop.f32.mrb[0].mxu0
        %1898 = vmatprep.mubr.bf16.mxu0 0
        %1899 = vmatmul.mubr.bf16.gmra.mrb[0].mxu0 %v1373
        %v1900 = vpop.f32.mrb[0].mxu0
        %v1901 = vadd.f32 %v861, %v1900
        %v1902 = vpop.f32.mrb[0].mxu0
        %v1903 = vpop.f32.mrb[0].mxu0
        %v1904 = vadd.f32 %v861, %v1903
        %v1905 = vpop.f32.mrb[0].mxu0
        %1906 = vmatprep.mubr.bf16.mxu0 0
        %1907 = vmatmul.mubr.bf16.gmra.mrb[0].mxu0 %v1376
        %v1908 = vpop.f32.mrb[0].mxu0
        %v1909 = vadd.f32 %v861, %v1908
        %v1910 = vpop.f32.mrb[0].mxu0
        %v1911 = vpop.f32.mrb[0].mxu0
        %v1912 = vadd.f32 %v861, %v1911
        %v1913 = vpop.f32.mrb[0].mxu0
        %1914 = vmatprep.mubr.bf16.mxu0 0
        %1915 = vmatmul.mubr.bf16.gmra.mrb[0].mxu0 %v1379
        %v1916 = vpop.f32.mrb[0].mxu0
        %v1917 = vadd.f32 %v861, %v1916
        %v1918 = vpop.f32.mrb[0].mxu0
        %v1919 = vpop.f32.mrb[0].mxu0
        %v1920 = vadd.f32 %v861, %v1919
        %v1921 = vpop.f32.mrb[0].mxu0
        %1922 = vmatprep.mubr.bf16.mxu0 0
        %1923 = vmatmul.mubr.bf16.gmra.mrb[0].mxu0 %v1382
        %v1924 = vpop.f32.mrb[0].mxu0
        %v1925 = vadd.f32 %v861, %v1924
        %v1926 = vpop.f32.mrb[0].mxu0
        %v1927 = vpop.f32.mrb[0].mxu0
        %v1928 = vadd.f32 %v861, %v1927
        %v1929 = vpop.f32.mrb[0].mxu0
        %1930 = vmatprep.mubr.bf16.mxu0 0
        %1931 = vmatmul.mubr.bf16.gmra.mrb[0].mxu0 %v1385
        %v1932 = vpop.f32.mrb[0].mxu0
        %v1933 = vadd.f32 %v861, %v1932
        %v1934 = vpop.f32.mrb[0].mxu0
        %v1935 = vpop.f32.mrb[0].mxu0
        %v1936 = vadd.f32 %v861, %v1935
        %v1937 = vpop.f32.mrb[0].mxu0
        %1938 = vdwg.mxu0
        %v1939 = vmax.f32 %v1429, 0.0
        %v1940 = vmax.f32 %v1432, 0.0
        %v1941 = vmax.f32 %v1437, 0.0
        %v1942 = vmax.f32 %v1440, 0.0
        %v1943 = vmax.f32 %v1445, 0.0
        %v1944 = vmax.f32 %v1448, 0.0
        %v1945 = vmax.f32 %v1453, 0.0
        %v1946 = vmax.f32 %v1456, 0.0
        %v1947 = vmax.f32 %v1461, 0.0
        %v1948 = vmax.f32 %v1464, 0.0
        %v1949 = vmax.f32 %v1469, 0.0
        %v1950 = vmax.f32 %v1472, 0.0
        %v1951 = vmax.f32 %v1477, 0.0
        %v1952 = vmax.f32 %v1480, 0.0
        %v1953 = vmax.f32 %v1485, 0.0
        %v1954 = vmax.f32 %v1488, 0.0
        %v1955 = vmax.f32 %v1493, 0.0
        %v1956 = vmax.f32 %v1496, 0.0
        %v1957 = vmax.f32 %v1501, 0.0
        %v1958 = vmax.f32 %v1504, 0.0
        %v1959 = vmax.f32 %v1509, 0.0
        %v1960 = vmax.f32 %v1512, 0.0
        %v1961 = vmax.f32 %v1517, 0.0
        %v1962 = vmax.f32 %v1520, 0.0
        %v1963 = vmax.f32 %v1525, 0.0
        %v1964 = vmax.f32 %v1528, 0.0
        %v1965 = vmax.f32 %v1533, 0.0
        %v1966 = vmax.f32 %v1536, 0.0
        %v1967 = vmax.f32 %v1541, 0.0
        %v1968 = vmax.f32 %v1544, 0.0
        %v1969 = vmax.f32 %v1549, 0.0
        %v1970 = vmax.f32 %v1552, 0.0
        %v1971 = vmax.f32 %v1557, 0.0
        %v1972 = vmax.f32 %v1560, 0.0
        %v1973 = vmax.f32 %v1565, 0.0
        %v1974 = vmax.f32 %v1568, 0.0
        %v1975 = vmax.f32 %v1573, 0.0
        %v1976 = vmax.f32 %v1576, 0.0
        %v1977 = vmax.f32 %v1581, 0.0
        %v1978 = vmax.f32 %v1584, 0.0
        %v1979 = vmax.f32 %v1589, 0.0
        %v1980 = vmax.f32 %v1592, 0.0
        %v1981 = vmax.f32 %v1597, 0.0
        %v1982 = vmax.f32 %v1600, 0.0
        %v1983 = vmax.f32 %v1605, 0.0
        %v1984 = vmax.f32 %v1608, 0.0
        %v1985 = vmax.f32 %v1613, 0.0
        %v1986 = vmax.f32 %v1616, 0.0
        %v1987 = vmax.f32 %v1621, 0.0
        %v1988 = vmax.f32 %v1624, 0.0
        %v1989 = vmax.f32 %v1629, 0.0
        %v1990 = vmax.f32 %v1632, 0.0
        %v1991 = vmax.f32 %v1637, 0.0
        %v1992 = vmax.f32 %v1640, 0.0
        %v1993 = vmax.f32 %v1645, 0.0
        %v1994 = vmax.f32 %v1648, 0.0
        %v1995 = vmax.f32 %v1653, 0.0
        %v1996 = vmax.f32 %v1656, 0.0
        %v1997 = vmax.f32 %v1661, 0.0
        %v1998 = vmax.f32 %v1664, 0.0
        %v1999 = vmax.f32 %v1669, 0.0
        %v2000 = vmax.f32 %v1672, 0.0
        %v2001 = vmax.f32 %v1677, 0.0
        %v2002 = vmax.f32 %v1680, 0.0
        %v2003 = vmax.f32 %v1685, 0.0
        %v2004 = vmax.f32 %v1688, 0.0
        %v2005 = vmax.f32 %v1693, 0.0
        %v2006 = vmax.f32 %v1696, 0.0
        %v2007 = vmax.f32 %v1701, 0.0
        %v2008 = vmax.f32 %v1704, 0.0
        %v2009 = vmax.f32 %v1709, 0.0
        %v2010 = vmax.f32 %v1712, 0.0
        %v2011 = vmax.f32 %v1717, 0.0
        %v2012 = vmax.f32 %v1720, 0.0
        %v2013 = vmax.f32 %v1725, 0.0
        %v2014 = vmax.f32 %v1728, 0.0
        %v2015 = vmax.f32 %v1733, 0.0
        %v2016 = vmax.f32 %v1736, 0.0
        %v2017 = vmax.f32 %v1741, 0.0
        %v2018 = vmax.f32 %v1744, 0.0
        %v2019 = vmax.f32 %v1749, 0.0
        %v2020 = vmax.f32 %v1752, 0.0
        %v2021 = vmax.f32 %v1757, 0.0
        %v2022 = vmax.f32 %v1760, 0.0
        %v2023 = vmax.f32 %v1765, 0.0
        %v2024 = vmax.f32 %v1768, 0.0
        %v2025 = vmax.f32 %v1773, 0.0
        %v2026 = vmax.f32 %v1776, 0.0
        %v2027 = vmax.f32 %v1781, 0.0
        %v2028 = vmax.f32 %v1784, 0.0
        %v2029 = vmax.f32 %v1789, 0.0
        %v2030 = vmax.f32 %v1792, 0.0
        %v2031 = vmax.f32 %v1797, 0.0
        %v2032 = vmax.f32 %v1800, 0.0
        %v2033 = vmax.f32 %v1805, 0.0
        %v2034 = vmax.f32 %v1808, 0.0
        %v2035 = vmax.f32 %v1813, 0.0
        %v2036 = vmax.f32 %v1816, 0.0
        %v2037 = vmax.f32 %v1821, 0.0
        %v2038 = vmax.f32 %v1824, 0.0
        %v2039 = vmax.f32 %v1829, 0.0
        %v2040 = vmax.f32 %v1832, 0.0
        %v2041 = vmax.f32 %v1837, 0.0
        %v2042 = vmax.f32 %v1840, 0.0
        %v2043 = vmax.f32 %v1845, 0.0
        %v2044 = vmax.f32 %v1848, 0.0
        %v2045 = vmax.f32 %v1853, 0.0
        %v2046 = vmax.f32 %v1856, 0.0
        %v2047 = vmax.f32 %v1861, 0.0
        %v2048 = vmax.f32 %v1864, 0.0
        %v2049 = vmax.f32 %v1869, 0.0
        %v2050 = vmax.f32 %v1872, 0.0
        %v2051 = vmax.f32 %v1877, 0.0
        %v2052 = vmax.f32 %v1880, 0.0
        %v2053 = vmax.f32 %v1885, 0.0
        %v2054 = vmax.f32 %v1888, 0.0
        %v2055 = vmax.f32 %v1893, 0.0
        %v2056 = vmax.f32 %v1896, 0.0
        %v2057 = vmax.f32 %v1901, 0.0
        %v2058 = vmax.f32 %v1904, 0.0
        %v2059 = vmax.f32 %v1909, 0.0
        %v2060 = vmax.f32 %v1912, 0.0
        %v2061 = vmax.f32 %v1917, 0.0
        %v2062 = vmax.f32 %v1920, 0.0
        %v2063 = vmax.f32 %v1925, 0.0
        %v2064 = vmax.f32 %v1928, 0.0
        %v2065 = vmax.f32 %v1933, 0.0
        %v2066 = vmax.f32 %v1936, 0.0
        %v2067 = vmax.f32 %v1939, %v1971
        %v2068 = vmax.f32 %v1940, %v1972
        %v2069 = vmax.f32 %v1941, %v1973
        %v2070 = vmax.f32 %v1942, %v1974
        %v2071 = vmax.f32 %v1943, %v1975
        %v2072 = vmax.f32 %v1944, %v1976
        %v2073 = vmax.f32 %v1945, %v1977
        %v2074 = vmax.f32 %v1946, %v1978
        %v2075 = vmax.f32 %v1947, %v1979
        %v2076 = vmax.f32 %v1948, %v1980
        %v2077 = vmax.f32 %v1949, %v1981
        %v2078 = vmax.f32 %v1950, %v1982
        %v2079 = vmax.f32 %v1951, %v1983
        %v2080 = vmax.f32 %v1952, %v1984
        %v2081 = vmax.f32 %v1953, %v1985
        %v2082 = vmax.f32 %v1954, %v1986
        %v2083 = vmax.f32 %v1955, %v1987
        %v2084 = vmax.f32 %v1956, %v1988
        %v2085 = vmax.f32 %v1957, %v1989
        %v2086 = vmax.f32 %v1958, %v1990
        %v2087 = vmax.f32 %v1959, %v1991
        %v2088 = vmax.f32 %v1960, %v1992
        %v2089 = vmax.f32 %v1961, %v1993
        %v2090 = vmax.f32 %v1962, %v1994
        %v2091 = vmax.f32 %v1963, %v1995
        %v2092 = vmax.f32 %v1964, %v1996
        %v2093 = vmax.f32 %v1965, %v1997
        %v2094 = vmax.f32 %v1966, %v1998
        %v2095 = vmax.f32 %v1967, %v1999
        %v2096 = vmax.f32 %v1968, %v2000
        %v2097 = vmax.f32 %v1969, %v2001
        %v2098 = vmax.f32 %v1970, %v2002
        %v2099 = vmax.f32 %v2067, %v2003
        %v2100 = vmax.f32 %v2068, %v2004
        %v2101 = vmax.f32 %v2069, %v2005
        %v2102 = vmax.f32 %v2070, %v2006
        %v2103 = vmax.f32 %v2071, %v2007
        %v2104 = vmax.f32 %v2072, %v2008
        %v2105 = vmax.f32 %v2073, %v2009
        %v2106 = vmax.f32 %v2074, %v2010
        %v2107 = vmax.f32 %v2075, %v2011
        %v2108 = vmax.f32 %v2076, %v2012
        %v2109 = vmax.f32 %v2077, %v2013
        %v2110 = vmax.f32 %v2078, %v2014
        %v2111 = vmax.f32 %v2079, %v2015
        %v2112 = vmax.f32 %v2080, %v2016
        %v2113 = vmax.f32 %v2081, %v2017
        %v2114 = vmax.f32 %v2082, %v2018
        %v2115 = vmax.f32 %v2083, %v2019
        %v2116 = vmax.f32 %v2084, %v2020
        %v2117 = vmax.f32 %v2085, %v2021
        %v2118 = vmax.f32 %v2086, %v2022
        %v2119 = vmax.f32 %v2087, %v2023
        %v2120 = vmax.f32 %v2088, %v2024
        %v2121 = vmax.f32 %v2089, %v2025
        %v2122 = vmax.f32 %v2090, %v2026
        %v2123 = vmax.f32 %v2091, %v2027
        %v2124 = vmax.f32 %v2092, %v2028
        %v2125 = vmax.f32 %v2093, %v2029
        %v2126 = vmax.f32 %v2094, %v2030
        %v2127 = vmax.f32 %v2095, %v2031
        %v2128 = vmax.f32 %v2096, %v2032
        %v2129 = vmax.f32 %v2097, %v2033
        %v2130 = vmax.f32 %v2098, %v2034
        %v2131 = vmax.f32 %v2099, %v2035
        %v2132 = vmax.f32 %v2100, %v2036
        %v2133 = vmax.f32 %v2101, %v2037
        %v2134 = vmax.f32 %v2102, %v2038
        %v2135 = vmax.f32 %v2103, %v2039
        %v2136 = vmax.f32 %v2104, %v2040
        %v2137 = vmax.f32 %v2105, %v2041
        %v2138 = vmax.f32 %v2106, %v2042
        %v2139 = vmax.f32 %v2107, %v2043
        %v2140 = vmax.f32 %v2108, %v2044
        %v2141 = vmax.f32 %v2109, %v2045
        %v2142 = vmax.f32 %v2110, %v2046
        %v2143 = vmax.f32 %v2111, %v2047
        %v2144 = vmax.f32 %v2112, %v2048
        %v2145 = vmax.f32 %v2113, %v2049
        %v2146 = vmax.f32 %v2114, %v2050
        %v2147 = vmax.f32 %v2115, %v2051
        %v2148 = vmax.f32 %v2116, %v2052
        %v2149 = vmax.f32 %v2117, %v2053
        %v2150 = vmax.f32 %v2118, %v2054
        %v2151 = vmax.f32 %v2119, %v2055
        %v2152 = vmax.f32 %v2120, %v2056
        %v2153 = vmax.f32 %v2121, %v2057
        %v2154 = vmax.f32 %v2122, %v2058
        %v2155 = vmax.f32 %v2123, %v2059
        %v2156 = vmax.f32 %v2124, %v2060
        %v2157 = vmax.f32 %v2125, %v2061
        %v2158 = vmax.f32 %v2126, %v2062
        %v2159 = vmax.f32 %v2127, %v2063
        %v2160 = vmax.f32 %v2128, %v2064
        %v2161 = vmax.f32 %v2129, %v2065
        %v2162 = vmax.f32 %v2130, %v2066
        %v2163 = vpack.c.bf16 %v2132, %v2131
        %v2164 = vpack.c.bf16 %v2134, %v2133
        %v2165 = vpack.c.bf16 %v2136, %v2135
        %v2166 = vpack.c.bf16 %v2138, %v2137
        %v2167 = vpack.c.bf16 %v2140, %v2139
        %v2168 = vpack.c.bf16 %v2142, %v2141
        %v2169 = vpack.c.bf16 %v2144, %v2143
        %v2170 = vpack.c.bf16 %v2146, %v2145
        %v2171 = vpack.c.bf16 %v2148, %v2147
        %v2172 = vpack.c.bf16 %v2150, %v2149
        %v2173 = vpack.c.bf16 %v2152, %v2151
        %v2174 = vpack.c.bf16 %v2154, %v2153
        %v2175 = vpack.c.bf16 %v2156, %v2155
        %v2176 = vpack.c.bf16 %v2158, %v2157
        %v2177 = vpack.c.bf16 %v2160, %v2159
        %v2178 = vpack.c.bf16 %v2162, %v2161
        %v2195 = vunpack.c.l.b16 %v2163
        %v2196 = vunpack.c.h.b16 %v2163
        %v2197 = vunpack.c.l.b16 %v2164
        %v2198 = vunpack.c.h.b16 %v2164
        %v2199 = vunpack.c.l.b16 %v2165
        %v2200 = vunpack.c.h.b16 %v2165
        %v2201 = vunpack.c.l.b16 %v2166
        %v2202 = vunpack.c.h.b16 %v2166
        %v2203 = vunpack.c.l.b16 %v2167
        %v2204 = vunpack.c.h.b16 %v2167
        %v2205 = vunpack.c.l.b16 %v2168
        %v2206 = vunpack.c.h.b16 %v2168
        %v2207 = vunpack.c.l.b16 %v2169
        %v2208 = vunpack.c.h.b16 %v2169
        %v2209 = vunpack.c.l.b16 %v2170
        %v2210 = vunpack.c.h.b16 %v2170
        %v2211 = vunpack.c.l.b16 %v2171
        %v2212 = vunpack.c.h.b16 %v2171
        %v2213 = vunpack.c.l.b16 %v2172
        %v2214 = vunpack.c.h.b16 %v2172
        %v2215 = vunpack.c.l.b16 %v2173
        %v2216 = vunpack.c.h.b16 %v2173
        %v2217 = vunpack.c.l.b16 %v2174
        %v2218 = vunpack.c.h.b16 %v2174
        %v2219 = vunpack.c.l.b16 %v2175
        %v2220 = vunpack.c.h.b16 %v2175
        %v2221 = vunpack.c.l.b16 %v2176
        %v2222 = vunpack.c.h.b16 %v2176
        %v2223 = vunpack.c.l.b16 %v2177
        %v2224 = vunpack.c.h.b16 %v2177
        %v2225 = vunpack.c.l.b16 %v2178
        %v2226 = vunpack.c.h.b16 %v2178
        %v2227 = vpack.c.b16 %v2195, %v2195
        %v2228 = vpack.c.b16 %v2196, %v2196
        %v2229 = vpack.c.b16 %v2197, %v2197
        %v2230 = vpack.c.b16 %v2198, %v2198
        %v2231 = vpack.c.b16 %v2199, %v2199
        %v2232 = vpack.c.b16 %v2200, %v2200
        %v2233 = vpack.c.b16 %v2201, %v2201
        %v2234 = vpack.c.b16 %v2202, %v2202
        %v2235 = vpack.c.b16 %v2203, %v2203
        %v2236 = vpack.c.b16 %v2204, %v2204
        %v2237 = vpack.c.b16 %v2205, %v2205
        %v2238 = vpack.c.b16 %v2206, %v2206
        %v2239 = vpack.c.b16 %v2207, %v2207
        %v2240 = vpack.c.b16 %v2208, %v2208
        %v2241 = vpack.c.b16 %v2209, %v2209
        %v2242 = vpack.c.b16 %v2210, %v2210
        %v2243 = vpack.c.b16 %v2211, %v2211
        %v2244 = vpack.c.b16 %v2212, %v2212
        %v2245 = vpack.c.b16 %v2213, %v2213
        %v2246 = vpack.c.b16 %v2214, %v2214
        %v2247 = vpack.c.b16 %v2215, %v2215
        %v2248 = vpack.c.b16 %v2216, %v2216
        %v2249 = vpack.c.b16 %v2217, %v2217
        %v2250 = vpack.c.b16 %v2218, %v2218
        %v2251 = vpack.c.b16 %v2219, %v2219
        %v2252 = vpack.c.b16 %v2220, %v2220
        %v2253 = vpack.c.b16 %v2221, %v2221
        %v2254 = vpack.c.b16 %v2222, %v2222
        %v2255 = vpack.c.b16 %v2223, %v2223
        %v2256 = vpack.c.b16 %v2224, %v2224
        %v2257 = vpack.c.b16 %v2225, %v2225
        %v2258 = vpack.c.b16 %v2226, %v2226
        %2291 = vst [vmem:[%s721] sm:$0xf] %v2227
        %2292 = vst [vmem:[%s721 + $0x4] sm:$0xf] %v2228
        %2293 = vst [vmem:[%s721 + $0x8] sm:$0xf] %v2229
        %2294 = vst [vmem:[%s721 + $0xc] sm:$0xf] %v2230
        %2295 = vst [vmem:[%s721 + $0x10] sm:$0xf] %v2231
        %2296 = vst [vmem:[%s721 + $0x14] sm:$0xf] %v2232
        %2297 = vst [vmem:[%s721 + $0x18] sm:$0xf] %v2233
        %2298 = vst [vmem:[%s721 + $0x1c] sm:$0xf] %v2234
        %2299 = vst [vmem:[%s721 + $0x20] sm:$0xf] %v2235
        %2300 = vst [vmem:[%s721 + $0x24] sm:$0xf] %v2236
        %2301 = vst [vmem:[%s721 + $0x28] sm:$0xf] %v2237
        %2302 = vst [vmem:[%s721 + $0x2c] sm:$0xf] %v2238
        %2303 = vst [vmem:[%s721 + $0x30] sm:$0xf] %v2239
        %2304 = vst [vmem:[%s721 + $0x34] sm:$0xf] %v2240
        %2305 = vst [vmem:[%s721 + $0x38] sm:$0xf] %v2241
        %2306 = vst [vmem:[%s721 + $0x3c] sm:$0xf] %v2242
        %2307 = vst [vmem:[%s721 + $0x40] sm:$0xf] %v2243
        %2308 = vst [vmem:[%s721 + $0x44] sm:$0xf] %v2244
        %2309 = vst [vmem:[%s721 + $0x48] sm:$0xf] %v2245
        %2310 = vst [vmem:[%s721 + $0x4c] sm:$0xf] %v2246
        %2311 = vst [vmem:[%s721 + $0x50] sm:$0xf] %v2247
        %2312 = vst [vmem:[%s721 + $0x54] sm:$0xf] %v2248
        %2313 = vst [vmem:[%s721 + $0x58] sm:$0xf] %v2249
        %2314 = vst [vmem:[%s721 + $0x5c] sm:$0xf] %v2250
        %2315 = vst [vmem:[%s721 + $0x60] sm:$0xf] %v2251
        %2316 = vst [vmem:[%s721 + $0x64] sm:$0xf] %v2252
        %2317 = vst [vmem:[%s721 + $0x68] sm:$0xf] %v2253
        %2318 = vst [vmem:[%s721 + $0x6c] sm:$0xf] %v2254
        %2319 = vst [vmem:[%s721 + $0x70] sm:$0xf] %v2255
        %2320 = vst [vmem:[%s721 + $0x74] sm:$0xf] %v2256
        %2321 = vst [vmem:[%s721 + $0x78] sm:$0xf] %v2257
        %2322 = vst [vmem:[%s721 + $0x7c] sm:$0xf] %v2258
        %s2323 = smul.u32 32, %s14
        %p2324 = scmp.lt.s32.totalorder %s2323, 63
        %s2325 = scalar_select %p2324, %s2323, 63
        %s2326 = smul.addr %s2325, 4
        %s2327 = scalar_lea.vmem %s3, %s2326
        // Predicated region
        $region74: #{cnn_forward.2} parent=68 // pred_check
          %p2328 = pneg %p100
        $region75: #{cnn_forward.2} parent=68 // pred_check_branch
          %2330 = sbr.rel (%p2328) target = $region77
        $region76: #{cnn_forward.2} parent=68 // pred_region
          %s2331 = smul.u32 32, %s14
        $region77: #{cnn_forward.2} parent=68 // pred_fallthru
          _
      $region69: #{cnn_forward.2} parent=5 // pred_fallthru
        _
      %p2332 = scmp.le.s32.totalorder 2, %s9
      // Predicated region
      $region78: #{cnn_forward.2} parent=5 // pred_check
        %p2333 = pneg %p2332
      $region79: #{cnn_forward.2} parent=5 // pred_check_branch
        %2335 = sbr.rel (%p2333) target = $region81
      $region80: #{cnn_forward.2} parent=5 // pred_region
        %s2336 = ssub.s32 %s9, 2
        // Predicated region
        $region82: #{cnn_forward.2} parent=80 // pred_check
          %p2337 = pneg %p106
        $region83: #{cnn_forward.2} parent=80 // pred_check_branch
          %2339 = sbr.rel (%p2337) target = $region85
        $region84: #{cnn_forward.2} parent=80 // pred_region
          %s2340 = smul.u32 32, %s15
          %p2341 = scmp.lt.s32.totalorder %s2340, 63
          %s2342 = scalar_select %p2341, %s2340, 63
          %s2343 = smul.addr %s2342, 4
          %s2344 = scalar_lea.vmem %s3, %s2343
        $region85: #{cnn_forward.2} parent=80 // pred_fallthru
          _
      $region81: #{cnn_forward.2} parent=5 // pred_fallthru
        _
    $region6: #{cnn_forward.2} parent=1 // loop_footer
      %s13 = sadd.s32 1, %s9
    $region7: #{cnn_forward.2} parent=1 // loop_footer_branch
      %8 = sbr.rel target = $region3
    $region8: #{cnn_forward.2} parent=1 // loop_exit
      _

// kernel: cnn_forward.3
$region0: #{cnn_forward.3}
  #allocation0 [shape = 'u32[]', space=smem, size = 0x4, offset = 0x4, fixed_abs, tag = 'smem constant byte address 0x4 - core index']
  #allocation1 [shape = 'u32[144,128]{1,0:T(1,128)}', space=vmem, size = 0x12000, scoped, tag = 'internal scratch']
  #allocation2 [shape = 'f32[2,4096]{1,0:T(2,128)}', space=vmem, size = 0x8000, scoped, tag = 'scratch operand']
  %s0 = inlined_call_operand.vmem [shape: bf16[4,128,288], index: 0, kind: input, shape index: {}]
  %s1 = inlined_call_operand.vmem [shape: bf16[288,64], index: 1, kind: input, shape index: {}]
  %s2 = inlined_call_operand.vmem [shape: f32[1,64], index: 2, kind: input, shape index: {}]
  %s3 = inlined_call_operand.vmem [shape: bf16[4096,512], index: 3, kind: input, shape index: {}]
  %s4 = inlined_call_operand.vmem [shape: f32[1,512], index: 4, kind: input, shape index: {}]
  %s5 = inlined_call_operand.vmem [shape: bf16[512,128], index: 5, kind: input, shape index: {}]
  %s6 = inlined_call_operand.vmem [shape: f32[1,128], index: 6, kind: input, shape index: {}]
  %s7 = inlined_call_operand.hbm [shape: f32[2,128], index: 7, kind: output, shape index: {}]
  %s8 = sld [smem:[#allocation0]]
  $region38: #{cnn_forward.3} parent=0
    _
  %s10 = ssub.s32 1, %s8
  %s11 = scalar_select 0, %s10, %s8
  $region1: #{cnn_forward.3} parent=0
    #allocation3 [shape = 'u8[1024]{0}', space=vmem, size = 0x400, scoped, tag = 'output window, operand 0, single buffered']
    #allocation4 [shape = 's32[1]{0}', space=sflag, size = 0x4, scoped, tag = 'scoped memory for cnn_forward.3']
    %12 = vsyncpa [#allocation4], 0
    // Predicated region
    $region2: #{cnn_forward.3} parent=1 // pred_check
      _
    $region3: #{cnn_forward.3} parent=1 // pred_check_branch
      %14 = sbr.rel (0) target = $region5
    $region4: #{cnn_forward.3} parent=1 // pred_region
      _
    $region5: #{cnn_forward.3} parent=1 // pred_fallthru
      _
    // Predicated region
    $region6: #{cnn_forward.3} parent=1 // pred_check
      _
    $region7: #{cnn_forward.3} parent=1 // pred_check_branch
      %16 = sbr.rel (0) target = $region9
    $region8: #{cnn_forward.3} parent=1 // pred_region
      _
    $region9: #{cnn_forward.3} parent=1 // pred_fallthru
      _
    // Predicated region
    $region10: #{cnn_forward.3} parent=1 // pred_check
      _
    $region11: #{cnn_forward.3} parent=1 // pred_check_branch
      %18 = sbr.rel (0) target = $region13
    $region12: #{cnn_forward.3} parent=1 // pred_region
      _
    $region13: #{cnn_forward.3} parent=1 // pred_fallthru
      _
    // Predicated region
    $region14: #{cnn_forward.3} parent=1 // pred_check
      _
    $region15: #{cnn_forward.3} parent=1 // pred_check_branch
      %20 = sbr.rel (0) target = $region17
    $region16: #{cnn_forward.3} parent=1 // pred_region
      _
    $region17: #{cnn_forward.3} parent=1 // pred_fallthru
      _
    // Predicated region
    $region18: #{cnn_forward.3} parent=1 // pred_check
      _
    $region19: #{cnn_forward.3} parent=1 // pred_check_branch
      %22 = sbr.rel (0) target = $region21
    $region20: #{cnn_forward.3} parent=1 // pred_region
      _
    $region21: #{cnn_forward.3} parent=1 // pred_fallthru
      _
    // Predicated region
    $region22: #{cnn_forward.3} parent=1 // pred_check
      _
    $region23: #{cnn_forward.3} parent=1 // pred_check_branch
      %24 = sbr.rel (0) target = $region25
    $region24: #{cnn_forward.3} parent=1 // pred_region
      _
    $region25: #{cnn_forward.3} parent=1 // pred_fallthru
      _
    // Predicated region
    $region26: #{cnn_forward.3} parent=1 // pred_check
      _
    $region27: #{cnn_forward.3} parent=1 // pred_check_branch
      %26 = sbr.rel (0) target = $region29
    $region28: #{cnn_forward.3} parent=1 // pred_region
      _
    $region29: #{cnn_forward.3} parent=1 // pred_fallthru
      _
    %v28 = vld [vmem:[%s0] sm:$0xff]
    %v29 = vld [vmem:[%s0 + $0x8] sm:$0xf]
    %v30 = vld [vmem:[%s0 + $0xc] sm:$0xff]
    %v31 = vld [vmem:[%s0 + $0x14] sm:$0xf]
    %v32 = vld [vmem:[%s0 + $0x18] sm:$0xff]
    %v33 = vld [vmem:[%s0 + $0x20] sm:$0xf]
    %v34 = vld [vmem:[%s0 + $0x24] sm:$0xff]
    %v35 = vld [vmem:[%s0 + $0x2c] sm:$0xf]
    %v36 = vld [vmem:[%s0 + $0x30] sm:$0xff]
    %v37 = vld [vmem:[%s0 + $0x38] sm:$0xf]
    %v38 = vld [vmem:[%s0 + $0x3c] sm:$0xff]
    %v39 = vld [vmem:[%s0 + $0x44] sm:$0xf]
    %v40 = vld [vmem:[%s0 + $0x48] sm:$0xff]
    %v41 = vld [vmem:[%s0 + $0x50] sm:$0xf]
    %v42 = vld [vmem:[%s0 + $0x54] sm:$0xff]
    %v43 = vld [vmem:[%s0 + $0x5c] sm:$0xf]
    %v44 = vld [vmem:[%s0 + $0x60] sm:$0xff]
    %v45 = vld [vmem:[%s0 + $0x68] sm:$0xf]
    %v46 = vld [vmem:[%s0 + $0x6c] sm:$0xff]
    %v47 = vld [vmem:[%s0 + $0x74] sm:$0xf]
    %v48 = vld [vmem:[%s0 + $0x78] sm:$0xff]
    %v49 = vld [vmem:[%s0 + $0x80] sm:$0xf]
    %v50 = vld [vmem:[%s0 + $0x84] sm:$0xff]
    %v51 = vld [vmem:[%s0 + $0x8c] sm:$0xf]
    %v52 = vld [vmem:[%s0 + $0x90] sm:$0xff]
    %v53 = vld [vmem:[%s0 + $0x98] sm:$0xf]
    %v54 = vld [vmem:[%s0 + $0x9c] sm:$0xff]
    %v55 = vld [vmem:[%s0 + $0xa4] sm:$0xf]
    %v56 = vld [vmem:[%s0 + $0xa8] sm:$0xff]
    %v57 = vld [vmem:[%s0 + $0xb0] sm:$0xf]
    %v58 = vld [vmem:[%s0 + $0xb4] sm:$0xff]
    %v59 = vld [vmem:[%s0 + $0xbc] sm:$0xf]
    %v60 = vld [vmem:[%s0 + $0xc0] sm:$0xff]
    %v61 = vld [vmem:[%s0 + $0xc8] sm:$0xf]
    %v62 = vld [vmem:[%s0 + $0xcc] sm:$0xff]
    %v63 = vld [vmem:[%s0 + $0xd4] sm:$0xf]
    %v64 = vld [vmem:[%s0 + $0xd8] sm:$0xff]
    %v65 = vld [vmem:[%s0 + $0xe0] sm:$0xf]
    %v66 = vld [vmem:[%s0 + $0xe4] sm:$0xff]
    %v67 = vld [vmem:[%s0 + $0xec] sm:$0xf]
    %v68 = vld [vmem:[%s0 + $0xf0] sm:$0xff]
    %v69 = vld [vmem:[%s0 + $0xf8] sm:$0xf]
    %v70 = vld [vmem:[%s0 + $0xfc] sm:$0xff]
    %v71 = vld [vmem:[%s0 + $0x104] sm:$0xf]
    %v72 = vld [vmem:[%s0 + $0x108] sm:$0xff]
    %v73 = vld [vmem:[%s0 + $0x110] sm:$0xf]
    %v74 = vld [vmem:[%s0 + $0x114] sm:$0xff]
    %v75 = vld [vmem:[%s0 + $0x11c] sm:$0xf]
    %v76 = vld [vmem:[%s0 + $0x120] sm:$0xff]
    %v77 = vld [vmem:[%s0 + $0x128] sm:$0xf]
    %v78 = vld [vmem:[%s0 + $0x12c] sm:$0xff]
    %v79 = vld [vmem:[%s0 + $0x134] sm:$0xf]
    %v80 = vld [vmem:[%s0 + $0x138] sm:$0xff]
    %v81 = vld [vmem:[%s0 + $0x140] sm:$0xf]
    %v82 = vld [vmem:[%s0 + $0x144] sm:$0xff]
    %v83 = vld [vmem:[%s0 + $0x14c] sm:$0xf]
    %v84 = vld [vmem:[%s0 + $0x150] sm:$0xff]
    %v85 = vld [vmem:[%s0 + $0x158] sm:$0xf]
    %v86 = vld [vmem:[%s0 + $0x15c] sm:$0xff]
    %v87 = vld [vmem:[%s0 + $0x164] sm:$0xf]
    %v88 = vld [vmem:[%s0 + $0x168] sm:$0xff]
    %v89 = vld [vmem:[%s0 + $0x170] sm:$0xf]
    %v90 = vld [vmem:[%s0 + $0x174] sm:$0xff]
    %v91 = vld [vmem:[%s0 + $0x17c] sm:$0xf]
    %v92 = vld [vmem:[%s0 + $0x180] sm:$0xff]
    %v93 = vld [vmem:[%s0 + $0x188] sm:$0xf]
    %v94 = vld [vmem:[%s0 + $0x18c] sm:$0xff]
    %v95 = vld [vmem:[%s0 + $0x194] sm:$0xf]
    %v96 = vld [vmem:[%s0 + $0x198] sm:$0xff]
    %v97 = vld [vmem:[%s0 + $0x1a0] sm:$0xf]
    %v98 = vld [vmem:[%s0 + $0x1a4] sm:$0xff]
    %v99 = vld [vmem:[%s0 + $0x1ac] sm:$0xf]
    %v100 = vld [vmem:[%s0 + $0x1b0] sm:$0xff]
    %v101 = vld [vmem:[%s0 + $0x1b8] sm:$0xf]
    %v102 = vld [vmem:[%s0 + $0x1bc] sm:$0xff]
    %v103 = vld [vmem:[%s0 + $0x1c4] sm:$0xf]
    %v104 = vld [vmem:[%s0 + $0x1c8] sm:$0xff]
    %v105 = vld [vmem:[%s0 + $0x1d0] sm:$0xf]
    %v106 = vld [vmem:[%s0 + $0x1d4] sm:$0xff]
    %v107 = vld [vmem:[%s0 + $0x1dc] sm:$0xf]
    %v108 = vld [vmem:[%s0 + $0x1e0] sm:$0xff]
    %v109 = vld [vmem:[%s0 + $0x1e8] sm:$0xf]
    %v110 = vld [vmem:[%s0 + $0x1ec] sm:$0xff]
    %v111 = vld [vmem:[%s0 + $0x1f4] sm:$0xf]
    %v112 = vld [vmem:[%s0 + $0x1f8] sm:$0xff]
    %v113 = vld [vmem:[%s0 + $0x200] sm:$0xf]
    %v114 = vld [vmem:[%s0 + $0x204] sm:$0xff]
    %v115 = vld [vmem:[%s0 + $0x20c] sm:$0xf]
    %v116 = vld [vmem:[%s0 + $0x210] sm:$0xff]
    %v117 = vld [vmem:[%s0 + $0x218] sm:$0xf]
    %v118 = vld [vmem:[%s0 + $0x21c] sm:$0xff]
    %v119 = vld [vmem:[%s0 + $0x224] sm:$0xf]
    %v120 = vld [vmem:[%s0 + $0x228] sm:$0xff]
    %v121 = vld [vmem:[%s0 + $0x230] sm:$0xf]
    %v122 = vld [vmem:[%s0 + $0x234] sm:$0xff]
    %v123 = vld [vmem:[%s0 + $0x23c] sm:$0xf]
    %v124 = vld [vmem:[%s0 + $0x240] sm:$0xff]
    %v125 = vld [vmem:[%s0 + $0x248] sm:$0xf]
    %v126 = vld [vmem:[%s0 + $0x24c] sm:$0xff]
    %v127 = vld [vmem:[%s0 + $0x254] sm:$0xf]
    %v128 = vld [vmem:[%s0 + $0x258] sm:$0xff]
    %v129 = vld [vmem:[%s0 + $0x260] sm:$0xf]
    %v130 = vld [vmem:[%s0 + $0x264] sm:$0xff]
    %v131 = vld [vmem:[%s0 + $0x26c] sm:$0xf]
    %v132 = vld [vmem:[%s0 + $0x270] sm:$0xff]
    %v133 = vld [vmem:[%s0 + $0x278] sm:$0xf]
    %v134 = vld [vmem:[%s0 + $0x27c] sm:$0xff]
    %v135 = vld [vmem:[%s0 + $0x284] sm:$0xf]
    %v136 = vld [vmem:[%s0 + $0x288] sm:$0xff]
    %v137 = vld [vmem:[%s0 + $0x290] sm:$0xf]
    %v138 = vld [vmem:[%s0 + $0x294] sm:$0xff]
    %v139 = vld [vmem:[%s0 + $0x29c] sm:$0xf]
    %v140 = vld [vmem:[%s0 + $0x2a0] sm:$0xff]
    %v141 = vld [vmem:[%s0 + $0x2a8] sm:$0xf]
    %v142 = vld [vmem:[%s0 + $0x2ac] sm:$0xff]
    %v143 = vld [vmem:[%s0 + $0x2b4] sm:$0xf]
    %v144 = vld [vmem:[%s0 + $0x2b8] sm:$0xff]
    %v145 = vld [vmem:[%s0 + $0x2c0] sm:$0xf]
    %v146 = vld [vmem:[%s0 + $0x2c4] sm:$0xff]
    %v147 = vld [vmem:[%s0 + $0x2cc] sm:$0xf]
    %v148 = vld [vmem:[%s0 + $0x2d0] sm:$0xff]
    %v149 = vld [vmem:[%s0 + $0x2d8] sm:$0xf]
    %v150 = vld [vmem:[%s0 + $0x2dc] sm:$0xff]
    %v151 = vld [vmem:[%s0 + $0x2e4] sm:$0xf]
    %v152 = vld [vmem:[%s0 + $0x2e8] sm:$0xff]
    %v153 = vld [vmem:[%s0 + $0x2f0] sm:$0xf]
    %v154 = vld [vmem:[%s0 + $0x2f4] sm:$0xff]
    %v155 = vld [vmem:[%s0 + $0x2fc] sm:$0xf]
    %v156 = vld [vmem:[%s1] sm:$0xf]
    %v157 = vld [vmem:[%s1 + $0x4] sm:$0xf]
    %v158 = vld [vmem:[%s1 + $0x8] sm:$0xf]
    %v159 = vld [vmem:[%s1 + $0xc] sm:$0xf]
    %v160 = vld [vmem:[%s1 + $0x10] sm:$0xf]
    %v161 = vld [vmem:[%s1 + $0x14] sm:$0xf]
    %v162 = vld [vmem:[%s1 + $0x18] sm:$0xf]
    %v163 = vld [vmem:[%s1 + $0x1c] sm:$0xf]
    %v164 = vld [vmem:[%s1 + $0x20] sm:$0xf]
    %v165 = vld [vmem:[%s1 + $0x24] sm:$0xf]
    %v166 = vld [vmem:[%s1 + $0x28] sm:$0xf]
    %v167 = vld [vmem:[%s1 + $0x2c] sm:$0xf]
    %v168 = vld [vmem:[%s1 + $0x30] sm:$0xf]
    %v169 = vld [vmem:[%s1 + $0x34] sm:$0xf]
    %v170 = vld [vmem:[%s1 + $0x38] sm:$0xf]
    %v171 = vld [vmem:[%s1 + $0x3c] sm:$0xf]
    %v172 = vld [vmem:[%s1 + $0x40] sm:$0xf]
    %v173 = vld [vmem:[%s1 + $0x44] sm:$0xf]
    %v174 = vld [vmem:[%s1 + $0x48] sm:$0xf]
    %v175 = vld [vmem:[%s1 + $0x4c] sm:$0xf]
    %v176 = vld [vmem:[%s1 + $0x50] sm:$0xf]
    %v177 = vld [vmem:[%s1 + $0x54] sm:$0xf]
    %v178 = vld [vmem:[%s1 + $0x58] sm:$0xf]
    %v179 = vld [vmem:[%s1 + $0x5c] sm:$0xf]
    %v180 = vld [vmem:[%s1 + $0x60] sm:$0xf]
    %v181 = vld [vmem:[%s1 + $0x64] sm:$0xf]
    %v182 = vld [vmem:[%s1 + $0x68] sm:$0xf]
    %v183 = vld [vmem:[%s1 + $0x6c] sm:$0xf]
    %v184 = vld [vmem:[%s1 + $0x70] sm:$0xf]
    %v185 = vld [vmem:[%s1 + $0x74] sm:$0xf]
    %v186 = vld [vmem:[%s1 + $0x78] sm:$0xf]
    %v187 = vld [vmem:[%s1 + $0x7c] sm:$0xf]
    %v188 = vld [vmem:[%s1 + $0x80] sm:$0xf]
    %v189 = vld [vmem:[%s1 + $0x84] sm:$0xf]
    %v190 = vld [vmem:[%s1 + $0x88] sm:$0xf]
    %v191 = vld [vmem:[%s1 + $0x8c] sm:$0xf]
    %v192 = vld [vmem:[%s2] sm:$0x1]
    %v194 = vlaneseq
    %v195 = vshrl.u32 %v194, 7
    %v196 = vsub.s32 0, %v195
    %v197 = vrot.slane %v192, %v196
    %v327 = vunpack.c.l.b16 %v28
    %v328 = vunpack.c.h.b16 %v28
    %v329 = vunpack.c.l.b16 %v29
    %v330 = vunpack.c.l.b16 %v30
    %v331 = vunpack.c.h.b16 %v30
    %v332 = vunpack.c.l.b16 %v31
    %v333 = vunpack.c.l.b16 %v32
    %v334 = vunpack.c.h.b16 %v32
    %v335 = vunpack.c.l.b16 %v33
    %v336 = vunpack.c.l.b16 %v34
    %v337 = vunpack.c.h.b16 %v34
    %v338 = vunpack.c.l.b16 %v35
    %v339 = vunpack.c.l.b16 %v36
    %v340 = vunpack.c.h.b16 %v36
    %v341 = vunpack.c.l.b16 %v37
    %v342 = vunpack.c.l.b16 %v38
    %v343 = vunpack.c.h.b16 %v38
    %v344 = vunpack.c.l.b16 %v39
    %v345 = vunpack.c.l.b16 %v40
    %v346 = vunpack.c.h.b16 %v40
    %v347 = vunpack.c.l.b16 %v41
    %v348 = vunpack.c.l.b16 %v42
    %v349 = vunpack.c.h.b16 %v42
    %v350 = vunpack.c.l.b16 %v43
    %v351 = vunpack.c.l.b16 %v44
    %v352 = vunpack.c.h.b16 %v44
    %v353 = vunpack.c.l.b16 %v45
    %v354 = vunpack.c.l.b16 %v46
    %v355 = vunpack.c.h.b16 %v46
    %v356 = vunpack.c.l.b16 %v47
    %v357 = vunpack.c.l.b16 %v48
    %v358 = vunpack.c.h.b16 %v48
    %v359 = vunpack.c.l.b16 %v49
    %v360 = vunpack.c.l.b16 %v50
    %v361 = vunpack.c.h.b16 %v50
    %v362 = vunpack.c.l.b16 %v51
    %v363 = vunpack.c.l.b16 %v52
    %v364 = vunpack.c.h.b16 %v52
    %v365 = vunpack.c.l.b16 %v53
    %v366 = vunpack.c.l.b16 %v54
    %v367 = vunpack.c.h.b16 %v54
    %v368 = vunpack.c.l.b16 %v55
    %v369 = vunpack.c.l.b16 %v56
    %v370 = vunpack.c.h.b16 %v56
    %v371 = vunpack.c.l.b16 %v57
    %v372 = vunpack.c.l.b16 %v58
    %v373 = vunpack.c.h.b16 %v58
    %v374 = vunpack.c.l.b16 %v59
    %v375 = vunpack.c.l.b16 %v60
    %v376 = vunpack.c.h.b16 %v60
    %v377 = vunpack.c.l.b16 %v61
    %v378 = vunpack.c.l.b16 %v62
    %v379 = vunpack.c.h.b16 %v62
    %v380 = vunpack.c.l.b16 %v63
    %v381 = vunpack.c.l.b16 %v64
    %v382 = vunpack.c.h.b16 %v64
    %v383 = vunpack.c.l.b16 %v65
    %v384 = vunpack.c.l.b16 %v66
    %v385 = vunpack.c.h.b16 %v66
    %v386 = vunpack.c.l.b16 %v67
    %v387 = vunpack.c.l.b16 %v68
    %v388 = vunpack.c.h.b16 %v68
    %v389 = vunpack.c.l.b16 %v69
    %v390 = vunpack.c.l.b16 %v70
    %v391 = vunpack.c.h.b16 %v70
    %v392 = vunpack.c.l.b16 %v71
    %v393 = vunpack.c.l.b16 %v72
    %v394 = vunpack.c.h.b16 %v72
    %v395 = vunpack.c.l.b16 %v73
    %v396 = vunpack.c.l.b16 %v74
    %v397 = vunpack.c.h.b16 %v74
    %v398 = vunpack.c.l.b16 %v75
    %v399 = vunpack.c.l.b16 %v76
    %v400 = vunpack.c.h.b16 %v76
    %v401 = vunpack.c.l.b16 %v77
    %v402 = vunpack.c.l.b16 %v78
    %v403 = vunpack.c.h.b16 %v78
    %v404 = vunpack.c.l.b16 %v79
    %v405 = vunpack.c.l.b16 %v80
    %v406 = vunpack.c.h.b16 %v80
    %v407 = vunpack.c.l.b16 %v81
    %v408 = vunpack.c.l.b16 %v82
    %v409 = vunpack.c.h.b16 %v82
    %v410 = vunpack.c.l.b16 %v83
    %v411 = vunpack.c.l.b16 %v84
    %v412 = vunpack.c.h.b16 %v84
    %v413 = vunpack.c.l.b16 %v85
    %v414 = vunpack.c.l.b16 %v86
    %v415 = vunpack.c.h.b16 %v86
    %v416 = vunpack.c.l.b16 %v87
    %v417 = vunpack.c.l.b16 %v88
    %v418 = vunpack.c.h.b16 %v88
    %v419 = vunpack.c.l.b16 %v89
    %v420 = vunpack.c.l.b16 %v90
    %v421 = vunpack.c.h.b16 %v90
    %v422 = vunpack.c.l.b16 %v91
    %v423 = vunpack.c.l.b16 %v92
    %v424 = vunpack.c.h.b16 %v92
    %v425 = vunpack.c.l.b16 %v93
    %v426 = vunpack.c.l.b16 %v94
    %v427 = vunpack.c.h.b16 %v94
    %v428 = vunpack.c.l.b16 %v95
    %v429 = vunpack.c.l.b16 %v96
    %v430 = vunpack.c.h.b16 %v96
    %v431 = vunpack.c.l.b16 %v97
    %v432 = vunpack.c.l.b16 %v98
    %v433 = vunpack.c.h.b16 %v98
    %v434 = vunpack.c.l.b16 %v99
    %v435 = vunpack.c.l.b16 %v100
    %v436 = vunpack.c.h.b16 %v100
    %v437 = vunpack.c.l.b16 %v101
    %v438 = vunpack.c.l.b16 %v102
    %v439 = vunpack.c.h.b16 %v102
    %v440 = vunpack.c.l.b16 %v103
    %v441 = vunpack.c.l.b16 %v104
    %v442 = vunpack.c.h.b16 %v104
    %v443 = vunpack.c.l.b16 %v105
    %v444 = vunpack.c.l.b16 %v106
    %v445 = vunpack.c.h.b16 %v106
    %v446 = vunpack.c.l.b16 %v107
    %v447 = vunpack.c.l.b16 %v108
    %v448 = vunpack.c.h.b16 %v108
    %v449 = vunpack.c.l.b16 %v109
    %v450 = vunpack.c.l.b16 %v110
    %v451 = vunpack.c.h.b16 %v110
    %v452 = vunpack.c.l.b16 %v111
    %v453 = vunpack.c.l.b16 %v112
    %v454 = vunpack.c.h.b16 %v112
    %v455 = vunpack.c.l.b16 %v113
    %v456 = vunpack.c.l.b16 %v114
    %v457 = vunpack.c.h.b16 %v114
    %v458 = vunpack.c.l.b16 %v115
    %v459 = vunpack.c.l.b16 %v116
    %v460 = vunpack.c.h.b16 %v116
    %v461 = vunpack.c.l.b16 %v117
    %v462 = vunpack.c.l.b16 %v118
    %v463 = vunpack.c.h.b16 %v118
    %v464 = vunpack.c.l.b16 %v119
    %v465 = vunpack.c.l.b16 %v120
    %v466 = vunpack.c.h.b16 %v120
    %v467 = vunpack.c.l.b16 %v121
    %v468 = vunpack.c.l.b16 %v122
    %v469 = vunpack.c.h.b16 %v122
    %v470 = vunpack.c.l.b16 %v123
    %v471 = vunpack.c.l.b16 %v124
    %v472 = vunpack.c.h.b16 %v124
    %v473 = vunpack.c.l.b16 %v125
    %v474 = vunpack.c.l.b16 %v126
    %v475 = vunpack.c.h.b16 %v126
    %v476 = vunpack.c.l.b16 %v127
    %v477 = vunpack.c.l.b16 %v128
    %v478 = vunpack.c.h.b16 %v128
    %v479 = vunpack.c.l.b16 %v129
    %v480 = vunpack.c.l.b16 %v130
    %v481 = vunpack.c.h.b16 %v130
    %v482 = vunpack.c.l.b16 %v131
    %v483 = vunpack.c.l.b16 %v132
    %v484 = vunpack.c.h.b16 %v132
    %v485 = vunpack.c.l.b16 %v133
    %v486 = vunpack.c.l.b16 %v134
    %v487 = vunpack.c.h.b16 %v134
    %v488 = vunpack.c.l.b16 %v135
    %v489 = vunpack.c.l.b16 %v136
    %v490 = vunpack.c.h.b16 %v136
    %v491 = vunpack.c.l.b16 %v137
    %v492 = vunpack.c.l.b16 %v138
    %v493 = vunpack.c.h.b16 %v138
    %v494 = vunpack.c.l.b16 %v139
    %v495 = vunpack.c.l.b16 %v140
    %v496 = vunpack.c.h.b16 %v140
    %v497 = vunpack.c.l.b16 %v141
    %v498 = vunpack.c.l.b16 %v142
    %v499 = vunpack.c.h.b16 %v142
    %v500 = vunpack.c.l.b16 %v143
    %v501 = vunpack.c.l.b16 %v144
    %v502 = vunpack.c.h.b16 %v144
    %v503 = vunpack.c.l.b16 %v145
    %v504 = vunpack.c.l.b16 %v146
    %v505 = vunpack.c.h.b16 %v146
    %v506 = vunpack.c.l.b16 %v147
    %v507 = vunpack.c.l.b16 %v148
    %v508 = vunpack.c.h.b16 %v148
    %v509 = vunpack.c.l.b16 %v149
    %v510 = vunpack.c.l.b16 %v150
    %v511 = vunpack.c.h.b16 %v150
    %v512 = vunpack.c.l.b16 %v151
    %v513 = vunpack.c.l.b16 %v152
    %v514 = vunpack.c.h.b16 %v152
    %v515 = vunpack.c.l.b16 %v153
    %v516 = vunpack.c.l.b16 %v154
    %v517 = vunpack.c.h.b16 %v154
    %v518 = vunpack.c.l.b16 %v155
    %v519 = vpack.c.b16 %v330, %v327
    %v520 = vpack.c.b16 %v331, %v328
    %v521 = vpack.c.b16 %v332, %v329
    %v522 = vpack.c.b16 %v336, %v333
    %v523 = vpack.c.b16 %v337, %v334
    %v524 = vpack.c.b16 %v338, %v335
    %v525 = vpack.c.b16 %v342, %v339
    %v526 = vpack.c.b16 %v343, %v340
    %v527 = vpack.c.b16 %v344, %v341
    %v528 = vpack.c.b16 %v348, %v345
    %v529 = vpack.c.b16 %v349, %v346
    %v530 = vpack.c.b16 %v350, %v347
    %v531 = vpack.c.b16 %v354, %v351
    %v532 = vpack.c.b16 %v355, %v352
    %v533 = vpack.c.b16 %v356, %v353
    %v534 = vpack.c.b16 %v360, %v357
    %v535 = vpack.c.b16 %v361, %v358
    %v536 = vpack.c.b16 %v362, %v359
    %v537 = vpack.c.b16 %v366, %v363
    %v538 = vpack.c.b16 %v367, %v364
    %v539 = vpack.c.b16 %v368, %v365
    %v540 = vpack.c.b16 %v372, %v369
    %v541 = vpack.c.b16 %v373, %v370
    %v542 = vpack.c.b16 %v374, %v371
    %v543 = vpack.c.b16 %v378, %v375
    %v544 = vpack.c.b16 %v379, %v376
    %v545 = vpack.c.b16 %v380, %v377
    %v546 = vpack.c.b16 %v384, %v381
    %v547 = vpack.c.b16 %v385, %v382
    %v548 = vpack.c.b16 %v386, %v383
    %v549 = vpack.c.b16 %v390, %v387
    %v550 = vpack.c.b16 %v391, %v388
    %v551 = vpack.c.b16 %v392, %v389
    %v552 = vpack.c.b16 %v396, %v393
    %v553 = vpack.c.b16 %v397, %v394
    %v554 = vpack.c.b16 %v398, %v395
    %v555 = vpack.c.b16 %v402, %v399
    %v556 = vpack.c.b16 %v403, %v400
    %v557 = vpack.c.b16 %v404, %v401
    %v558 = vpack.c.b16 %v408, %v405
    %v559 = vpack.c.b16 %v409, %v406
    %v560 = vpack.c.b16 %v410, %v407
    %v561 = vpack.c.b16 %v414, %v411
    %v562 = vpack.c.b16 %v415, %v412
    %v563 = vpack.c.b16 %v416, %v413
    %v564 = vpack.c.b16 %v420, %v417
    %v565 = vpack.c.b16 %v421, %v418
    %v566 = vpack.c.b16 %v422, %v419
    %v567 = vpack.c.b16 %v426, %v423
    %v568 = vpack.c.b16 %v427, %v424
    %v569 = vpack.c.b16 %v428, %v425
    %v570 = vpack.c.b16 %v432, %v429
    %v571 = vpack.c.b16 %v433, %v430
    %v572 = vpack.c.b16 %v434, %v431
    %v573 = vpack.c.b16 %v438, %v435
    %v574 = vpack.c.b16 %v439, %v436
    %v575 = vpack.c.b16 %v440, %v437
    %v576 = vpack.c.b16 %v444, %v441
    %v577 = vpack.c.b16 %v445, %v442
    %v578 = vpack.c.b16 %v446, %v443
    %v579 = vpack.c.b16 %v450, %v447
    %v580 = vpack.c.b16 %v451, %v448
    %v581 = vpack.c.b16 %v452, %v449
    %v582 = vpack.c.b16 %v456, %v453
    %v583 = vpack.c.b16 %v457, %v454
    %v584 = vpack.c.b16 %v458, %v455
    %v585 = vpack.c.b16 %v462, %v459
    %v586 = vpack.c.b16 %v463, %v460
    %v587 = vpack.c.b16 %v464, %v461
    %v588 = vpack.c.b16 %v468, %v465
    %v589 = vpack.c.b16 %v469, %v466
    %v590 = vpack.c.b16 %v470, %v467
    %v591 = vpack.c.b16 %v474, %v471
    %v592 = vpack.c.b16 %v475, %v472
    %v593 = vpack.c.b16 %v476, %v473
    %v594 = vpack.c.b16 %v480, %v477
    %v595 = vpack.c.b16 %v481, %v478
    %v596 = vpack.c.b16 %v482, %v479
    %v597 = vpack.c.b16 %v486, %v483
    %v598 = vpack.c.b16 %v487, %v484
    %v599 = vpack.c.b16 %v488, %v485
    %v600 = vpack.c.b16 %v492, %v489
    %v601 = vpack.c.b16 %v493, %v490
    %v602 = vpack.c.b16 %v494, %v491
    %v603 = vpack.c.b16 %v498, %v495
    %v604 = vpack.c.b16 %v499, %v496
    %v605 = vpack.c.b16 %v500, %v497
    %v606 = vpack.c.b16 %v504, %v501
    %v607 = vpack.c.b16 %v505, %v502
    %v608 = vpack.c.b16 %v506, %v503
    %v609 = vpack.c.b16 %v510, %v507
    %v610 = vpack.c.b16 %v511, %v508
    %v611 = vpack.c.b16 %v512, %v509
    %v612 = vpack.c.b16 %v516, %v513
    %v613 = vpack.c.b16 %v517, %v514
    %v614 = vpack.c.b16 %v518, %v515
    %v715 = vunpack.c.l.b16 %v156
    %v716 = vunpack.c.l.b16 %v157
    %v717 = vunpack.c.l.b16 %v158
    %v718 = vunpack.c.l.b16 %v159
    %v719 = vunpack.c.l.b16 %v160
    %v720 = vunpack.c.l.b16 %v161
    %v721 = vunpack.c.l.b16 %v162
    %v722 = vunpack.c.l.b16 %v163
    %v723 = vunpack.c.l.b16 %v164
    %v724 = vunpack.c.l.b16 %v165
    %v725 = vunpack.c.l.b16 %v166
    %v726 = vunpack.c.l.b16 %v167
    %v727 = vunpack.c.l.b16 %v168
    %v728 = vunpack.c.l.b16 %v169
    %v729 = vunpack.c.l.b16 %v170
    %v730 = vunpack.c.l.b16 %v171
    %v731 = vunpack.c.l.b16 %v172
    %v732 = vunpack.c.l.b16 %v173
    %v733 = vunpack.c.l.b16 %v174
    %v734 = vunpack.c.l.b16 %v175
    %v735 = vunpack.c.l.b16 %v176
    %v736 = vunpack.c.l.b16 %v177
    %v737 = vunpack.c.l.b16 %v178
    %v738 = vunpack.c.l.b16 %v179
    %v739 = vunpack.c.l.b16 %v180
    %v740 = vunpack.c.l.b16 %v181
    %v741 = vunpack.c.l.b16 %v182
    %v742 = vunpack.c.l.b16 %v183
    %v743 = vunpack.c.l.b16 %v184
    %v744 = vunpack.c.l.b16 %v185
    %v745 = vunpack.c.l.b16 %v186
    %v746 = vunpack.c.l.b16 %v187
    %v747 = vunpack.c.l.b16 %v188
    %v748 = vunpack.c.l.b16 %v189
    %v749 = vunpack.c.l.b16 %v190
    %v750 = vunpack.c.l.b16 %v191
    %v751 = vpack.c.b16 %v716, %v715
    %v752 = vpack.c.b16 %v718, %v717
    %v753 = vpack.c.b16 %v720, %v719
    %v754 = vpack.c.b16 %v722, %v721
    %v755 = vpack.c.b16 %v724, %v723
    %v756 = vpack.c.b16 %v726, %v725
    %v757 = vpack.c.b16 %v728, %v727
    %v758 = vpack.c.b16 %v730, %v729
    %v759 = vpack.c.b16 %v732, %v731
    %v760 = vpack.c.b16 %v734, %v733
    %v761 = vpack.c.b16 %v736, %v735
    %v762 = vpack.c.b16 %v738, %v737
    %v763 = vpack.c.b16 %v740, %v739
    %v764 = vpack.c.b16 %v742, %v741
    %v765 = vpack.c.b16 %v744, %v743
    %v766 = vpack.c.b16 %v746, %v745
    %v767 = vpack.c.b16 %v748, %v747
    %v768 = vpack.c.b16 %v750, %v749
    %vm787 = vcmask 261120
    %v789 = vsel %vm787, %v521, 0
    %v792 = vsel %vm787, %v524, 0
    %v795 = vsel %vm787, %v527, 0
    %v798 = vsel %vm787, %v530, 0
    %v801 = vsel %vm787, %v533, 0
    %v804 = vsel %vm787, %v536, 0
    %v807 = vsel %vm787, %v539, 0
    %v810 = vsel %vm787, %v542, 0
    %v813 = vsel %vm787, %v545, 0
    %v816 = vsel %vm787, %v548, 0
    %v819 = vsel %vm787, %v551, 0
    %v822 = vsel %vm787, %v554, 0
    %v825 = vsel %vm787, %v557, 0
    %v828 = vsel %vm787, %v560, 0
    %v831 = vsel %vm787, %v563, 0
    %v834 = vsel %vm787, %v566, 0
    %v837 = vsel %vm787, %v569, 0
    %v840 = vsel %vm787, %v572, 0
    %v843 = vsel %vm787, %v575, 0
    %v846 = vsel %vm787, %v578, 0
    %v849 = vsel %vm787, %v581, 0
    %v852 = vsel %vm787, %v584, 0
    %v855 = vsel %vm787, %v587, 0
    %v858 = vsel %vm787, %v590, 0
    %v861 = vsel %vm787, %v593, 0
    %v864 = vsel %vm787, %v596, 0
    %v867 = vsel %vm787, %v599, 0
    %v870 = vsel %vm787, %v602, 0
    %v873 = vsel %vm787, %v605, 0
    %v876 = vsel %vm787, %v608, 0
    %v879 = vsel %vm787, %v611, 0
    %v882 = vsel %vm787, %v614, 0
    %884 = vmatprep.subr.bf16.mxu0 0
    %885 = vmatpush1.bf16.msra.mxu0 %v751
    %886 = vmatprep.subr.bf16.mxu0 0
    %887 = vmatpush1.bf16.msra.mxu0 %v752
    %888 = vmatprep.subr.bf16.mxu0 0
    %889 = vmatpush1.bf16.msra.mxu0 %v753
    %890 = vmatprep.subr.bf16.mxu0 0
    %891 = vmatpush1.bf16.msra.mxu0 %v754
    %892 = vmatprep.subr.bf16.mxu0 0
    %893 = vmatpush1.bf16.msra.mxu0 %v755
    %894 = vmatprep.subr.bf16.mxu0 0
    %895 = vmatpush1.bf16.msra.mxu0 %v756
    %896 = vmatprep.subr.bf16.mxu0 0
    %897 = vmatpush1.bf16.msra.mxu0 %v757
    %898 = vmatprep.subr.bf16.mxu0 0
    %899 = vmatpush1.bf16.msra.mxu0 %v758
    %900 = vmatprep.subr.bf16.mxu0 0
    %901 = vmatpush1.bf16.msra.mxu0 %v759
    %902 = vmatprep.subr.bf16.mxu0 0
    %903 = vmatpush1.bf16.msra.mxu0 %v760
    %904 = vmatprep.subr.bf16.mxu0 0
    %905 = vmatpush1.bf16.msra.mxu0 %v761
    %906 = vmatprep.subr.bf16.mxu0 0
    %907 = vmatpush1.bf16.msra.mxu0 %v762
    %908 = vmatprep.subr.bf16.mxu0 0
    %909 = vmatpush1.bf16.msra.mxu0 %v763
    %910 = vmatprep.subr.bf16.mxu0 0
    %911 = vmatpush1.bf16.msra.mxu0 %v764
    %912 = vmatprep.subr.bf16.mxu0 0
    %913 = vmatpush1.bf16.msra.mxu0 %v765
    %914 = vmatprep.subr.bf16.mxu0 0
    %915 = vmatpush1.bf16.msra.mxu0 %v766
    %916 = vmatprep.mubr.bf16.mxu0 %v520
    %917 = vmatmul.mubr.bf16.gmra.mrb[0].mxu0 %v519
    %v918 = vpop.f32.mrb[0].mxu0
    %v919 = vadd.f32 %v197, %v918
    %v920 = vpop.f32.mrb[0].mxu0
    %v921 = vpop.f32.mrb[0].mxu0
    %v922 = vadd.f32 %v197, %v921
    %v923 = vpop.f32.mrb[0].mxu0
    %924 = vmatprep.mubr.bf16.mxu0 %v523
    %925 = vmatmul.mubr.bf16.gmra.mrb[0].mxu0 %v522
    %v926 = vpop.f32.mrb[0].mxu0
    %v927 = vadd.f32 %v197, %v926
    %v928 = vpop.f32.mrb[0].mxu0
    %v929 = vpop.f32.mrb[0].mxu0
    %v930 = vadd.f32 %v197, %v929
    %v931 = vpop.f32.mrb[0].mxu0
    %932 = vmatprep.mubr.bf16.mxu0 %v526
    %933 = vmatmul.mubr.bf16.gmra.mrb[0].mxu0 %v525
    %v934 = vpop.f32.mrb[0].mxu0
    %v935 = vadd.f32 %v197, %v934
    %v936 = vpop.f32.mrb[0].mxu0
    %v937 = vpop.f32.mrb[0].mxu0
    %v938 = vadd.f32 %v197, %v937
    %v939 = vpop.f32.mrb[0].mxu0
    %940 = vmatprep.mubr.bf16.mxu0 %v529
    %941 = vmatmul.mubr.bf16.gmra.mrb[0].mxu0 %v528
    %v942 = vpop.f32.mrb[0].mxu0
    %v943 = vadd.f32 %v197, %v942
    %v944 = vpop.f32.mrb[0].mxu0
    %v945 = vpop.f32.mrb[0].mxu0
    %v946 = vadd.f32 %v197, %v945
    %v947 = vpop.f32.mrb[0].mxu0
    %948 = vmatprep.mubr.bf16.mxu0 %v532
    %949 = vmatmul.mubr.bf16.gmra.mrb[0].mxu0 %v531
    %v950 = vpop.f32.mrb[0].mxu0
    %v951 = vadd.f32 %v197, %v950
    %v952 = vpop.f32.mrb[0].mxu0
    %v953 = vpop.f32.mrb[0].mxu0
    %v954 = vadd.f32 %v197, %v953
    %v955 = vpop.f32.mrb[0].mxu0
    %956 = vmatprep.mubr.bf16.mxu0 %v535
    %957 = vmatmul.mubr.bf16.gmra.mrb[0].mxu0 %v534
    %v958 = vpop.f32.mrb[0].mxu0
    %v959 = vadd.f32 %v197, %v958
    %v960 = vpop.f32.mrb[0].mxu0
    %v961 = vpop.f32.mrb[0].mxu0
    %v962 = vadd.f32 %v197, %v961
    %v963 = vpop.f32.mrb[0].mxu0
    %964 = vmatprep.mubr.bf16.mxu0 %v538
    %965 = vmatmul.mubr.bf16.gmra.mrb[0].mxu0 %v537
    %v966 = vpop.f32.mrb[0].mxu0
    %v967 = vadd.f32 %v197, %v966
    %v968 = vpop.f32.mrb[0].mxu0
    %v969 = vpop.f32.mrb[0].mxu0
    %v970 = vadd.f32 %v197, %v969
    %v971 = vpop.f32.mrb[0].mxu0
    %972 = vmatprep.mubr.bf16.mxu0 %v541
    %973 = vmatmul.mubr.bf16.gmra.mrb[0].mxu0 %v540
    %v974 = vpop.f32.mrb[0].mxu0
    %v975 = vadd.f32 %v197, %v974
    %v976 = vpop.f32.mrb[0].mxu0
    %v977 = vpop.f32.mrb[0].mxu0
    %v978 = vadd.f32 %v197, %v977
    %v979 = vpop.f32.mrb[0].mxu0
    %980 = vmatprep.mubr.bf16.mxu0 %v544
    %981 = vmatmul.mubr.bf16.gmra.mrb[0].mxu0 %v543
    %v982 = vpop.f32.mrb[0].mxu0
    %v983 = vadd.f32 %v197, %v982
    %v984 = vpop.f32.mrb[0].mxu0
    %v985 = vpop.f32.mrb[0].mxu0
    %v986 = vadd.f32 %v197, %v985
    %v987 = vpop.f32.mrb[0].mxu0
    %988 = vmatprep.mubr.bf16.mxu0 %v547
    %989 = vmatmul.mubr.bf16.gmra.mrb[0].mxu0 %v546
    %v990 = vpop.f32.mrb[0].mxu0
    %v991 = vadd.f32 %v197, %v990
    %v992 = vpop.f32.mrb[0].mxu0
    %v993 = vpop.f32.mrb[0].mxu0
    %v994 = vadd.f32 %v197, %v993
    %v995 = vpop.f32.mrb[0].mxu0
    %996 = vmatprep.mubr.bf16.mxu0 %v550
    %997 = vmatmul.mubr.bf16.gmra.mrb[0].mxu0 %v549
    %v998 = vpop.f32.mrb[0].mxu0
    %v999 = vadd.f32 %v197, %v998
    %v1000 = vpop.f32.mrb[0].mxu0
    %v1001 = vpop.f32.mrb[0].mxu0
    %v1002 = vadd.f32 %v197, %v1001
    %v1003 = vpop.f32.mrb[0].mxu0
    %1004 = vmatprep.mubr.bf16.mxu0 %v553
    %1005 = vmatmul.mubr.bf16.gmra.mrb[0].mxu0 %v552
    %v1006 = vpop.f32.mrb[0].mxu0
    %v1007 = vadd.f32 %v197, %v1006
    %v1008 = vpop.f32.mrb[0].mxu0
    %v1009 = vpop.f32.mrb[0].mxu0
    %v1010 = vadd.f32 %v197, %v1009
    %v1011 = vpop.f32.mrb[0].mxu0
    %1012 = vmatprep.mubr.bf16.mxu0 %v556
    %1013 = vmatmul.mubr.bf16.gmra.mrb[0].mxu0 %v555
    %v1014 = vpop.f32.mrb[0].mxu0
    %v1015 = vadd.f32 %v197, %v1014
    %v1016 = vpop.f32.mrb[0].mxu0
    %v1017 = vpop.f32.mrb[0].mxu0
    %v1018 = vadd.f32 %v197, %v1017
    %v1019 = vpop.f32.mrb[0].mxu0
    %1020 = vmatprep.mubr.bf16.mxu0 %v559
    %1021 = vmatmul.mubr.bf16.gmra.mrb[0].mxu0 %v558
    %v1022 = vpop.f32.mrb[0].mxu0
    %v1023 = vadd.f32 %v197, %v1022
    %v1024 = vpop.f32.mrb[0].mxu0
    %v1025 = vpop.f32.mrb[0].mxu0
    %v1026 = vadd.f32 %v197, %v1025
    %v1027 = vpop.f32.mrb[0].mxu0
    %1028 = vmatprep.mubr.bf16.mxu0 %v562
    %1029 = vmatmul.mubr.bf16.gmra.mrb[0].mxu0 %v561
    %v1030 = vpop.f32.mrb[0].mxu0
    %v1031 = vadd.f32 %v197, %v1030
    %v1032 = vpop.f32.mrb[0].mxu0
    %v1033 = vpop.f32.mrb[0].mxu0
    %v1034 = vadd.f32 %v197, %v1033
    %v1035 = vpop.f32.mrb[0].mxu0
    %1036 = vmatprep.mubr.bf16.mxu0 %v565
    %1037 = vmatmul.mubr.bf16.gmra.mrb[0].mxu0 %v564
    %v1038 = vpop.f32.mrb[0].mxu0
    %v1039 = vadd.f32 %v197, %v1038
    %v1040 = vpop.f32.mrb[0].mxu0
    %v1041 = vpop.f32.mrb[0].mxu0
    %v1042 = vadd.f32 %v197, %v1041
    %v1043 = vpop.f32.mrb[0].mxu0
    %1044 = vmatprep.mubr.bf16.mxu0 %v568
    %1045 = vmatmul.mubr.bf16.gmra.mrb[0].mxu0 %v567
    %v1046 = vpop.f32.mrb[0].mxu0
    %v1047 = vadd.f32 %v197, %v1046
    %v1048 = vpop.f32.mrb[0].mxu0
    %v1049 = vpop.f32.mrb[0].mxu0
    %v1050 = vadd.f32 %v197, %v1049
    %v1051 = vpop.f32.mrb[0].mxu0
    %1052 = vmatprep.mubr.bf16.mxu0 %v571
    %1053 = vmatmul.mubr.bf16.gmra.mrb[0].mxu0 %v570
    %v1054 = vpop.f32.mrb[0].mxu0
    %v1055 = vadd.f32 %v197, %v1054
    %v1056 = vpop.f32.mrb[0].mxu0
    %v1057 = vpop.f32.mrb[0].mxu0
    %v1058 = vadd.f32 %v197, %v1057
    %v1059 = vpop.f32.mrb[0].mxu0
    %1060 = vmatprep.mubr.bf16.mxu0 %v574
    %1061 = vmatmul.mubr.bf16.gmra.mrb[0].mxu0 %v573
    %v1062 = vpop.f32.mrb[0].mxu0
    %v1063 = vadd.f32 %v197, %v1062
    %v1064 = vpop.f32.mrb[0].mxu0
    %v1065 = vpop.f32.mrb[0].mxu0
    %v1066 = vadd.f32 %v197, %v1065
    %v1067 = vpop.f32.mrb[0].mxu0
    %1068 = vmatprep.mubr.bf16.mxu0 %v577
    %1069 = vmatmul.mubr.bf16.gmra.mrb[0].mxu0 %v576
    %v1070 = vpop.f32.mrb[0].mxu0
    %v1071 = vadd.f32 %v197, %v1070
    %v1072 = vpop.f32.mrb[0].mxu0
    %v1073 = vpop.f32.mrb[0].mxu0
    %v1074 = vadd.f32 %v197, %v1073
    %v1075 = vpop.f32.mrb[0].mxu0
    %1076 = vmatprep.mubr.bf16.mxu0 %v580
    %1077 = vmatmul.mubr.bf16.gmra.mrb[0].mxu0 %v579
    %v1078 = vpop.f32.mrb[0].mxu0
    %v1079 = vadd.f32 %v197, %v1078
    %v1080 = vpop.f32.mrb[0].mxu0
    %v1081 = vpop.f32.mrb[0].mxu0
    %v1082 = vadd.f32 %v197, %v1081
    %v1083 = vpop.f32.mrb[0].mxu0
    %1084 = vmatprep.mubr.bf16.mxu0 %v583
    %1085 = vmatmul.mubr.bf16.gmra.mrb[0].mxu0 %v582
    %v1086 = vpop.f32.mrb[0].mxu0
    %v1087 = vadd.f32 %v197, %v1086
    %v1088 = vpop.f32.mrb[0].mxu0
    %v1089 = vpop.f32.mrb[0].mxu0
    %v1090 = vadd.f32 %v197, %v1089
    %v1091 = vpop.f32.mrb[0].mxu0
    %1092 = vmatprep.mubr.bf16.mxu0 %v586
    %1093 = vmatmul.mubr.bf16.gmra.mrb[0].mxu0 %v585
    %v1094 = vpop.f32.mrb[0].mxu0
    %v1095 = vadd.f32 %v197, %v1094
    %v1096 = vpop.f32.mrb[0].mxu0
    %v1097 = vpop.f32.mrb[0].mxu0
    %v1098 = vadd.f32 %v197, %v1097
    %v1099 = vpop.f32.mrb[0].mxu0
    %1100 = vmatprep.mubr.bf16.mxu0 %v589
    %1101 = vmatmul.mubr.bf16.gmra.mrb[0].mxu0 %v588
    %v1102 = vpop.f32.mrb[0].mxu0
    %v1103 = vadd.f32 %v197, %v1102
    %v1104 = vpop.f32.mrb[0].mxu0
    %v1105 = vpop.f32.mrb[0].mxu0
    %v1106 = vadd.f32 %v197, %v1105
    %v1107 = vpop.f32.mrb[0].mxu0
    %1108 = vmatprep.mubr.bf16.mxu0 %v592
    %1109 = vmatmul.mubr.bf16.gmra.mrb[0].mxu0 %v591
    %v1110 = vpop.f32.mrb[0].mxu0
    %v1111 = vadd.f32 %v197, %v1110
    %v1112 = vpop.f32.mrb[0].mxu0
    %v1113 = vpop.f32.mrb[0].mxu0
    %v1114 = vadd.f32 %v197, %v1113
    %v1115 = vpop.f32.mrb[0].mxu0
    %1116 = vmatprep.mubr.bf16.mxu0 %v595
    %1117 = vmatmul.mubr.bf16.gmra.mrb[0].mxu0 %v594
    %v1118 = vpop.f32.mrb[0].mxu0
    %v1119 = vadd.f32 %v197, %v1118
    %v1120 = vpop.f32.mrb[0].mxu0
    %v1121 = vpop.f32.mrb[0].mxu0
    %v1122 = vadd.f32 %v197, %v1121
    %v1123 = vpop.f32.mrb[0].mxu0
    %1124 = vmatprep.mubr.bf16.mxu0 %v598
    %1125 = vmatmul.mubr.bf16.gmra.mrb[0].mxu0 %v597
    %v1126 = vpop.f32.mrb[0].mxu0
    %v1127 = vadd.f32 %v197, %v1126
    %v1128 = vpop.f32.mrb[0].mxu0
    %v1129 = vpop.f32.mrb[0].mxu0
    %v1130 = vadd.f32 %v197, %v1129
    %v1131 = vpop.f32.mrb[0].mxu0
    %1132 = vmatprep.mubr.bf16.mxu0 %v601
    %1133 = vmatmul.mubr.bf16.gmra.mrb[0].mxu0 %v600
    %v1134 = vpop.f32.mrb[0].mxu0
    %v1135 = vadd.f32 %v197, %v1134
    %v1136 = vpop.f32.mrb[0].mxu0
    %v1137 = vpop.f32.mrb[0].mxu0
    %v1138 = vadd.f32 %v197, %v1137
    %v1139 = vpop.f32.mrb[0].mxu0
    %1140 = vmatprep.mubr.bf16.mxu0 %v604
    %1141 = vmatmul.mubr.bf16.gmra.mrb[0].mxu0 %v603
    %v1142 = vpop.f32.mrb[0].mxu0
    %v1143 = vadd.f32 %v197, %v1142
    %v1144 = vpop.f32.mrb[0].mxu0
    %v1145 = vpop.f32.mrb[0].mxu0
    %v1146 = vadd.f32 %v197, %v1145
    %v1147 = vpop.f32.mrb[0].mxu0
    %1148 = vmatprep.mubr.bf16.mxu0 %v607
    %1149 = vmatmul.mubr.bf16.gmra.mrb[0].mxu0 %v606
    %v1150 = vpop.f32.mrb[0].mxu0
    %v1151 = vadd.f32 %v197, %v1150
    %v1152 = vpop.f32.mrb[0].mxu0
    %v1153 = vpop.f32.mrb[0].mxu0
    %v1154 = vadd.f32 %v197, %v1153
    %v1155 = vpop.f32.mrb[0].mxu0
    %1156 = vmatprep.mubr.bf16.mxu0 %v610
    %1157 = vmatmul.mubr.bf16.gmra.mrb[0].mxu0 %v609
    %v1158 = vpop.f32.mrb[0].mxu0
    %v1159 = vadd.f32 %v197, %v1158
    %v1160 = vpop.f32.mrb[0].mxu0
    %v1161 = vpop.f32.mrb[0].mxu0
    %v1162 = vadd.f32 %v197, %v1161
    %v1163 = vpop.f32.mrb[0].mxu0
    %1164 = vmatprep.mubr.bf16.mxu0 %v613
    %1165 = vmatmul.mubr.bf16.gmra.mrb[0].mxu0 %v612
    %v1166 = vpop.f32.mrb[0].mxu0
    %v1167 = vadd.f32 %v197, %v1166
    %v1168 = vpop.f32.mrb[0].mxu0
    %v1169 = vpop.f32.mrb[0].mxu0
    %v1170 = vadd.f32 %v197, %v1169
    %v1171 = vpop.f32.mrb[0].mxu0
    %1172 = vdwg.mxu0
    %1173 = vmatprep.subr.bf16.mxu0 0
    %1174 = vmatpush1.bf16.msra.mxu0 %v767
    %1175 = vmatprep.subr.bf16.mxu0 0
    %1176 = vmatpush1.bf16.msra.mxu0 %v768
    %1177 = vmatprep.subr.bf16.mxu0 0
    %1178 = vmatpush1.bf16.msra.mxu0 0
    %1179 = vmatprep.subr.bf16.mxu0 0
    %1180 = vmatpush1.bf16.msra.mxu0 0
    %1181 = vmatprep.subr.bf16.mxu0 0
    %1182 = vmatpush1.bf16.msra.mxu0 0
    %1183 = vmatprep.subr.bf16.mxu0 0
    %1184 = vmatpush1.bf16.msra.mxu0 0
    %1185 = vmatprep.subr.bf16.mxu0 0
    %1186 = vmatpush1.bf16.msra.mxu0 0
    %1187 = vmatprep.subr.bf16.mxu0 0
    %1188 = vmatpush1.bf16.msra.mxu0 0
    %1189 = vmatprep.subr.bf16.mxu0 0
    %1190 = vmatpush1.bf16.msra.mxu0 0
    %1191 = vmatprep.subr.bf16.mxu0 0
    %1192 = vmatpush1.bf16.msra.mxu0 0
    %1193 = vmatprep.subr.bf16.mxu0 0
    %1194 = vmatpush1.bf16.msra.mxu0 0
    %1195 = vmatprep.subr.bf16.mxu0 0
    %1196 = vmatpush1.bf16.msra.mxu0 0
    %1197 = vmatprep.subr.bf16.mxu0 0
    %1198 = vmatpush1.bf16.msra.mxu0 0
    %1199 = vmatprep.subr.bf16.mxu0 0
    %1200 = vmatpush1.bf16.msra.mxu0 0
    %1201 = vmatprep.subr.bf16.mxu0 0
    %1202 = vmatpush1.bf16.msra.mxu0 0
    %1203 = vmatprep.subr.bf16.mxu0 0
    %1204 = vmatpush1.bf16.msra.mxu0 0
    %1205 = vmatprep.mubr.bf16.mxu0 0
    %1206 = vmatmul.mubr.bf16.gmra.mrb[0].mxu0 %v789
    %v1207 = vpop.f32.mrb[0].mxu0
    %v1208 = vadd.f32 %v919, %v1207
    %v1209 = vpop.f32.mrb[0].mxu0
    %v1210 = vpop.f32.mrb[0].mxu0
    %v1211 = vadd.f32 %v922, %v1210
    %v1212 = vpop.f32.mrb[0].mxu0
    %1213 = vmatprep.mubr.bf16.mxu0 0
    %1214 = vmatmul.mubr.bf16.gmra.mrb[0].mxu0 %v792
    %v1215 = vpop.f32.mrb[0].mxu0
    %v1216 = vadd.f32 %v927, %v1215
    %v1217 = vpop.f32.mrb[0].mxu0
    %v1218 = vpop.f32.mrb[0].mxu0
    %v1219 = vadd.f32 %v930, %v1218
    %v1220 = vpop.f32.mrb[0].mxu0
    %1221 = vmatprep.mubr.bf16.mxu0 0
    %1222 = vmatmul.mubr.bf16.gmra.mrb[0].mxu0 %v795
    %v1223 = vpop.f32.mrb[0].mxu0
    %v1224 = vadd.f32 %v935, %v1223
    %v1225 = vpop.f32.mrb[0].mxu0
    %v1226 = vpop.f32.mrb[0].mxu0
    %v1227 = vadd.f32 %v938, %v1226
    %v1228 = vpop.f32.mrb[0].mxu0
    %1229 = vmatprep.mubr.bf16.mxu0 0
    %1230 = vmatmul.mubr.bf16.gmra.mrb[0].mxu0 %v798
    %v1231 = vpop.f32.mrb[0].mxu0
    %v1232 = vadd.f32 %v943, %v1231
    %v1233 = vpop.f32.mrb[0].mxu0
    %v1234 = vpop.f32.mrb[0].mxu0
    %v1235 = vadd.f32 %v946, %v1234
    %v1236 = vpop.f32.mrb[0].mxu0
    %1237 = vmatprep.mubr.bf16.mxu0 0
    %1238 = vmatmul.mubr.bf16.gmra.mrb[0].mxu0 %v801
    %v1239 = vpop.f32.mrb[0].mxu0
    %v1240 = vadd.f32 %v951, %v1239
    %v1241 = vpop.f32.mrb[0].mxu0
    %v1242 = vpop.f32.mrb[0].mxu0
    %v1243 = vadd.f32 %v954, %v1242
    %v1244 = vpop.f32.mrb[0].mxu0
    %1245 = vmatprep.mubr.bf16.mxu0 0
    %1246 = vmatmul.mubr.bf16.gmra.mrb[0].mxu0 %v804
    %v1247 = vpop.f32.mrb[0].mxu0
    %v1248 = vadd.f32 %v959, %v1247
    %v1249 = vpop.f32.mrb[0].mxu0
    %v1250 = vpop.f32.mrb[0].mxu0
    %v1251 = vadd.f32 %v962, %v1250
    %v1252 = vpop.f32.mrb[0].mxu0
    %1253 = vmatprep.mubr.bf16.mxu0 0
    %1254 = vmatmul.mubr.bf16.gmra.mrb[0].mxu0 %v807
    %v1255 = vpop.f32.mrb[0].mxu0
    %v1256 = vadd.f32 %v967, %v1255
    %v1257 = vpop.f32.mrb[0].mxu0
    %v1258 = vpop.f32.mrb[0].mxu0
    %v1259 = vadd.f32 %v970, %v1258
    %v1260 = vpop.f32.mrb[0].mxu0
    %1261 = vmatprep.mubr.bf16.mxu0 0
    %1262 = vmatmul.mubr.bf16.gmra.mrb[0].mxu0 %v810
    %v1263 = vpop.f32.mrb[0].mxu0
    %v1264 = vadd.f32 %v975, %v1263
    %v1265 = vpop.f32.mrb[0].mxu0
    %v1266 = vpop.f32.mrb[0].mxu0
    %v1267 = vadd.f32 %v978, %v1266
    %v1268 = vpop.f32.mrb[0].mxu0
    %1269 = vmatprep.mubr.bf16.mxu0 0
    %1270 = vmatmul.mubr.bf16.gmra.mrb[0].mxu0 %v813
    %v1271 = vpop.f32.mrb[0].mxu0
    %v1272 = vadd.f32 %v983, %v1271
    %v1273 = vpop.f32.mrb[0].mxu0
    %v1274 = vpop.f32.mrb[0].mxu0
    %v1275 = vadd.f32 %v986, %v1274
    %v1276 = vpop.f32.mrb[0].mxu0
    %1277 = vmatprep.mubr.bf16.mxu0 0
    %1278 = vmatmul.mubr.bf16.gmra.mrb[0].mxu0 %v816
    %v1279 = vpop.f32.mrb[0].mxu0
    %v1280 = vadd.f32 %v991, %v1279
    %v1281 = vpop.f32.mrb[0].mxu0
    %v1282 = vpop.f32.mrb[0].mxu0
    %v1283 = vadd.f32 %v994, %v1282
    %v1284 = vpop.f32.mrb[0].mxu0
    %1285 = vmatprep.mubr.bf16.mxu0 0
    %1286 = vmatmul.mubr.bf16.gmra.mrb[0].mxu0 %v819
    %v1287 = vpop.f32.mrb[0].mxu0
    %v1288 = vadd.f32 %v999, %v1287
    %v1289 = vpop.f32.mrb[0].mxu0
    %v1290 = vpop.f32.mrb[0].mxu0
    %v1291 = vadd.f32 %v1002, %v1290
    %v1292 = vpop.f32.mrb[0].mxu0
    %1293 = vmatprep.mubr.bf16.mxu0 0
    %1294 = vmatmul.mubr.bf16.gmra.mrb[0].mxu0 %v822
    %v1295 = vpop.f32.mrb[0].mxu0
    %v1296 = vadd.f32 %v1007, %v1295
    %v1297 = vpop.f32.mrb[0].mxu0
    %v1298 = vpop.f32.mrb[0].mxu0
    %v1299 = vadd.f32 %v1010, %v1298
    %v1300 = vpop.f32.mrb[0].mxu0
    %1301 = vmatprep.mubr.bf16.mxu0 0
    %1302 = vmatmul.mubr.bf16.gmra.mrb[0].mxu0 %v825
    %v1303 = vpop.f32.mrb[0].mxu0
    %v1304 = vadd.f32 %v1015, %v1303
    %v1305 = vpop.f32.mrb[0].mxu0
    %v1306 = vpop.f32.mrb[0].mxu0
    %v1307 = vadd.f32 %v1018, %v1306
    %v1308 = vpop.f32.mrb[0].mxu0
    %1309 = vmatprep.mubr.bf16.mxu0 0
    %1310 = vmatmul.mubr.bf16.gmra.mrb[0].mxu0 %v828
    %v1311 = vpop.f32.mrb[0].mxu0
    %v1312 = vadd.f32 %v1023, %v1311
    %v1313 = vpop.f32.mrb[0].mxu0
    %v1314 = vpop.f32.mrb[0].mxu0
    %v1315 = vadd.f32 %v1026, %v1314
    %v1316 = vpop.f32.mrb[0].mxu0
    %1317 = vmatprep.mubr.bf16.mxu0 0
    %1318 = vmatmul.mubr.bf16.gmra.mrb[0].mxu0 %v831
    %v1319 = vpop.f32.mrb[0].mxu0
    %v1320 = vadd.f32 %v1031, %v1319
    %v1321 = vpop.f32.mrb[0].mxu0
    %v1322 = vpop.f32.mrb[0].mxu0
    %v1323 = vadd.f32 %v1034, %v1322
    %v1324 = vpop.f32.mrb[0].mxu0
    %1325 = vmatprep.mubr.bf16.mxu0 0
    %1326 = vmatmul.mubr.bf16.gmra.mrb[0].mxu0 %v834
    %v1327 = vpop.f32.mrb[0].mxu0
    %v1328 = vadd.f32 %v1039, %v1327
    %v1329 = vpop.f32.mrb[0].mxu0
    %v1330 = vpop.f32.mrb[0].mxu0
    %v1331 = vadd.f32 %v1042, %v1330
    %v1332 = vpop.f32.mrb[0].mxu0
    %1333 = vmatprep.mubr.bf16.mxu0 0
    %1334 = vmatmul.mubr.bf16.gmra.mrb[0].mxu0 %v837
    %v1335 = vpop.f32.mrb[0].mxu0
    %v1336 = vadd.f32 %v1047, %v1335
    %v1337 = vpop.f32.mrb[0].mxu0
    %v1338 = vpop.f32.mrb[0].mxu0
    %v1339 = vadd.f32 %v1050, %v1338
    %v1340 = vpop.f32.mrb[0].mxu0
    %1341 = vmatprep.mubr.bf16.mxu0 0
    %1342 = vmatmul.mubr.bf16.gmra.mrb[0].mxu0 %v840
    %v1343 = vpop.f32.mrb[0].mxu0
    %v1344 = vadd.f32 %v1055, %v1343
    %v1345 = vpop.f32.mrb[0].mxu0
    %v1346 = vpop.f32.mrb[0].mxu0
    %v1347 = vadd.f32 %v1058, %v1346
    %v1348 = vpop.f32.mrb[0].mxu0
    %1349 = vmatprep.mubr.bf16.mxu0 0
    %1350 = vmatmul.mubr.bf16.gmra.mrb[0].mxu0 %v843
    %v1351 = vpop.f32.mrb[0].mxu0
    %v1352 = vadd.f32 %v1063, %v1351
    %v1353 = vpop.f32.mrb[0].mxu0
    %v1354 = vpop.f32.mrb[0].mxu0
    %v1355 = vadd.f32 %v1066, %v1354
    %v1356 = vpop.f32.mrb[0].mxu0
    %1357 = vmatprep.mubr.bf16.mxu0 0
    %1358 = vmatmul.mubr.bf16.gmra.mrb[0].mxu0 %v846
    %v1359 = vpop.f32.mrb[0].mxu0
    %v1360 = vadd.f32 %v1071, %v1359
    %v1361 = vpop.f32.mrb[0].mxu0
    %v1362 = vpop.f32.mrb[0].mxu0
    %v1363 = vadd.f32 %v1074, %v1362
    %v1364 = vpop.f32.mrb[0].mxu0
    %1365 = vmatprep.mubr.bf16.mxu0 0
    %1366 = vmatmul.mubr.bf16.gmra.mrb[0].mxu0 %v849
    %v1367 = vpop.f32.mrb[0].mxu0
    %v1368 = vadd.f32 %v1079, %v1367
    %v1369 = vpop.f32.mrb[0].mxu0
    %v1370 = vpop.f32.mrb[0].mxu0
    %v1371 = vadd.f32 %v1082, %v1370
    %v1372 = vpop.f32.mrb[0].mxu0
    %1373 = vmatprep.mubr.bf16.mxu0 0
    %1374 = vmatmul.mubr.bf16.gmra.mrb[0].mxu0 %v852
    %v1375 = vpop.f32.mrb[0].mxu0
    %v1376 = vadd.f32 %v1087, %v1375
    %v1377 = vpop.f32.mrb[0].mxu0
    %v1378 = vpop.f32.mrb[0].mxu0
    %v1379 = vadd.f32 %v1090, %v1378
    %v1380 = vpop.f32.mrb[0].mxu0
    %1381 = vmatprep.mubr.bf16.mxu0 0
    %1382 = vmatmul.mubr.bf16.gmra.mrb[0].mxu0 %v855
    %v1383 = vpop.f32.mrb[0].mxu0
    %v1384 = vadd.f32 %v1095, %v1383
    %v1385 = vpop.f32.mrb[0].mxu0
    %v1386 = vpop.f32.mrb[0].mxu0
    %v1387 = vadd.f32 %v1098, %v1386
    %v1388 = vpop.f32.mrb[0].mxu0
    %1389 = vmatprep.mubr.bf16.mxu0 0
    %1390 = vmatmul.mubr.bf16.gmra.mrb[0].mxu0 %v858
    %v1391 = vpop.f32.mrb[0].mxu0
    %v1392 = vadd.f32 %v1103, %v1391
    %v1393 = vpop.f32.mrb[0].mxu0
    %v1394 = vpop.f32.mrb[0].mxu0
    %v1395 = vadd.f32 %v1106, %v1394
    %v1396 = vpop.f32.mrb[0].mxu0
    %1397 = vmatprep.mubr.bf16.mxu0 0
    %1398 = vmatmul.mubr.bf16.gmra.mrb[0].mxu0 %v861
    %v1399 = vpop.f32.mrb[0].mxu0
    %v1400 = vadd.f32 %v1111, %v1399
    %v1401 = vpop.f32.mrb[0].mxu0
    %v1402 = vpop.f32.mrb[0].mxu0
    %v1403 = vadd.f32 %v1114, %v1402
    %v1404 = vpop.f32.mrb[0].mxu0
    %1405 = vmatprep.mubr.bf16.mxu0 0
    %1406 = vmatmul.mubr.bf16.gmra.mrb[0].mxu0 %v864
    %v1407 = vpop.f32.mrb[0].mxu0
    %v1408 = vadd.f32 %v1119, %v1407
    %v1409 = vpop.f32.mrb[0].mxu0
    %v1410 = vpop.f32.mrb[0].mxu0
    %v1411 = vadd.f32 %v1122, %v1410
    %v1412 = vpop.f32.mrb[0].mxu0
    %1413 = vmatprep.mubr.bf16.mxu0 0
    %1414 = vmatmul.mubr.bf16.gmra.mrb[0].mxu0 %v867
    %v1415 = vpop.f32.mrb[0].mxu0
    %v1416 = vadd.f32 %v1127, %v1415
    %v1417 = vpop.f32.mrb[0].mxu0
    %v1418 = vpop.f32.mrb[0].mxu0
    %v1419 = vadd.f32 %v1130, %v1418
    %v1420 = vpop.f32.mrb[0].mxu0
    %1421 = vmatprep.mubr.bf16.mxu0 0
    %1422 = vmatmul.mubr.bf16.gmra.mrb[0].mxu0 %v870
    %v1423 = vpop.f32.mrb[0].mxu0
    %v1424 = vadd.f32 %v1135, %v1423
    %v1425 = vpop.f32.mrb[0].mxu0
    %v1426 = vpop.f32.mrb[0].mxu0
    %v1427 = vadd.f32 %v1138, %v1426
    %v1428 = vpop.f32.mrb[0].mxu0
    %1429 = vmatprep.mubr.bf16.mxu0 0
    %1430 = vmatmul.mubr.bf16.gmra.mrb[0].mxu0 %v873
    %v1431 = vpop.f32.mrb[0].mxu0
    %v1432 = vadd.f32 %v1143, %v1431
    %v1433 = vpop.f32.mrb[0].mxu0
    %v1434 = vpop.f32.mrb[0].mxu0
    %v1435 = vadd.f32 %v1146, %v1434
    %v1436 = vpop.f32.mrb[0].mxu0
    %1437 = vmatprep.mubr.bf16.mxu0 0
    %1438 = vmatmul.mubr.bf16.gmra.mrb[0].mxu0 %v876
    %v1439 = vpop.f32.mrb[0].mxu0
    %v1440 = vadd.f32 %v1151, %v1439
    %v1441 = vpop.f32.mrb[0].mxu0
    %v1442 = vpop.f32.mrb[0].mxu0
    %v1443 = vadd.f32 %v1154, %v1442
    %v1444 = vpop.f32.mrb[0].mxu0
    %1445 = vmatprep.mubr.bf16.mxu0 0
    %1446 = vmatmul.mubr.bf16.gmra.mrb[0].mxu0 %v879
    %v1447 = vpop.f32.mrb[0].mxu0
    %v1448 = vadd.f32 %v1159, %v1447
    %v1449 = vpop.f32.mrb[0].mxu0
    %v1450 = vpop.f32.mrb[0].mxu0
    %v1451 = vadd.f32 %v1162, %v1450
    %v1452 = vpop.f32.mrb[0].mxu0
    %1453 = vmatprep.mubr.bf16.mxu0 0
    %1454 = vmatmul.mubr.bf16.gmra.mrb[0].mxu0 %v882
    %v1455 = vpop.f32.mrb[0].mxu0
    %v1456 = vadd.f32 %v1167, %v1455
    %v1457 = vpop.f32.mrb[0].mxu0
    %v1458 = vpop.f32.mrb[0].mxu0
    %v1459 = vadd.f32 %v1170, %v1458
    %v1460 = vpop.f32.mrb[0].mxu0
    %1461 = vdwg.mxu0
    %v1462 = vmax.f32 %v1208, 0.0
    %v1463 = vmax.f32 %v1211, 0.0
    %v1464 = vmax.f32 %v1216, 0.0
    %v1465 = vmax.f32 %v1219, 0.0
    %v1466 = vmax.f32 %v1224, 0.0
    %v1467 = vmax.f32 %v1227, 0.0
    %v1468 = vmax.f32 %v1232, 0.0
    %v1469 = vmax.f32 %v1235, 0.0
    %v1470 = vmax.f32 %v1240, 0.0
    %v1471 = vmax.f32 %v1243, 0.0
    %v1472 = vmax.f32 %v1248, 0.0
    %v1473 = vmax.f32 %v1251, 0.0
    %v1474 = vmax.f32 %v1256, 0.0
    %v1475 = vmax.f32 %v1259, 0.0
    %v1476 = vmax.f32 %v1264, 0.0
    %v1477 = vmax.f32 %v1267, 0.0
    %v1478 = vmax.f32 %v1272, 0.0
    %v1479 = vmax.f32 %v1275, 0.0
    %v1480 = vmax.f32 %v1280, 0.0
    %v1481 = vmax.f32 %v1283, 0.0
    %v1482 = vmax.f32 %v1288, 0.0
    %v1483 = vmax.f32 %v1291, 0.0
    %v1484 = vmax.f32 %v1296, 0.0
    %v1485 = vmax.f32 %v1299, 0.0
    %v1486 = vmax.f32 %v1304, 0.0
    %v1487 = vmax.f32 %v1307, 0.0
    %v1488 = vmax.f32 %v1312, 0.0
    %v1489 = vmax.f32 %v1315, 0.0
    %v1490 = vmax.f32 %v1320, 0.0
    %v1491 = vmax.f32 %v1323, 0.0
    %v1492 = vmax.f32 %v1328, 0.0
    %v1493 = vmax.f32 %v1331, 0.0
    %v1494 = vmax.f32 %v1336, 0.0
    %v1495 = vmax.f32 %v1339, 0.0
    %v1496 = vmax.f32 %v1344, 0.0
    %v1497 = vmax.f32 %v1347, 0.0
    %v1498 = vmax.f32 %v1352, 0.0
    %v1499 = vmax.f32 %v1355, 0.0
    %v1500 = vmax.f32 %v1360, 0.0
    %v1501 = vmax.f32 %v1363, 0.0
    %v1502 = vmax.f32 %v1368, 0.0
    %v1503 = vmax.f32 %v1371, 0.0
    %v1504 = vmax.f32 %v1376, 0.0
    %v1505 = vmax.f32 %v1379, 0.0
    %v1506 = vmax.f32 %v1384, 0.0
    %v1507 = vmax.f32 %v1387, 0.0
    %v1508 = vmax.f32 %v1392, 0.0
    %v1509 = vmax.f32 %v1395, 0.0
    %v1510 = vmax.f32 %v1400, 0.0
    %v1511 = vmax.f32 %v1403, 0.0
    %v1512 = vmax.f32 %v1408, 0.0
    %v1513 = vmax.f32 %v1411, 0.0
    %v1514 = vmax.f32 %v1416, 0.0
    %v1515 = vmax.f32 %v1419, 0.0
    %v1516 = vmax.f32 %v1424, 0.0
    %v1517 = vmax.f32 %v1427, 0.0
    %v1518 = vmax.f32 %v1432, 0.0
    %v1519 = vmax.f32 %v1435, 0.0
    %v1520 = vmax.f32 %v1440, 0.0
    %v1521 = vmax.f32 %v1443, 0.0
    %v1522 = vmax.f32 %v1448, 0.0
    %v1523 = vmax.f32 %v1451, 0.0
    %v1524 = vmax.f32 %v1456, 0.0
    %v1525 = vmax.f32 %v1459, 0.0
    %v1526 = vmax.f32 %v1462, %v1478
    %v1527 = vmax.f32 %v1463, %v1479
    %v1528 = vmax.f32 %v1464, %v1480
    %v1529 = vmax.f32 %v1465, %v1481
    %v1530 = vmax.f32 %v1466, %v1482
    %v1531 = vmax.f32 %v1467, %v1483
    %v1532 = vmax.f32 %v1468, %v1484
    %v1533 = vmax.f32 %v1469, %v1485
    %v1534 = vmax.f32 %v1470, %v1486
    %v1535 = vmax.f32 %v1471, %v1487
    %v1536 = vmax.f32 %v1472, %v1488
    %v1537 = vmax.f32 %v1473, %v1489
    %v1538 = vmax.f32 %v1474, %v1490
    %v1539 = vmax.f32 %v1475, %v1491
    %v1540 = vmax.f32 %v1476, %v1492
    %v1541 = vmax.f32 %v1477, %v1493
    %v1542 = vmax.f32 %v1526, %v1494
    %v1543 = vmax.f32 %v1527, %v1495
    %v1544 = vmax.f32 %v1528, %v1496
    %v1545 = vmax.f32 %v1529, %v1497
    %v1546 = vmax.f32 %v1530, %v1498
    %v1547 = vmax.f32 %v1531, %v1499
    %v1548 = vmax.f32 %v1532, %v1500
    %v1549 = vmax.f32 %v1533, %v1501
    %v1550 = vmax.f32 %v1534, %v1502
    %v1551 = vmax.f32 %v1535, %v1503
    %v1552 = vmax.f32 %v1536, %v1504
    %v1553 = vmax.f32 %v1537, %v1505
    %v1554 = vmax.f32 %v1538, %v1506
    %v1555 = vmax.f32 %v1539, %v1507
    %v1556 = vmax.f32 %v1540, %v1508
    %v1557 = vmax.f32 %v1541, %v1509
    %v1558 = vmax.f32 %v1542, %v1510
    %v1559 = vmax.f32 %v1543, %v1511
    %v1560 = vmax.f32 %v1544, %v1512
    %v1561 = vmax.f32 %v1545, %v1513
    %v1562 = vmax.f32 %v1546, %v1514
    %v1563 = vmax.f32 %v1547, %v1515
    %v1564 = vmax.f32 %v1548, %v1516
    %v1565 = vmax.f32 %v1549, %v1517
    %v1566 = vmax.f32 %v1550, %v1518
    %v1567 = vmax.f32 %v1551, %v1519
    %v1568 = vmax.f32 %v1552, %v1520
    %v1569 = vmax.f32 %v1553, %v1521
    %v1570 = vmax.f32 %v1554, %v1522
    %v1571 = vmax.f32 %v1555, %v1523
    %v1572 = vmax.f32 %v1556, %v1524
    %v1573 = vmax.f32 %v1557, %v1525
    %vm1574 = vcmask 517120
    %1575 = vst.msk [vmem:[#allocation2] sm:$0x3] %vm1574, %v1558
    %v1578 = vunpack.c.l.s4 1983009808
    %v1579 = vunpack.c.0.s8 %v1578
    %v1580 = vlaneseq
    %v1581 = vshrl.u32 %v1580, 7
    %v1582 = vsub.s32 %v1579, %v1581
    %v1583 = vrot.slane %v1558, %v1582
    %v1584 = vcombine.high %v1583, %v1583
    %1585 = vrot.lane.b32.xlu0 %v1584, 64
    %v1586 = vpop.permute.xlu0 %1585
    %vm1588 = vcmask 1041920
    %1589 = vst.msk [vmem:[#allocation2] sm:$0x3] %vm1588, %v1586
    %v1590 = vcombine.high %v1558, %v1558
    %v1592 = vunpack.c.l.s4 1983009808
    %v1593 = vunpack.c.0.s8 %v1592
    %v1594 = vlaneseq
    %v1595 = vshrl.u32 %v1594, 7
    %v1596 = vsub.s32 %v1593, %v1595
    %v1597 = vrot.slane %v1590, %v1596
    %1599 = vst.msk [vmem:[#allocation2 + $0x2] sm:$0x3] %vm1574, %v1597
    %v1600 = vcombine.high %v1597, %v1597
    %1601 = vrot.lane.b32.xlu0 %v1600, 64
    %v1602 = vpop.permute.xlu0 %1601
    %1604 = vst.msk [vmem:[#allocation2 + $0x2] sm:$0x3] %vm1588, %v1602
    %1605 = vst.msk [vmem:[#allocation2 + $0x4] sm:$0x3] %vm1574, %v1559
    %v1608 = vunpack.c.l.s4 1983009808
    %v1609 = vunpack.c.0.s8 %v1608
    %v1610 = vlaneseq
    %v1611 = vshrl.u32 %v1610, 7
    %v1612 = vsub.s32 %v1609, %v1611
    %v1613 = vrot.slane %v1559, %v1612
    %v1614 = vcombine.high %v1613, %v1613
    %1615 = vrot.lane.b32.xlu0 %v1614, 64
    %v1616 = vpop.permute.xlu0 %1615
    %1618 = vst.msk [vmem:[#allocation2 + $0x4] sm:$0x3] %vm1588, %v1616
    %v1619 = vcombine.high %v1559, %v1559
    %v1621 = vunpack.c.l.s4 1983009808
    %v1622 = vunpack.c.0.s8 %v1621
    %v1623 = vlaneseq
    %v1624 = vshrl.u32 %v1623, 7
    %v1625 = vsub.s32 %v1622, %v1624
    %v1626 = vrot.slane %v1619, %v1625
    %1628 = vst.msk [vmem:[#allocation2 + $0x6] sm:$0x3] %vm1574, %v1626
    %v1629 = vcombine.high %v1626, %v1626
    %1630 = vrot.lane.b32.xlu0 %v1629, 64
    %v1631 = vpop.permute.xlu0 %1630
    %1633 = vst.msk [vmem:[#allocation2 + $0x6] sm:$0x3] %vm1588, %v1631
    %1634 = vst.msk [vmem:[#allocation2 + $0x8] sm:$0x3] %vm1574, %v1560
    %v1637 = vunpack.c.l.s4 1983009808
    %v1638 = vunpack.c.0.s8 %v1637
    %v1639 = vlaneseq
    %v1640 = vshrl.u32 %v1639, 7
    %v1641 = vsub.s32 %v1638, %v1640
    %v1642 = vrot.slane %v1560, %v1641
    %v1643 = vcombine.high %v1642, %v1642
    %1644 = vrot.lane.b32.xlu0 %v1643, 64
    %v1645 = vpop.permute.xlu0 %1644
    %1647 = vst.msk [vmem:[#allocation2 + $0x8] sm:$0x3] %vm1588, %v1645
    %v1648 = vcombine.high %v1560, %v1560
    %v1650 = vunpack.c.l.s4 1983009808
    %v1651 = vunpack.c.0.s8 %v1650
    %v1652 = vlaneseq
    %v1653 = vshrl.u32 %v1652, 7
    %v1654 = vsub.s32 %v1651, %v1653
    %v1655 = vrot.slane %v1648, %v1654
    %1657 = vst.msk [vmem:[#allocation2 + $0xa] sm:$0x3] %vm1574, %v1655
    %v1658 = vcombine.high %v1655, %v1655
    %1659 = vrot.lane.b32.xlu0 %v1658, 64
    %v1660 = vpop.permute.xlu0 %1659
    %1662 = vst.msk [vmem:[#allocation2 + $0xa] sm:$0x3] %vm1588, %v1660
    %1663 = vst.msk [vmem:[#allocation2 + $0xc] sm:$0x3] %vm1574, %v1561
    %v1666 = vunpack.c.l.s4 1983009808
    %v1667 = vunpack.c.0.s8 %v1666
    %v1668 = vlaneseq
    %v1669 = vshrl.u32 %v1668, 7
    %v1670 = vsub.s32 %v1667, %v1669
    %v1671 = vrot.slane %v1561, %v1670
    %v1672 = vcombine.high %v1671, %v1671
    %1673 = vrot.lane.b32.xlu0 %v1672, 64
    %v1674 = vpop.permute.xlu0 %1673
    %1676 = vst.msk [vmem:[#allocation2 + $0xc] sm:$0x3] %vm1588, %v1674
    %v1677 = vcombine.high %v1561, %v1561
    %v1679 = vunpack.c.l.s4 1983009808
    %v1680 = vunpack.c.0.s8 %v1679
    %v1681 = vlaneseq
    %v1682 = vshrl.u32 %v1681, 7
    %v1683 = vsub.s32 %v1680, %v1682
    %v1684 = vrot.slane %v1677, %v1683
    %1686 = vst.msk [vmem:[#allocation2 + $0xe] sm:$0x3] %vm1574, %v1684
    %v1687 = vcombine.high %v1684, %v1684
    %1688 = vrot.lane.b32.xlu0 %v1687, 64
    %v1689 = vpop.permute.xlu0 %1688
    %1691 = vst.msk [vmem:[#allocation2 + $0xe] sm:$0x3] %vm1588, %v1689
    %1692 = vst.msk [vmem:[#allocation2 + $0x10] sm:$0x3] %vm1574, %v1562
    %v1695 = vunpack.c.l.s4 1983009808
    %v1696 = vunpack.c.0.s8 %v1695
    %v1697 = vlaneseq
    %v1698 = vshrl.u32 %v1697, 7
    %v1699 = vsub.s32 %v1696, %v1698
    %v1700 = vrot.slane %v1562, %v1699
    %v1701 = vcombine.high %v1700, %v1700
    %1702 = vrot.lane.b32.xlu0 %v1701, 64
    %v1703 = vpop.permute.xlu0 %1702
    %1705 = vst.msk [vmem:[#allocation2 + $0x10] sm:$0x3] %vm1588, %v1703
    %v1706 = vcombine.high %v1562, %v1562
    %v1708 = vunpack.c.l.s4 1983009808
    %v1709 = vunpack.c.0.s8 %v1708
    %v1710 = vlaneseq
    %v1711 = vshrl.u32 %v1710, 7
    %v1712 = vsub.s32 %v1709, %v1711
    %v1713 = vrot.slane %v1706, %v1712
    %1715 = vst.msk [vmem:[#allocation2 + $0x12] sm:$0x3] %vm1574, %v1713
    %v1716 = vcombine.high %v1713, %v1713
    %1717 = vrot.lane.b32.xlu0 %v1716, 64
    %v1718 = vpop.permute.xlu0 %1717
    %1720 = vst.msk [vmem:[#allocation2 + $0x12] sm:$0x3] %vm1588, %v1718
    %1721 = vst.msk [vmem:[#allocation2 + $0x14] sm:$0x3] %vm1574, %v1563
    %v1724 = vunpack.c.l.s4 1983009808
    %v1725 = vunpack.c.0.s8 %v1724
    %v1726 = vlaneseq
    %v1727 = vshrl.u32 %v1726, 7
    %v1728 = vsub.s32 %v1725, %v1727
    %v1729 = vrot.slane %v1563, %v1728
    %v1730 = vcombine.high %v1729, %v1729
    %1731 = vrot.lane.b32.xlu0 %v1730, 64
    %v1732 = vpop.permute.xlu0 %1731
    %1734 = vst.msk [vmem:[#allocation2 + $0x14] sm:$0x3] %vm1588, %v1732
    %v1735 = vcombine.high %v1563, %v1563
    %v1737 = vunpack.c.l.s4 1983009808
    %v1738 = vunpack.c.0.s8 %v1737
    %v1739 = vlaneseq
    %v1740 = vshrl.u32 %v1739, 7
    %v1741 = vsub.s32 %v1738, %v1740
    %v1742 = vrot.slane %v1735, %v1741
    %1744 = vst.msk [vmem:[#allocation2 + $0x16] sm:$0x3] %vm1574, %v1742
    %v1745 = vcombine.high %v1742, %v1742
    %1746 = vrot.lane.b32.xlu0 %v1745, 64
    %v1747 = vpop.permute.xlu0 %1746
    %1749 = vst.msk [vmem:[#allocation2 + $0x16] sm:$0x3] %vm1588, %v1747
    %1750 = vst.msk [vmem:[#allocation2 + $0x18] sm:$0x3] %vm1574, %v1564
    %v1753 = vunpack.c.l.s4 1983009808
    %v1754 = vunpack.c.0.s8 %v1753
    %v1755 = vlaneseq
    %v1756 = vshrl.u32 %v1755, 7
    %v1757 = vsub.s32 %v1754, %v1756
    %v1758 = vrot.slane %v1564, %v1757
    %v1759 = vcombine.high %v1758, %v1758
    %1760 = vrot.lane.b32.xlu0 %v1759, 64
    %v1761 = vpop.permute.xlu0 %1760
    %1763 = vst.msk [vmem:[#allocation2 + $0x18] sm:$0x3] %vm1588, %v1761
    %v1764 = vcombine.high %v1564, %v1564
    %v1766 = vunpack.c.l.s4 1983009808
    %v1767 = vunpack.c.0.s8 %v1766
    %v1768 = vlaneseq
    %v1769 = vshrl.u32 %v1768, 7
    %v1770 = vsub.s32 %v1767, %v1769
    %v1771 = vrot.slane %v1764, %v1770
    %1773 = vst.msk [vmem:[#allocation2 + $0x1a] sm:$0x3] %vm1574, %v1771
    %v1774 = vcombine.high %v1771, %v1771
    %1775 = vrot.lane.b32.xlu0 %v1774, 64
    %v1776 = vpop.permute.xlu0 %1775
    %1778 = vst.msk [vmem:[#allocation2 + $0x1a] sm:$0x3] %vm1588, %v1776
    %1779 = vst.msk [vmem:[#allocation2 + $0x1c] sm:$0x3] %vm1574, %v1565
    %v1782 = vunpack.c.l.s4 1983009808
    %v1783 = vunpack.c.0.s8 %v1782
    %v1784 = vlaneseq
    %v1785 = vshrl.u32 %v1784, 7
    %v1786 = vsub.s32 %v1783, %v1785
    %v1787 = vrot.slane %v1565, %v1786
    %v1788 = vcombine.high %v1787, %v1787
    %1789 = vrot.lane.b32.xlu0 %v1788, 64
    %v1790 = vpop.permute.xlu0 %1789
    %1792 = vst.msk [vmem:[#allocation2 + $0x1c] sm:$0x3] %vm1588, %v1790
    %v1793 = vcombine.high %v1565, %v1565
    %v1795 = vunpack.c.l.s4 1983009808
    %v1796 = vunpack.c.0.s8 %v1795
    %v1797 = vlaneseq
    %v1798 = vshrl.u32 %v1797, 7
    %v1799 = vsub.s32 %v1796, %v1798
    %v1800 = vrot.slane %v1793, %v1799
    %1802 = vst.msk [vmem:[#allocation2 + $0x1e] sm:$0x3] %vm1574, %v1800
    %v1803 = vcombine.high %v1800, %v1800
    %1804 = vrot.lane.b32.xlu0 %v1803, 64
    %v1805 = vpop.permute.xlu0 %1804
    %1807 = vst.msk [vmem:[#allocation2 + $0x1e] sm:$0x3] %vm1588, %v1805
    %1808 = vst.msk [vmem:[#allocation2 + $0x20] sm:$0x3] %vm1574, %v1566
    %v1811 = vunpack.c.l.s4 1983009808
    %v1812 = vunpack.c.0.s8 %v1811
    %v1813 = vlaneseq
    %v1814 = vshrl.u32 %v1813, 7
    %v1815 = vsub.s32 %v1812, %v1814
    %v1816 = vrot.slane %v1566, %v1815
    %v1817 = vcombine.high %v1816, %v1816
    %1818 = vrot.lane.b32.xlu0 %v1817, 64
    %v1819 = vpop.permute.xlu0 %1818
    %1821 = vst.msk [vmem:[#allocation2 + $0x20] sm:$0x3] %vm1588, %v1819
    %v1822 = vcombine.high %v1566, %v1566
    %v1824 = vunpack.c.l.s4 1983009808
    %v1825 = vunpack.c.0.s8 %v1824
    %v1826 = vlaneseq
    %v1827 = vshrl.u32 %v1826, 7
    %v1828 = vsub.s32 %v1825, %v1827
    %v1829 = vrot.slane %v1822, %v1828
    %1831 = vst.msk [vmem:[#allocation2 + $0x22] sm:$0x3] %vm1574, %v1829
    %v1832 = vcombine.high %v1829, %v1829
    %1833 = vrot.lane.b32.xlu0 %v1832, 64
    %v1834 = vpop.permute.xlu0 %1833
    %1836 = vst.msk [vmem:[#allocation2 + $0x22] sm:$0x3] %vm1588, %v1834
    %1837 = vst.msk [vmem:[#allocation2 + $0x24] sm:$0x3] %vm1574, %v1567
    %v1840 = vunpack.c.l.s4 1983009808
    %v1841 = vunpack.c.0.s8 %v1840
    %v1842 = vlaneseq
    %v1843 = vshrl.u32 %v1842, 7
    %v1844 = vsub.s32 %v1841, %v1843
    %v1845 = vrot.slane %v1567, %v1844
    %v1846 = vcombine.high %v1845, %v1845
    %1847 = vrot.lane.b32.xlu0 %v1846, 64
    %v1848 = vpop.permute.xlu0 %1847
    %1850 = vst.msk [vmem:[#allocation2 + $0x24] sm:$0x3] %vm1588, %v1848
    %v1851 = vcombine.high %v1567, %v1567
    %v1853 = vunpack.c.l.s4 1983009808
    %v1854 = vunpack.c.0.s8 %v1853
    %v1855 = vlaneseq
    %v1856 = vshrl.u32 %v1855, 7
    %v1857 = vsub.s32 %v1854, %v1856
    %v1858 = vrot.slane %v1851, %v1857
    %1860 = vst.msk [vmem:[#allocation2 + $0x26] sm:$0x3] %vm1574, %v1858
    %v1861 = vcombine.high %v1858, %v1858
    %1862 = vrot.lane.b32.xlu0 %v1861, 64
    %v1863 = vpop.permute.xlu0 %1862
    %1865 = vst.msk [vmem:[#allocation2 + $0x26] sm:$0x3] %vm1588, %v1863
    %1866 = vst.msk [vmem:[#allocation2 + $0x28] sm:$0x3] %vm1574, %v1568
    %v1869 = vunpack.c.l.s4 1983009808
    %v1870 = vunpack.c.0.s8 %v1869
    %v1871 = vlaneseq
    %v1872 = vshrl.u32 %v1871, 7
    %v1873 = vsub.s32 %v1870, %v1872
    %v1874 = vrot.slane %v1568, %v1873
    %v1875 = vcombine.high %v1874, %v1874
    %1876 = vrot.lane.b32.xlu0 %v1875, 64
    %v1877 = vpop.permute.xlu0 %1876
    %1879 = vst.msk [vmem:[#allocation2 + $0x28] sm:$0x3] %vm1588, %v1877
    %v1880 = vcombine.high %v1568, %v1568
    %v1882 = vunpack.c.l.s4 1983009808
    %v1883 = vunpack.c.0.s8 %v1882
    %v1884 = vlaneseq
    %v1885 = vshrl.u32 %v1884, 7
    %v1886 = vsub.s32 %v1883, %v1885
    %v1887 = vrot.slane %v1880, %v1886
    %1889 = vst.msk [vmem:[#allocation2 + $0x2a] sm:$0x3] %vm1574, %v1887
    %v1890 = vcombine.high %v1887, %v1887
    %1891 = vrot.lane.b32.xlu0 %v1890, 64
    %v1892 = vpop.permute.xlu0 %1891
    %1894 = vst.msk [vmem:[#allocation2 + $0x2a] sm:$0x3] %vm1588, %v1892
    %1895 = vst.msk [vmem:[#allocation2 + $0x2c] sm:$0x3] %vm1574, %v1569
    %v1898 = vunpack.c.l.s4 1983009808
    %v1899 = vunpack.c.0.s8 %v1898
    %v1900 = vlaneseq
    %v1901 = vshrl.u32 %v1900, 7
    %v1902 = vsub.s32 %v1899, %v1901
    %v1903 = vrot.slane %v1569, %v1902
    %v1904 = vcombine.high %v1903, %v1903
    %1905 = vrot.lane.b32.xlu0 %v1904, 64
    %v1906 = vpop.permute.xlu0 %1905
    %1908 = vst.msk [vmem:[#allocation2 + $0x2c] sm:$0x3] %vm1588, %v1906
    %v1909 = vcombine.high %v1569, %v1569
    %v1911 = vunpack.c.l.s4 1983009808
    %v1912 = vunpack.c.0.s8 %v1911
    %v1913 = vlaneseq
    %v1914 = vshrl.u32 %v1913, 7
    %v1915 = vsub.s32 %v1912, %v1914
    %v1916 = vrot.slane %v1909, %v1915
    %1918 = vst.msk [vmem:[#allocation2 + $0x2e] sm:$0x3] %vm1574, %v1916
    %v1919 = vcombine.high %v1916, %v1916
    %1920 = vrot.lane.b32.xlu0 %v1919, 64
    %v1921 = vpop.permute.xlu0 %1920
    %1923 = vst.msk [vmem:[#allocation2 + $0x2e] sm:$0x3] %vm1588, %v1921
    %1924 = vst.msk [vmem:[#allocation2 + $0x30] sm:$0x3] %vm1574, %v1570
    %v1927 = vunpack.c.l.s4 1983009808
    %v1928 = vunpack.c.0.s8 %v1927
    %v1929 = vlaneseq
    %v1930 = vshrl.u32 %v1929, 7
    %v1931 = vsub.s32 %v1928, %v1930
    %v1932 = vrot.slane %v1570, %v1931
    %v1933 = vcombine.high %v1932, %v1932
    %1934 = vrot.lane.b32.xlu0 %v1933, 64
    %v1935 = vpop.permute.xlu0 %1934
    %1937 = vst.msk [vmem:[#allocation2 + $0x30] sm:$0x3] %vm1588, %v1935
    %v1938 = vcombine.high %v1570, %v1570
    %v1940 = vunpack.c.l.s4 1983009808
    %v1941 = vunpack.c.0.s8 %v1940
    %v1942 = vlaneseq
    %v1943 = vshrl.u32 %v1942, 7
    %v1944 = vsub.s32 %v1941, %v1943
    %v1945 = vrot.slane %v1938, %v1944
    %1947 = vst.msk [vmem:[#allocation2 + $0x32] sm:$0x3] %vm1574, %v1945
    %v1948 = vcombine.high %v1945, %v1945
    %1949 = vrot.lane.b32.xlu0 %v1948, 64
    %v1950 = vpop.permute.xlu0 %1949
    %1952 = vst.msk [vmem:[#allocation2 + $0x32] sm:$0x3] %vm1588, %v1950
    %1953 = vst.msk [vmem:[#allocation2 + $0x34] sm:$0x3] %vm1574, %v1571
    %v1956 = vunpack.c.l.s4 1983009808
    %v1957 = vunpack.c.0.s8 %v1956
    %v1958 = vlaneseq
    %v1959 = vshrl.u32 %v1958, 7
    %v1960 = vsub.s32 %v1957, %v1959
    %v1961 = vrot.slane %v1571, %v1960
    %v1962 = vcombine.high %v1961, %v1961
    %1963 = vrot.lane.b32.xlu0 %v1962, 64
    %v1964 = vpop.permute.xlu0 %1963
    %1966 = vst.msk [vmem:[#allocation2 + $0x34] sm:$0x3] %vm1588, %v1964
    %v1967 = vcombine.high %v1571, %v1571
    %v1969 = vunpack.c.l.s4 1983009808
    %v1970 = vunpack.c.0.s8 %v1969
    %v1971 = vlaneseq
    %v1972 = vshrl.u32 %v1971, 7
    %v1973 = vsub.s32 %v1970, %v1972
    %v1974 = vrot.slane %v1967, %v1973
    %1976 = vst.msk [vmem:[#allocation2 + $0x36] sm:$0x3] %vm1574, %v1974
    %v1977 = vcombine.high %v1974, %v1974
    %1978 = vrot.lane.b32.xlu0 %v1977, 64
    %v1979 = vpop.permute.xlu0 %1978
    %1981 = vst.msk [vmem:[#allocation2 + $0x36] sm:$0x3] %vm1588, %v1979
    %1982 = vst.msk [vmem:[#allocation2 + $0x38] sm:$0x3] %vm1574, %v1572
    %v1985 = vunpack.c.l.s4 1983009808
    %v1986 = vunpack.c.0.s8 %v1985
    %v1987 = vlaneseq
    %v1988 = vshrl.u32 %v1987, 7
    %v1989 = vsub.s32 %v1986, %v1988
    %v1990 = vrot.slane %v1572, %v1989
    %v1991 = vcombine.high %v1990, %v1990
    %1992 = vrot.lane.b32.xlu0 %v1991, 64
    %v1993 = vpop.permute.xlu0 %1992
    %1995 = vst.msk [vmem:[#allocation2 + $0x38] sm:$0x3] %vm1588, %v1993
    %v1996 = vcombine.high %v1572, %v1572
    %v1998 = vunpack.c.l.s4 1983009808
    %v1999 = vunpack.c.0.s8 %v1998
    %v2000 = vlaneseq
    %v2001 = vshrl.u32 %v2000, 7
    %v2002 = vsub.s32 %v1999, %v2001
    %v2003 = vrot.slane %v1996, %v2002
    %2005 = vst.msk [vmem:[#allocation2 + $0x3a] sm:$0x3] %vm1574, %v2003
    %v2006 = vcombine.high %v2003, %v2003
    %2007 = vrot.lane.b32.xlu0 %v2006, 64
    %v2008 = vpop.permute.xlu0 %2007
    %2010 = vst.msk [vmem:[#allocation2 + $0x3a] sm:$0x3] %vm1588, %v2008
    %2011 = vst.msk [vmem:[#allocation2 + $0x3c] sm:$0x3] %vm1574, %v1573
    %v2014 = vunpack.c.l.s4 1983009808
    %v2015 = vunpack.c.0.s8 %v2014
    %v2016 = vlaneseq
    %v2017 = vshrl.u32 %v2016, 7
    %v2018 = vsub.s32 %v2015, %v2017
    %v2019 = vrot.slane %v1573, %v2018
    %v2020 = vcombine.high %v2019, %v2019
    %2021 = vrot.lane.b32.xlu0 %v2020, 64
    %v2022 = vpop.permute.xlu0 %2021
    %2024 = vst.msk [vmem:[#allocation2 + $0x3c] sm:$0x3] %vm1588, %v2022
    %v2025 = vcombine.high %v1573, %v1573
    %v2027 = vunpack.c.l.s4 1983009808
    %v2028 = vunpack.c.0.s8 %v2027
    %v2029 = vlaneseq
    %v2030 = vshrl.u32 %v2029, 7
    %v2031 = vsub.s32 %v2028, %v2030
    %v2032 = vrot.slane %v2025, %v2031
    %2034 = vst.msk [vmem:[#allocation2 + $0x3e] sm:$0x3] %vm1574, %v2032
    %v2035 = vcombine.high %v2032, %v2032
    %2036 = vrot.lane.b32.xlu0 %v2035, 64
    %v2037 = vpop.permute.xlu0 %2036
    %2039 = vst.msk [vmem:[#allocation2 + $0x3e] sm:$0x3] %vm1588, %v2037
    %v2040 = vld [vmem:[#allocation2] sm:$0xff]
    %v2041 = vld [vmem:[#allocation2 + $0x8] sm:$0xff]
    %v2042 = vld [vmem:[#allocation2 + $0x10] sm:$0xff]
    %v2043 = vld [vmem:[#allocation2 + $0x18] sm:$0xff]
    %v2044 = vld [vmem:[#allocation2 + $0x20] sm:$0xff]
    %v2045 = vld [vmem:[#allocation2 + $0x28] sm:$0xff]
    %v2046 = vld [vmem:[#allocation2 + $0x30] sm:$0xff]
    %v2047 = vld [vmem:[#allocation2 + $0x38] sm:$0xff]
    %v2056 = vcombine.high %v2040, %v2040
    %v2058 = vunpack.c.l.s4 1983009808
    %v2059 = vunpack.c.0.s8 %v2058
    %v2060 = vlaneseq
    %v2061 = vshrl.u32 %v2060, 7
    %v2062 = vsub.s32 %v2059, %v2061
    %v2063 = vrot.slane %v2040, %v2062
    %v2065 = vunpack.c.l.s4 1983009808
    %v2066 = vunpack.c.0.s8 %v2065
    %v2067 = vlaneseq
    %v2068 = vshrl.u32 %v2067, 7
    %v2069 = vsub.s32 %v2066, %v2068
    %v2070 = vrot.slane %v2056, %v2069
    %v2071 = vcombine.high %v2063, %v2063
    %v2072 = vcombine.high %v2070, %v2070
    %v2073 = vcombine.high %v2041, %v2041
    %v2075 = vunpack.c.l.s4 1983009808
    %v2076 = vunpack.c.0.s8 %v2075
    %v2077 = vlaneseq
    %v2078 = vshrl.u32 %v2077, 7
    %v2079 = vsub.s32 %v2076, %v2078
    %v2080 = vrot.slane %v2041, %v2079
    %v2082 = vunpack.c.l.s4 1983009808
    %v2083 = vunpack.c.0.s8 %v2082
    %v2084 = vlaneseq
    %v2085 = vshrl.u32 %v2084, 7
    %v2086 = vsub.s32 %v2083, %v2085
    %v2087 = vrot.slane %v2073, %v2086
    %v2088 = vcombine.high %v2080, %v2080
    %v2089 = vcombine.high %v2087, %v2087
    %v2090 = vcombine.high %v2042, %v2042
    %v2092 = vunpack.c.l.s4 1983009808
    %v2093 = vunpack.c.0.s8 %v2092
    %v2094 = vlaneseq
    %v2095 = vshrl.u32 %v2094, 7
    %v2096 = vsub.s32 %v2093, %v2095
    %v2097 = vrot.slane %v2042, %v2096
    %v2099 = vunpack.c.l.s4 1983009808
    %v2100 = vunpack.c.0.s8 %v2099
    %v2101 = vlaneseq
    %v2102 = vshrl.u32 %v2101, 7
    %v2103 = vsub.s32 %v2100, %v2102
    %v2104 = vrot.slane %v2090, %v2103
    %v2105 = vcombine.high %v2097, %v2097
    %v2106 = vcombine.high %v2104, %v2104
    %v2107 = vcombine.high %v2043, %v2043
    %v2109 = vunpack.c.l.s4 1983009808
    %v2110 = vunpack.c.0.s8 %v2109
    %v2111 = vlaneseq
    %v2112 = vshrl.u32 %v2111, 7
    %v2113 = vsub.s32 %v2110, %v2112
    %v2114 = vrot.slane %v2043, %v2113
    %v2116 = vunpack.c.l.s4 1983009808
    %v2117 = vunpack.c.0.s8 %v2116
    %v2118 = vlaneseq
    %v2119 = vshrl.u32 %v2118, 7
    %v2120 = vsub.s32 %v2117, %v2119
    %v2121 = vrot.slane %v2107, %v2120
    %v2122 = vcombine.high %v2114, %v2114
    %v2123 = vcombine.high %v2121, %v2121
    %v2124 = vcombine.high %v2044, %v2044
    %v2126 = vunpack.c.l.s4 1983009808
    %v2127 = vunpack.c.0.s8 %v2126
    %v2128 = vlaneseq
    %v2129 = vshrl.u32 %v2128, 7
    %v2130 = vsub.s32 %v2127, %v2129
    %v2131 = vrot.slane %v2044, %v2130
    %v2133 = vunpack.c.l.s4 1983009808
    %v2134 = vunpack.c.0.s8 %v2133
    %v2135 = vlaneseq
    %v2136 = vshrl.u32 %v2135, 7
    %v2137 = vsub.s32 %v2134, %v2136
    %v2138 = vrot.slane %v2124, %v2137
    %v2139 = vcombine.high %v2131, %v2131
    %v2140 = vcombine.high %v2138, %v2138
    %v2141 = vcombine.high %v2045, %v2045
    %v2143 = vunpack.c.l.s4 1983009808
    %v2144 = vunpack.c.0.s8 %v2143
    %v2145 = vlaneseq
    %v2146 = vshrl.u32 %v2145, 7
    %v2147 = vsub.s32 %v2144, %v2146
    %v2148 = vrot.slane %v2045, %v2147
    %v2150 = vunpack.c.l.s4 1983009808
    %v2151 = vunpack.c.0.s8 %v2150
    %v2152 = vlaneseq
    %v2153 = vshrl.u32 %v2152, 7
    %v2154 = vsub.s32 %v2151, %v2153
    %v2155 = vrot.slane %v2141, %v2154
    %v2156 = vcombine.high %v2148, %v2148
    %v2157 = vcombine.high %v2155, %v2155
    %v2158 = vcombine.high %v2046, %v2046
    %v2160 = vunpack.c.l.s4 1983009808
    %v2161 = vunpack.c.0.s8 %v2160
    %v2162 = vlaneseq
    %v2163 = vshrl.u32 %v2162, 7
    %v2164 = vsub.s32 %v2161, %v2163
    %v2165 = vrot.slane %v2046, %v2164
    %v2167 = vunpack.c.l.s4 1983009808
    %v2168 = vunpack.c.0.s8 %v2167
    %v2169 = vlaneseq
    %v2170 = vshrl.u32 %v2169, 7
    %v2171 = vsub.s32 %v2168, %v2170
    %v2172 = vrot.slane %v2158, %v2171
    %v2173 = vcombine.high %v2165, %v2165
    %v2174 = vcombine.high %v2172, %v2172
    %v2175 = vcombine.high %v2047, %v2047
    %v2177 = vunpack.c.l.s4 1983009808
    %v2178 = vunpack.c.0.s8 %v2177
    %v2179 = vlaneseq
    %v2180 = vshrl.u32 %v2179, 7
    %v2181 = vsub.s32 %v2178, %v2180
    %v2182 = vrot.slane %v2047, %v2181
    %v2184 = vunpack.c.l.s4 1983009808
    %v2185 = vunpack.c.0.s8 %v2184
    %v2186 = vlaneseq
    %v2187 = vshrl.u32 %v2186, 7
    %v2188 = vsub.s32 %v2185, %v2187
    %v2189 = vrot.slane %v2175, %v2188
    %v2190 = vcombine.high %v2182, %v2182
    %v2191 = vcombine.high %v2189, %v2189
    %v2224 = vpack.c.bf16 %v2063, %v2063
    %v2225 = vpack.c.bf16 %v2071, %v2071
    %v2226 = vpack.c.bf16 %v2070, %v2070
    %v2227 = vpack.c.bf16 %v2072, %v2072
    %v2228 = vpack.c.bf16 %v2080, %v2080
    %v2229 = vpack.c.bf16 %v2088, %v2088
    %v2230 = vpack.c.bf16 %v2087, %v2087
    %v2231 = vpack.c.bf16 %v2089, %v2089
    %v2232 = vpack.c.bf16 %v2097, %v2097
    %v2233 = vpack.c.bf16 %v2105, %v2105
    %v2234 = vpack.c.bf16 %v2104, %v2104
    %v2235 = vpack.c.bf16 %v2106, %v2106
    %v2236 = vpack.c.bf16 %v2114, %v2114
    %v2237 = vpack.c.bf16 %v2122, %v2122
    %v2238 = vpack.c.bf16 %v2121, %v2121
    %v2239 = vpack.c.bf16 %v2123, %v2123
    %v2240 = vpack.c.bf16 %v2131, %v2131
    %v2241 = vpack.c.bf16 %v2139, %v2139
    %v2242 = vpack.c.bf16 %v2138, %v2138
    %v2243 = vpack.c.bf16 %v2140, %v2140
    %v2244 = vpack.c.bf16 %v2148, %v2148
    %v2245 = vpack.c.bf16 %v2156, %v2156
    %v2246 = vpack.c.bf16 %v2155, %v2155
    %v2247 = vpack.c.bf16 %v2157, %v2157
    %v2248 = vpack.c.bf16 %v2165, %v2165
    %v2249 = vpack.c.bf16 %v2173, %v2173
    %v2250 = vpack.c.bf16 %v2172, %v2172
    %v2251 = vpack.c.bf16 %v2174, %v2174
    %v2252 = vpack.c.bf16 %v2182, %v2182
    %v2253 = vpack.c.bf16 %v2190, %v2190
    %v2254 = vpack.c.bf16 %v2189, %v2189
    %v2255 = vpack.c.bf16 %v2191, %v2191
    %v2256 = vld [vmem:[%s3] sm:$0xff]
    %v2257 = vld [vmem:[%s3 + $0x8] sm:$0xff]
    %v2258 = vld [vmem:[%s3 + $0x10] sm:$0xff]
    %v2259 = vld [vmem:[%s3 + $0x18] sm:$0xff]
    %v2260 = vld [vmem:[%s3 + $0x20] sm:$0xff]
    %v2261 = vld [vmem:[%s3 + $0x28] sm:$0xff]
    %v2262 = vld [vmem:[%s3 + $0x30] sm:$0xff]
    %v2263 = vld [vmem:[%s3 + $0x38] sm:$0xff]
    %v2264 = vld [vmem:[%s3 + $0x40] sm:$0xff]
    %v2265 = vld [vmem:[%s3 + $0x48] sm:$0xff]
    %v2266 = vld [vmem:[%s3 + $0x50] sm:$0xff]
    %v2267 = vld [vmem:[%s3 + $0x58] sm:$0xff]
    %v2268 = vld [vmem:[%s3 + $0x60] sm:$0xff]
    %v2269 = vld [vmem:[%s3 + $0x68] sm:$0xff]
    %v2270 = vld [vmem:[%s3 + $0x70] sm:$0xff]
    %v2271 = vld [vmem:[%s3 + $0x78] sm:$0xff]
    %v2272 = vld [vmem:[%s3 + $0x80] sm:$0xff]
    %v2273 = vld [vmem:[%s3 + $0x88] sm:$0xff]
    %v2274 = vld [vmem:[%s3 + $0x90] sm:$0xff]
    %v2275 = vld [vmem:[%s3 + $0x98] sm:$0xff]
    %v2276 = vld [vmem:[%s3 + $0xa0] sm:$0xff]
    %v2277 = vld [vmem:[%s3 + $0xa8] sm:$0xff]
    %v2278 = vld [vmem:[%s3 + $0xb0] sm:$0xff]
    %v2279 = vld [vmem:[%s3 + $0xb8] sm:$0xff]
    %v2280 = vld [vmem:[%s3 + $0xc0] sm:$0xff]
    %v2281 = vld [vmem:[%s3 + $0xc8] sm:$0xff]
    %v2282 = vld [vmem:[%s3 + $0xd0] sm:$0xff]
    %v2283 = vld [vmem:[%s3 + $0xd8] sm:$0xff]
    %v2284 = vld [vmem:[%s3 + $0xe0] sm:$0xff]
    %v2285 = vld [vmem:[%s3 + $0xe8] sm:$0xff]
    %v2286 = vld [vmem:[%s3 + $0xf0] sm:$0xff]
    %v2287 = vld [vmem:[%s3 + $0xf8] sm:$0xff]
    %v2288 = vld [vmem:[%s3 + $0x100] sm:$0xff]
    %v2289 = vld [vmem:[%s3 + $0x108] sm:$0xff]
    %v2290 = vld [vmem:[%s3 + $0x110] sm:$0xff]
    %v2291 = vld [vmem:[%s3 + $0x118] sm:$0xff]
    %v2292 = vld [vmem:[%s3 + $0x120] sm:$0xff]
    %v2293 = vld [vmem:[%s3 + $0x128] sm:$0xff]
    %v2294 = vld [vmem:[%s3 + $0x130] sm:$0xff]
    %v2295 = vld [vmem:[%s3 + $0x138] sm:$0xff]
    %v2296 = vld [vmem:[%s3 + $0x140] sm:$0xff]
    %v2297 = vld [vmem:[%s3 + $0x148] sm:$0xff]
    %v2298 = vld [vmem:[%s3 + $0x150] sm:$0xff]
    %v2299 = vld [vmem:[%s3 + $0x158] sm:$0xff]
    %v2300 = vld [vmem:[%s3 + $0x160] sm:$0xff]
    %v2301 = vld [vmem:[%s3 + $0x168] sm:$0xff]
    %v2302 = vld [vmem:[%s3 + $0x170] sm:$0xff]
    %v2303 = vld [vmem:[%s3 + $0x178] sm:$0xff]
    %v2304 = vld [vmem:[%s3 + $0x180] sm:$0xff]
    %v2305 = vld [vmem:[%s3 + $0x188] sm:$0xff]
    %v2306 = vld [vmem:[%s3 + $0x190] sm:$0xff]
    %v2307 = vld [vmem:[%s3 + $0x198] sm:$0xff]
    %v2308 = vld [vmem:[%s3 + $0x1a0] sm:$0xff]
    %v2309 = vld [vmem:[%s3 + $0x1a8] sm:$0xff]
    %v2310 = vld [vmem:[%s3 + $0x1b0] sm:$0xff]
    %v2311 = vld [vmem:[%s3 + $0x1b8] sm:$0xff]
    %v2312 = vld [vmem:[%s3 + $0x1c0] sm:$0xff]
    %v2313 = vld [vmem:[%s3 + $0x1c8] sm:$0xff]
    %v2314 = vld [vmem:[%s3 + $0x1d0] sm:$0xff]
    %v2315 = vld [vmem:[%s3 + $0x1d8] sm:$0xff]
    %v2316 = vld [vmem:[%s3 + $0x1e0] sm:$0xff]
    %v2317 = vld [vmem:[%s3 + $0x1e8] sm:$0xff]
    %v2318 = vld [vmem:[%s3 + $0x1f0] sm:$0xff]
    %v2319 = vld [vmem:[%s3 + $0x1f8] sm:$0xff]
    %v2320 = vld [vmem:[%s3 + $0x200] sm:$0xff]
    %v2321 = vld [vmem:[%s3 + $0x208] sm:$0xff]
    %v2322 = vld [vmem:[%s3 + $0x210] sm:$0xff]
    %v2323 = vld [vmem:[%s3 + $0x218] sm:$0xff]
    %v2324 = vld [vmem:[%s3 + $0x220] sm:$0xff]
    %v2325 = vld [vmem:[%s3 + $0x228] sm:$0xff]
    %v2326 = vld [vmem:[%s3 + $0x230] sm:$0xff]
    %v2327 = vld [vmem:[%s3 + $0x238] sm:$0xff]
    %v2328 = vld [vmem:[%s3 + $0x240] sm:$0xff]
    %v2329 = vld [vmem:[%s3 + $0x248] sm:$0xff]
    %v2330 = vld [vmem:[%s3 + $0x250] sm:$0xff]
    %v2331 = vld [vmem:[%s3 + $0x258] sm:$0xff]
    %v2332 = vld [vmem:[%s3 + $0x260] sm:$0xff]
    %v2333 = vld [vmem:[%s3 + $0x268] sm:$0xff]
    %v2334 = vld [vmem:[%s3 + $0x270] sm:$0xff]
    %v2335 = vld [vmem:[%s3 + $0x278] sm:$0xff]
    %v2336 = vld [vmem:[%s3 + $0x280] sm:$0xff]
    %v2337 = vld [vmem:[%s3 + $0x288] sm:$0xff]
    %v2338 = vld [vmem:[%s3 + $0x290] sm:$0xff]
    %v2339 = vld [vmem:[%s3 + $0x298] sm:$0xff]
    %v2340 = vld [vmem:[%s3 + $0x2a0] sm:$0xff]
    %v2341 = vld [vmem:[%s3 + $0x2a8] sm:$0xff]
    %v2342 = vld [vmem:[%s3 + $0x2b0] sm:$0xff]
    %v2343 = vld [vmem:[%s3 + $0x2b8] sm:$0xff]
    %v2344 = vld [vmem:[%s3 + $0x2c0] sm:$0xff]
    %v2345 = vld [vmem:[%s3 + $0x2c8] sm:$0xff]
    %v2346 = vld [vmem:[%s3 + $0x2d0] sm:$0xff]
    %v2347 = vld [vmem:[%s3 + $0x2d8] sm:$0xff]
    %v2348 = vld [vmem:[%s3 + $0x2e0] sm:$0xff]
    %v2349 = vld [vmem:[%s3 + $0x2e8] sm:$0xff]
    %v2350 = vld [vmem:[%s3 + $0x2f0] sm:$0xff]
    %v2351 = vld [vmem:[%s3 + $0x2f8] sm:$0xff]
    %v2352 = vld [vmem:[%s3 + $0x300] sm:$0xff]
    %v2353 = vld [vmem:[%s3 + $0x308] sm:$0xff]
    %v2354 = vld [vmem:[%s3 + $0x310] sm:$0xff]
    %v2355 = vld [vmem:[%s3 + $0x318] sm:$0xff]
    %v2356 = vld [vmem:[%s3 + $0x320] sm:$0xff]
    %v2357 = vld [vmem:[%s3 + $0x328] sm:$0xff]
    %v2358 = vld [vmem:[%s3 + $0x330] sm:$0xff]
    %v2359 = vld [vmem:[%s3 + $0x338] sm:$0xff]
    %v2360 = vld [vmem:[%s3 + $0x340] sm:$0xff]
    %v2361 = vld [vmem:[%s3 + $0x348] sm:$0xff]
    %v2362 = vld [vmem:[%s3 + $0x350] sm:$0xff]
    %v2363 = vld [vmem:[%s3 + $0x358] sm:$0xff]
    %v2364 = vld [vmem:[%s3 + $0x360] sm:$0xff]
    %v2365 = vld [vmem:[%s3 + $0x368] sm:$0xff]
    %v2366 = vld [vmem:[%s3 + $0x370] sm:$0xff]
    %v2367 = vld [vmem:[%s3 + $0x378] sm:$0xff]
    %v2368 = vld [vmem:[%s3 + $0x380] sm:$0xff]
    %v2369 = vld [vmem:[%s3 + $0x388] sm:$0xff]
    %v2370 = vld [vmem:[%s3 + $0x390] sm:$0xff]
    %v2371 = vld [vmem:[%s3 + $0x398] sm:$0xff]
    %v2372 = vld [vmem:[%s3 + $0x3a0] sm:$0xff]
    %v2373 = vld [vmem:[%s3 + $0x3a8] sm:$0xff]
    %v2374 = vld [vmem:[%s3 + $0x3b0] sm:$0xff]
    %v2375 = vld [vmem:[%s3 + $0x3b8] sm:$0xff]
    %v2376 = vld [vmem:[%s3 + $0x3c0] sm:$0xff]
    %v2377 = vld [vmem:[%s3 + $0x3c8] sm:$0xff]
    %v2378 = vld [vmem:[%s3 + $0x3d0] sm:$0xff]
    %v2379 = vld [vmem:[%s3 + $0x3d8] sm:$0xff]
    %v2380 = vld [vmem:[%s3 + $0x3e0] sm:$0xff]
    %v2381 = vld [vmem:[%s3 + $0x3e8] sm:$0xff]
    %v2382 = vld [vmem:[%s3 + $0x3f0] sm:$0xff]
    %v2383 = vld [vmem:[%s3 + $0x3f8] sm:$0xff]
    %v2384 = vld [vmem:[%s3 + $0x400] sm:$0xff]
    %v2385 = vld [vmem:[%s3 + $0x408] sm:$0xff]
    %v2386 = vld [vmem:[%s3 + $0x410] sm:$0xff]
    %v2387 = vld [vmem:[%s3 + $0x418] sm:$0xff]
    %v2388 = vld [vmem:[%s3 + $0x420] sm:$0xff]
    %v2389 = vld [vmem:[%s3 + $0x428] sm:$0xff]
    %v2390 = vld [vmem:[%s3 + $0x430] sm:$0xff]
    %v2391 = vld [vmem:[%s3 + $0x438] sm:$0xff]
    %v2392 = vld [vmem:[%s3 + $0x440] sm:$0xff]
    %v2393 = vld [vmem:[%s3 + $0x448] sm:$0xff]
    %v2394 = vld [vmem:[%s3 + $0x450] sm:$0xff]
    %v2395 = vld [vmem:[%s3 + $0x458] sm:$0xff]
    %v2396 = vld [vmem:[%s3 + $0x460] sm:$0xff]
    %v2397 = vld [vmem:[%s3 + $0x468] sm:$0xff]
    %v2398 = vld [vmem:[%s3 + $0x470] sm:$0xff]
    %v2399 = vld [vmem:[%s3 + $0x478] sm:$0xff]
    %v2400 = vld [vmem:[%s3 + $0x480] sm:$0xff]
    %v2401 = vld [vmem:[%s3 + $0x488] sm:$0xff]
    %v2402 = vld [vmem:[%s3 + $0x490] sm:$0xff]
    %v2403 = vld [vmem:[%s3 + $0x498] sm:$0xff]
    %v2404 = vld [vmem:[%s3 + $0x4a0] sm:$0xff]
    %v2405 = vld [vmem:[%s3 + $0x4a8] sm:$0xff]
    %v2406 = vld [vmem:[%s3 + $0x4b0] sm:$0xff]
    %v2407 = vld [vmem:[%s3 + $0x4b8] sm:$0xff]
    %v2408 = vld [vmem:[%s3 + $0x4c0] sm:$0xff]
    %v2409 = vld [vmem:[%s3 + $0x4c8] sm:$0xff]
    %v2410 = vld [vmem:[%s3 + $0x4d0] sm:$0xff]
    %v2411 = vld [vmem:[%s3 + $0x4d8] sm:$0xff]
    %v2412 = vld [vmem:[%s3 + $0x4e0] sm:$0xff]
    %v2413 = vld [vmem:[%s3 + $0x4e8] sm:$0xff]
    %v2414 = vld [vmem:[%s3 + $0x4f0] sm:$0xff]
    %v2415 = vld [vmem:[%s3 + $0x4f8] sm:$0xff]
    %v2416 = vld [vmem:[%s3 + $0x500] sm:$0xff]
    %v2417 = vld [vmem:[%s3 + $0x508] sm:$0xff]
    %v2418 = vld [vmem:[%s3 + $0x510] sm:$0xff]
    %v2419 = vld [vmem:[%s3 + $0x518] sm:$0xff]
    %v2420 = vld [vmem:[%s3 + $0x520] sm:$0xff]
    %v2421 = vld [vmem:[%s3 + $0x528] sm:$0xff]
    %v2422 = vld [vmem:[%s3 + $0x530] sm:$0xff]
    %v2423 = vld [vmem:[%s3 + $0x538] sm:$0xff]
    %v2424 = vld [vmem:[%s3 + $0x540] sm:$0xff]
    %v2425 = vld [vmem:[%s3 + $0x548] sm:$0xff]
    %v2426 = vld [vmem:[%s3 + $0x550] sm:$0xff]
    %v2427 = vld [vmem:[%s3 + $0x558] sm:$0xff]
    %v2428 = vld [vmem:[%s3 + $0x560] sm:$0xff]
    %v2429 = vld [vmem:[%s3 + $0x568] sm:$0xff]
    %v2430 = vld [vmem:[%s3 + $0x570] sm:$0xff]
    %v2431 = vld [vmem:[%s3 + $0x578] sm:$0xff]
    %v2432 = vld [vmem:[%s3 + $0x580] sm:$0xff]
    %v2433 = vld [vmem:[%s3 + $0x588] sm:$0xff]
    %v2434 = vld [vmem:[%s3 + $0x590] sm:$0xff]
    %v2435 = vld [vmem:[%s3 + $0x598] sm:$0xff]
    %v2436 = vld [vmem:[%s3 + $0x5a0] sm:$0xff]
    %v2437 = vld [vmem:[%s3 + $0x5a8] sm:$0xff]
    %v2438 = vld [vmem:[%s3 + $0x5b0] sm:$0xff]
    %v2439 = vld [vmem:[%s3 + $0x5b8] sm:$0xff]
    %v2440 = vld [vmem:[%s3 + $0x5c0] sm:$0xff]
    %v2441 = vld [vmem:[%s3 + $0x5c8] sm:$0xff]
    %v2442 = vld [vmem:[%s3 + $0x5d0] sm:$0xff]
    %v2443 = vld [vmem:[%s3 + $0x5d8] sm:$0xff]
    %v2444 = vld [vmem:[%s3 + $0x5e0] sm:$0xff]
    %v2445 = vld [vmem:[%s3 + $0x5e8] sm:$0xff]
    %v2446 = vld [vmem:[%s3 + $0x5f0] sm:$0xff]
    %v2447 = vld [vmem:[%s3 + $0x5f8] sm:$0xff]
    %v2448 = vld [vmem:[%s3 + $0x600] sm:$0xff]
    %v2449 = vld [vmem:[%s3 + $0x608] sm:$0xff]
    %v2450 = vld [vmem:[%s3 + $0x610] sm:$0xff]
    %v2451 = vld [vmem:[%s3 + $0x618] sm:$0xff]
    %v2452 = vld [vmem:[%s3 + $0x620] sm:$0xff]
    %v2453 = vld [vmem:[%s3 + $0x628] sm:$0xff]
    %v2454 = vld [vmem:[%s3 + $0x630] sm:$0xff]
    %v2455 = vld [vmem:[%s3 + $0x638] sm:$0xff]
    %v2456 = vld [vmem:[%s3 + $0x640] sm:$0xff]
    %v2457 = vld [vmem:[%s3 + $0x648] sm:$0xff]
    %v2458 = vld [vmem:[%s3 + $0x650] sm:$0xff]
    %v2459 = vld [vmem:[%s3 + $0x658] sm:$0xff]
    %v2460 = vld [vmem:[%s3 + $0x660] sm:$0xff]
    %v2461 = vld [vmem:[%s3 + $0x668] sm:$0xff]
    %v2462 = vld [vmem:[%s3 + $0x670] sm:$0xff]
    %v2463 = vld [vmem:[%s3 + $0x678] sm:$0xff]
    %v2464 = vld [vmem:[%s3 + $0x680] sm:$0xff]
    %v2465 = vld [vmem:[%s3 + $0x688] sm:$0xff]
    %v2466 = vld [vmem:[%s3 + $0x690] sm:$0xff]
    %v2467 = vld [vmem:[%s3 + $0x698] sm:$0xff]
    %v2468 = vld [vmem:[%s3 + $0x6a0] sm:$0xff]
    %v2469 = vld [vmem:[%s3 + $0x6a8] sm:$0xff]
    %v2470 = vld [vmem:[%s3 + $0x6b0] sm:$0xff]
    %v2471 = vld [vmem:[%s3 + $0x6b8] sm:$0xff]
    %v2472 = vld [vmem:[%s3 + $0x6c0] sm:$0xff]
    %v2473 = vld [vmem:[%s3 + $0x6c8] sm:$0xff]
    %v2474 = vld [vmem:[%s3 + $0x6d0] sm:$0xff]
    %v2475 = vld [vmem:[%s3 + $0x6d8] sm:$0xff]
    %v2476 = vld [vmem:[%s3 + $0x6e0] sm:$0xff]
    %v2477 = vld [vmem:[%s3 + $0x6e8] sm:$0xff]
    %v2478 = vld [vmem:[%s3 + $0x6f0] sm:$0xff]
    %v2479 = vld [vmem:[%s3 + $0x6f8] sm:$0xff]
    %v2480 = vld [vmem:[%s3 + $0x700] sm:$0xff]
    %v2481 = vld [vmem:[%s3 + $0x708] sm:$0xff]
    %v2482 = vld [vmem:[%s3 + $0x710] sm:$0xff]
    %v2483 = vld [vmem:[%s3 + $0x718] sm:$0xff]
    %v2484 = vld [vmem:[%s3 + $0x720] sm:$0xff]
    %v2485 = vld [vmem:[%s3 + $0x728] sm:$0xff]
    %v2486 = vld [vmem:[%s3 + $0x730] sm:$0xff]
    %v2487 = vld [vmem:[%s3 + $0x738] sm:$0xff]
    %v2488 = vld [vmem:[%s3 + $0x740] sm:$0xff]
    %v2489 = vld [vmem:[%s3 + $0x748] sm:$0xff]
    %v2490 = vld [vmem:[%s3 + $0x750] sm:$0xff]
    %v2491 = vld [vmem:[%s3 + $0x758] sm:$0xff]
    %v2492 = vld [vmem:[%s3 + $0x760] sm:$0xff]
    %v2493 = vld [vmem:[%s3 + $0x768] sm:$0xff]
    %v2494 = vld [vmem:[%s3 + $0x770] sm:$0xff]
    %v2495 = vld [vmem:[%s3 + $0x778] sm:$0xff]
    %v2496 = vld [vmem:[%s3 + $0x780] sm:$0xff]
    %v2497 = vld [vmem:[%s3 + $0x788] sm:$0xff]
    %v2498 = vld [vmem:[%s3 + $0x790] sm:$0xff]
    %v2499 = vld [vmem:[%s3 + $0x798] sm:$0xff]
    %v2500 = vld [vmem:[%s3 + $0x7a0] sm:$0xff]
    %v2501 = vld [vmem:[%s3 + $0x7a8] sm:$0xff]
    %v2502 = vld [vmem:[%s3 + $0x7b0] sm:$0xff]
    %v2503 = vld [vmem:[%s3 + $0x7b8] sm:$0xff]
    %v2504 = vld [vmem:[%s3 + $0x7c0] sm:$0xff]
    %v2505 = vld [vmem:[%s3 + $0x7c8] sm:$0xff]
    %v2506 = vld [vmem:[%s3 + $0x7d0] sm:$0xff]
    %v2507 = vld [vmem:[%s3 + $0x7d8] sm:$0xff]
    %v2508 = vld [vmem:[%s3 + $0x7e0] sm:$0xff]
    %v2509 = vld [vmem:[%s3 + $0x7e8] sm:$0xff]
    %v2510 = vld [vmem:[%s3 + $0x7f0] sm:$0xff]
    %v2511 = vld [vmem:[%s3 + $0x7f8] sm:$0xff]
    %v2512 = vld [vmem:[%s3 + $0x800] sm:$0xff]
    %v2513 = vld [vmem:[%s3 + $0x808] sm:$0xff]
    %v2514 = vld [vmem:[%s3 + $0x810] sm:$0xff]
    %v2515 = vld [vmem:[%s3 + $0x818] sm:$0xff]
    %v2516 = vld [vmem:[%s3 + $0x820] sm:$0xff]
    %v2517 = vld [vmem:[%s3 + $0x828] sm:$0xff]
    %v2518 = vld [vmem:[%s3 + $0x830] sm:$0xff]
    %v2519 = vld [vmem:[%s3 + $0x838] sm:$0xff]
    %v2520 = vld [vmem:[%s3 + $0x840] sm:$0xff]
    %v2521 = vld [vmem:[%s3 + $0x848] sm:$0xff]
    %v2522 = vld [vmem:[%s3 + $0x850] sm:$0xff]
    %v2523 = vld [vmem:[%s3 + $0x858] sm:$0xff]
    %v2524 = vld [vmem:[%s3 + $0x860] sm:$0xff]
    %v2525 = vld [vmem:[%s3 + $0x868] sm:$0xff]
    %v2526 = vld [vmem:[%s3 + $0x870] sm:$0xff]
    %v2527 = vld [vmem:[%s3 + $0x878] sm:$0xff]
    %v2528 = vld [vmem:[%s3 + $0x880] sm:$0xff]
    %v2529 = vld [vmem:[%s3 + $0x888] sm:$0xff]
    %v2530 = vld [vmem:[%s3 + $0x890] sm:$0xff]
    %v2531 = vld [vmem:[%s3 + $0x898] sm:$0xff]
    %v2532 = vld [vmem:[%s3 + $0x8a0] sm:$0xff]
    %v2533 = vld [vmem:[%s3 + $0x8a8] sm:$0xff]
    %v2534 = vld [vmem:[%s3 + $0x8b0] sm:$0xff]
    %v2535 = vld [vmem:[%s3 + $0x8b8] sm:$0xff]
    %v2536 = vld [vmem:[%s3 + $0x8c0] sm:$0xff]
    %v2537 = vld [vmem:[%s3 + $0x8c8] sm:$0xff]
    %v2538 = vld [vmem:[%s3 + $0x8d0] sm:$0xff]
    %v2539 = vld [vmem:[%s3 + $0x8d8] sm:$0xff]
    %v2540 = vld [vmem:[%s3 + $0x8e0] sm:$0xff]
    %v2541 = vld [vmem:[%s3 + $0x8e8] sm:$0xff]
    %v2542 = vld [vmem:[%s3 + $0x8f0] sm:$0xff]
    %v2543 = vld [vmem:[%s3 + $0x8f8] sm:$0xff]
    %v2544 = vld [vmem:[%s3 + $0x900] sm:$0xff]
    %v2545 = vld [vmem:[%s3 + $0x908] sm:$0xff]
    %v2546 = vld [vmem:[%s3 + $0x910] sm:$0xff]
    %v2547 = vld [vmem:[%s3 + $0x918] sm:$0xff]
    %v2548 = vld [vmem:[%s3 + $0x920] sm:$0xff]
    %v2549 = vld [vmem:[%s3 + $0x928] sm:$0xff]
    %v2550 = vld [vmem:[%s3 + $0x930] sm:$0xff]
    %v2551 = vld [vmem:[%s3 + $0x938] sm:$0xff]
    %v2552 = vld [vmem:[%s3 + $0x940] sm:$0xff]
    %v2553 = vld [vmem:[%s3 + $0x948] sm:$0xff]
    %v2554 = vld [vmem:[%s3 + $0x950] sm:$0xff]
    %v2555 = vld [vmem:[%s3 + $0x958] sm:$0xff]
    %v2556 = vld [vmem:[%s3 + $0x960] sm:$0xff]
    %v2557 = vld [vmem:[%s3 + $0x968] sm:$0xff]
    %v2558 = vld [vmem:[%s3 + $0x970] sm:$0xff]
    %v2559 = vld [vmem:[%s3 + $0x978] sm:$0xff]
    %v2560 = vld [vmem:[%s3 + $0x980] sm:$0xff]
    %v2561 = vld [vmem:[%s3 + $0x988] sm:$0xff]
    %v2562 = vld [vmem:[%s3 + $0x990] sm:$0xff]
    %v2563 = vld [vmem:[%s3 + $0x998] sm:$0xff]
    %v2564 = vld [vmem:[%s3 + $0x9a0] sm:$0xff]
    %v2565 = vld [vmem:[%s3 + $0x9a8] sm:$0xff]
    %v2566 = vld [vmem:[%s3 + $0x9b0] sm:$0xff]
    %v2567 = vld [vmem:[%s3 + $0x9b8] sm:$0xff]
    %v2568 = vld [vmem:[%s3 + $0x9c0] sm:$0xff]
    %v2569 = vld [vmem:[%s3 + $0x9c8] sm:$0xff]
    %v2570 = vld [vmem:[%s3 + $0x9d0] sm:$0xff]
    %v2571 = vld [vmem:[%s3 + $0x9d8] sm:$0xff]
    %v2572 = vld [vmem:[%s3 + $0x9e0] sm:$0xff]
    %v2573 = vld [vmem:[%s3 + $0x9e8] sm:$0xff]
    %v2574 = vld [vmem:[%s3 + $0x9f0] sm:$0xff]
    %v2575 = vld [vmem:[%s3 + $0x9f8] sm:$0xff]
    %v2576 = vld [vmem:[%s3 + $0xa00] sm:$0xff]
    %v2577 = vld [vmem:[%s3 + $0xa08] sm:$0xff]
    %v2578 = vld [vmem:[%s3 + $0xa10] sm:$0xff]
    %v2579 = vld [vmem:[%s3 + $0xa18] sm:$0xff]
    %v2580 = vld [vmem:[%s3 + $0xa20] sm:$0xff]
    %v2581 = vld [vmem:[%s3 + $0xa28] sm:$0xff]
    %v2582 = vld [vmem:[%s3 + $0xa30] sm:$0xff]
    %v2583 = vld [vmem:[%s3 + $0xa38] sm:$0xff]
    %v2584 = vld [vmem:[%s3 + $0xa40] sm:$0xff]
    %v2585 = vld [vmem:[%s3 + $0xa48] sm:$0xff]
    %v2586 = vld [vmem:[%s3 + $0xa50] sm:$0xff]
    %v2587 = vld [vmem:[%s3 + $0xa58] sm:$0xff]
    %v2588 = vld [vmem:[%s3 + $0xa60] sm:$0xff]
    %v2589 = vld [vmem:[%s3 + $0xa68] sm:$0xff]
    %v2590 = vld [vmem:[%s3 + $0xa70] sm:$0xff]
    %v2591 = vld [vmem:[%s3 + $0xa78] sm:$0xff]
    %v2592 = vld [vmem:[%s3 + $0xa80] sm:$0xff]
    %v2593 = vld [vmem:[%s3 + $0xa88] sm:$0xff]
    %v2594 = vld [vmem:[%s3 + $0xa90] sm:$0xff]
    %v2595 = vld [vmem:[%s3 + $0xa98] sm:$0xff]
    %v2596 = vld [vmem:[%s3 + $0xaa0] sm:$0xff]
    %v2597 = vld [vmem:[%s3 + $0xaa8] sm:$0xff]
    %v2598 = vld [vmem:[%s3 + $0xab0] sm:$0xff]
    %v2599 = vld [vmem:[%s3 + $0xab8] sm:$0xff]
    %v2600 = vld [vmem:[%s3 + $0xac0] sm:$0xff]
    %v2601 = vld [vmem:[%s3 + $0xac8] sm:$0xff]
    %v2602 = vld [vmem:[%s3 + $0xad0] sm:$0xff]
    %v2603 = vld [vmem:[%s3 + $0xad8] sm:$0xff]
    %v2604 = vld [vmem:[%s3 + $0xae0] sm:$0xff]
    %v2605 = vld [vmem:[%s3 + $0xae8] sm:$0xff]
    %v2606 = vld [vmem:[%s3 + $0xaf0] sm:$0xff]
    %v2607 = vld [vmem:[%s3 + $0xaf8] sm:$0xff]
    %v2608 = vld [vmem:[%s3 + $0xb00] sm:$0xff]
    %v2609 = vld [vmem:[%s3 + $0xb08] sm:$0xff]
    %v2610 = vld [vmem:[%s3 + $0xb10] sm:$0xff]
    %v2611 = vld [vmem:[%s3 + $0xb18] sm:$0xff]
    %v2612 = vld [vmem:[%s3 + $0xb20] sm:$0xff]
    %v2613 = vld [vmem:[%s3 + $0xb28] sm:$0xff]
    %v2614 = vld [vmem:[%s3 + $0xb30] sm:$0xff]
    %v2615 = vld [vmem:[%s3 + $0xb38] sm:$0xff]
    %v2616 = vld [vmem:[%s3 + $0xb40] sm:$0xff]
    %v2617 = vld [vmem:[%s3 + $0xb48] sm:$0xff]
    %v2618 = vld [vmem:[%s3 + $0xb50] sm:$0xff]
    %v2619 = vld [vmem:[%s3 + $0xb58] sm:$0xff]
    %v2620 = vld [vmem:[%s3 + $0xb60] sm:$0xff]
    %v2621 = vld [vmem:[%s3 + $0xb68] sm:$0xff]
    %v2622 = vld [vmem:[%s3 + $0xb70] sm:$0xff]
    %v2623 = vld [vmem:[%s3 + $0xb78] sm:$0xff]
    %v2624 = vld [vmem:[%s3 + $0xb80] sm:$0xff]
    %v2625 = vld [vmem:[%s3 + $0xb88] sm:$0xff]
    %v2626 = vld [vmem:[%s3 + $0xb90] sm:$0xff]
    %v2627 = vld [vmem:[%s3 + $0xb98] sm:$0xff]
    %v2628 = vld [vmem:[%s3 + $0xba0] sm:$0xff]
    %v2629 = vld [vmem:[%s3 + $0xba8] sm:$0xff]
    %v2630 = vld [vmem:[%s3 + $0xbb0] sm:$0xff]
    %v2631 = vld [vmem:[%s3 + $0xbb8] sm:$0xff]
    %v2632 = vld [vmem:[%s3 + $0xbc0] sm:$0xff]
    %v2633 = vld [vmem:[%s3 + $0xbc8] sm:$0xff]
    %v2634 = vld [vmem:[%s3 + $0xbd0] sm:$0xff]
    %v2635 = vld [vmem:[%s3 + $0xbd8] sm:$0xff]
    %v2636 = vld [vmem:[%s3 + $0xbe0] sm:$0xff]
    %v2637 = vld [vmem:[%s3 + $0xbe8] sm:$0xff]
    %v2638 = vld [vmem:[%s3 + $0xbf0] sm:$0xff]
    %v2639 = vld [vmem:[%s3 + $0xbf8] sm:$0xff]
    %v2640 = vld [vmem:[%s3 + $0xc00] sm:$0xff]
    %v2641 = vld [vmem:[%s3 + $0xc08] sm:$0xff]
    %v2642 = vld [vmem:[%s3 + $0xc10] sm:$0xff]
    %v2643 = vld [vmem:[%s3 + $0xc18] sm:$0xff]
    %v2644 = vld [vmem:[%s3 + $0xc20] sm:$0xff]
    %v2645 = vld [vmem:[%s3 + $0xc28] sm:$0xff]
    %v2646 = vld [vmem:[%s3 + $0xc30] sm:$0xff]
    %v2647 = vld [vmem:[%s3 + $0xc38] sm:$0xff]
    %v2648 = vld [vmem:[%s3 + $0xc40] sm:$0xff]
    %v2649 = vld [vmem:[%s3 + $0xc48] sm:$0xff]
    %v2650 = vld [vmem:[%s3 + $0xc50] sm:$0xff]
    %v2651 = vld [vmem:[%s3 + $0xc58] sm:$0xff]
    %v2652 = vld [vmem:[%s3 + $0xc60] sm:$0xff]
    %v2653 = vld [vmem:[%s3 + $0xc68] sm:$0xff]
    %v2654 = vld [vmem:[%s3 + $0xc70] sm:$0xff]
    %v2655 = vld [vmem:[%s3 + $0xc78] sm:$0xff]
    %v2656 = vld [vmem:[%s3 + $0xc80] sm:$0xff]
    %v2657 = vld [vmem:[%s3 + $0xc88] sm:$0xff]
    %v2658 = vld [vmem:[%s3 + $0xc90] sm:$0xff]
    %v2659 = vld [vmem:[%s3 + $0xc98] sm:$0xff]
    %v2660 = vld [vmem:[%s3 + $0xca0] sm:$0xff]
    %v2661 = vld [vmem:[%s3 + $0xca8] sm:$0xff]
    %v2662 = vld [vmem:[%s3 + $0xcb0] sm:$0xff]
    %v2663 = vld [vmem:[%s3 + $0xcb8] sm:$0xff]
    %v2664 = vld [vmem:[%s3 + $0xcc0] sm:$0xff]
    %v2665 = vld [vmem:[%s3 + $0xcc8] sm:$0xff]
    %v2666 = vld [vmem:[%s3 + $0xcd0] sm:$0xff]
    %v2667 = vld [vmem:[%s3 + $0xcd8] sm:$0xff]
    %v2668 = vld [vmem:[%s3 + $0xce0] sm:$0xff]
    %v2669 = vld [vmem:[%s3 + $0xce8] sm:$0xff]
    %v2670 = vld [vmem:[%s3 + $0xcf0] sm:$0xff]
    %v2671 = vld [vmem:[%s3 + $0xcf8] sm:$0xff]
    %v2672 = vld [vmem:[%s3 + $0xd00] sm:$0xff]
    %v2673 = vld [vmem:[%s3 + $0xd08] sm:$0xff]
    %v2674 = vld [vmem:[%s3 + $0xd10] sm:$0xff]
    %v2675 = vld [vmem:[%s3 + $0xd18] sm:$0xff]
    %v2676 = vld [vmem:[%s3 + $0xd20] sm:$0xff]
    %v2677 = vld [vmem:[%s3 + $0xd28] sm:$0xff]
    %v2678 = vld [vmem:[%s3 + $0xd30] sm:$0xff]
    %v2679 = vld [vmem:[%s3 + $0xd38] sm:$0xff]
    %v2680 = vld [vmem:[%s3 + $0xd40] sm:$0xff]
    %v2681 = vld [vmem:[%s3 + $0xd48] sm:$0xff]
    %v2682 = vld [vmem:[%s3 + $0xd50] sm:$0xff]
    %v2683 = vld [vmem:[%s3 + $0xd58] sm:$0xff]
    %v2684 = vld [vmem:[%s3 + $0xd60] sm:$0xff]
    %v2685 = vld [vmem:[%s3 + $0xd68] sm:$0xff]
    %v2686 = vld [vmem:[%s3 + $0xd70] sm:$0xff]
    %v2687 = vld [vmem:[%s3 + $0xd78] sm:$0xff]
    %v2688 = vld [vmem:[%s3 + $0xd80] sm:$0xff]
    %v2689 = vld [vmem:[%s3 + $0xd88] sm:$0xff]
    %v2690 = vld [vmem:[%s3 + $0xd90] sm:$0xff]
    %v2691 = vld [vmem:[%s3 + $0xd98] sm:$0xff]
    %v2692 = vld [vmem:[%s3 + $0xda0] sm:$0xff]
    %v2693 = vld [vmem:[%s3 + $0xda8] sm:$0xff]
    %v2694 = vld [vmem:[%s3 + $0xdb0] sm:$0xff]
    %v2695 = vld [vmem:[%s3 + $0xdb8] sm:$0xff]
    %v2696 = vld [vmem:[%s3 + $0xdc0] sm:$0xff]
    %v2697 = vld [vmem:[%s3 + $0xdc8] sm:$0xff]
    %v2698 = vld [vmem:[%s3 + $0xdd0] sm:$0xff]
    %v2699 = vld [vmem:[%s3 + $0xdd8] sm:$0xff]
    %v2700 = vld [vmem:[%s3 + $0xde0] sm:$0xff]
    %v2701 = vld [vmem:[%s3 + $0xde8] sm:$0xff]
    %v2702 = vld [vmem:[%s3 + $0xdf0] sm:$0xff]
    %v2703 = vld [vmem:[%s3 + $0xdf8] sm:$0xff]
    %v2704 = vld [vmem:[%s3 + $0xe00] sm:$0xff]
    %v2705 = vld [vmem:[%s3 + $0xe08] sm:$0xff]
    %v2706 = vld [vmem:[%s3 + $0xe10] sm:$0xff]
    %v2707 = vld [vmem:[%s3 + $0xe18] sm:$0xff]
    %v2708 = vld [vmem:[%s3 + $0xe20] sm:$0xff]
    %v2709 = vld [vmem:[%s3 + $0xe28] sm:$0xff]
    %v2710 = vld [vmem:[%s3 + $0xe30] sm:$0xff]
    %v2711 = vld [vmem:[%s3 + $0xe38] sm:$0xff]
    %v2712 = vld [vmem:[%s3 + $0xe40] sm:$0xff]
    %v2713 = vld [vmem:[%s3 + $0xe48] sm:$0xff]
    %v2714 = vld [vmem:[%s3 + $0xe50] sm:$0xff]
    %v2715 = vld [vmem:[%s3 + $0xe58] sm:$0xff]
    %v2716 = vld [vmem:[%s3 + $0xe60] sm:$0xff]
    %v2717 = vld [vmem:[%s3 + $0xe68] sm:$0xff]
    %v2718 = vld [vmem:[%s3 + $0xe70] sm:$0xff]
    %v2719 = vld [vmem:[%s3 + $0xe78] sm:$0xff]
    %v2720 = vld [vmem:[%s3 + $0xe80] sm:$0xff]
    %v2721 = vld [vmem:[%s3 + $0xe88] sm:$0xff]
    %v2722 = vld [vmem:[%s3 + $0xe90] sm:$0xff]
    %v2723 = vld [vmem:[%s3 + $0xe98] sm:$0xff]
    %v2724 = vld [vmem:[%s3 + $0xea0] sm:$0xff]
    %v2725 = vld [vmem:[%s3 + $0xea8] sm:$0xff]
    %v2726 = vld [vmem:[%s3 + $0xeb0] sm:$0xff]
    %v2727 = vld [vmem:[%s3 + $0xeb8] sm:$0xff]
    %v2728 = vld [vmem:[%s3 + $0xec0] sm:$0xff]
    %v2729 = vld [vmem:[%s3 + $0xec8] sm:$0xff]
    %v2730 = vld [vmem:[%s3 + $0xed0] sm:$0xff]
    %v2731 = vld [vmem:[%s3 + $0xed8] sm:$0xff]
    %v2732 = vld [vmem:[%s3 + $0xee0] sm:$0xff]
    %v2733 = vld [vmem:[%s3 + $0xee8] sm:$0xff]
    %v2734 = vld [vmem:[%s3 + $0xef0] sm:$0xff]
    %v2735 = vld [vmem:[%s3 + $0xef8] sm:$0xff]
    %v2736 = vld [vmem:[%s3 + $0xf00] sm:$0xff]
    %v2737 = vld [vmem:[%s3 + $0xf08] sm:$0xff]
    %v2738 = vld [vmem:[%s3 + $0xf10] sm:$0xff]
    %v2739 = vld [vmem:[%s3 + $0xf18] sm:$0xff]
    %v2740 = vld [vmem:[%s3 + $0xf20] sm:$0xff]
    %v2741 = vld [vmem:[%s3 + $0xf28] sm:$0xff]
    %v2742 = vld [vmem:[%s3 + $0xf30] sm:$0xff]
    %v2743 = vld [vmem:[%s3 + $0xf38] sm:$0xff]
    %v2744 = vld [vmem:[%s3 + $0xf40] sm:$0xff]
    %v2745 = vld [vmem:[%s3 + $0xf48] sm:$0xff]
    %v2746 = vld [vmem:[%s3 + $0xf50] sm:$0xff]
    %v2747 = vld [vmem:[%s3 + $0xf58] sm:$0xff]
    %v2748 = vld [vmem:[%s3 + $0xf60] sm:$0xff]
    %v2749 = vld [vmem:[%s3 + $0xf68] sm:$0xff]
    %v2750 = vld [vmem:[%s3 + $0xf70] sm:$0xff]
    %v2751 = vld [vmem:[%s3 + $0xf78] sm:$0xff]
    %v2752 = vld [vmem:[%s3 + $0xf80] sm:$0xff]
    %v2753 = vld [vmem:[%s3 + $0xf88] sm:$0xff]
    %v2754 = vld [vmem:[%s3 + $0xf90] sm:$0xff]
    %v2755 = vld [vmem:[%s3 + $0xf98] sm:$0xff]
    %v2756 = vld [vmem:[%s3 + $0xfa0] sm:$0xff]
    %v2757 = vld [vmem:[%s3 + $0xfa8] sm:$0xff]
    %v2758 = vld [vmem:[%s3 + $0xfb0] sm:$0xff]
    %v2759 = vld [vmem:[%s3 + $0xfb8] sm:$0xff]
    %v2760 = vld [vmem:[%s3 + $0xfc0] sm:$0xff]
    %v2761 = vld [vmem:[%s3 + $0xfc8] sm:$0xff]
    %v2762 = vld [vmem:[%s3 + $0xfd0] sm:$0xff]
    %v2763 = vld [vmem:[%s3 + $0xfd8] sm:$0xff]
    %v2764 = vld [vmem:[%s3 + $0xfe0] sm:$0xff]
    %v2765 = vld [vmem:[%s3 + $0xfe8] sm:$0xff]
    %v2766 = vld [vmem:[%s3 + $0xff0] sm:$0xff]
    %v2767 = vld [vmem:[%s3 + $0xff8] sm:$0xff]
    %v2768 = vld [vmem:[%s3 + $0x1000] sm:$0xff]
    %v2769 = vld [vmem:[%s3 + $0x1008] sm:$0xff]
    %v2770 = vld [vmem:[%s3 + $0x1010] sm:$0xff]
    %v2771 = vld [vmem:[%s3 + $0x1018] sm:$0xff]
    %v2772 = vld [vmem:[%s3 + $0x1020] sm:$0xff]
    %v2773 = vld [vmem:[%s3 + $0x1028] sm:$0xff]
    %v2774 = vld [vmem:[%s3 + $0x1030] sm:$0xff]
    %v2775 = vld [vmem:[%s3 + $0x1038] sm:$0xff]
    %v2776 = vld [vmem:[%s3 + $0x1040] sm:$0xff]
    %v2777 = vld [vmem:[%s3 + $0x1048] sm:$0xff]
    %v2778 = vld [vmem:[%s3 + $0x1050] sm:$0xff]
    %v2779 = vld [vmem:[%s3 + $0x1058] sm:$0xff]
    %v2780 = vld [vmem:[%s3 + $0x1060] sm:$0xff]
    %v2781 = vld [vmem:[%s3 + $0x1068] sm:$0xff]
    %v2782 = vld [vmem:[%s3 + $0x1070] sm:$0xff]
    %v2783 = vld [vmem:[%s3 + $0x1078] sm:$0xff]
    %v2784 = vld [vmem:[%s3 + $0x1080] sm:$0xff]
    %v2785 = vld [vmem:[%s3 + $0x1088] sm:$0xff]
    %v2786 = vld [vmem:[%s3 + $0x1090] sm:$0xff]
    %v2787 = vld [vmem:[%s3 + $0x1098] sm:$0xff]
    %v2788 = vld [vmem:[%s3 + $0x10a0] sm:$0xff]
    %v2789 = vld [vmem:[%s3 + $0x10a8] sm:$0xff]
    %v2790 = vld [vmem:[%s3 + $0x10b0] sm:$0xff]
    %v2791 = vld [vmem:[%s3 + $0x10b8] sm:$0xff]
    %v2792 = vld [vmem:[%s3 + $0x10c0] sm:$0xff]
    %v2793 = vld [vmem:[%s3 + $0x10c8] sm:$0xff]
    %v2794 = vld [vmem:[%s3 + $0x10d0] sm:$0xff]
    %v2795 = vld [vmem:[%s3 + $0x10d8] sm:$0xff]
    %v2796 = vld [vmem:[%s3 + $0x10e0] sm:$0xff]
    %v2797 = vld [vmem:[%s3 + $0x10e8] sm:$0xff]
    %v2798 = vld [vmem:[%s3 + $0x10f0] sm:$0xff]
    %v2799 = vld [vmem:[%s3 + $0x10f8] sm:$0xff]
    %v2800 = vld [vmem:[%s3 + $0x1100] sm:$0xff]
    %v2801 = vld [vmem:[%s3 + $0x1108] sm:$0xff]
    %v2802 = vld [vmem:[%s3 + $0x1110] sm:$0xff]
    %v2803 = vld [vmem:[%s3 + $0x1118] sm:$0xff]
    %v2804 = vld [vmem:[%s3 + $0x1120] sm:$0xff]
    %v2805 = vld [vmem:[%s3 + $0x1128] sm:$0xff]
    %v2806 = vld [vmem:[%s3 + $0x1130] sm:$0xff]
    %v2807 = vld [vmem:[%s3 + $0x1138] sm:$0xff]
    %v2808 = vld [vmem:[%s3 + $0x1140] sm:$0xff]
    %v2809 = vld [vmem:[%s3 + $0x1148] sm:$0xff]
    %v2810 = vld [vmem:[%s3 + $0x1150] sm:$0xff]
    %v2811 = vld [vmem:[%s3 + $0x1158] sm:$0xff]
    %v2812 = vld [vmem:[%s3 + $0x1160] sm:$0xff]
    %v2813 = vld [vmem:[%s3 + $0x1168] sm:$0xff]
    %v2814 = vld [vmem:[%s3 + $0x1170] sm:$0xff]
    %v2815 = vld [vmem:[%s3 + $0x1178] sm:$0xff]
    %v2816 = vld [vmem:[%s3 + $0x1180] sm:$0xff]
    %v2817 = vld [vmem:[%s3 + $0x1188] sm:$0xff]
    %v2818 = vld [vmem:[%s3 + $0x1190] sm:$0xff]
    %v2819 = vld [vmem:[%s3 + $0x1198] sm:$0xff]
    %v2820 = vld [vmem:[%s3 + $0x11a0] sm:$0xff]
    %v2821 = vld [vmem:[%s3 + $0x11a8] sm:$0xff]
    %v2822 = vld [vmem:[%s3 + $0x11b0] sm:$0xff]
    %v2823 = vld [vmem:[%s3 + $0x11b8] sm:$0xff]
    %v2824 = vld [vmem:[%s3 + $0x11c0] sm:$0xff]
    %v2825 = vld [vmem:[%s3 + $0x11c8] sm:$0xff]
    %v2826 = vld [vmem:[%s3 + $0x11d0] sm:$0xff]
    %v2827 = vld [vmem:[%s3 + $0x11d8] sm:$0xff]
    %v2828 = vld [vmem:[%s3 + $0x11e0] sm:$0xff]
    %v2829 = vld [vmem:[%s3 + $0x11e8] sm:$0xff]
    %v2830 = vld [vmem:[%s3 + $0x11f0] sm:$0xff]
    %v2831 = vld [vmem:[%s3 + $0x11f8] sm:$0xff]
    %v2832 = vld [vmem:[%s3 + $0x1200] sm:$0xff]
    %v2833 = vld [vmem:[%s3 + $0x1208] sm:$0xff]
    %v2834 = vld [vmem:[%s3 + $0x1210] sm:$0xff]
    %v2835 = vld [vmem:[%s3 + $0x1218] sm:$0xff]
    %v2836 = vld [vmem:[%s3 + $0x1220] sm:$0xff]
    %v2837 = vld [vmem:[%s3 + $0x1228] sm:$0xff]
    %v2838 = vld [vmem:[%s3 + $0x1230] sm:$0xff]
    %v2839 = vld [vmem:[%s3 + $0x1238] sm:$0xff]
    %v2840 = vld [vmem:[%s3 + $0x1240] sm:$0xff]
    %v2841 = vld [vmem:[%s3 + $0x1248] sm:$0xff]
    %v2842 = vld [vmem:[%s3 + $0x1250] sm:$0xff]
    %v2843 = vld [vmem:[%s3 + $0x1258] sm:$0xff]
    %v2844 = vld [vmem:[%s3 + $0x1260] sm:$0xff]
    %v2845 = vld [vmem:[%s3 + $0x1268] sm:$0xff]
    %v2846 = vld [vmem:[%s3 + $0x1270] sm:$0xff]
    %v2847 = vld [vmem:[%s3 + $0x1278] sm:$0xff]
    %v2848 = vld [vmem:[%s3 + $0x1280] sm:$0xff]
    %v2849 = vld [vmem:[%s3 + $0x1288] sm:$0xff]
    %v2850 = vld [vmem:[%s3 + $0x1290] sm:$0xff]
    %v2851 = vld [vmem:[%s3 + $0x1298] sm:$0xff]
    %v2852 = vld [vmem:[%s3 + $0x12a0] sm:$0xff]
    %v2853 = vld [vmem:[%s3 + $0x12a8] sm:$0xff]
    %v2854 = vld [vmem:[%s3 + $0x12b0] sm:$0xff]
    %v2855 = vld [vmem:[%s3 + $0x12b8] sm:$0xff]
    %v2856 = vld [vmem:[%s3 + $0x12c0] sm:$0xff]
    %v2857 = vld [vmem:[%s3 + $0x12c8] sm:$0xff]
    %v2858 = vld [vmem:[%s3 + $0x12d0] sm:$0xff]
    %v2859 = vld [vmem:[%s3 + $0x12d8] sm:$0xff]
    %v2860 = vld [vmem:[%s3 + $0x12e0] sm:$0xff]
    %v2861 = vld [vmem:[%s3 + $0x12e8] sm:$0xff]
    %v2862 = vld [vmem:[%s3 + $0x12f0] sm:$0xff]
    %v2863 = vld [vmem:[%s3 + $0x12f8] sm:$0xff]
    %v2864 = vld [vmem:[%s3 + $0x1300] sm:$0xff]
    %v2865 = vld [vmem:[%s3 + $0x1308] sm:$0xff]
    %v2866 = vld [vmem:[%s3 + $0x1310] sm:$0xff]
    %v2867 = vld [vmem:[%s3 + $0x1318] sm:$0xff]
    %v2868 = vld [vmem:[%s3 + $0x1320] sm:$0xff]
    %v2869 = vld [vmem:[%s3 + $0x1328] sm:$0xff]
    %v2870 = vld [vmem:[%s3 + $0x1330] sm:$0xff]
    %v2871 = vld [vmem:[%s3 + $0x1338] sm:$0xff]
    %v2872 = vld [vmem:[%s3 + $0x1340] sm:$0xff]
    %v2873 = vld [vmem:[%s3 + $0x1348] sm:$0xff]
    %v2874 = vld [vmem:[%s3 + $0x1350] sm:$0xff]
    %v2875 = vld [vmem:[%s3 + $0x1358] sm:$0xff]
    %v2876 = vld [vmem:[%s3 + $0x1360] sm:$0xff]
    %v2877 = vld [vmem:[%s3 + $0x1368] sm:$0xff]
    %v2878 = vld [vmem:[%s3 + $0x1370] sm:$0xff]
    %v2879 = vld [vmem:[%s3 + $0x1378] sm:$0xff]
    %v2880 = vld [vmem:[%s3 + $0x1380] sm:$0xff]
    %v2881 = vld [vmem:[%s3 + $0x1388] sm:$0xff]
    %v2882 = vld [vmem:[%s3 + $0x1390] sm:$0xff]
    %v2883 = vld [vmem:[%s3 + $0x1398] sm:$0xff]
    %v2884 = vld [vmem:[%s3 + $0x13a0] sm:$0xff]
    %v2885 = vld [vmem:[%s3 + $0x13a8] sm:$0xff]
    %v2886 = vld [vmem:[%s3 + $0x13b0] sm:$0xff]
    %v2887 = vld [vmem:[%s3 + $0x13b8] sm:$0xff]
    %v2888 = vld [vmem:[%s3 + $0x13c0] sm:$0xff]
    %v2889 = vld [vmem:[%s3 + $0x13c8] sm:$0xff]
    %v2890 = vld [vmem:[%s3 + $0x13d0] sm:$0xff]
    %v2891 = vld [vmem:[%s3 + $0x13d8] sm:$0xff]
    %v2892 = vld [vmem:[%s3 + $0x13e0] sm:$0xff]
    %v2893 = vld [vmem:[%s3 + $0x13e8] sm:$0xff]
    %v2894 = vld [vmem:[%s3 + $0x13f0] sm:$0xff]
    %v2895 = vld [vmem:[%s3 + $0x13f8] sm:$0xff]
    %v2896 = vld [vmem:[%s3 + $0x1400] sm:$0xff]
    %v2897 = vld [vmem:[%s3 + $0x1408] sm:$0xff]
    %v2898 = vld [vmem:[%s3 + $0x1410] sm:$0xff]
    %v2899 = vld [vmem:[%s3 + $0x1418] sm:$0xff]
    %v2900 = vld [vmem:[%s3 + $0x1420] sm:$0xff]
    %v2901 = vld [vmem:[%s3 + $0x1428] sm:$0xff]
    %v2902 = vld [vmem:[%s3 + $0x1430] sm:$0xff]
    %v2903 = vld [vmem:[%s3 + $0x1438] sm:$0xff]
    %v2904 = vld [vmem:[%s3 + $0x1440] sm:$0xff]
    %v2905 = vld [vmem:[%s3 + $0x1448] sm:$0xff]
    %v2906 = vld [vmem:[%s3 + $0x1450] sm:$0xff]
    %v2907 = vld [vmem:[%s3 + $0x1458] sm:$0xff]
    %v2908 = vld [vmem:[%s3 + $0x1460] sm:$0xff]
    %v2909 = vld [vmem:[%s3 + $0x1468] sm:$0xff]
    %v2910 = vld [vmem:[%s3 + $0x1470] sm:$0xff]
    %v2911 = vld [vmem:[%s3 + $0x1478] sm:$0xff]
    %v2912 = vld [vmem:[%s3 + $0x1480] sm:$0xff]
    %v2913 = vld [vmem:[%s3 + $0x1488] sm:$0xff]
    %v2914 = vld [vmem:[%s3 + $0x1490] sm:$0xff]
    %v2915 = vld [vmem:[%s3 + $0x1498] sm:$0xff]
    %v2916 = vld [vmem:[%s3 + $0x14a0] sm:$0xff]
    %v2917 = vld [vmem:[%s3 + $0x14a8] sm:$0xff]
    %v2918 = vld [vmem:[%s3 + $0x14b0] sm:$0xff]
    %v2919 = vld [vmem:[%s3 + $0x14b8] sm:$0xff]
    %v2920 = vld [vmem:[%s3 + $0x14c0] sm:$0xff]
    %v2921 = vld [vmem:[%s3 + $0x14c8] sm:$0xff]
    %v2922 = vld [vmem:[%s3 + $0x14d0] sm:$0xff]
    %v2923 = vld [vmem:[%s3 + $0x14d8] sm:$0xff]
    %v2924 = vld [vmem:[%s3 + $0x14e0] sm:$0xff]
    %v2925 = vld [vmem:[%s3 + $0x14e8] sm:$0xff]
    %v2926 = vld [vmem:[%s3 + $0x14f0] sm:$0xff]
    %v2927 = vld [vmem:[%s3 + $0x14f8] sm:$0xff]
    %v2928 = vld [vmem:[%s3 + $0x1500] sm:$0xff]
    %v2929 = vld [vmem:[%s3 + $0x1508] sm:$0xff]
    %v2930 = vld [vmem:[%s3 + $0x1510] sm:$0xff]
    %v2931 = vld [vmem:[%s3 + $0x1518] sm:$0xff]
    %v2932 = vld [vmem:[%s3 + $0x1520] sm:$0xff]
    %v2933 = vld [vmem:[%s3 + $0x1528] sm:$0xff]
    %v2934 = vld [vmem:[%s3 + $0x1530] sm:$0xff]
    %v2935 = vld [vmem:[%s3 + $0x1538] sm:$0xff]
    %v2936 = vld [vmem:[%s3 + $0x1540] sm:$0xff]
    %v2937 = vld [vmem:[%s3 + $0x1548] sm:$0xff]
    %v2938 = vld [vmem:[%s3 + $0x1550] sm:$0xff]
    %v2939 = vld [vmem:[%s3 + $0x1558] sm:$0xff]
    %v2940 = vld [vmem:[%s3 + $0x1560] sm:$0xff]
    %v2941 = vld [vmem:[%s3 + $0x1568] sm:$0xff]
    %v2942 = vld [vmem:[%s3 + $0x1570] sm:$0xff]
    %v2943 = vld [vmem:[%s3 + $0x1578] sm:$0xff]
    %v2944 = vld [vmem:[%s3 + $0x1580] sm:$0xff]
    %v2945 = vld [vmem:[%s3 + $0x1588] sm:$0xff]
    %v2946 = vld [vmem:[%s3 + $0x1590] sm:$0xff]
    %v2947 = vld [vmem:[%s3 + $0x1598] sm:$0xff]
    %v2948 = vld [vmem:[%s3 + $0x15a0] sm:$0xff]
    %v2949 = vld [vmem:[%s3 + $0x15a8] sm:$0xff]
    %v2950 = vld [vmem:[%s3 + $0x15b0] sm:$0xff]
    %v2951 = vld [vmem:[%s3 + $0x15b8] sm:$0xff]
    %v2952 = vld [vmem:[%s3 + $0x15c0] sm:$0xff]
    %v2953 = vld [vmem:[%s3 + $0x15c8] sm:$0xff]
    %v2954 = vld [vmem:[%s3 + $0x15d0] sm:$0xff]
    %v2955 = vld [vmem:[%s3 + $0x15d8] sm:$0xff]
    %v2956 = vld [vmem:[%s3 + $0x15e0] sm:$0xff]
    %v2957 = vld [vmem:[%s3 + $0x15e8] sm:$0xff]
    %v2958 = vld [vmem:[%s3 + $0x15f0] sm:$0xff]
    %v2959 = vld [vmem:[%s3 + $0x15f8] sm:$0xff]
    %v2960 = vld [vmem:[%s3 + $0x1600] sm:$0xff]
    %v2961 = vld [vmem:[%s3 + $0x1608] sm:$0xff]
    %v2962 = vld [vmem:[%s3 + $0x1610] sm:$0xff]
    %v2963 = vld [vmem:[%s3 + $0x1618] sm:$0xff]
    %v2964 = vld [vmem:[%s3 + $0x1620] sm:$0xff]
    %v2965 = vld [vmem:[%s3 + $0x1628] sm:$0xff]
    %v2966 = vld [vmem:[%s3 + $0x1630] sm:$0xff]
    %v2967 = vld [vmem:[%s3 + $0x1638] sm:$0xff]
    %v2968 = vld [vmem:[%s3 + $0x1640] sm:$0xff]
    %v2969 = vld [vmem:[%s3 + $0x1648] sm:$0xff]
    %v2970 = vld [vmem:[%s3 + $0x1650] sm:$0xff]
    %v2971 = vld [vmem:[%s3 + $0x1658] sm:$0xff]
    %v2972 = vld [vmem:[%s3 + $0x1660] sm:$0xff]
    %v2973 = vld [vmem:[%s3 + $0x1668] sm:$0xff]
    %v2974 = vld [vmem:[%s3 + $0x1670] sm:$0xff]
    %v2975 = vld [vmem:[%s3 + $0x1678] sm:$0xff]
    %v2976 = vld [vmem:[%s3 + $0x1680] sm:$0xff]
    %v2977 = vld [vmem:[%s3 + $0x1688] sm:$0xff]
    %v2978 = vld [vmem:[%s3 + $0x1690] sm:$0xff]
    %v2979 = vld [vmem:[%s3 + $0x1698] sm:$0xff]
    %v2980 = vld [vmem:[%s3 + $0x16a0] sm:$0xff]
    %v2981 = vld [vmem:[%s3 + $0x16a8] sm:$0xff]
    %v2982 = vld [vmem:[%s3 + $0x16b0] sm:$0xff]
    %v2983 = vld [vmem:[%s3 + $0x16b8] sm:$0xff]
    %v2984 = vld [vmem:[%s3 + $0x16c0] sm:$0xff]
    %v2985 = vld [vmem:[%s3 + $0x16c8] sm:$0xff]
    %v2986 = vld [vmem:[%s3 + $0x16d0] sm:$0xff]
    %v2987 = vld [vmem:[%s3 + $0x16d8] sm:$0xff]
    %v2988 = vld [vmem:[%s3 + $0x16e0] sm:$0xff]
    %v2989 = vld [vmem:[%s3 + $0x16e8] sm:$0xff]
    %v2990 = vld [vmem:[%s3 + $0x16f0] sm:$0xff]
    %v2991 = vld [vmem:[%s3 + $0x16f8] sm:$0xff]
    %v2992 = vld [vmem:[%s3 + $0x1700] sm:$0xff]
    %v2993 = vld [vmem:[%s3 + $0x1708] sm:$0xff]
    %v2994 = vld [vmem:[%s3 + $0x1710] sm:$0xff]
    %v2995 = vld [vmem:[%s3 + $0x1718] sm:$0xff]
    %v2996 = vld [vmem:[%s3 + $0x1720] sm:$0xff]
    %v2997 = vld [vmem:[%s3 + $0x1728] sm:$0xff]
    %v2998 = vld [vmem:[%s3 + $0x1730] sm:$0xff]
    %v2999 = vld [vmem:[%s3 + $0x1738] sm:$0xff]
    %v3000 = vld [vmem:[%s3 + $0x1740] sm:$0xff]
    %v3001 = vld [vmem:[%s3 + $0x1748] sm:$0xff]
    %v3002 = vld [vmem:[%s3 + $0x1750] sm:$0xff]
    %v3003 = vld [vmem:[%s3 + $0x1758] sm:$0xff]
    %v3004 = vld [vmem:[%s3 + $0x1760] sm:$0xff]
    %v3005 = vld [vmem:[%s3 + $0x1768] sm:$0xff]
    %v3006 = vld [vmem:[%s3 + $0x1770] sm:$0xff]
    %v3007 = vld [vmem:[%s3 + $0x1778] sm:$0xff]
    %v3008 = vld [vmem:[%s3 + $0x1780] sm:$0xff]
    %v3009 = vld [vmem:[%s3 + $0x1788] sm:$0xff]
    %v3010 = vld [vmem:[%s3 + $0x1790] sm:$0xff]
    %v3011 = vld [vmem:[%s3 + $0x1798] sm:$0xff]
    %v3012 = vld [vmem:[%s3 + $0x17a0] sm:$0xff]
    %v3013 = vld [vmem:[%s3 + $0x17a8] sm:$0xff]
    %v3014 = vld [vmem:[%s3 + $0x17b0] sm:$0xff]
    %v3015 = vld [vmem:[%s3 + $0x17b8] sm:$0xff]
    %v3016 = vld [vmem:[%s3 + $0x17c0] sm:$0xff]
    %v3017 = vld [vmem:[%s3 + $0x17c8] sm:$0xff]
    %v3018 = vld [vmem:[%s3 + $0x17d0] sm:$0xff]
    %v3019 = vld [vmem:[%s3 + $0x17d8] sm:$0xff]
    %v3020 = vld [vmem:[%s3 + $0x17e0] sm:$0xff]
    %v3021 = vld [vmem:[%s3 + $0x17e8] sm:$0xff]
    %v3022 = vld [vmem:[%s3 + $0x17f0] sm:$0xff]
    %v3023 = vld [vmem:[%s3 + $0x17f8] sm:$0xff]
    %v3024 = vld [vmem:[%s3 + $0x1800] sm:$0xff]
    %v3025 = vld [vmem:[%s3 + $0x1808] sm:$0xff]
    %v3026 = vld [vmem:[%s3 + $0x1810] sm:$0xff]
    %v3027 = vld [vmem:[%s3 + $0x1818] sm:$0xff]
    %v3028 = vld [vmem:[%s3 + $0x1820] sm:$0xff]
    %v3029 = vld [vmem:[%s3 + $0x1828] sm:$0xff]
    %v3030 = vld [vmem:[%s3 + $0x1830] sm:$0xff]
    %v3031 = vld [vmem:[%s3 + $0x1838] sm:$0xff]
    %v3032 = vld [vmem:[%s3 + $0x1840] sm:$0xff]
    %v3033 = vld [vmem:[%s3 + $0x1848] sm:$0xff]
    %v3034 = vld [vmem:[%s3 + $0x1850] sm:$0xff]
    %v3035 = vld [vmem:[%s3 + $0x1858] sm:$0xff]
    %v3036 = vld [vmem:[%s3 + $0x1860] sm:$0xff]
    %v3037 = vld [vmem:[%s3 + $0x1868] sm:$0xff]
    %v3038 = vld [vmem:[%s3 + $0x1870] sm:$0xff]
    %v3039 = vld [vmem:[%s3 + $0x1878] sm:$0xff]
    %v3040 = vld [vmem:[%s3 + $0x1880] sm:$0xff]
    %v3041 = vld [vmem:[%s3 + $0x1888] sm:$0xff]
    %v3042 = vld [vmem:[%s3 + $0x1890] sm:$0xff]
    %v3043 = vld [vmem:[%s3 + $0x1898] sm:$0xff]
    %v3044 = vld [vmem:[%s3 + $0x18a0] sm:$0xff]
    %v3045 = vld [vmem:[%s3 + $0x18a8] sm:$0xff]
    %v3046 = vld [vmem:[%s3 + $0x18b0] sm:$0xff]
    %v3047 = vld [vmem:[%s3 + $0x18b8] sm:$0xff]
    %v3048 = vld [vmem:[%s3 + $0x18c0] sm:$0xff]
    %v3049 = vld [vmem:[%s3 + $0x18c8] sm:$0xff]
    %v3050 = vld [vmem:[%s3 + $0x18d0] sm:$0xff]
    %v3051 = vld [vmem:[%s3 + $0x18d8] sm:$0xff]
    %v3052 = vld [vmem:[%s3 + $0x18e0] sm:$0xff]
    %v3053 = vld [vmem:[%s3 + $0x18e8] sm:$0xff]
    %v3054 = vld [vmem:[%s3 + $0x18f0] sm:$0xff]
    %v3055 = vld [vmem:[%s3 + $0x18f8] sm:$0xff]
    %v3056 = vld [vmem:[%s3 + $0x1900] sm:$0xff]
    %v3057 = vld [vmem:[%s3 + $0x1908] sm:$0xff]
    %v3058 = vld [vmem:[%s3 + $0x1910] sm:$0xff]
    %v3059 = vld [vmem:[%s3 + $0x1918] sm:$0xff]
    %v3060 = vld [vmem:[%s3 + $0x1920] sm:$0xff]
    %v3061 = vld [vmem:[%s3 + $0x1928] sm:$0xff]
    %v3062 = vld [vmem:[%s3 + $0x1930] sm:$0xff]
    %v3063 = vld [vmem:[%s3 + $0x1938] sm:$0xff]
    %v3064 = vld [vmem:[%s3 + $0x1940] sm:$0xff]
    %v3065 = vld [vmem:[%s3 + $0x1948] sm:$0xff]
    %v3066 = vld [vmem:[%s3 + $0x1950] sm:$0xff]
    %v3067 = vld [vmem:[%s3 + $0x1958] sm:$0xff]
    %v3068 = vld [vmem:[%s3 + $0x1960] sm:$0xff]
    %v3069 = vld [vmem:[%s3 + $0x1968] sm:$0xff]
    %v3070 = vld [vmem:[%s3 + $0x1970] sm:$0xff]
    %v3071 = vld [vmem:[%s3 + $0x1978] sm:$0xff]
    %v3072 = vld [vmem:[%s3 + $0x1980] sm:$0xff]
    %v3073 = vld [vmem:[%s3 + $0x1988] sm:$0xff]
    %v3074 = vld [vmem:[%s3 + $0x1990] sm:$0xff]
    %v3075 = vld [vmem:[%s3 + $0x1998] sm:$0xff]
    %v3076 = vld [vmem:[%s3 + $0x19a0] sm:$0xff]
    %v3077 = vld [vmem:[%s3 + $0x19a8] sm:$0xff]
    %v3078 = vld [vmem:[%s3 + $0x19b0] sm:$0xff]
    %v3079 = vld [vmem:[%s3 + $0x19b8] sm:$0xff]
    %v3080 = vld [vmem:[%s3 + $0x19c0] sm:$0xff]
    %v3081 = vld [vmem:[%s3 + $0x19c8] sm:$0xff]
    %v3082 = vld [vmem:[%s3 + $0x19d0] sm:$0xff]
    %v3083 = vld [vmem:[%s3 + $0x19d8] sm:$0xff]
    %v3084 = vld [vmem:[%s3 + $0x19e0] sm:$0xff]
    %v3085 = vld [vmem:[%s3 + $0x19e8] sm:$0xff]
    %v3086 = vld [vmem:[%s3 + $0x19f0] sm:$0xff]
    %v3087 = vld [vmem:[%s3 + $0x19f8] sm:$0xff]
    %v3088 = vld [vmem:[%s3 + $0x1a00] sm:$0xff]
    %v3089 = vld [vmem:[%s3 + $0x1a08] sm:$0xff]
    %v3090 = vld [vmem:[%s3 + $0x1a10] sm:$0xff]
    %v3091 = vld [vmem:[%s3 + $0x1a18] sm:$0xff]
    %v3092 = vld [vmem:[%s3 + $0x1a20] sm:$0xff]
    %v3093 = vld [vmem:[%s3 + $0x1a28] sm:$0xff]
    %v3094 = vld [vmem:[%s3 + $0x1a30] sm:$0xff]
    %v3095 = vld [vmem:[%s3 + $0x1a38] sm:$0xff]
    %v3096 = vld [vmem:[%s3 + $0x1a40] sm:$0xff]
    %v3097 = vld [vmem:[%s3 + $0x1a48] sm:$0xff]
    %v3098 = vld [vmem:[%s3 + $0x1a50] sm:$0xff]
    %v3099 = vld [vmem:[%s3 + $0x1a58] sm:$0xff]
    %v3100 = vld [vmem:[%s3 + $0x1a60] sm:$0xff]
    %v3101 = vld [vmem:[%s3 + $0x1a68] sm:$0xff]
    %v3102 = vld [vmem:[%s3 + $0x1a70] sm:$0xff]
    %v3103 = vld [vmem:[%s3 + $0x1a78] sm:$0xff]
    %v3104 = vld [vmem:[%s3 + $0x1a80] sm:$0xff]
    %v3105 = vld [vmem:[%s3 + $0x1a88] sm:$0xff]
    %v3106 = vld [vmem:[%s3 + $0x1a90] sm:$0xff]
    %v3107 = vld [vmem:[%s3 + $0x1a98] sm:$0xff]
    %v3108 = vld [vmem:[%s3 + $0x1aa0] sm:$0xff]
    %v3109 = vld [vmem:[%s3 + $0x1aa8] sm:$0xff]
    %v3110 = vld [vmem:[%s3 + $0x1ab0] sm:$0xff]
    %v3111 = vld [vmem:[%s3 + $0x1ab8] sm:$0xff]
    %v3112 = vld [vmem:[%s3 + $0x1ac0] sm:$0xff]
    %v3113 = vld [vmem:[%s3 + $0x1ac8] sm:$0xff]
    %v3114 = vld [vmem:[%s3 + $0x1ad0] sm:$0xff]
    %v3115 = vld [vmem:[%s3 + $0x1ad8] sm:$0xff]
    %v3116 = vld [vmem:[%s3 + $0x1ae0] sm:$0xff]
    %v3117 = vld [vmem:[%s3 + $0x1ae8] sm:$0xff]
    %v3118 = vld [vmem:[%s3 + $0x1af0] sm:$0xff]
    %v3119 = vld [vmem:[%s3 + $0x1af8] sm:$0xff]
    %v3120 = vld [vmem:[%s3 + $0x1b00] sm:$0xff]
    %v3121 = vld [vmem:[%s3 + $0x1b08] sm:$0xff]
    %v3122 = vld [vmem:[%s3 + $0x1b10] sm:$0xff]
    %v3123 = vld [vmem:[%s3 + $0x1b18] sm:$0xff]
    %v3124 = vld [vmem:[%s3 + $0x1b20] sm:$0xff]
    %v3125 = vld [vmem:[%s3 + $0x1b28] sm:$0xff]
    %v3126 = vld [vmem:[%s3 + $0x1b30] sm:$0xff]
    %v3127 = vld [vmem:[%s3 + $0x1b38] sm:$0xff]
    %v3128 = vld [vmem:[%s3 + $0x1b40] sm:$0xff]
    %v3129 = vld [vmem:[%s3 + $0x1b48] sm:$0xff]
    %v3130 = vld [vmem:[%s3 + $0x1b50] sm:$0xff]
    %v3131 = vld [vmem:[%s3 + $0x1b58] sm:$0xff]
    %v3132 = vld [vmem:[%s3 + $0x1b60] sm:$0xff]
    %v3133 = vld [vmem:[%s3 + $0x1b68] sm:$0xff]
    %v3134 = vld [vmem:[%s3 + $0x1b70] sm:$0xff]
    %v3135 = vld [vmem:[%s3 + $0x1b78] sm:$0xff]
    %v3136 = vld [vmem:[%s3 + $0x1b80] sm:$0xff]
    %v3137 = vld [vmem:[%s3 + $0x1b88] sm:$0xff]
    %v3138 = vld [vmem:[%s3 + $0x1b90] sm:$0xff]
    %v3139 = vld [vmem:[%s3 + $0x1b98] sm:$0xff]
    %v3140 = vld [vmem:[%s3 + $0x1ba0] sm:$0xff]
    %v3141 = vld [vmem:[%s3 + $0x1ba8] sm:$0xff]
    %v3142 = vld [vmem:[%s3 + $0x1bb0] sm:$0xff]
    %v3143 = vld [vmem:[%s3 + $0x1bb8] sm:$0xff]
    %v3144 = vld [vmem:[%s3 + $0x1bc0] sm:$0xff]
    %v3145 = vld [vmem:[%s3 + $0x1bc8] sm:$0xff]
    %v3146 = vld [vmem:[%s3 + $0x1bd0] sm:$0xff]
    %v3147 = vld [vmem:[%s3 + $0x1bd8] sm:$0xff]
    %v3148 = vld [vmem:[%s3 + $0x1be0] sm:$0xff]
    %v3149 = vld [vmem:[%s3 + $0x1be8] sm:$0xff]
    %v3150 = vld [vmem:[%s3 + $0x1bf0] sm:$0xff]
    %v3151 = vld [vmem:[%s3 + $0x1bf8] sm:$0xff]
    %v3152 = vld [vmem:[%s3 + $0x1c00] sm:$0xff]
    %v3153 = vld [vmem:[%s3 + $0x1c08] sm:$0xff]
    %v3154 = vld [vmem:[%s3 + $0x1c10] sm:$0xff]
    %v3155 = vld [vmem:[%s3 + $0x1c18] sm:$0xff]
    %v3156 = vld [vmem:[%s3 + $0x1c20] sm:$0xff]
    %v3157 = vld [vmem:[%s3 + $0x1c28] sm:$0xff]
    %v3158 = vld [vmem:[%s3 + $0x1c30] sm:$0xff]
    %v3159 = vld [vmem:[%s3 + $0x1c38] sm:$0xff]
    %v3160 = vld [vmem:[%s3 + $0x1c40] sm:$0xff]
    %v3161 = vld [vmem:[%s3 + $0x1c48] sm:$0xff]
    %v3162 = vld [vmem:[%s3 + $0x1c50] sm:$0xff]
    %v3163 = vld [vmem:[%s3 + $0x1c58] sm:$0xff]
    %v3164 = vld [vmem:[%s3 + $0x1c60] sm:$0xff]
    %v3165 = vld [vmem:[%s3 + $0x1c68] sm:$0xff]
    %v3166 = vld [vmem:[%s3 + $0x1c70] sm:$0xff]
    %v3167 = vld [vmem:[%s3 + $0x1c78] sm:$0xff]
    %v3168 = vld [vmem:[%s3 + $0x1c80] sm:$0xff]
    %v3169 = vld [vmem:[%s3 + $0x1c88] sm:$0xff]
    %v3170 = vld [vmem:[%s3 + $0x1c90] sm:$0xff]
    %v3171 = vld [vmem:[%s3 + $0x1c98] sm:$0xff]
    %v3172 = vld [vmem:[%s3 + $0x1ca0] sm:$0xff]
    %v3173 = vld [vmem:[%s3 + $0x1ca8] sm:$0xff]
    %v3174 = vld [vmem:[%s3 + $0x1cb0] sm:$0xff]
    %v3175 = vld [vmem:[%s3 + $0x1cb8] sm:$0xff]
    %v3176 = vld [vmem:[%s3 + $0x1cc0] sm:$0xff]
    %v3177 = vld [vmem:[%s3 + $0x1cc8] sm:$0xff]
    %v3178 = vld [vmem:[%s3 + $0x1cd0] sm:$0xff]
    %v3179 = vld [vmem:[%s3 + $0x1cd8] sm:$0xff]
    %v3180 = vld [vmem:[%s3 + $0x1ce0] sm:$0xff]
    %v3181 = vld [vmem:[%s3 + $0x1ce8] sm:$0xff]
    %v3182 = vld [vmem:[%s3 + $0x1cf0] sm:$0xff]
    %v3183 = vld [vmem:[%s3 + $0x1cf8] sm:$0xff]
    %v3184 = vld [vmem:[%s3 + $0x1d00] sm:$0xff]
    %v3185 = vld [vmem:[%s3 + $0x1d08] sm:$0xff]
    %v3186 = vld [vmem:[%s3 + $0x1d10] sm:$0xff]
    %v3187 = vld [vmem:[%s3 + $0x1d18] sm:$0xff]
    %v3188 = vld [vmem:[%s3 + $0x1d20] sm:$0xff]
    %v3189 = vld [vmem:[%s3 + $0x1d28] sm:$0xff]
    %v3190 = vld [vmem:[%s3 + $0x1d30] sm:$0xff]
    %v3191 = vld [vmem:[%s3 + $0x1d38] sm:$0xff]
    %v3192 = vld [vmem:[%s3 + $0x1d40] sm:$0xff]
    %v3193 = vld [vmem:[%s3 + $0x1d48] sm:$0xff]
    %v3194 = vld [vmem:[%s3 + $0x1d50] sm:$0xff]
    %v3195 = vld [vmem:[%s3 + $0x1d58] sm:$0xff]
    %v3196 = vld [vmem:[%s3 + $0x1d60] sm:$0xff]
    %v3197 = vld [vmem:[%s3 + $0x1d68] sm:$0xff]
    %v3198 = vld [vmem:[%s3 + $0x1d70] sm:$0xff]
    %v3199 = vld [vmem:[%s3 + $0x1d78] sm:$0xff]
    %v3200 = vld [vmem:[%s3 + $0x1d80] sm:$0xff]
    %v3201 = vld [vmem:[%s3 + $0x1d88] sm:$0xff]
    %v3202 = vld [vmem:[%s3 + $0x1d90] sm:$0xff]
    %v3203 = vld [vmem:[%s3 + $0x1d98] sm:$0xff]
    %v3204 = vld [vmem:[%s3 + $0x1da0] sm:$0xff]
    %v3205 = vld [vmem:[%s3 + $0x1da8] sm:$0xff]
    %v3206 = vld [vmem:[%s3 + $0x1db0] sm:$0xff]
    %v3207 = vld [vmem:[%s3 + $0x1db8] sm:$0xff]
    %v3208 = vld [vmem:[%s3 + $0x1dc0] sm:$0xff]
    %v3209 = vld [vmem:[%s3 + $0x1dc8] sm:$0xff]
    %v3210 = vld [vmem:[%s3 + $0x1dd0] sm:$0xff]
    %v3211 = vld [vmem:[%s3 + $0x1dd8] sm:$0xff]
    %v3212 = vld [vmem:[%s3 + $0x1de0] sm:$0xff]
    %v3213 = vld [vmem:[%s3 + $0x1de8] sm:$0xff]
    %v3214 = vld [vmem:[%s3 + $0x1df0] sm:$0xff]
    %v3215 = vld [vmem:[%s3 + $0x1df8] sm:$0xff]
    %v3216 = vld [vmem:[%s3 + $0x1e00] sm:$0xff]
    %v3217 = vld [vmem:[%s3 + $0x1e08] sm:$0xff]
    %v3218 = vld [vmem:[%s3 + $0x1e10] sm:$0xff]
    %v3219 = vld [vmem:[%s3 + $0x1e18] sm:$0xff]
    %v3220 = vld [vmem:[%s3 + $0x1e20] sm:$0xff]
    %v3221 = vld [vmem:[%s3 + $0x1e28] sm:$0xff]
    %v3222 = vld [vmem:[%s3 + $0x1e30] sm:$0xff]
    %v3223 = vld [vmem:[%s3 + $0x1e38] sm:$0xff]
    %v3224 = vld [vmem:[%s3 + $0x1e40] sm:$0xff]
    %v3225 = vld [vmem:[%s3 + $0x1e48] sm:$0xff]
    %v3226 = vld [vmem:[%s3 + $0x1e50] sm:$0xff]
    %v3227 = vld [vmem:[%s3 + $0x1e58] sm:$0xff]
    %v3228 = vld [vmem:[%s3 + $0x1e60] sm:$0xff]
    %v3229 = vld [vmem:[%s3 + $0x1e68] sm:$0xff]
    %v3230 = vld [vmem:[%s3 + $0x1e70] sm:$0xff]
    %v3231 = vld [vmem:[%s3 + $0x1e78] sm:$0xff]
    %v3232 = vld [vmem:[%s3 + $0x1e80] sm:$0xff]
    %v3233 = vld [vmem:[%s3 + $0x1e88] sm:$0xff]
    %v3234 = vld [vmem:[%s3 + $0x1e90] sm:$0xff]
    %v3235 = vld [vmem:[%s3 + $0x1e98] sm:$0xff]
    %v3236 = vld [vmem:[%s3 + $0x1ea0] sm:$0xff]
    %v3237 = vld [vmem:[%s3 + $0x1ea8] sm:$0xff]
    %v3238 = vld [vmem:[%s3 + $0x1eb0] sm:$0xff]
    %v3239 = vld [vmem:[%s3 + $0x1eb8] sm:$0xff]
    %v3240 = vld [vmem:[%s3 + $0x1ec0] sm:$0xff]
    %v3241 = vld [vmem:[%s3 + $0x1ec8] sm:$0xff]
    %v3242 = vld [vmem:[%s3 + $0x1ed0] sm:$0xff]
    %v3243 = vld [vmem:[%s3 + $0x1ed8] sm:$0xff]
    %v3244 = vld [vmem:[%s3 + $0x1ee0] sm:$0xff]
    %v3245 = vld [vmem:[%s3 + $0x1ee8] sm:$0xff]
    %v3246 = vld [vmem:[%s3 + $0x1ef0] sm:$0xff]
    %v3247 = vld [vmem:[%s3 + $0x1ef8] sm:$0xff]
    %v3248 = vld [vmem:[%s3 + $0x1f00] sm:$0xff]
    %v3249 = vld [vmem:[%s3 + $0x1f08] sm:$0xff]
    %v3250 = vld [vmem:[%s3 + $0x1f10] sm:$0xff]
    %v3251 = vld [vmem:[%s3 + $0x1f18] sm:$0xff]
    %v3252 = vld [vmem:[%s3 + $0x1f20] sm:$0xff]
    %v3253 = vld [vmem:[%s3 + $0x1f28] sm:$0xff]
    %v3254 = vld [vmem:[%s3 + $0x1f30] sm:$0xff]
    %v3255 = vld [vmem:[%s3 + $0x1f38] sm:$0xff]
    %v3256 = vld [vmem:[%s3 + $0x1f40] sm:$0xff]
    %v3257 = vld [vmem:[%s3 + $0x1f48] sm:$0xff]
    %v3258 = vld [vmem:[%s3 + $0x1f50] sm:$0xff]
    %v3259 = vld [vmem:[%s3 + $0x1f58] sm:$0xff]
    %v3260 = vld [vmem:[%s3 + $0x1f60] sm:$0xff]
    %v3261 = vld [vmem:[%s3 + $0x1f68] sm:$0xff]
    %v3262 = vld [vmem:[%s3 + $0x1f70] sm:$0xff]
    %v3263 = vld [vmem:[%s3 + $0x1f78] sm:$0xff]
    %v3264 = vld [vmem:[%s3 + $0x1f80] sm:$0xff]
    %v3265 = vld [vmem:[%s3 + $0x1f88] sm:$0xff]
    %v3266 = vld [vmem:[%s3 + $0x1f90] sm:$0xff]
    %v3267 = vld [vmem:[%s3 + $0x1f98] sm:$0xff]
    %v3268 = vld [vmem:[%s3 + $0x1fa0] sm:$0xff]
    %v3269 = vld [vmem:[%s3 + $0x1fa8] sm:$0xff]
    %v3270 = vld [vmem:[%s3 + $0x1fb0] sm:$0xff]
    %v3271 = vld [vmem:[%s3 + $0x1fb8] sm:$0xff]
    %v3272 = vld [vmem:[%s3 + $0x1fc0] sm:$0xff]
    %v3273 = vld [vmem:[%s3 + $0x1fc8] sm:$0xff]
    %v3274 = vld [vmem:[%s3 + $0x1fd0] sm:$0xff]
    %v3275 = vld [vmem:[%s3 + $0x1fd8] sm:$0xff]
    %v3276 = vld [vmem:[%s3 + $0x1fe0] sm:$0xff]
    %v3277 = vld [vmem:[%s3 + $0x1fe8] sm:$0xff]
    %v3278 = vld [vmem:[%s3 + $0x1ff0] sm:$0xff]
    %v3279 = vld [vmem:[%s3 + $0x1ff8] sm:$0xff]
    %v3280 = vld [vmem:[%s4] sm:$0xf]
    %v3282 = vlaneseq
    %v3283 = vshrl.u32 %v3282, 7
    %v3284 = vsub.s32 0, %v3283
    %v3285 = vrot.slane %v3280, %v3284
    %v3286 = vlaneseq
    %v3287 = vshrl.u32 %v3286, 7
    %v3288 = vsub.s32 1, %v3287
    %v3289 = vrot.slane %v3280, %v3288
    %v3290 = vlaneseq
    %v3291 = vshrl.u32 %v3290, 7
    %v3292 = vsub.s32 2, %v3291
    %v3293 = vrot.slane %v3280, %v3292
    %v3294 = vlaneseq
    %v3295 = vshrl.u32 %v3294, 7
    %v3296 = vsub.s32 3, %v3295
    %v3297 = vrot.slane %v3280, %v3296
    %v4326 = vunpack.c.l.b16 %v2256
    %v4327 = vunpack.c.h.b16 %v2256
    %v4328 = vunpack.c.l.b16 %v2257
    %v4329 = vunpack.c.h.b16 %v2257
    %v4330 = vunpack.c.l.b16 %v2258
    %v4331 = vunpack.c.h.b16 %v2258
    %v4332 = vunpack.c.l.b16 %v2259
    %v4333 = vunpack.c.h.b16 %v2259
    %v4334 = vunpack.c.l.b16 %v2260
    %v4335 = vunpack.c.h.b16 %v2260
    %v4336 = vunpack.c.l.b16 %v2261
    %v4337 = vunpack.c.h.b16 %v2261
    %v4338 = vunpack.c.l.b16 %v2262
    %v4339 = vunpack.c.h.b16 %v2262
    %v4340 = vunpack.c.l.b16 %v2263
    %v4341 = vunpack.c.h.b16 %v2263
    %v4342 = vunpack.c.l.b16 %v2264
    %v4343 = vunpack.c.h.b16 %v2264
    %v4344 = vunpack.c.l.b16 %v2265
    %v4345 = vunpack.c.h.b16 %v2265
    %v4346 = vunpack.c.l.b16 %v2266
    %v4347 = vunpack.c.h.b16 %v2266
    %v4348 = vunpack.c.l.b16 %v2267
    %v4349 = vunpack.c.h.b16 %v2267
    %v4350 = vunpack.c.l.b16 %v2268
    %v4351 = vunpack.c.h.b16 %v2268
    %v4352 = vunpack.c.l.b16 %v2269
    %v4353 = vunpack.c.h.b16 %v2269
    %v4354 = vunpack.c.l.b16 %v2270
    %v4355 = vunpack.c.h.b16 %v2270
    %v4356 = vunpack.c.l.b16 %v2271
    %v4357 = vunpack.c.h.b16 %v2271
    %v4358 = vunpack.c.l.b16 %v2272
    %v4359 = vunpack.c.h.b16 %v2272
    %v4360 = vunpack.c.l.b16 %v2273
    %v4361 = vunpack.c.h.b16 %v2273
    %v4362 = vunpack.c.l.b16 %v2274
    %v4363 = vunpack.c.h.b16 %v2274
    %v4364 = vunpack.c.l.b16 %v2275
    %v4365 = vunpack.c.h.b16 %v2275
    %v4366 = vunpack.c.l.b16 %v2276
    %v4367 = vunpack.c.h.b16 %v2276
    %v4368 = vunpack.c.l.b16 %v2277
    %v4369 = vunpack.c.h.b16 %v2277
    %v4370 = vunpack.c.l.b16 %v2278
    %v4371 = vunpack.c.h.b16 %v2278
    %v4372 = vunpack.c.l.b16 %v2279
    %v4373 = vunpack.c.h.b16 %v2279
    %v4374 = vunpack.c.l.b16 %v2280
    %v4375 = vunpack.c.h.b16 %v2280
    %v4376 = vunpack.c.l.b16 %v2281
    %v4377 = vunpack.c.h.b16 %v2281
    %v4378 = vunpack.c.l.b16 %v2282
    %v4379 = vunpack.c.h.b16 %v2282
    %v4380 = vunpack.c.l.b16 %v2283
    %v4381 = vunpack.c.h.b16 %v2283
    %v4382 = vunpack.c.l.b16 %v2284
    %v4383 = vunpack.c.h.b16 %v2284
    %v4384 = vunpack.c.l.b16 %v2285
    %v4385 = vunpack.c.h.b16 %v2285
    %v4386 = vunpack.c.l.b16 %v2286
    %v4387 = vunpack.c.h.b16 %v2286
    %v4388 = vunpack.c.l.b16 %v2287
    %v4389 = vunpack.c.h.b16 %v2287
    %v4390 = vunpack.c.l.b16 %v2288
    %v4391 = vunpack.c.h.b16 %v2288
    %v4392 = vunpack.c.l.b16 %v2289
    %v4393 = vunpack.c.h.b16 %v2289
    %v4394 = vunpack.c.l.b16 %v2290
    %v4395 = vunpack.c.h.b16 %v2290
    %v4396 = vunpack.c.l.b16 %v2291
    %v4397 = vunpack.c.h.b16 %v2291
    %v4398 = vunpack.c.l.b16 %v2292
    %v4399 = vunpack.c.h.b16 %v2292
    %v4400 = vunpack.c.l.b16 %v2293
    %v4401 = vunpack.c.h.b16 %v2293
    %v4402 = vunpack.c.l.b16 %v2294
    %v4403 = vunpack.c.h.b16 %v2294
    %v4404 = vunpack.c.l.b16 %v2295
    %v4405 = vunpack.c.h.b16 %v2295
    %v4406 = vunpack.c.l.b16 %v2296
    %v4407 = vunpack.c.h.b16 %v2296
    %v4408 = vunpack.c.l.b16 %v2297
    %v4409 = vunpack.c.h.b16 %v2297
    %v4410 = vunpack.c.l.b16 %v2298
    %v4411 = vunpack.c.h.b16 %v2298
    %v4412 = vunpack.c.l.b16 %v2299
    %v4413 = vunpack.c.h.b16 %v2299
    %v4414 = vunpack.c.l.b16 %v2300
    %v4415 = vunpack.c.h.b16 %v2300
    %v4416 = vunpack.c.l.b16 %v2301
    %v4417 = vunpack.c.h.b16 %v2301
    %v4418 = vunpack.c.l.b16 %v2302
    %v4419 = vunpack.c.h.b16 %v2302
    %v4420 = vunpack.c.l.b16 %v2303
    %v4421 = vunpack.c.h.b16 %v2303
    %v4422 = vunpack.c.l.b16 %v2304
    %v4423 = vunpack.c.h.b16 %v2304
    %v4424 = vunpack.c.l.b16 %v2305
    %v4425 = vunpack.c.h.b16 %v2305
    %v4426 = vunpack.c.l.b16 %v2306
    %v4427 = vunpack.c.h.b16 %v2306
    %v4428 = vunpack.c.l.b16 %v2307
    %v4429 = vunpack.c.h.b16 %v2307
    %v4430 = vunpack.c.l.b16 %v2308
    %v4431 = vunpack.c.h.b16 %v2308
    %v4432 = vunpack.c.l.b16 %v2309
    %v4433 = vunpack.c.h.b16 %v2309
    %v4434 = vunpack.c.l.b16 %v2310
    %v4435 = vunpack.c.h.b16 %v2310
    %v4436 = vunpack.c.l.b16 %v2311
    %v4437 = vunpack.c.h.b16 %v2311
    %v4438 = vunpack.c.l.b16 %v2312
    %v4439 = vunpack.c.h.b16 %v2312
    %v4440 = vunpack.c.l.b16 %v2313
    %v4441 = vunpack.c.h.b16 %v2313
    %v4442 = vunpack.c.l.b16 %v2314
    %v4443 = vunpack.c.h.b16 %v2314
    %v4444 = vunpack.c.l.b16 %v2315
    %v4445 = vunpack.c.h.b16 %v2315
    %v4446 = vunpack.c.l.b16 %v2316
    %v4447 = vunpack.c.h.b16 %v2316
    %v4448 = vunpack.c.l.b16 %v2317
    %v4449 = vunpack.c.h.b16 %v2317
    %v4450 = vunpack.c.l.b16 %v2318
    %v4451 = vunpack.c.h.b16 %v2318
    %v4452 = vunpack.c.l.b16 %v2319
    %v4453 = vunpack.c.h.b16 %v2319
    %v4454 = vunpack.c.l.b16 %v2320
    %v4455 = vunpack.c.h.b16 %v2320
    %v4456 = vunpack.c.l.b16 %v2321
    %v4457 = vunpack.c.h.b16 %v2321
    %v4458 = vunpack.c.l.b16 %v2322
    %v4459 = vunpack.c.h.b16 %v2322
    %v4460 = vunpack.c.l.b16 %v2323
    %v4461 = vunpack.c.h.b16 %v2323
    %v4462 = vunpack.c.l.b16 %v2324
    %v4463 = vunpack.c.h.b16 %v2324
    %v4464 = vunpack.c.l.b16 %v2325
    %v4465 = vunpack.c.h.b16 %v2325
    %v4466 = vunpack.c.l.b16 %v2326
    %v4467 = vunpack.c.h.b16 %v2326
    %v4468 = vunpack.c.l.b16 %v2327
    %v4469 = vunpack.c.h.b16 %v2327
    %v4470 = vunpack.c.l.b16 %v2328
    %v4471 = vunpack.c.h.b16 %v2328
    %v4472 = vunpack.c.l.b16 %v2329
    %v4473 = vunpack.c.h.b16 %v2329
    %v4474 = vunpack.c.l.b16 %v2330
    %v4475 = vunpack.c.h.b16 %v2330
    %v4476 = vunpack.c.l.b16 %v2331
    %v4477 = vunpack.c.h.b16 %v2331
    %v4478 = vunpack.c.l.b16 %v2332
    %v4479 = vunpack.c.h.b16 %v2332
    %v4480 = vunpack.c.l.b16 %v2333
    %v4481 = vunpack.c.h.b16 %v2333
    %v4482 = vunpack.c.l.b16 %v2334
    %v4483 = vunpack.c.h.b16 %v2334
    %v4484 = vunpack.c.l.b16 %v2335
    %v4485 = vunpack.c.h.b16 %v2335
    %v4486 = vunpack.c.l.b16 %v2336
    %v4487 = vunpack.c.h.b16 %v2336
    %v4488 = vunpack.c.l.b16 %v2337
    %v4489 = vunpack.c.h.b16 %v2337
    %v4490 = vunpack.c.l.b16 %v2338
    %v4491 = vunpack.c.h.b16 %v2338
    %v4492 = vunpack.c.l.b16 %v2339
    %v4493 = vunpack.c.h.b16 %v2339
    %v4494 = vunpack.c.l.b16 %v2340
    %v4495 = vunpack.c.h.b16 %v2340
    %v4496 = vunpack.c.l.b16 %v2341
    %v4497 = vunpack.c.h.b16 %v2341
    %v4498 = vunpack.c.l.b16 %v2342
    %v4499 = vunpack.c.h.b16 %v2342
    %v4500 = vunpack.c.l.b16 %v2343
    %v4501 = vunpack.c.h.b16 %v2343
    %v4502 = vunpack.c.l.b16 %v2344
    %v4503 = vunpack.c.h.b16 %v2344
    %v4504 = vunpack.c.l.b16 %v2345
    %v4505 = vunpack.c.h.b16 %v2345
    %v4506 = vunpack.c.l.b16 %v2346
    %v4507 = vunpack.c.h.b16 %v2346
    %v4508 = vunpack.c.l.b16 %v2347
    %v4509 = vunpack.c.h.b16 %v2347
    %v4510 = vunpack.c.l.b16 %v2348
    %v4511 = vunpack.c.h.b16 %v2348
    %v4512 = vunpack.c.l.b16 %v2349
    %v4513 = vunpack.c.h.b16 %v2349
    %v4514 = vunpack.c.l.b16 %v2350
    %v4515 = vunpack.c.h.b16 %v2350
    %v4516 = vunpack.c.l.b16 %v2351
    %v4517 = vunpack.c.h.b16 %v2351
    %v4518 = vunpack.c.l.b16 %v2352
    %v4519 = vunpack.c.h.b16 %v2352
    %v4520 = vunpack.c.l.b16 %v2353
    %v4521 = vunpack.c.h.b16 %v2353
    %v4522 = vunpack.c.l.b16 %v2354
    %v4523 = vunpack.c.h.b16 %v2354
    %v4524 = vunpack.c.l.b16 %v2355
    %v4525 = vunpack.c.h.b16 %v2355
    %v4526 = vunpack.c.l.b16 %v2356
    %v4527 = vunpack.c.h.b16 %v2356
    %v4528 = vunpack.c.l.b16 %v2357
    %v4529 = vunpack.c.h.b16 %v2357
    %v4530 = vunpack.c.l.b16 %v2358
    %v4531 = vunpack.c.h.b16 %v2358
    %v4532 = vunpack.c.l.b16 %v2359
    %v4533 = vunpack.c.h.b16 %v2359
    %v4534 = vunpack.c.l.b16 %v2360
    %v4535 = vunpack.c.h.b16 %v2360
    %v4536 = vunpack.c.l.b16 %v2361
    %v4537 = vunpack.c.h.b16 %v2361
    %v4538 = vunpack.c.l.b16 %v2362
    %v4539 = vunpack.c.h.b16 %v2362
    %v4540 = vunpack.c.l.b16 %v2363
    %v4541 = vunpack.c.h.b16 %v2363
    %v4542 = vunpack.c.l.b16 %v2364
    %v4543 = vunpack.c.h.b16 %v2364
    %v4544 = vunpack.c.l.b16 %v2365
    %v4545 = vunpack.c.h.b16 %v2365
    %v4546 = vunpack.c.l.b16 %v2366
    %v4547 = vunpack.c.h.b16 %v2366
    %v4548 = vunpack.c.l.b16 %v2367
    %v4549 = vunpack.c.h.b16 %v2367
    %v4550 = vunpack.c.l.b16 %v2368
    %v4551 = vunpack.c.h.b16 %v2368
    %v4552 = vunpack.c.l.b16 %v2369
    %v4553 = vunpack.c.h.b16 %v2369
    %v4554 = vunpack.c.l.b16 %v2370
    %v4555 = vunpack.c.h.b16 %v2370
    %v4556 = vunpack.c.l.b16 %v2371
    %v4557 = vunpack.c.h.b16 %v2371
    %v4558 = vunpack.c.l.b16 %v2372
    %v4559 = vunpack.c.h.b16 %v2372
    %v4560 = vunpack.c.l.b16 %v2373
    %v4561 = vunpack.c.h.b16 %v2373
    %v4562 = vunpack.c.l.b16 %v2374
    %v4563 = vunpack.c.h.b16 %v2374
    %v4564 = vunpack.c.l.b16 %v2375
    %v4565 = vunpack.c.h.b16 %v2375
    %v4566 = vunpack.c.l.b16 %v2376
    %v4567 = vunpack.c.h.b16 %v2376
    %v4568 = vunpack.c.l.b16 %v2377
    %v4569 = vunpack.c.h.b16 %v2377
    %v4570 = vunpack.c.l.b16 %v2378
    %v4571 = vunpack.c.h.b16 %v2378
    %v4572 = vunpack.c.l.b16 %v2379
    %v4573 = vunpack.c.h.b16 %v2379
    %v4574 = vunpack.c.l.b16 %v2380
    %v4575 = vunpack.c.h.b16 %v2380
    %v4576 = vunpack.c.l.b16 %v2381
    %v4577 = vunpack.c.h.b16 %v2381
    %v4578 = vunpack.c.l.b16 %v2382
    %v4579 = vunpack.c.h.b16 %v2382
    %v4580 = vunpack.c.l.b16 %v2383
    %v4581 = vunpack.c.h.b16 %v2383
    %v4582 = vunpack.c.l.b16 %v2384
    %v4583 = vunpack.c.h.b16 %v2384
    %v4584 = vunpack.c.l.b16 %v2385
    %v4585 = vunpack.c.h.b16 %v2385
    %v4586 = vunpack.c.l.b16 %v2386
    %v4587 = vunpack.c.h.b16 %v2386
    %v4588 = vunpack.c.l.b16 %v2387
    %v4589 = vunpack.c.h.b16 %v2387
    %v4590 = vunpack.c.l.b16 %v2388
    %v4591 = vunpack.c.h.b16 %v2388
    %v4592 = vunpack.c.l.b16 %v2389
    %v4593 = vunpack.c.h.b16 %v2389
    %v4594 = vunpack.c.l.b16 %v2390
    %v4595 = vunpack.c.h.b16 %v2390
    %v4596 = vunpack.c.l.b16 %v2391
    %v4597 = vunpack.c.h.b16 %v2391
    %v4598 = vunpack.c.l.b16 %v2392
    %v4599 = vunpack.c.h.b16 %v2392
    %v4600 = vunpack.c.l.b16 %v2393
    %v4601 = vunpack.c.h.b16 %v2393
    %v4602 = vunpack.c.l.b16 %v2394
    %v4603 = vunpack.c.h.b16 %v2394
    %v4604 = vunpack.c.l.b16 %v2395
    %v4605 = vunpack.c.h.b16 %v2395
    %v4606 = vunpack.c.l.b16 %v2396
    %v4607 = vunpack.c.h.b16 %v2396
    %v4608 = vunpack.c.l.b16 %v2397
    %v4609 = vunpack.c.h.b16 %v2397
    %v4610 = vunpack.c.l.b16 %v2398
    %v4611 = vunpack.c.h.b16 %v2398
    %v4612 = vunpack.c.l.b16 %v2399
    %v4613 = vunpack.c.h.b16 %v2399
    %v4614 = vunpack.c.l.b16 %v2400
    %v4615 = vunpack.c.h.b16 %v2400
    %v4616 = vunpack.c.l.b16 %v2401
    %v4617 = vunpack.c.h.b16 %v2401
    %v4618 = vunpack.c.l.b16 %v2402
    %v4619 = vunpack.c.h.b16 %v2402
    %v4620 = vunpack.c.l.b16 %v2403
    %v4621 = vunpack.c.h.b16 %v2403
    %v4622 = vunpack.c.l.b16 %v2404
    %v4623 = vunpack.c.h.b16 %v2404
    %v4624 = vunpack.c.l.b16 %v2405
    %v4625 = vunpack.c.h.b16 %v2405
    %v4626 = vunpack.c.l.b16 %v2406
    %v4627 = vunpack.c.h.b16 %v2406
    %v4628 = vunpack.c.l.b16 %v2407
    %v4629 = vunpack.c.h.b16 %v2407
    %v4630 = vunpack.c.l.b16 %v2408
    %v4631 = vunpack.c.h.b16 %v2408
    %v4632 = vunpack.c.l.b16 %v2409
    %v4633 = vunpack.c.h.b16 %v2409
    %v4634 = vunpack.c.l.b16 %v2410
    %v4635 = vunpack.c.h.b16 %v2410
    %v4636 = vunpack.c.l.b16 %v2411
    %v4637 = vunpack.c.h.b16 %v2411
    %v4638 = vunpack.c.l.b16 %v2412
    %v4639 = vunpack.c.h.b16 %v2412
    %v4640 = vunpack.c.l.b16 %v2413
    %v4641 = vunpack.c.h.b16 %v2413
    %v4642 = vunpack.c.l.b16 %v2414
    %v4643 = vunpack.c.h.b16 %v2414
    %v4644 = vunpack.c.l.b16 %v2415
    %v4645 = vunpack.c.h.b16 %v2415
    %v4646 = vunpack.c.l.b16 %v2416
    %v4647 = vunpack.c.h.b16 %v2416
    %v4648 = vunpack.c.l.b16 %v2417
    %v4649 = vunpack.c.h.b16 %v2417
    %v4650 = vunpack.c.l.b16 %v2418
    %v4651 = vunpack.c.h.b16 %v2418
    %v4652 = vunpack.c.l.b16 %v2419
    %v4653 = vunpack.c.h.b16 %v2419
    %v4654 = vunpack.c.l.b16 %v2420
    %v4655 = vunpack.c.h.b16 %v2420
    %v4656 = vunpack.c.l.b16 %v2421
    %v4657 = vunpack.c.h.b16 %v2421
    %v4658 = vunpack.c.l.b16 %v2422
    %v4659 = vunpack.c.h.b16 %v2422
    %v4660 = vunpack.c.l.b16 %v2423
    %v4661 = vunpack.c.h.b16 %v2423
    %v4662 = vunpack.c.l.b16 %v2424
    %v4663 = vunpack.c.h.b16 %v2424
    %v4664 = vunpack.c.l.b16 %v2425
    %v4665 = vunpack.c.h.b16 %v2425
    %v4666 = vunpack.c.l.b16 %v2426
    %v4667 = vunpack.c.h.b16 %v2426
    %v4668 = vunpack.c.l.b16 %v2427
    %v4669 = vunpack.c.h.b16 %v2427
    %v4670 = vunpack.c.l.b16 %v2428
    %v4671 = vunpack.c.h.b16 %v2428
    %v4672 = vunpack.c.l.b16 %v2429
    %v4673 = vunpack.c.h.b16 %v2429
    %v4674 = vunpack.c.l.b16 %v2430
    %v4675 = vunpack.c.h.b16 %v2430
    %v4676 = vunpack.c.l.b16 %v2431
    %v4677 = vunpack.c.h.b16 %v2431
    %v4678 = vunpack.c.l.b16 %v2432
    %v4679 = vunpack.c.h.b16 %v2432
    %v4680 = vunpack.c.l.b16 %v2433
    %v4681 = vunpack.c.h.b16 %v2433
    %v4682 = vunpack.c.l.b16 %v2434
    %v4683 = vunpack.c.h.b16 %v2434
    %v4684 = vunpack.c.l.b16 %v2435
    %v4685 = vunpack.c.h.b16 %v2435
    %v4686 = vunpack.c.l.b16 %v2436
    %v4687 = vunpack.c.h.b16 %v2436
    %v4688 = vunpack.c.l.b16 %v2437
    %v4689 = vunpack.c.h.b16 %v2437
    %v4690 = vunpack.c.l.b16 %v2438
    %v4691 = vunpack.c.h.b16 %v2438
    %v4692 = vunpack.c.l.b16 %v2439
    %v4693 = vunpack.c.h.b16 %v2439
    %v4694 = vunpack.c.l.b16 %v2440
    %v4695 = vunpack.c.h.b16 %v2440
    %v4696 = vunpack.c.l.b16 %v2441
    %v4697 = vunpack.c.h.b16 %v2441
    %v4698 = vunpack.c.l.b16 %v2442
    %v4699 = vunpack.c.h.b16 %v2442
    %v4700 = vunpack.c.l.b16 %v2443
    %v4701 = vunpack.c.h.b16 %v2443
    %v4702 = vunpack.c.l.b16 %v2444
    %v4703 = vunpack.c.h.b16 %v2444
    %v4704 = vunpack.c.l.b16 %v2445
    %v4705 = vunpack.c.h.b16 %v2445
    %v4706 = vunpack.c.l.b16 %v2446
    %v4707 = vunpack.c.h.b16 %v2446
    %v4708 = vunpack.c.l.b16 %v2447
    %v4709 = vunpack.c.h.b16 %v2447
    %v4710 = vunpack.c.l.b16 %v2448
    %v4711 = vunpack.c.h.b16 %v2448
    %v4712 = vunpack.c.l.b16 %v2449
    %v4713 = vunpack.c.h.b16 %v2449
    %v4714 = vunpack.c.l.b16 %v2450
    %v4715 = vunpack.c.h.b16 %v2450
    %v4716 = vunpack.c.l.b16 %v2451
    %v4717 = vunpack.c.h.b16 %v2451
    %v4718 = vunpack.c.l.b16 %v2452
    %v4719 = vunpack.c.h.b16 %v2452
    %v4720 = vunpack.c.l.b16 %v2453
    %v4721 = vunpack.c.h.b16 %v2453
    %v4722 = vunpack.c.l.b16 %v2454
    %v4723 = vunpack.c.h.b16 %v2454
    %v4724 = vunpack.c.l.b16 %v2455
    %v4725 = vunpack.c.h.b16 %v2455
    %v4726 = vunpack.c.l.b16 %v2456
    %v4727 = vunpack.c.h.b16 %v2456
    %v4728 = vunpack.c.l.b16 %v2457
    %v4729 = vunpack.c.h.b16 %v2457
    %v4730 = vunpack.c.l.b16 %v2458
    %v4731 = vunpack.c.h.b16 %v2458
    %v4732 = vunpack.c.l.b16 %v2459
    %v4733 = vunpack.c.h.b16 %v2459
    %v4734 = vunpack.c.l.b16 %v2460
    %v4735 = vunpack.c.h.b16 %v2460
    %v4736 = vunpack.c.l.b16 %v2461
    %v4737 = vunpack.c.h.b16 %v2461
    %v4738 = vunpack.c.l.b16 %v2462
    %v4739 = vunpack.c.h.b16 %v2462
    %v4740 = vunpack.c.l.b16 %v2463
    %v4741 = vunpack.c.h.b16 %v2463
    %v4742 = vunpack.c.l.b16 %v2464
    %v4743 = vunpack.c.h.b16 %v2464
    %v4744 = vunpack.c.l.b16 %v2465
    %v4745 = vunpack.c.h.b16 %v2465
    %v4746 = vunpack.c.l.b16 %v2466
    %v4747 = vunpack.c.h.b16 %v2466
    %v4748 = vunpack.c.l.b16 %v2467
    %v4749 = vunpack.c.h.b16 %v2467
    %v4750 = vunpack.c.l.b16 %v2468
    %v4751 = vunpack.c.h.b16 %v2468
    %v4752 = vunpack.c.l.b16 %v2469
    %v4753 = vunpack.c.h.b16 %v2469
    %v4754 = vunpack.c.l.b16 %v2470
    %v4755 = vunpack.c.h.b16 %v2470
    %v4756 = vunpack.c.l.b16 %v2471
    %v4757 = vunpack.c.h.b16 %v2471
    %v4758 = vunpack.c.l.b16 %v2472
    %v4759 = vunpack.c.h.b16 %v2472
    %v4760 = vunpack.c.l.b16 %v2473
    %v4761 = vunpack.c.h.b16 %v2473
    %v4762 = vunpack.c.l.b16 %v2474
    %v4763 = vunpack.c.h.b16 %v2474
    %v4764 = vunpack.c.l.b16 %v2475
    %v4765 = vunpack.c.h.b16 %v2475
    %v4766 = vunpack.c.l.b16 %v2476
    %v4767 = vunpack.c.h.b16 %v2476
    %v4768 = vunpack.c.l.b16 %v2477
    %v4769 = vunpack.c.h.b16 %v2477
    %v4770 = vunpack.c.l.b16 %v2478
    %v4771 = vunpack.c.h.b16 %v2478
    %v4772 = vunpack.c.l.b16 %v2479
    %v4773 = vunpack.c.h.b16 %v2479
    %v4774 = vunpack.c.l.b16 %v2480
    %v4775 = vunpack.c.h.b16 %v2480
    %v4776 = vunpack.c.l.b16 %v2481
    %v4777 = vunpack.c.h.b16 %v2481
    %v4778 = vunpack.c.l.b16 %v2482
    %v4779 = vunpack.c.h.b16 %v2482
    %v4780 = vunpack.c.l.b16 %v2483
    %v4781 = vunpack.c.h.b16 %v2483
    %v4782 = vunpack.c.l.b16 %v2484
    %v4783 = vunpack.c.h.b16 %v2484
    %v4784 = vunpack.c.l.b16 %v2485
    %v4785 = vunpack.c.h.b16 %v2485
    %v4786 = vunpack.c.l.b16 %v2486
    %v4787 = vunpack.c.h.b16 %v2486
    %v4788 = vunpack.c.l.b16 %v2487
    %v4789 = vunpack.c.h.b16 %v2487
    %v4790 = vunpack.c.l.b16 %v2488
    %v4791 = vunpack.c.h.b16 %v2488
    %v4792 = vunpack.c.l.b16 %v2489
    %v4793 = vunpack.c.h.b16 %v2489
    %v4794 = vunpack.c.l.b16 %v2490
    %v4795 = vunpack.c.h.b16 %v2490
    %v4796 = vunpack.c.l.b16 %v2491
    %v4797 = vunpack.c.h.b16 %v2491
    %v4798 = vunpack.c.l.b16 %v2492
    %v4799 = vunpack.c.h.b16 %v2492
    %v4800 = vunpack.c.l.b16 %v2493
    %v4801 = vunpack.c.h.b16 %v2493
    %v4802 = vunpack.c.l.b16 %v2494
    %v4803 = vunpack.c.h.b16 %v2494
    %v4804 = vunpack.c.l.b16 %v2495
    %v4805 = vunpack.c.h.b16 %v2495
    %v4806 = vunpack.c.l.b16 %v2496
    %v4807 = vunpack.c.h.b16 %v2496
    %v4808 = vunpack.c.l.b16 %v2497
    %v4809 = vunpack.c.h.b16 %v2497
    %v4810 = vunpack.c.l.b16 %v2498
    %v4811 = vunpack.c.h.b16 %v2498
    %v4812 = vunpack.c.l.b16 %v2499
    %v4813 = vunpack.c.h.b16 %v2499
    %v4814 = vunpack.c.l.b16 %v2500
    %v4815 = vunpack.c.h.b16 %v2500
    %v4816 = vunpack.c.l.b16 %v2501
    %v4817 = vunpack.c.h.b16 %v2501
    %v4818 = vunpack.c.l.b16 %v2502
    %v4819 = vunpack.c.h.b16 %v2502
    %v4820 = vunpack.c.l.b16 %v2503
    %v4821 = vunpack.c.h.b16 %v2503
    %v4822 = vunpack.c.l.b16 %v2504
    %v4823 = vunpack.c.h.b16 %v2504
    %v4824 = vunpack.c.l.b16 %v2505
    %v4825 = vunpack.c.h.b16 %v2505
    %v4826 = vunpack.c.l.b16 %v2506
    %v4827 = vunpack.c.h.b16 %v2506
    %v4828 = vunpack.c.l.b16 %v2507
    %v4829 = vunpack.c.h.b16 %v2507
    %v4830 = vunpack.c.l.b16 %v2508
    %v4831 = vunpack.c.h.b16 %v2508
    %v4832 = vunpack.c.l.b16 %v2509
    %v4833 = vunpack.c.h.b16 %v2509
    %v4834 = vunpack.c.l.b16 %v2510
    %v4835 = vunpack.c.h.b16 %v2510
    %v4836 = vunpack.c.l.b16 %v2511
    %v4837 = vunpack.c.h.b16 %v2511
    %v4838 = vunpack.c.l.b16 %v2512
    %v4839 = vunpack.c.h.b16 %v2512
    %v4840 = vunpack.c.l.b16 %v2513
    %v4841 = vunpack.c.h.b16 %v2513
    %v4842 = vunpack.c.l.b16 %v2514
    %v4843 = vunpack.c.h.b16 %v2514
    %v4844 = vunpack.c.l.b16 %v2515
    %v4845 = vunpack.c.h.b16 %v2515
    %v4846 = vunpack.c.l.b16 %v2516
    %v4847 = vunpack.c.h.b16 %v2516
    %v4848 = vunpack.c.l.b16 %v2517
    %v4849 = vunpack.c.h.b16 %v2517
    %v4850 = vunpack.c.l.b16 %v2518
    %v4851 = vunpack.c.h.b16 %v2518
    %v4852 = vunpack.c.l.b16 %v2519
    %v4853 = vunpack.c.h.b16 %v2519
    %v4854 = vunpack.c.l.b16 %v2520
    %v4855 = vunpack.c.h.b16 %v2520
    %v4856 = vunpack.c.l.b16 %v2521
    %v4857 = vunpack.c.h.b16 %v2521
    %v4858 = vunpack.c.l.b16 %v2522
    %v4859 = vunpack.c.h.b16 %v2522
    %v4860 = vunpack.c.l.b16 %v2523
    %v4861 = vunpack.c.h.b16 %v2523
    %v4862 = vunpack.c.l.b16 %v2524
    %v4863 = vunpack.c.h.b16 %v2524
    %v4864 = vunpack.c.l.b16 %v2525
    %v4865 = vunpack.c.h.b16 %v2525
    %v4866 = vunpack.c.l.b16 %v2526
    %v4867 = vunpack.c.h.b16 %v2526
    %v4868 = vunpack.c.l.b16 %v2527
    %v4869 = vunpack.c.h.b16 %v2527
    %v4870 = vunpack.c.l.b16 %v2528
    %v4871 = vunpack.c.h.b16 %v2528
    %v4872 = vunpack.c.l.b16 %v2529
    %v4873 = vunpack.c.h.b16 %v2529
    %v4874 = vunpack.c.l.b16 %v2530
    %v4875 = vunpack.c.h.b16 %v2530
    %v4876 = vunpack.c.l.b16 %v2531
    %v4877 = vunpack.c.h.b16 %v2531
    %v4878 = vunpack.c.l.b16 %v2532
    %v4879 = vunpack.c.h.b16 %v2532
    %v4880 = vunpack.c.l.b16 %v2533
    %v4881 = vunpack.c.h.b16 %v2533
    %v4882 = vunpack.c.l.b16 %v2534
    %v4883 = vunpack.c.h.b16 %v2534
    %v4884 = vunpack.c.l.b16 %v2535
    %v4885 = vunpack.c.h.b16 %v2535
    %v4886 = vunpack.c.l.b16 %v2536
    %v4887 = vunpack.c.h.b16 %v2536
    %v4888 = vunpack.c.l.b16 %v2537
    %v4889 = vunpack.c.h.b16 %v2537
    %v4890 = vunpack.c.l.b16 %v2538
    %v4891 = vunpack.c.h.b16 %v2538
    %v4892 = vunpack.c.l.b16 %v2539
    %v4893 = vunpack.c.h.b16 %v2539
    %v4894 = vunpack.c.l.b16 %v2540
    %v4895 = vunpack.c.h.b16 %v2540
    %v4896 = vunpack.c.l.b16 %v2541
    %v4897 = vunpack.c.h.b16 %v2541
    %v4898 = vunpack.c.l.b16 %v2542
    %v4899 = vunpack.c.h.b16 %v2542
    %v4900 = vunpack.c.l.b16 %v2543
    %v4901 = vunpack.c.h.b16 %v2543
    %v4902 = vunpack.c.l.b16 %v2544
    %v4903 = vunpack.c.h.b16 %v2544
    %v4904 = vunpack.c.l.b16 %v2545
    %v4905 = vunpack.c.h.b16 %v2545
    %v4906 = vunpack.c.l.b16 %v2546
    %v4907 = vunpack.c.h.b16 %v2546
    %v4908 = vunpack.c.l.b16 %v2547
    %v4909 = vunpack.c.h.b16 %v2547
    %v4910 = vunpack.c.l.b16 %v2548
    %v4911 = vunpack.c.h.b16 %v2548
    %v4912 = vunpack.c.l.b16 %v2549
    %v4913 = vunpack.c.h.b16 %v2549
    %v4914 = vunpack.c.l.b16 %v2550
    %v4915 = vunpack.c.h.b16 %v2550
    %v4916 = vunpack.c.l.b16 %v2551
    %v4917 = vunpack.c.h.b16 %v2551
    %v4918 = vunpack.c.l.b16 %v2552
    %v4919 = vunpack.c.h.b16 %v2552
    %v4920 = vunpack.c.l.b16 %v2553
    %v4921 = vunpack.c.h.b16 %v2553
    %v4922 = vunpack.c.l.b16 %v2554
    %v4923 = vunpack.c.h.b16 %v2554
    %v4924 = vunpack.c.l.b16 %v2555
    %v4925 = vunpack.c.h.b16 %v2555
    %v4926 = vunpack.c.l.b16 %v2556
    %v4927 = vunpack.c.h.b16 %v2556
    %v4928 = vunpack.c.l.b16 %v2557
    %v4929 = vunpack.c.h.b16 %v2557
    %v4930 = vunpack.c.l.b16 %v2558
    %v4931 = vunpack.c.h.b16 %v2558
    %v4932 = vunpack.c.l.b16 %v2559
    %v4933 = vunpack.c.h.b16 %v2559
    %v4934 = vunpack.c.l.b16 %v2560
    %v4935 = vunpack.c.h.b16 %v2560
    %v4936 = vunpack.c.l.b16 %v2561
    %v4937 = vunpack.c.h.b16 %v2561
    %v4938 = vunpack.c.l.b16 %v2562
    %v4939 = vunpack.c.h.b16 %v2562
    %v4940 = vunpack.c.l.b16 %v2563
    %v4941 = vunpack.c.h.b16 %v2563
    %v4942 = vunpack.c.l.b16 %v2564
    %v4943 = vunpack.c.h.b16 %v2564
    %v4944 = vunpack.c.l.b16 %v2565
    %v4945 = vunpack.c.h.b16 %v2565
    %v4946 = vunpack.c.l.b16 %v2566
    %v4947 = vunpack.c.h.b16 %v2566
    %v4948 = vunpack.c.l.b16 %v2567
    %v4949 = vunpack.c.h.b16 %v2567
    %v4950 = vunpack.c.l.b16 %v2568
    %v4951 = vunpack.c.h.b16 %v2568
    %v4952 = vunpack.c.l.b16 %v2569
    %v4953 = vunpack.c.h.b16 %v2569
    %v4954 = vunpack.c.l.b16 %v2570
    %v4955 = vunpack.c.h.b16 %v2570
    %v4956 = vunpack.c.l.b16 %v2571
    %v4957 = vunpack.c.h.b16 %v2571
    %v4958 = vunpack.c.l.b16 %v2572
    %v4959 = vunpack.c.h.b16 %v2572
    %v4960 = vunpack.c.l.b16 %v2573
    %v4961 = vunpack.c.h.b16 %v2573
    %v4962 = vunpack.c.l.b16 %v2574
    %v4963 = vunpack.c.h.b16 %v2574
    %v4964 = vunpack.c.l.b16 %v2575
    %v4965 = vunpack.c.h.b16 %v2575
    %v4966 = vunpack.c.l.b16 %v2576
    %v4967 = vunpack.c.h.b16 %v2576
    %v4968 = vunpack.c.l.b16 %v2577
    %v4969 = vunpack.c.h.b16 %v2577
    %v4970 = vunpack.c.l.b16 %v2578
    %v4971 = vunpack.c.h.b16 %v2578
    %v4972 = vunpack.c.l.b16 %v2579
    %v4973 = vunpack.c.h.b16 %v2579
    %v4974 = vunpack.c.l.b16 %v2580
    %v4975 = vunpack.c.h.b16 %v2580
    %v4976 = vunpack.c.l.b16 %v2581
    %v4977 = vunpack.c.h.b16 %v2581
    %v4978 = vunpack.c.l.b16 %v2582
    %v4979 = vunpack.c.h.b16 %v2582
    %v4980 = vunpack.c.l.b16 %v2583
    %v4981 = vunpack.c.h.b16 %v2583
    %v4982 = vunpack.c.l.b16 %v2584
    %v4983 = vunpack.c.h.b16 %v2584
    %v4984 = vunpack.c.l.b16 %v2585
    %v4985 = vunpack.c.h.b16 %v2585
    %v4986 = vunpack.c.l.b16 %v2586
    %v4987 = vunpack.c.h.b16 %v2586
    %v4988 = vunpack.c.l.b16 %v2587
    %v4989 = vunpack.c.h.b16 %v2587
    %v4990 = vunpack.c.l.b16 %v2588
    %v4991 = vunpack.c.h.b16 %v2588
    %v4992 = vunpack.c.l.b16 %v2589
    %v4993 = vunpack.c.h.b16 %v2589
    %v4994 = vunpack.c.l.b16 %v2590
    %v4995 = vunpack.c.h.b16 %v2590
    %v4996 = vunpack.c.l.b16 %v2591
    %v4997 = vunpack.c.h.b16 %v2591
    %v4998 = vunpack.c.l.b16 %v2592
    %v4999 = vunpack.c.h.b16 %v2592
    %v5000 = vunpack.c.l.b16 %v2593
    %v5001 = vunpack.c.h.b16 %v2593
    %v5002 = vunpack.c.l.b16 %v2594
    %v5003 = vunpack.c.h.b16 %v2594
    %v5004 = vunpack.c.l.b16 %v2595
    %v5005 = vunpack.c.h.b16 %v2595
    %v5006 = vunpack.c.l.b16 %v2596
    %v5007 = vunpack.c.h.b16 %v2596
    %v5008 = vunpack.c.l.b16 %v2597
    %v5009 = vunpack.c.h.b16 %v2597
    %v5010 = vunpack.c.l.b16 %v2598
    %v5011 = vunpack.c.h.b16 %v2598
    %v5012 = vunpack.c.l.b16 %v2599
    %v5013 = vunpack.c.h.b16 %v2599
    %v5014 = vunpack.c.l.b16 %v2600
    %v5015 = vunpack.c.h.b16 %v2600
    %v5016 = vunpack.c.l.b16 %v2601
    %v5017 = vunpack.c.h.b16 %v2601
    %v5018 = vunpack.c.l.b16 %v2602
    %v5019 = vunpack.c.h.b16 %v2602
    %v5020 = vunpack.c.l.b16 %v2603
    %v5021 = vunpack.c.h.b16 %v2603
    %v5022 = vunpack.c.l.b16 %v2604
    %v5023 = vunpack.c.h.b16 %v2604
    %v5024 = vunpack.c.l.b16 %v2605
    %v5025 = vunpack.c.h.b16 %v2605
    %v5026 = vunpack.c.l.b16 %v2606
    %v5027 = vunpack.c.h.b16 %v2606
    %v5028 = vunpack.c.l.b16 %v2607
    %v5029 = vunpack.c.h.b16 %v2607
    %v5030 = vunpack.c.l.b16 %v2608
    %v5031 = vunpack.c.h.b16 %v2608
    %v5032 = vunpack.c.l.b16 %v2609
    %v5033 = vunpack.c.h.b16 %v2609
    %v5034 = vunpack.c.l.b16 %v2610
    %v5035 = vunpack.c.h.b16 %v2610
    %v5036 = vunpack.c.l.b16 %v2611
    %v5037 = vunpack.c.h.b16 %v2611
    %v5038 = vunpack.c.l.b16 %v2612
    %v5039 = vunpack.c.h.b16 %v2612
    %v5040 = vunpack.c.l.b16 %v2613
    %v5041 = vunpack.c.h.b16 %v2613
    %v5042 = vunpack.c.l.b16 %v2614
    %v5043 = vunpack.c.h.b16 %v2614
    %v5044 = vunpack.c.l.b16 %v2615
    %v5045 = vunpack.c.h.b16 %v2615
    %v5046 = vunpack.c.l.b16 %v2616
    %v5047 = vunpack.c.h.b16 %v2616
    %v5048 = vunpack.c.l.b16 %v2617
    %v5049 = vunpack.c.h.b16 %v2617
    %v5050 = vunpack.c.l.b16 %v2618
    %v5051 = vunpack.c.h.b16 %v2618
    %v5052 = vunpack.c.l.b16 %v2619
    %v5053 = vunpack.c.h.b16 %v2619
    %v5054 = vunpack.c.l.b16 %v2620
    %v5055 = vunpack.c.h.b16 %v2620
    %v5056 = vunpack.c.l.b16 %v2621
    %v5057 = vunpack.c.h.b16 %v2621
    %v5058 = vunpack.c.l.b16 %v2622
    %v5059 = vunpack.c.h.b16 %v2622
    %v5060 = vunpack.c.l.b16 %v2623
    %v5061 = vunpack.c.h.b16 %v2623
    %v5062 = vunpack.c.l.b16 %v2624
    %v5063 = vunpack.c.h.b16 %v2624
    %v5064 = vunpack.c.l.b16 %v2625
    %v5065 = vunpack.c.h.b16 %v2625
    %v5066 = vunpack.c.l.b16 %v2626
    %v5067 = vunpack.c.h.b16 %v2626
    %v5068 = vunpack.c.l.b16 %v2627
    %v5069 = vunpack.c.h.b16 %v2627
    %v5070 = vunpack.c.l.b16 %v2628
    %v5071 = vunpack.c.h.b16 %v2628
    %v5072 = vunpack.c.l.b16 %v2629
    %v5073 = vunpack.c.h.b16 %v2629
    %v5074 = vunpack.c.l.b16 %v2630
    %v5075 = vunpack.c.h.b16 %v2630
    %v5076 = vunpack.c.l.b16 %v2631
    %v5077 = vunpack.c.h.b16 %v2631
    %v5078 = vunpack.c.l.b16 %v2632
    %v5079 = vunpack.c.h.b16 %v2632
    %v5080 = vunpack.c.l.b16 %v2633
    %v5081 = vunpack.c.h.b16 %v2633
    %v5082 = vunpack.c.l.b16 %v2634
    %v5083 = vunpack.c.h.b16 %v2634
    %v5084 = vunpack.c.l.b16 %v2635
    %v5085 = vunpack.c.h.b16 %v2635
    %v5086 = vunpack.c.l.b16 %v2636
    %v5087 = vunpack.c.h.b16 %v2636
    %v5088 = vunpack.c.l.b16 %v2637
    %v5089 = vunpack.c.h.b16 %v2637
    %v5090 = vunpack.c.l.b16 %v2638
    %v5091 = vunpack.c.h.b16 %v2638
    %v5092 = vunpack.c.l.b16 %v2639
    %v5093 = vunpack.c.h.b16 %v2639
    %v5094 = vunpack.c.l.b16 %v2640
    %v5095 = vunpack.c.h.b16 %v2640
    %v5096 = vunpack.c.l.b16 %v2641
    %v5097 = vunpack.c.h.b16 %v2641
    %v5098 = vunpack.c.l.b16 %v2642
    %v5099 = vunpack.c.h.b16 %v2642
    %v5100 = vunpack.c.l.b16 %v2643
    %v5101 = vunpack.c.h.b16 %v2643
    %v5102 = vunpack.c.l.b16 %v2644
    %v5103 = vunpack.c.h.b16 %v2644
    %v5104 = vunpack.c.l.b16 %v2645
    %v5105 = vunpack.c.h.b16 %v2645
    %v5106 = vunpack.c.l.b16 %v2646
    %v5107 = vunpack.c.h.b16 %v2646
    %v5108 = vunpack.c.l.b16 %v2647
    %v5109 = vunpack.c.h.b16 %v2647
    %v5110 = vunpack.c.l.b16 %v2648
    %v5111 = vunpack.c.h.b16 %v2648
    %v5112 = vunpack.c.l.b16 %v2649
    %v5113 = vunpack.c.h.b16 %v2649
    %v5114 = vunpack.c.l.b16 %v2650
    %v5115 = vunpack.c.h.b16 %v2650
    %v5116 = vunpack.c.l.b16 %v2651
    %v5117 = vunpack.c.h.b16 %v2651
    %v5118 = vunpack.c.l.b16 %v2652
    %v5119 = vunpack.c.h.b16 %v2652
    %v5120 = vunpack.c.l.b16 %v2653
    %v5121 = vunpack.c.h.b16 %v2653
    %v5122 = vunpack.c.l.b16 %v2654
    %v5123 = vunpack.c.h.b16 %v2654
    %v5124 = vunpack.c.l.b16 %v2655
    %v5125 = vunpack.c.h.b16 %v2655
    %v5126 = vunpack.c.l.b16 %v2656
    %v5127 = vunpack.c.h.b16 %v2656
    %v5128 = vunpack.c.l.b16 %v2657
    %v5129 = vunpack.c.h.b16 %v2657
    %v5130 = vunpack.c.l.b16 %v2658
    %v5131 = vunpack.c.h.b16 %v2658
    %v5132 = vunpack.c.l.b16 %v2659
    %v5133 = vunpack.c.h.b16 %v2659
    %v5134 = vunpack.c.l.b16 %v2660
    %v5135 = vunpack.c.h.b16 %v2660
    %v5136 = vunpack.c.l.b16 %v2661
    %v5137 = vunpack.c.h.b16 %v2661
    %v5138 = vunpack.c.l.b16 %v2662
    %v5139 = vunpack.c.h.b16 %v2662
    %v5140 = vunpack.c.l.b16 %v2663
    %v5141 = vunpack.c.h.b16 %v2663
    %v5142 = vunpack.c.l.b16 %v2664
    %v5143 = vunpack.c.h.b16 %v2664
    %v5144 = vunpack.c.l.b16 %v2665
    %v5145 = vunpack.c.h.b16 %v2665
    %v5146 = vunpack.c.l.b16 %v2666
    %v5147 = vunpack.c.h.b16 %v2666
    %v5148 = vunpack.c.l.b16 %v2667
    %v5149 = vunpack.c.h.b16 %v2667
    %v5150 = vunpack.c.l.b16 %v2668
    %v5151 = vunpack.c.h.b16 %v2668
    %v5152 = vunpack.c.l.b16 %v2669
    %v5153 = vunpack.c.h.b16 %v2669
    %v5154 = vunpack.c.l.b16 %v2670
    %v5155 = vunpack.c.h.b16 %v2670
    %v5156 = vunpack.c.l.b16 %v2671
    %v5157 = vunpack.c.h.b16 %v2671
    %v5158 = vunpack.c.l.b16 %v2672
    %v5159 = vunpack.c.h.b16 %v2672
    %v5160 = vunpack.c.l.b16 %v2673
    %v5161 = vunpack.c.h.b16 %v2673
    %v5162 = vunpack.c.l.b16 %v2674
    %v5163 = vunpack.c.h.b16 %v2674
    %v5164 = vunpack.c.l.b16 %v2675
    %v5165 = vunpack.c.h.b16 %v2675
    %v5166 = vunpack.c.l.b16 %v2676
    %v5167 = vunpack.c.h.b16 %v2676
    %v5168 = vunpack.c.l.b16 %v2677
    %v5169 = vunpack.c.h.b16 %v2677
    %v5170 = vunpack.c.l.b16 %v2678
    %v5171 = vunpack.c.h.b16 %v2678
    %v5172 = vunpack.c.l.b16 %v2679
    %v5173 = vunpack.c.h.b16 %v2679
    %v5174 = vunpack.c.l.b16 %v2680
    %v5175 = vunpack.c.h.b16 %v2680
    %v5176 = vunpack.c.l.b16 %v2681
    %v5177 = vunpack.c.h.b16 %v2681
    %v5178 = vunpack.c.l.b16 %v2682
    %v5179 = vunpack.c.h.b16 %v2682
    %v5180 = vunpack.c.l.b16 %v2683
    %v5181 = vunpack.c.h.b16 %v2683
    %v5182 = vunpack.c.l.b16 %v2684
    %v5183 = vunpack.c.h.b16 %v2684
    %v5184 = vunpack.c.l.b16 %v2685
    %v5185 = vunpack.c.h.b16 %v2685
    %v5186 = vunpack.c.l.b16 %v2686
    %v5187 = vunpack.c.h.b16 %v2686
    %v5188 = vunpack.c.l.b16 %v2687
    %v5189 = vunpack.c.h.b16 %v2687
    %v5190 = vunpack.c.l.b16 %v2688
    %v5191 = vunpack.c.h.b16 %v2688
    %v5192 = vunpack.c.l.b16 %v2689
    %v5193 = vunpack.c.h.b16 %v2689
    %v5194 = vunpack.c.l.b16 %v2690
    %v5195 = vunpack.c.h.b16 %v2690
    %v5196 = vunpack.c.l.b16 %v2691
    %v5197 = vunpack.c.h.b16 %v2691
    %v5198 = vunpack.c.l.b16 %v2692
    %v5199 = vunpack.c.h.b16 %v2692
    %v5200 = vunpack.c.l.b16 %v2693
    %v5201 = vunpack.c.h.b16 %v2693
    %v5202 = vunpack.c.l.b16 %v2694
    %v5203 = vunpack.c.h.b16 %v2694
    %v5204 = vunpack.c.l.b16 %v2695
    %v5205 = vunpack.c.h.b16 %v2695
    %v5206 = vunpack.c.l.b16 %v2696
    %v5207 = vunpack.c.h.b16 %v2696
    %v5208 = vunpack.c.l.b16 %v2697
    %v5209 = vunpack.c.h.b16 %v2697
    %v5210 = vunpack.c.l.b16 %v2698
    %v5211 = vunpack.c.h.b16 %v2698
    %v5212 = vunpack.c.l.b16 %v2699
    %v5213 = vunpack.c.h.b16 %v2699
    %v5214 = vunpack.c.l.b16 %v2700
    %v5215 = vunpack.c.h.b16 %v2700
    %v5216 = vunpack.c.l.b16 %v2701
    %v5217 = vunpack.c.h.b16 %v2701
    %v5218 = vunpack.c.l.b16 %v2702
    %v5219 = vunpack.c.h.b16 %v2702
    %v5220 = vunpack.c.l.b16 %v2703
    %v5221 = vunpack.c.h.b16 %v2703
    %v5222 = vunpack.c.l.b16 %v2704
    %v5223 = vunpack.c.h.b16 %v2704
    %v5224 = vunpack.c.l.b16 %v2705
    %v5225 = vunpack.c.h.b16 %v2705
    %v5226 = vunpack.c.l.b16 %v2706
    %v5227 = vunpack.c.h.b16 %v2706
    %v5228 = vunpack.c.l.b16 %v2707
    %v5229 = vunpack.c.h.b16 %v2707
    %v5230 = vunpack.c.l.b16 %v2708
    %v5231 = vunpack.c.h.b16 %v2708
    %v5232 = vunpack.c.l.b16 %v2709
    %v5233 = vunpack.c.h.b16 %v2709
    %v5234 = vunpack.c.l.b16 %v2710
    %v5235 = vunpack.c.h.b16 %v2710
    %v5236 = vunpack.c.l.b16 %v2711
    %v5237 = vunpack.c.h.b16 %v2711
    %v5238 = vunpack.c.l.b16 %v2712
    %v5239 = vunpack.c.h.b16 %v2712
    %v5240 = vunpack.c.l.b16 %v2713
    %v5241 = vunpack.c.h.b16 %v2713
    %v5242 = vunpack.c.l.b16 %v2714
    %v5243 = vunpack.c.h.b16 %v2714
    %v5244 = vunpack.c.l.b16 %v2715
    %v5245 = vunpack.c.h.b16 %v2715
    %v5246 = vunpack.c.l.b16 %v2716
    %v5247 = vunpack.c.h.b16 %v2716
    %v5248 = vunpack.c.l.b16 %v2717
    %v5249 = vunpack.c.h.b16 %v2717
    %v5250 = vunpack.c.l.b16 %v2718
    %v5251 = vunpack.c.h.b16 %v2718
    %v5252 = vunpack.c.l.b16 %v2719
    %v5253 = vunpack.c.h.b16 %v2719
    %v5254 = vunpack.c.l.b16 %v2720
    %v5255 = vunpack.c.h.b16 %v2720
    %v5256 = vunpack.c.l.b16 %v2721
    %v5257 = vunpack.c.h.b16 %v2721
    %v5258 = vunpack.c.l.b16 %v2722
    %v5259 = vunpack.c.h.b16 %v2722
    %v5260 = vunpack.c.l.b16 %v2723
    %v5261 = vunpack.c.h.b16 %v2723
    %v5262 = vunpack.c.l.b16 %v2724
    %v5263 = vunpack.c.h.b16 %v2724
    %v5264 = vunpack.c.l.b16 %v2725
    %v5265 = vunpack.c.h.b16 %v2725
    %v5266 = vunpack.c.l.b16 %v2726
    %v5267 = vunpack.c.h.b16 %v2726
    %v5268 = vunpack.c.l.b16 %v2727
    %v5269 = vunpack.c.h.b16 %v2727
    %v5270 = vunpack.c.l.b16 %v2728
    %v5271 = vunpack.c.h.b16 %v2728
    %v5272 = vunpack.c.l.b16 %v2729
    %v5273 = vunpack.c.h.b16 %v2729
    %v5274 = vunpack.c.l.b16 %v2730
    %v5275 = vunpack.c.h.b16 %v2730
    %v5276 = vunpack.c.l.b16 %v2731
    %v5277 = vunpack.c.h.b16 %v2731
    %v5278 = vunpack.c.l.b16 %v2732
    %v5279 = vunpack.c.h.b16 %v2732
    %v5280 = vunpack.c.l.b16 %v2733
    %v5281 = vunpack.c.h.b16 %v2733
    %v5282 = vunpack.c.l.b16 %v2734
    %v5283 = vunpack.c.h.b16 %v2734
    %v5284 = vunpack.c.l.b16 %v2735
    %v5285 = vunpack.c.h.b16 %v2735
    %v5286 = vunpack.c.l.b16 %v2736
    %v5287 = vunpack.c.h.b16 %v2736
    %v5288 = vunpack.c.l.b16 %v2737
    %v5289 = vunpack.c.h.b16 %v2737
    %v5290 = vunpack.c.l.b16 %v2738
    %v5291 = vunpack.c.h.b16 %v2738
    %v5292 = vunpack.c.l.b16 %v2739
    %v5293 = vunpack.c.h.b16 %v2739
    %v5294 = vunpack.c.l.b16 %v2740
    %v5295 = vunpack.c.h.b16 %v2740
    %v5296 = vunpack.c.l.b16 %v2741
    %v5297 = vunpack.c.h.b16 %v2741
    %v5298 = vunpack.c.l.b16 %v2742
    %v5299 = vunpack.c.h.b16 %v2742
    %v5300 = vunpack.c.l.b16 %v2743
    %v5301 = vunpack.c.h.b16 %v2743
    %v5302 = vunpack.c.l.b16 %v2744
    %v5303 = vunpack.c.h.b16 %v2744
    %v5304 = vunpack.c.l.b16 %v2745
    %v5305 = vunpack.c.h.b16 %v2745
    %v5306 = vunpack.c.l.b16 %v2746
    %v5307 = vunpack.c.h.b16 %v2746
    %v5308 = vunpack.c.l.b16 %v2747
    %v5309 = vunpack.c.h.b16 %v2747
    %v5310 = vunpack.c.l.b16 %v2748
    %v5311 = vunpack.c.h.b16 %v2748
    %v5312 = vunpack.c.l.b16 %v2749
    %v5313 = vunpack.c.h.b16 %v2749
    %v5314 = vunpack.c.l.b16 %v2750
    %v5315 = vunpack.c.h.b16 %v2750
    %v5316 = vunpack.c.l.b16 %v2751
    %v5317 = vunpack.c.h.b16 %v2751
    %v5318 = vunpack.c.l.b16 %v2752
    %v5319 = vunpack.c.h.b16 %v2752
    %v5320 = vunpack.c.l.b16 %v2753
    %v5321 = vunpack.c.h.b16 %v2753
    %v5322 = vunpack.c.l.b16 %v2754
    %v5323 = vunpack.c.h.b16 %v2754
    %v5324 = vunpack.c.l.b16 %v2755
    %v5325 = vunpack.c.h.b16 %v2755
    %v5326 = vunpack.c.l.b16 %v2756
    %v5327 = vunpack.c.h.b16 %v2756
    %v5328 = vunpack.c.l.b16 %v2757
    %v5329 = vunpack.c.h.b16 %v2757
    %v5330 = vunpack.c.l.b16 %v2758
    %v5331 = vunpack.c.h.b16 %v2758
    %v5332 = vunpack.c.l.b16 %v2759
    %v5333 = vunpack.c.h.b16 %v2759
    %v5334 = vunpack.c.l.b16 %v2760
    %v5335 = vunpack.c.h.b16 %v2760
    %v5336 = vunpack.c.l.b16 %v2761
    %v5337 = vunpack.c.h.b16 %v2761
    %v5338 = vunpack.c.l.b16 %v2762
    %v5339 = vunpack.c.h.b16 %v2762
    %v5340 = vunpack.c.l.b16 %v2763
    %v5341 = vunpack.c.h.b16 %v2763
    %v5342 = vunpack.c.l.b16 %v2764
    %v5343 = vunpack.c.h.b16 %v2764
    %v5344 = vunpack.c.l.b16 %v2765
    %v5345 = vunpack.c.h.b16 %v2765
    %v5346 = vunpack.c.l.b16 %v2766
    %v5347 = vunpack.c.h.b16 %v2766
    %v5348 = vunpack.c.l.b16 %v2767
    %v5349 = vunpack.c.h.b16 %v2767
    %v5350 = vunpack.c.l.b16 %v2768
    %v5351 = vunpack.c.h.b16 %v2768
    %v5352 = vunpack.c.l.b16 %v2769
    %v5353 = vunpack.c.h.b16 %v2769
    %v5354 = vunpack.c.l.b16 %v2770
    %v5355 = vunpack.c.h.b16 %v2770
    %v5356 = vunpack.c.l.b16 %v2771
    %v5357 = vunpack.c.h.b16 %v2771
    %v5358 = vunpack.c.l.b16 %v2772
    %v5359 = vunpack.c.h.b16 %v2772
    %v5360 = vunpack.c.l.b16 %v2773
    %v5361 = vunpack.c.h.b16 %v2773
    %v5362 = vunpack.c.l.b16 %v2774
    %v5363 = vunpack.c.h.b16 %v2774
    %v5364 = vunpack.c.l.b16 %v2775
    %v5365 = vunpack.c.h.b16 %v2775
    %v5366 = vunpack.c.l.b16 %v2776
    %v5367 = vunpack.c.h.b16 %v2776
    %v5368 = vunpack.c.l.b16 %v2777
    %v5369 = vunpack.c.h.b16 %v2777
    %v5370 = vunpack.c.l.b16 %v2778
    %v5371 = vunpack.c.h.b16 %v2778
    %v5372 = vunpack.c.l.b16 %v2779
    %v5373 = vunpack.c.h.b16 %v2779
    %v5374 = vunpack.c.l.b16 %v2780
    %v5375 = vunpack.c.h.b16 %v2780
    %v5376 = vunpack.c.l.b16 %v2781
    %v5377 = vunpack.c.h.b16 %v2781
    %v5378 = vunpack.c.l.b16 %v2782
    %v5379 = vunpack.c.h.b16 %v2782
    %v5380 = vunpack.c.l.b16 %v2783
    %v5381 = vunpack.c.h.b16 %v2783
    %v5382 = vunpack.c.l.b16 %v2784
    %v5383 = vunpack.c.h.b16 %v2784
    %v5384 = vunpack.c.l.b16 %v2785
    %v5385 = vunpack.c.h.b16 %v2785
    %v5386 = vunpack.c.l.b16 %v2786
    %v5387 = vunpack.c.h.b16 %v2786
    %v5388 = vunpack.c.l.b16 %v2787
    %v5389 = vunpack.c.h.b16 %v2787
    %v5390 = vunpack.c.l.b16 %v2788
    %v5391 = vunpack.c.h.b16 %v2788
    %v5392 = vunpack.c.l.b16 %v2789
    %v5393 = vunpack.c.h.b16 %v2789
    %v5394 = vunpack.c.l.b16 %v2790
    %v5395 = vunpack.c.h.b16 %v2790
    %v5396 = vunpack.c.l.b16 %v2791
    %v5397 = vunpack.c.h.b16 %v2791
    %v5398 = vunpack.c.l.b16 %v2792
    %v5399 = vunpack.c.h.b16 %v2792
    %v5400 = vunpack.c.l.b16 %v2793
    %v5401 = vunpack.c.h.b16 %v2793
    %v5402 = vunpack.c.l.b16 %v2794
    %v5403 = vunpack.c.h.b16 %v2794
    %v5404 = vunpack.c.l.b16 %v2795
    %v5405 = vunpack.c.h.b16 %v2795
    %v5406 = vunpack.c.l.b16 %v2796
    %v5407 = vunpack.c.h.b16 %v2796
    %v5408 = vunpack.c.l.b16 %v2797
    %v5409 = vunpack.c.h.b16 %v2797
    %v5410 = vunpack.c.l.b16 %v2798
    %v5411 = vunpack.c.h.b16 %v2798
    %v5412 = vunpack.c.l.b16 %v2799
    %v5413 = vunpack.c.h.b16 %v2799
    %v5414 = vunpack.c.l.b16 %v2800
    %v5415 = vunpack.c.h.b16 %v2800
    %v5416 = vunpack.c.l.b16 %v2801
    %v5417 = vunpack.c.h.b16 %v2801
    %v5418 = vunpack.c.l.b16 %v2802
    %v5419 = vunpack.c.h.b16 %v2802
    %v5420 = vunpack.c.l.b16 %v2803
    %v5421 = vunpack.c.h.b16 %v2803
    %v5422 = vunpack.c.l.b16 %v2804
    %v5423 = vunpack.c.h.b16 %v2804
    %v5424 = vunpack.c.l.b16 %v2805
    %v5425 = vunpack.c.h.b16 %v2805
    %v5426 = vunpack.c.l.b16 %v2806
    %v5427 = vunpack.c.h.b16 %v2806
    %v5428 = vunpack.c.l.b16 %v2807
    %v5429 = vunpack.c.h.b16 %v2807
    %v5430 = vunpack.c.l.b16 %v2808
    %v5431 = vunpack.c.h.b16 %v2808
    %v5432 = vunpack.c.l.b16 %v2809
    %v5433 = vunpack.c.h.b16 %v2809
    %v5434 = vunpack.c.l.b16 %v2810
    %v5435 = vunpack.c.h.b16 %v2810
    %v5436 = vunpack.c.l.b16 %v2811
    %v5437 = vunpack.c.h.b16 %v2811
    %v5438 = vunpack.c.l.b16 %v2812
    %v5439 = vunpack.c.h.b16 %v2812
    %v5440 = vunpack.c.l.b16 %v2813
    %v5441 = vunpack.c.h.b16 %v2813
    %v5442 = vunpack.c.l.b16 %v2814
    %v5443 = vunpack.c.h.b16 %v2814
    %v5444 = vunpack.c.l.b16 %v2815
    %v5445 = vunpack.c.h.b16 %v2815
    %v5446 = vunpack.c.l.b16 %v2816
    %v5447 = vunpack.c.h.b16 %v2816
    %v5448 = vunpack.c.l.b16 %v2817
    %v5449 = vunpack.c.h.b16 %v2817
    %v5450 = vunpack.c.l.b16 %v2818
    %v5451 = vunpack.c.h.b16 %v2818
    %v5452 = vunpack.c.l.b16 %v2819
    %v5453 = vunpack.c.h.b16 %v2819
    %v5454 = vunpack.c.l.b16 %v2820
    %v5455 = vunpack.c.h.b16 %v2820
    %v5456 = vunpack.c.l.b16 %v2821
    %v5457 = vunpack.c.h.b16 %v2821
    %v5458 = vunpack.c.l.b16 %v2822
    %v5459 = vunpack.c.h.b16 %v2822
    %v5460 = vunpack.c.l.b16 %v2823
    %v5461 = vunpack.c.h.b16 %v2823
    %v5462 = vunpack.c.l.b16 %v2824
    %v5463 = vunpack.c.h.b16 %v2824
    %v5464 = vunpack.c.l.b16 %v2825
    %v5465 = vunpack.c.h.b16 %v2825
    %v5466 = vunpack.c.l.b16 %v2826
    %v5467 = vunpack.c.h.b16 %v2826
    %v5468 = vunpack.c.l.b16 %v2827
    %v5469 = vunpack.c.h.b16 %v2827
    %v5470 = vunpack.c.l.b16 %v2828
    %v5471 = vunpack.c.h.b16 %v2828
    %v5472 = vunpack.c.l.b16 %v2829
    %v5473 = vunpack.c.h.b16 %v2829
    %v5474 = vunpack.c.l.b16 %v2830
    %v5475 = vunpack.c.h.b16 %v2830
    %v5476 = vunpack.c.l.b16 %v2831
    %v5477 = vunpack.c.h.b16 %v2831
    %v5478 = vunpack.c.l.b16 %v2832
    %v5479 = vunpack.c.h.b16 %v2832
    %v5480 = vunpack.c.l.b16 %v2833
    %v5481 = vunpack.c.h.b16 %v2833
    %v5482 = vunpack.c.l.b16 %v2834
    %v5483 = vunpack.c.h.b16 %v2834
    %v5484 = vunpack.c.l.b16 %v2835
    %v5485 = vunpack.c.h.b16 %v2835
    %v5486 = vunpack.c.l.b16 %v2836
    %v5487 = vunpack.c.h.b16 %v2836
    %v5488 = vunpack.c.l.b16 %v2837
    %v5489 = vunpack.c.h.b16 %v2837
    %v5490 = vunpack.c.l.b16 %v2838
    %v5491 = vunpack.c.h.b16 %v2838
    %v5492 = vunpack.c.l.b16 %v2839
    %v5493 = vunpack.c.h.b16 %v2839
    %v5494 = vunpack.c.l.b16 %v2840
    %v5495 = vunpack.c.h.b16 %v2840
    %v5496 = vunpack.c.l.b16 %v2841
    %v5497 = vunpack.c.h.b16 %v2841
    %v5498 = vunpack.c.l.b16 %v2842
    %v5499 = vunpack.c.h.b16 %v2842
    %v5500 = vunpack.c.l.b16 %v2843
    %v5501 = vunpack.c.h.b16 %v2843
    %v5502 = vunpack.c.l.b16 %v2844
    %v5503 = vunpack.c.h.b16 %v2844
    %v5504 = vunpack.c.l.b16 %v2845
    %v5505 = vunpack.c.h.b16 %v2845
    %v5506 = vunpack.c.l.b16 %v2846
    %v5507 = vunpack.c.h.b16 %v2846
    %v5508 = vunpack.c.l.b16 %v2847
    %v5509 = vunpack.c.h.b16 %v2847
    %v5510 = vunpack.c.l.b16 %v2848
    %v5511 = vunpack.c.h.b16 %v2848
    %v5512 = vunpack.c.l.b16 %v2849
    %v5513 = vunpack.c.h.b16 %v2849
    %v5514 = vunpack.c.l.b16 %v2850
    %v5515 = vunpack.c.h.b16 %v2850
    %v5516 = vunpack.c.l.b16 %v2851
    %v5517 = vunpack.c.h.b16 %v2851
    %v5518 = vunpack.c.l.b16 %v2852
    %v5519 = vunpack.c.h.b16 %v2852
    %v5520 = vunpack.c.l.b16 %v2853
    %v5521 = vunpack.c.h.b16 %v2853
    %v5522 = vunpack.c.l.b16 %v2854
    %v5523 = vunpack.c.h.b16 %v2854
    %v5524 = vunpack.c.l.b16 %v2855
    %v5525 = vunpack.c.h.b16 %v2855
    %v5526 = vunpack.c.l.b16 %v2856
    %v5527 = vunpack.c.h.b16 %v2856
    %v5528 = vunpack.c.l.b16 %v2857
    %v5529 = vunpack.c.h.b16 %v2857
    %v5530 = vunpack.c.l.b16 %v2858
    %v5531 = vunpack.c.h.b16 %v2858
    %v5532 = vunpack.c.l.b16 %v2859
    %v5533 = vunpack.c.h.b16 %v2859
    %v5534 = vunpack.c.l.b16 %v2860
    %v5535 = vunpack.c.h.b16 %v2860
    %v5536 = vunpack.c.l.b16 %v2861
    %v5537 = vunpack.c.h.b16 %v2861
    %v5538 = vunpack.c.l.b16 %v2862
    %v5539 = vunpack.c.h.b16 %v2862
    %v5540 = vunpack.c.l.b16 %v2863
    %v5541 = vunpack.c.h.b16 %v2863
    %v5542 = vunpack.c.l.b16 %v2864
    %v5543 = vunpack.c.h.b16 %v2864
    %v5544 = vunpack.c.l.b16 %v2865
    %v5545 = vunpack.c.h.b16 %v2865
    %v5546 = vunpack.c.l.b16 %v2866
    %v5547 = vunpack.c.h.b16 %v2866
    %v5548 = vunpack.c.l.b16 %v2867
    %v5549 = vunpack.c.h.b16 %v2867
    %v5550 = vunpack.c.l.b16 %v2868
    %v5551 = vunpack.c.h.b16 %v2868
    %v5552 = vunpack.c.l.b16 %v2869
    %v5553 = vunpack.c.h.b16 %v2869
    %v5554 = vunpack.c.l.b16 %v2870
    %v5555 = vunpack.c.h.b16 %v2870
    %v5556 = vunpack.c.l.b16 %v2871
    %v5557 = vunpack.c.h.b16 %v2871
    %v5558 = vunpack.c.l.b16 %v2872
    %v5559 = vunpack.c.h.b16 %v2872
    %v5560 = vunpack.c.l.b16 %v2873
    %v5561 = vunpack.c.h.b16 %v2873
    %v5562 = vunpack.c.l.b16 %v2874
    %v5563 = vunpack.c.h.b16 %v2874
    %v5564 = vunpack.c.l.b16 %v2875
    %v5565 = vunpack.c.h.b16 %v2875
    %v5566 = vunpack.c.l.b16 %v2876
    %v5567 = vunpack.c.h.b16 %v2876
    %v5568 = vunpack.c.l.b16 %v2877
    %v5569 = vunpack.c.h.b16 %v2877
    %v5570 = vunpack.c.l.b16 %v2878
    %v5571 = vunpack.c.h.b16 %v2878
    %v5572 = vunpack.c.l.b16 %v2879
    %v5573 = vunpack.c.h.b16 %v2879
    %v5574 = vunpack.c.l.b16 %v2880
    %v5575 = vunpack.c.h.b16 %v2880
    %v5576 = vunpack.c.l.b16 %v2881
    %v5577 = vunpack.c.h.b16 %v2881
    %v5578 = vunpack.c.l.b16 %v2882
    %v5579 = vunpack.c.h.b16 %v2882
    %v5580 = vunpack.c.l.b16 %v2883
    %v5581 = vunpack.c.h.b16 %v2883
    %v5582 = vunpack.c.l.b16 %v2884
    %v5583 = vunpack.c.h.b16 %v2884
    %v5584 = vunpack.c.l.b16 %v2885
    %v5585 = vunpack.c.h.b16 %v2885
    %v5586 = vunpack.c.l.b16 %v2886
    %v5587 = vunpack.c.h.b16 %v2886
    %v5588 = vunpack.c.l.b16 %v2887
    %v5589 = vunpack.c.h.b16 %v2887
    %v5590 = vunpack.c.l.b16 %v2888
    %v5591 = vunpack.c.h.b16 %v2888
    %v5592 = vunpack.c.l.b16 %v2889
    %v5593 = vunpack.c.h.b16 %v2889
    %v5594 = vunpack.c.l.b16 %v2890
    %v5595 = vunpack.c.h.b16 %v2890
    %v5596 = vunpack.c.l.b16 %v2891
    %v5597 = vunpack.c.h.b16 %v2891
    %v5598 = vunpack.c.l.b16 %v2892
    %v5599 = vunpack.c.h.b16 %v2892
    %v5600 = vunpack.c.l.b16 %v2893
    %v5601 = vunpack.c.h.b16 %v2893
    %v5602 = vunpack.c.l.b16 %v2894
    %v5603 = vunpack.c.h.b16 %v2894
    %v5604 = vunpack.c.l.b16 %v2895
    %v5605 = vunpack.c.h.b16 %v2895
    %v5606 = vunpack.c.l.b16 %v2896
    %v5607 = vunpack.c.h.b16 %v2896
    %v5608 = vunpack.c.l.b16 %v2897
    %v5609 = vunpack.c.h.b16 %v2897
    %v5610 = vunpack.c.l.b16 %v2898
    %v5611 = vunpack.c.h.b16 %v2898
    %v5612 = vunpack.c.l.b16 %v2899
    %v5613 = vunpack.c.h.b16 %v2899
    %v5614 = vunpack.c.l.b16 %v2900
    %v5615 = vunpack.c.h.b16 %v2900
    %v5616 = vunpack.c.l.b16 %v2901
    %v5617 = vunpack.c.h.b16 %v2901
    %v5618 = vunpack.c.l.b16 %v2902
    %v5619 = vunpack.c.h.b16 %v2902
    %v5620 = vunpack.c.l.b16 %v2903
    %v5621 = vunpack.c.h.b16 %v2903
    %v5622 = vunpack.c.l.b16 %v2904
    %v5623 = vunpack.c.h.b16 %v2904
    %v5624 = vunpack.c.l.b16 %v2905
    %v5625 = vunpack.c.h.b16 %v2905
    %v5626 = vunpack.c.l.b16 %v2906
    %v5627 = vunpack.c.h.b16 %v2906
    %v5628 = vunpack.c.l.b16 %v2907
    %v5629 = vunpack.c.h.b16 %v2907
    %v5630 = vunpack.c.l.b16 %v2908
    %v5631 = vunpack.c.h.b16 %v2908
    %v5632 = vunpack.c.l.b16 %v2909
    %v5633 = vunpack.c.h.b16 %v2909
    %v5634 = vunpack.c.l.b16 %v2910
    %v5635 = vunpack.c.h.b16 %v2910
    %v5636 = vunpack.c.l.b16 %v2911
    %v5637 = vunpack.c.h.b16 %v2911
    %v5638 = vunpack.c.l.b16 %v2912
    %v5639 = vunpack.c.h.b16 %v2912
    %v5640 = vunpack.c.l.b16 %v2913
    %v5641 = vunpack.c.h.b16 %v2913
    %v5642 = vunpack.c.l.b16 %v2914
    %v5643 = vunpack.c.h.b16 %v2914
    %v5644 = vunpack.c.l.b16 %v2915
    %v5645 = vunpack.c.h.b16 %v2915
    %v5646 = vunpack.c.l.b16 %v2916
    %v5647 = vunpack.c.h.b16 %v2916
    %v5648 = vunpack.c.l.b16 %v2917
    %v5649 = vunpack.c.h.b16 %v2917
    %v5650 = vunpack.c.l.b16 %v2918
    %v5651 = vunpack.c.h.b16 %v2918
    %v5652 = vunpack.c.l.b16 %v2919
    %v5653 = vunpack.c.h.b16 %v2919
    %v5654 = vunpack.c.l.b16 %v2920
    %v5655 = vunpack.c.h.b16 %v2920
    %v5656 = vunpack.c.l.b16 %v2921
    %v5657 = vunpack.c.h.b16 %v2921
    %v5658 = vunpack.c.l.b16 %v2922
    %v5659 = vunpack.c.h.b16 %v2922
    %v5660 = vunpack.c.l.b16 %v2923
    %v5661 = vunpack.c.h.b16 %v2923
    %v5662 = vunpack.c.l.b16 %v2924
    %v5663 = vunpack.c.h.b16 %v2924
    %v5664 = vunpack.c.l.b16 %v2925
    %v5665 = vunpack.c.h.b16 %v2925
    %v5666 = vunpack.c.l.b16 %v2926
    %v5667 = vunpack.c.h.b16 %v2926
    %v5668 = vunpack.c.l.b16 %v2927
    %v5669 = vunpack.c.h.b16 %v2927
    %v5670 = vunpack.c.l.b16 %v2928
    %v5671 = vunpack.c.h.b16 %v2928
    %v5672 = vunpack.c.l.b16 %v2929
    %v5673 = vunpack.c.h.b16 %v2929
    %v5674 = vunpack.c.l.b16 %v2930
    %v5675 = vunpack.c.h.b16 %v2930
    %v5676 = vunpack.c.l.b16 %v2931
    %v5677 = vunpack.c.h.b16 %v2931
    %v5678 = vunpack.c.l.b16 %v2932
    %v5679 = vunpack.c.h.b16 %v2932
    %v5680 = vunpack.c.l.b16 %v2933
    %v5681 = vunpack.c.h.b16 %v2933
    %v5682 = vunpack.c.l.b16 %v2934
    %v5683 = vunpack.c.h.b16 %v2934
    %v5684 = vunpack.c.l.b16 %v2935
    %v5685 = vunpack.c.h.b16 %v2935
    %v5686 = vunpack.c.l.b16 %v2936
    %v5687 = vunpack.c.h.b16 %v2936
    %v5688 = vunpack.c.l.b16 %v2937
    %v5689 = vunpack.c.h.b16 %v2937
    %v5690 = vunpack.c.l.b16 %v2938
    %v5691 = vunpack.c.h.b16 %v2938
    %v5692 = vunpack.c.l.b16 %v2939
    %v5693 = vunpack.c.h.b16 %v2939
    %v5694 = vunpack.c.l.b16 %v2940
    %v5695 = vunpack.c.h.b16 %v2940
    %v5696 = vunpack.c.l.b16 %v2941
    %v5697 = vunpack.c.h.b16 %v2941
    %v5698 = vunpack.c.l.b16 %v2942
    %v5699 = vunpack.c.h.b16 %v2942
    %v5700 = vunpack.c.l.b16 %v2943
    %v5701 = vunpack.c.h.b16 %v2943
    %v5702 = vunpack.c.l.b16 %v2944
    %v5703 = vunpack.c.h.b16 %v2944
    %v5704 = vunpack.c.l.b16 %v2945
    %v5705 = vunpack.c.h.b16 %v2945
    %v5706 = vunpack.c.l.b16 %v2946
    %v5707 = vunpack.c.h.b16 %v2946
    %v5708 = vunpack.c.l.b16 %v2947
    %v5709 = vunpack.c.h.b16 %v2947
    %v5710 = vunpack.c.l.b16 %v2948
    %v5711 = vunpack.c.h.b16 %v2948
    %v5712 = vunpack.c.l.b16 %v2949
    %v5713 = vunpack.c.h.b16 %v2949
    %v5714 = vunpack.c.l.b16 %v2950
    %v5715 = vunpack.c.h.b16 %v2950
    %v5716 = vunpack.c.l.b16 %v2951
    %v5717 = vunpack.c.h.b16 %v2951
    %v5718 = vunpack.c.l.b16 %v2952
    %v5719 = vunpack.c.h.b16 %v2952
    %v5720 = vunpack.c.l.b16 %v2953
    %v5721 = vunpack.c.h.b16 %v2953
    %v5722 = vunpack.c.l.b16 %v2954
    %v5723 = vunpack.c.h.b16 %v2954
    %v5724 = vunpack.c.l.b16 %v2955
    %v5725 = vunpack.c.h.b16 %v2955
    %v5726 = vunpack.c.l.b16 %v2956
    %v5727 = vunpack.c.h.b16 %v2956
    %v5728 = vunpack.c.l.b16 %v2957
    %v5729 = vunpack.c.h.b16 %v2957
    %v5730 = vunpack.c.l.b16 %v2958
    %v5731 = vunpack.c.h.b16 %v2958
    %v5732 = vunpack.c.l.b16 %v2959
    %v5733 = vunpack.c.h.b16 %v2959
    %v5734 = vunpack.c.l.b16 %v2960
    %v5735 = vunpack.c.h.b16 %v2960
    %v5736 = vunpack.c.l.b16 %v2961
    %v5737 = vunpack.c.h.b16 %v2961
    %v5738 = vunpack.c.l.b16 %v2962
    %v5739 = vunpack.c.h.b16 %v2962
    %v5740 = vunpack.c.l.b16 %v2963
    %v5741 = vunpack.c.h.b16 %v2963
    %v5742 = vunpack.c.l.b16 %v2964
    %v5743 = vunpack.c.h.b16 %v2964
    %v5744 = vunpack.c.l.b16 %v2965
    %v5745 = vunpack.c.h.b16 %v2965
    %v5746 = vunpack.c.l.b16 %v2966
    %v5747 = vunpack.c.h.b16 %v2966
    %v5748 = vunpack.c.l.b16 %v2967
    %v5749 = vunpack.c.h.b16 %v2967
    %v5750 = vunpack.c.l.b16 %v2968
    %v5751 = vunpack.c.h.b16 %v2968
    %v5752 = vunpack.c.l.b16 %v2969
    %v5753 = vunpack.c.h.b16 %v2969
    %v5754 = vunpack.c.l.b16 %v2970
    %v5755 = vunpack.c.h.b16 %v2970
    %v5756 = vunpack.c.l.b16 %v2971
    %v5757 = vunpack.c.h.b16 %v2971
    %v5758 = vunpack.c.l.b16 %v2972
    %v5759 = vunpack.c.h.b16 %v2972
    %v5760 = vunpack.c.l.b16 %v2973
    %v5761 = vunpack.c.h.b16 %v2973
    %v5762 = vunpack.c.l.b16 %v2974
    %v5763 = vunpack.c.h.b16 %v2974
    %v5764 = vunpack.c.l.b16 %v2975
    %v5765 = vunpack.c.h.b16 %v2975
    %v5766 = vunpack.c.l.b16 %v2976
    %v5767 = vunpack.c.h.b16 %v2976
    %v5768 = vunpack.c.l.b16 %v2977
    %v5769 = vunpack.c.h.b16 %v2977
    %v5770 = vunpack.c.l.b16 %v2978
    %v5771 = vunpack.c.h.b16 %v2978
    %v5772 = vunpack.c.l.b16 %v2979
    %v5773 = vunpack.c.h.b16 %v2979
    %v5774 = vunpack.c.l.b16 %v2980
    %v5775 = vunpack.c.h.b16 %v2980
    %v5776 = vunpack.c.l.b16 %v2981
    %v5777 = vunpack.c.h.b16 %v2981
    %v5778 = vunpack.c.l.b16 %v2982
    %v5779 = vunpack.c.h.b16 %v2982
    %v5780 = vunpack.c.l.b16 %v2983
    %v5781 = vunpack.c.h.b16 %v2983
    %v5782 = vunpack.c.l.b16 %v2984
    %v5783 = vunpack.c.h.b16 %v2984
    %v5784 = vunpack.c.l.b16 %v2985
    %v5785 = vunpack.c.h.b16 %v2985
    %v5786 = vunpack.c.l.b16 %v2986
    %v5787 = vunpack.c.h.b16 %v2986
    %v5788 = vunpack.c.l.b16 %v2987
    %v5789 = vunpack.c.h.b16 %v2987
    %v5790 = vunpack.c.l.b16 %v2988
    %v5791 = vunpack.c.h.b16 %v2988
    %v5792 = vunpack.c.l.b16 %v2989
    %v5793 = vunpack.c.h.b16 %v2989
    %v5794 = vunpack.c.l.b16 %v2990
    %v5795 = vunpack.c.h.b16 %v2990
    %v5796 = vunpack.c.l.b16 %v2991
    %v5797 = vunpack.c.h.b16 %v2991
    %v5798 = vunpack.c.l.b16 %v2992
    %v5799 = vunpack.c.h.b16 %v2992
    %v5800 = vunpack.c.l.b16 %v2993
    %v5801 = vunpack.c.h.b16 %v2993
    %v5802 = vunpack.c.l.b16 %v2994
    %v5803 = vunpack.c.h.b16 %v2994
    %v5804 = vunpack.c.l.b16 %v2995
    %v5805 = vunpack.c.h.b16 %v2995
    %v5806 = vunpack.c.l.b16 %v2996
    %v5807 = vunpack.c.h.b16 %v2996
    %v5808 = vunpack.c.l.b16 %v2997
    %v5809 = vunpack.c.h.b16 %v2997
    %v5810 = vunpack.c.l.b16 %v2998
    %v5811 = vunpack.c.h.b16 %v2998
    %v5812 = vunpack.c.l.b16 %v2999
    %v5813 = vunpack.c.h.b16 %v2999
    %v5814 = vunpack.c.l.b16 %v3000
    %v5815 = vunpack.c.h.b16 %v3000
    %v5816 = vunpack.c.l.b16 %v3001
    %v5817 = vunpack.c.h.b16 %v3001
    %v5818 = vunpack.c.l.b16 %v3002
    %v5819 = vunpack.c.h.b16 %v3002
    %v5820 = vunpack.c.l.b16 %v3003
    %v5821 = vunpack.c.h.b16 %v3003
    %v5822 = vunpack.c.l.b16 %v3004
    %v5823 = vunpack.c.h.b16 %v3004
    %v5824 = vunpack.c.l.b16 %v3005
    %v5825 = vunpack.c.h.b16 %v3005
    %v5826 = vunpack.c.l.b16 %v3006
    %v5827 = vunpack.c.h.b16 %v3006
    %v5828 = vunpack.c.l.b16 %v3007
    %v5829 = vunpack.c.h.b16 %v3007
    %v5830 = vunpack.c.l.b16 %v3008
    %v5831 = vunpack.c.h.b16 %v3008
    %v5832 = vunpack.c.l.b16 %v3009
    %v5833 = vunpack.c.h.b16 %v3009
    %v5834 = vunpack.c.l.b16 %v3010
    %v5835 = vunpack.c.h.b16 %v3010
    %v5836 = vunpack.c.l.b16 %v3011
    %v5837 = vunpack.c.h.b16 %v3011
    %v5838 = vunpack.c.l.b16 %v3012
    %v5839 = vunpack.c.h.b16 %v3012
    %v5840 = vunpack.c.l.b16 %v3013
    %v5841 = vunpack.c.h.b16 %v3013
    %v5842 = vunpack.c.l.b16 %v3014
    %v5843 = vunpack.c.h.b16 %v3014
    %v5844 = vunpack.c.l.b16 %v3015
    %v5845 = vunpack.c.h.b16 %v3015
    %v5846 = vunpack.c.l.b16 %v3016
    %v5847 = vunpack.c.h.b16 %v3016
    %v5848 = vunpack.c.l.b16 %v3017
    %v5849 = vunpack.c.h.b16 %v3017
    %v5850 = vunpack.c.l.b16 %v3018
    %v5851 = vunpack.c.h.b16 %v3018
    %v5852 = vunpack.c.l.b16 %v3019
    %v5853 = vunpack.c.h.b16 %v3019
    %v5854 = vunpack.c.l.b16 %v3020
    %v5855 = vunpack.c.h.b16 %v3020
    %v5856 = vunpack.c.l.b16 %v3021
    %v5857 = vunpack.c.h.b16 %v3021
    %v5858 = vunpack.c.l.b16 %v3022
    %v5859 = vunpack.c.h.b16 %v3022
    %v5860 = vunpack.c.l.b16 %v3023
    %v5861 = vunpack.c.h.b16 %v3023
    %v5862 = vunpack.c.l.b16 %v3024
    %v5863 = vunpack.c.h.b16 %v3024
    %v5864 = vunpack.c.l.b16 %v3025
    %v5865 = vunpack.c.h.b16 %v3025
    %v5866 = vunpack.c.l.b16 %v3026
    %v5867 = vunpack.c.h.b16 %v3026
    %v5868 = vunpack.c.l.b16 %v3027
    %v5869 = vunpack.c.h.b16 %v3027
    %v5870 = vunpack.c.l.b16 %v3028
    %v5871 = vunpack.c.h.b16 %v3028
    %v5872 = vunpack.c.l.b16 %v3029
    %v5873 = vunpack.c.h.b16 %v3029
    %v5874 = vunpack.c.l.b16 %v3030
    %v5875 = vunpack.c.h.b16 %v3030
    %v5876 = vunpack.c.l.b16 %v3031
    %v5877 = vunpack.c.h.b16 %v3031
    %v5878 = vunpack.c.l.b16 %v3032
    %v5879 = vunpack.c.h.b16 %v3032
    %v5880 = vunpack.c.l.b16 %v3033
    %v5881 = vunpack.c.h.b16 %v3033
    %v5882 = vunpack.c.l.b16 %v3034
    %v5883 = vunpack.c.h.b16 %v3034
    %v5884 = vunpack.c.l.b16 %v3035
    %v5885 = vunpack.c.h.b16 %v3035
    %v5886 = vunpack.c.l.b16 %v3036
    %v5887 = vunpack.c.h.b16 %v3036
    %v5888 = vunpack.c.l.b16 %v3037
    %v5889 = vunpack.c.h.b16 %v3037
    %v5890 = vunpack.c.l.b16 %v3038
    %v5891 = vunpack.c.h.b16 %v3038
    %v5892 = vunpack.c.l.b16 %v3039
    %v5893 = vunpack.c.h.b16 %v3039
    %v5894 = vunpack.c.l.b16 %v3040
    %v5895 = vunpack.c.h.b16 %v3040
    %v5896 = vunpack.c.l.b16 %v3041
    %v5897 = vunpack.c.h.b16 %v3041
    %v5898 = vunpack.c.l.b16 %v3042
    %v5899 = vunpack.c.h.b16 %v3042
    %v5900 = vunpack.c.l.b16 %v3043
    %v5901 = vunpack.c.h.b16 %v3043
    %v5902 = vunpack.c.l.b16 %v3044
    %v5903 = vunpack.c.h.b16 %v3044
    %v5904 = vunpack.c.l.b16 %v3045
    %v5905 = vunpack.c.h.b16 %v3045
    %v5906 = vunpack.c.l.b16 %v3046
    %v5907 = vunpack.c.h.b16 %v3046
    %v5908 = vunpack.c.l.b16 %v3047
    %v5909 = vunpack.c.h.b16 %v3047
    %v5910 = vunpack.c.l.b16 %v3048
    %v5911 = vunpack.c.h.b16 %v3048
    %v5912 = vunpack.c.l.b16 %v3049
    %v5913 = vunpack.c.h.b16 %v3049
    %v5914 = vunpack.c.l.b16 %v3050
    %v5915 = vunpack.c.h.b16 %v3050
    %v5916 = vunpack.c.l.b16 %v3051
    %v5917 = vunpack.c.h.b16 %v3051
    %v5918 = vunpack.c.l.b16 %v3052
    %v5919 = vunpack.c.h.b16 %v3052
    %v5920 = vunpack.c.l.b16 %v3053
    %v5921 = vunpack.c.h.b16 %v3053
    %v5922 = vunpack.c.l.b16 %v3054
    %v5923 = vunpack.c.h.b16 %v3054
    %v5924 = vunpack.c.l.b16 %v3055
    %v5925 = vunpack.c.h.b16 %v3055
    %v5926 = vunpack.c.l.b16 %v3056
    %v5927 = vunpack.c.h.b16 %v3056
    %v5928 = vunpack.c.l.b16 %v3057
    %v5929 = vunpack.c.h.b16 %v3057
    %v5930 = vunpack.c.l.b16 %v3058
    %v5931 = vunpack.c.h.b16 %v3058
    %v5932 = vunpack.c.l.b16 %v3059
    %v5933 = vunpack.c.h.b16 %v3059
    %v5934 = vunpack.c.l.b16 %v3060
    %v5935 = vunpack.c.h.b16 %v3060
    %v5936 = vunpack.c.l.b16 %v3061
    %v5937 = vunpack.c.h.b16 %v3061
    %v5938 = vunpack.c.l.b16 %v3062
    %v5939 = vunpack.c.h.b16 %v3062
    %v5940 = vunpack.c.l.b16 %v3063
    %v5941 = vunpack.c.h.b16 %v3063
    %v5942 = vunpack.c.l.b16 %v3064
    %v5943 = vunpack.c.h.b16 %v3064
    %v5944 = vunpack.c.l.b16 %v3065
    %v5945 = vunpack.c.h.b16 %v3065
    %v5946 = vunpack.c.l.b16 %v3066
    %v5947 = vunpack.c.h.b16 %v3066
    %v5948 = vunpack.c.l.b16 %v3067
    %v5949 = vunpack.c.h.b16 %v3067
    %v5950 = vunpack.c.l.b16 %v3068
    %v5951 = vunpack.c.h.b16 %v3068
    %v5952 = vunpack.c.l.b16 %v3069
    %v5953 = vunpack.c.h.b16 %v3069
    %v5954 = vunpack.c.l.b16 %v3070
    %v5955 = vunpack.c.h.b16 %v3070
    %v5956 = vunpack.c.l.b16 %v3071
    %v5957 = vunpack.c.h.b16 %v3071
    %v5958 = vunpack.c.l.b16 %v3072
    %v5959 = vunpack.c.h.b16 %v3072
    %v5960 = vunpack.c.l.b16 %v3073
    %v5961 = vunpack.c.h.b16 %v3073
    %v5962 = vunpack.c.l.b16 %v3074
    %v5963 = vunpack.c.h.b16 %v3074
    %v5964 = vunpack.c.l.b16 %v3075
    %v5965 = vunpack.c.h.b16 %v3075
    %v5966 = vunpack.c.l.b16 %v3076
    %v5967 = vunpack.c.h.b16 %v3076
    %v5968 = vunpack.c.l.b16 %v3077
    %v5969 = vunpack.c.h.b16 %v3077
    %v5970 = vunpack.c.l.b16 %v3078
    %v5971 = vunpack.c.h.b16 %v3078
    %v5972 = vunpack.c.l.b16 %v3079
    %v5973 = vunpack.c.h.b16 %v3079
    %v5974 = vunpack.c.l.b16 %v3080
    %v5975 = vunpack.c.h.b16 %v3080
    %v5976 = vunpack.c.l.b16 %v3081
    %v5977 = vunpack.c.h.b16 %v3081
    %v5978 = vunpack.c.l.b16 %v3082
    %v5979 = vunpack.c.h.b16 %v3082
    %v5980 = vunpack.c.l.b16 %v3083
    %v5981 = vunpack.c.h.b16 %v3083
    %v5982 = vunpack.c.l.b16 %v3084
    %v5983 = vunpack.c.h.b16 %v3084
    %v5984 = vunpack.c.l.b16 %v3085
    %v5985 = vunpack.c.h.b16 %v3085
    %v5986 = vunpack.c.l.b16 %v3086
    %v5987 = vunpack.c.h.b16 %v3086
    %v5988 = vunpack.c.l.b16 %v3087
    %v5989 = vunpack.c.h.b16 %v3087
    %v5990 = vunpack.c.l.b16 %v3088
    %v5991 = vunpack.c.h.b16 %v3088
    %v5992 = vunpack.c.l.b16 %v3089
    %v5993 = vunpack.c.h.b16 %v3089
    %v5994 = vunpack.c.l.b16 %v3090
    %v5995 = vunpack.c.h.b16 %v3090
    %v5996 = vunpack.c.l.b16 %v3091
    %v5997 = vunpack.c.h.b16 %v3091
    %v5998 = vunpack.c.l.b16 %v3092
    %v5999 = vunpack.c.h.b16 %v3092
    %v6000 = vunpack.c.l.b16 %v3093
    %v6001 = vunpack.c.h.b16 %v3093
    %v6002 = vunpack.c.l.b16 %v3094
    %v6003 = vunpack.c.h.b16 %v3094
    %v6004 = vunpack.c.l.b16 %v3095
    %v6005 = vunpack.c.h.b16 %v3095
    %v6006 = vunpack.c.l.b16 %v3096
    %v6007 = vunpack.c.h.b16 %v3096
    %v6008 = vunpack.c.l.b16 %v3097
    %v6009 = vunpack.c.h.b16 %v3097
    %v6010 = vunpack.c.l.b16 %v3098
    %v6011 = vunpack.c.h.b16 %v3098
    %v6012 = vunpack.c.l.b16 %v3099
    %v6013 = vunpack.c.h.b16 %v3099
    %v6014 = vunpack.c.l.b16 %v3100
    %v6015 = vunpack.c.h.b16 %v3100
    %v6016 = vunpack.c.l.b16 %v3101
    %v6017 = vunpack.c.h.b16 %v3101
    %v6018 = vunpack.c.l.b16 %v3102
    %v6019 = vunpack.c.h.b16 %v3102
    %v6020 = vunpack.c.l.b16 %v3103
    %v6021 = vunpack.c.h.b16 %v3103
    %v6022 = vunpack.c.l.b16 %v3104
    %v6023 = vunpack.c.h.b16 %v3104
    %v6024 = vunpack.c.l.b16 %v3105
    %v6025 = vunpack.c.h.b16 %v3105
    %v6026 = vunpack.c.l.b16 %v3106
    %v6027 = vunpack.c.h.b16 %v3106
    %v6028 = vunpack.c.l.b16 %v3107
    %v6029 = vunpack.c.h.b16 %v3107
    %v6030 = vunpack.c.l.b16 %v3108
    %v6031 = vunpack.c.h.b16 %v3108
    %v6032 = vunpack.c.l.b16 %v3109
    %v6033 = vunpack.c.h.b16 %v3109
    %v6034 = vunpack.c.l.b16 %v3110
    %v6035 = vunpack.c.h.b16 %v3110
    %v6036 = vunpack.c.l.b16 %v3111
    %v6037 = vunpack.c.h.b16 %v3111
    %v6038 = vunpack.c.l.b16 %v3112
    %v6039 = vunpack.c.h.b16 %v3112
    %v6040 = vunpack.c.l.b16 %v3113
    %v6041 = vunpack.c.h.b16 %v3113
    %v6042 = vunpack.c.l.b16 %v3114
    %v6043 = vunpack.c.h.b16 %v3114
    %v6044 = vunpack.c.l.b16 %v3115
    %v6045 = vunpack.c.h.b16 %v3115
    %v6046 = vunpack.c.l.b16 %v3116
    %v6047 = vunpack.c.h.b16 %v3116
    %v6048 = vunpack.c.l.b16 %v3117
    %v6049 = vunpack.c.h.b16 %v3117
    %v6050 = vunpack.c.l.b16 %v3118
    %v6051 = vunpack.c.h.b16 %v3118
    %v6052 = vunpack.c.l.b16 %v3119
    %v6053 = vunpack.c.h.b16 %v3119
    %v6054 = vunpack.c.l.b16 %v3120
    %v6055 = vunpack.c.h.b16 %v3120
    %v6056 = vunpack.c.l.b16 %v3121
    %v6057 = vunpack.c.h.b16 %v3121
    %v6058 = vunpack.c.l.b16 %v3122
    %v6059 = vunpack.c.h.b16 %v3122
    %v6060 = vunpack.c.l.b16 %v3123
    %v6061 = vunpack.c.h.b16 %v3123
    %v6062 = vunpack.c.l.b16 %v3124
    %v6063 = vunpack.c.h.b16 %v3124
    %v6064 = vunpack.c.l.b16 %v3125
    %v6065 = vunpack.c.h.b16 %v3125
    %v6066 = vunpack.c.l.b16 %v3126
    %v6067 = vunpack.c.h.b16 %v3126
    %v6068 = vunpack.c.l.b16 %v3127
    %v6069 = vunpack.c.h.b16 %v3127
    %v6070 = vunpack.c.l.b16 %v3128
    %v6071 = vunpack.c.h.b16 %v3128
    %v6072 = vunpack.c.l.b16 %v3129
    %v6073 = vunpack.c.h.b16 %v3129
    %v6074 = vunpack.c.l.b16 %v3130
    %v6075 = vunpack.c.h.b16 %v3130
    %v6076 = vunpack.c.l.b16 %v3131
    %v6077 = vunpack.c.h.b16 %v3131
    %v6078 = vunpack.c.l.b16 %v3132
    %v6079 = vunpack.c.h.b16 %v3132
    %v6080 = vunpack.c.l.b16 %v3133
    %v6081 = vunpack.c.h.b16 %v3133
    %v6082 = vunpack.c.l.b16 %v3134
    %v6083 = vunpack.c.h.b16 %v3134
    %v6084 = vunpack.c.l.b16 %v3135
    %v6085 = vunpack.c.h.b16 %v3135
    %v6086 = vunpack.c.l.b16 %v3136
    %v6087 = vunpack.c.h.b16 %v3136
    %v6088 = vunpack.c.l.b16 %v3137
    %v6089 = vunpack.c.h.b16 %v3137
    %v6090 = vunpack.c.l.b16 %v3138
    %v6091 = vunpack.c.h.b16 %v3138
    %v6092 = vunpack.c.l.b16 %v3139
    %v6093 = vunpack.c.h.b16 %v3139
    %v6094 = vunpack.c.l.b16 %v3140
    %v6095 = vunpack.c.h.b16 %v3140
    %v6096 = vunpack.c.l.b16 %v3141
    %v6097 = vunpack.c.h.b16 %v3141
    %v6098 = vunpack.c.l.b16 %v3142
    %v6099 = vunpack.c.h.b16 %v3142
    %v6100 = vunpack.c.l.b16 %v3143
    %v6101 = vunpack.c.h.b16 %v3143
    %v6102 = vunpack.c.l.b16 %v3144
    %v6103 = vunpack.c.h.b16 %v3144
    %v6104 = vunpack.c.l.b16 %v3145
    %v6105 = vunpack.c.h.b16 %v3145
    %v6106 = vunpack.c.l.b16 %v3146
    %v6107 = vunpack.c.h.b16 %v3146
    %v6108 = vunpack.c.l.b16 %v3147
    %v6109 = vunpack.c.h.b16 %v3147
    %v6110 = vunpack.c.l.b16 %v3148
    %v6111 = vunpack.c.h.b16 %v3148
    %v6112 = vunpack.c.l.b16 %v3149
    %v6113 = vunpack.c.h.b16 %v3149
    %v6114 = vunpack.c.l.b16 %v3150
    %v6115 = vunpack.c.h.b16 %v3150
    %v6116 = vunpack.c.l.b16 %v3151
    %v6117 = vunpack.c.h.b16 %v3151
    %v6118 = vunpack.c.l.b16 %v3152
    %v6119 = vunpack.c.h.b16 %v3152
    %v6120 = vunpack.c.l.b16 %v3153
    %v6121 = vunpack.c.h.b16 %v3153
    %v6122 = vunpack.c.l.b16 %v3154
    %v6123 = vunpack.c.h.b16 %v3154
    %v6124 = vunpack.c.l.b16 %v3155
    %v6125 = vunpack.c.h.b16 %v3155
    %v6126 = vunpack.c.l.b16 %v3156
    %v6127 = vunpack.c.h.b16 %v3156
    %v6128 = vunpack.c.l.b16 %v3157
    %v6129 = vunpack.c.h.b16 %v3157
    %v6130 = vunpack.c.l.b16 %v3158
    %v6131 = vunpack.c.h.b16 %v3158
    %v6132 = vunpack.c.l.b16 %v3159
    %v6133 = vunpack.c.h.b16 %v3159
    %v6134 = vunpack.c.l.b16 %v3160
    %v6135 = vunpack.c.h.b16 %v3160
    %v6136 = vunpack.c.l.b16 %v3161
    %v6137 = vunpack.c.h.b16 %v3161
    %v6138 = vunpack.c.l.b16 %v3162
    %v6139 = vunpack.c.h.b16 %v3162
    %v6140 = vunpack.c.l.b16 %v3163
    %v6141 = vunpack.c.h.b16 %v3163
    %v6142 = vunpack.c.l.b16 %v3164
    %v6143 = vunpack.c.h.b16 %v3164
    %v6144 = vunpack.c.l.b16 %v3165
    %v6145 = vunpack.c.h.b16 %v3165
    %v6146 = vunpack.c.l.b16 %v3166
    %v6147 = vunpack.c.h.b16 %v3166
    %v6148 = vunpack.c.l.b16 %v3167
    %v6149 = vunpack.c.h.b16 %v3167
    %v6150 = vunpack.c.l.b16 %v3168
    %v6151 = vunpack.c.h.b16 %v3168
    %v6152 = vunpack.c.l.b16 %v3169
    %v6153 = vunpack.c.h.b16 %v3169
    %v6154 = vunpack.c.l.b16 %v3170
    %v6155 = vunpack.c.h.b16 %v3170
    %v6156 = vunpack.c.l.b16 %v3171
    %v6157 = vunpack.c.h.b16 %v3171
    %v6158 = vunpack.c.l.b16 %v3172
    %v6159 = vunpack.c.h.b16 %v3172
    %v6160 = vunpack.c.l.b16 %v3173
    %v6161 = vunpack.c.h.b16 %v3173
    %v6162 = vunpack.c.l.b16 %v3174
    %v6163 = vunpack.c.h.b16 %v3174
    %v6164 = vunpack.c.l.b16 %v3175
    %v6165 = vunpack.c.h.b16 %v3175
    %v6166 = vunpack.c.l.b16 %v3176
    %v6167 = vunpack.c.h.b16 %v3176
    %v6168 = vunpack.c.l.b16 %v3177
    %v6169 = vunpack.c.h.b16 %v3177
    %v6170 = vunpack.c.l.b16 %v3178
    %v6171 = vunpack.c.h.b16 %v3178
    %v6172 = vunpack.c.l.b16 %v3179
    %v6173 = vunpack.c.h.b16 %v3179
    %v6174 = vunpack.c.l.b16 %v3180
    %v6175 = vunpack.c.h.b16 %v3180
    %v6176 = vunpack.c.l.b16 %v3181
    %v6177 = vunpack.c.h.b16 %v3181
    %v6178 = vunpack.c.l.b16 %v3182
    %v6179 = vunpack.c.h.b16 %v3182
    %v6180 = vunpack.c.l.b16 %v3183
    %v6181 = vunpack.c.h.b16 %v3183
    %v6182 = vunpack.c.l.b16 %v3184
    %v6183 = vunpack.c.h.b16 %v3184
    %v6184 = vunpack.c.l.b16 %v3185
    %v6185 = vunpack.c.h.b16 %v3185
    %v6186 = vunpack.c.l.b16 %v3186
    %v6187 = vunpack.c.h.b16 %v3186
    %v6188 = vunpack.c.l.b16 %v3187
    %v6189 = vunpack.c.h.b16 %v3187
    %v6190 = vunpack.c.l.b16 %v3188
    %v6191 = vunpack.c.h.b16 %v3188
    %v6192 = vunpack.c.l.b16 %v3189
    %v6193 = vunpack.c.h.b16 %v3189
    %v6194 = vunpack.c.l.b16 %v3190
    %v6195 = vunpack.c.h.b16 %v3190
    %v6196 = vunpack.c.l.b16 %v3191
    %v6197 = vunpack.c.h.b16 %v3191
    %v6198 = vunpack.c.l.b16 %v3192
    %v6199 = vunpack.c.h.b16 %v3192
    %v6200 = vunpack.c.l.b16 %v3193
    %v6201 = vunpack.c.h.b16 %v3193
    %v6202 = vunpack.c.l.b16 %v3194
    %v6203 = vunpack.c.h.b16 %v3194
    %v6204 = vunpack.c.l.b16 %v3195
    %v6205 = vunpack.c.h.b16 %v3195
    %v6206 = vunpack.c.l.b16 %v3196
    %v6207 = vunpack.c.h.b16 %v3196
    %v6208 = vunpack.c.l.b16 %v3197
    %v6209 = vunpack.c.h.b16 %v3197
    %v6210 = vunpack.c.l.b16 %v3198
    %v6211 = vunpack.c.h.b16 %v3198
    %v6212 = vunpack.c.l.b16 %v3199
    %v6213 = vunpack.c.h.b16 %v3199
    %v6214 = vunpack.c.l.b16 %v3200
    %v6215 = vunpack.c.h.b16 %v3200
    %v6216 = vunpack.c.l.b16 %v3201
    %v6217 = vunpack.c.h.b16 %v3201
    %v6218 = vunpack.c.l.b16 %v3202
    %v6219 = vunpack.c.h.b16 %v3202
    %v6220 = vunpack.c.l.b16 %v3203
    %v6221 = vunpack.c.h.b16 %v3203
    %v6222 = vunpack.c.l.b16 %v3204
    %v6223 = vunpack.c.h.b16 %v3204
    %v6224 = vunpack.c.l.b16 %v3205
    %v6225 = vunpack.c.h.b16 %v3205
    %v6226 = vunpack.c.l.b16 %v3206
    %v6227 = vunpack.c.h.b16 %v3206
    %v6228 = vunpack.c.l.b16 %v3207
    %v6229 = vunpack.c.h.b16 %v3207
    %v6230 = vunpack.c.l.b16 %v3208
    %v6231 = vunpack.c.h.b16 %v3208
    %v6232 = vunpack.c.l.b16 %v3209
    %v6233 = vunpack.c.h.b16 %v3209
    %v6234 = vunpack.c.l.b16 %v3210
    %v6235 = vunpack.c.h.b16 %v3210
    %v6236 = vunpack.c.l.b16 %v3211
    %v6237 = vunpack.c.h.b16 %v3211
    %v6238 = vunpack.c.l.b16 %v3212
    %v6239 = vunpack.c.h.b16 %v3212
    %v6240 = vunpack.c.l.b16 %v3213
    %v6241 = vunpack.c.h.b16 %v3213
    %v6242 = vunpack.c.l.b16 %v3214
    %v6243 = vunpack.c.h.b16 %v3214
    %v6244 = vunpack.c.l.b16 %v3215
    %v6245 = vunpack.c.h.b16 %v3215
    %v6246 = vunpack.c.l.b16 %v3216
    %v6247 = vunpack.c.h.b16 %v3216
    %v6248 = vunpack.c.l.b16 %v3217
    %v6249 = vunpack.c.h.b16 %v3217
    %v6250 = vunpack.c.l.b16 %v3218
    %v6251 = vunpack.c.h.b16 %v3218
    %v6252 = vunpack.c.l.b16 %v3219
    %v6253 = vunpack.c.h.b16 %v3219
    %v6254 = vunpack.c.l.b16 %v3220
    %v6255 = vunpack.c.h.b16 %v3220
    %v6256 = vunpack.c.l.b16 %v3221
    %v6257 = vunpack.c.h.b16 %v3221
    %v6258 = vunpack.c.l.b16 %v3222
    %v6259 = vunpack.c.h.b16 %v3222
    %v6260 = vunpack.c.l.b16 %v3223
    %v6261 = vunpack.c.h.b16 %v3223
    %v6262 = vunpack.c.l.b16 %v3224
    %v6263 = vunpack.c.h.b16 %v3224
    %v6264 = vunpack.c.l.b16 %v3225
    %v6265 = vunpack.c.h.b16 %v3225
    %v6266 = vunpack.c.l.b16 %v3226
    %v6267 = vunpack.c.h.b16 %v3226
    %v6268 = vunpack.c.l.b16 %v3227
    %v6269 = vunpack.c.h.b16 %v3227
    %v6270 = vunpack.c.l.b16 %v3228
    %v6271 = vunpack.c.h.b16 %v3228
    %v6272 = vunpack.c.l.b16 %v3229
    %v6273 = vunpack.c.h.b16 %v3229
    %v6274 = vunpack.c.l.b16 %v3230
    %v6275 = vunpack.c.h.b16 %v3230
    %v6276 = vunpack.c.l.b16 %v3231
    %v6277 = vunpack.c.h.b16 %v3231
    %v6278 = vunpack.c.l.b16 %v3232
    %v6279 = vunpack.c.h.b16 %v3232
    %v6280 = vunpack.c.l.b16 %v3233
    %v6281 = vunpack.c.h.b16 %v3233
    %v6282 = vunpack.c.l.b16 %v3234
    %v6283 = vunpack.c.h.b16 %v3234
    %v6284 = vunpack.c.l.b16 %v3235
    %v6285 = vunpack.c.h.b16 %v3235
    %v6286 = vunpack.c.l.b16 %v3236
    %v6287 = vunpack.c.h.b16 %v3236
    %v6288 = vunpack.c.l.b16 %v3237
    %v6289 = vunpack.c.h.b16 %v3237
    %v6290 = vunpack.c.l.b16 %v3238
    %v6291 = vunpack.c.h.b16 %v3238
    %v6292 = vunpack.c.l.b16 %v3239
    %v6293 = vunpack.c.h.b16 %v3239
    %v6294 = vunpack.c.l.b16 %v3240
    %v6295 = vunpack.c.h.b16 %v3240
    %v6296 = vunpack.c.l.b16 %v3241
    %v6297 = vunpack.c.h.b16 %v3241
    %v6298 = vunpack.c.l.b16 %v3242
    %v6299 = vunpack.c.h.b16 %v3242
    %v6300 = vunpack.c.l.b16 %v3243
    %v6301 = vunpack.c.h.b16 %v3243
    %v6302 = vunpack.c.l.b16 %v3244
    %v6303 = vunpack.c.h.b16 %v3244
    %v6304 = vunpack.c.l.b16 %v3245
    %v6305 = vunpack.c.h.b16 %v3245
    %v6306 = vunpack.c.l.b16 %v3246
    %v6307 = vunpack.c.h.b16 %v3246
    %v6308 = vunpack.c.l.b16 %v3247
    %v6309 = vunpack.c.h.b16 %v3247
    %v6310 = vunpack.c.l.b16 %v3248
    %v6311 = vunpack.c.h.b16 %v3248
    %v6312 = vunpack.c.l.b16 %v3249
    %v6313 = vunpack.c.h.b16 %v3249
    %v6314 = vunpack.c.l.b16 %v3250
    %v6315 = vunpack.c.h.b16 %v3250
    %v6316 = vunpack.c.l.b16 %v3251
    %v6317 = vunpack.c.h.b16 %v3251
    %v6318 = vunpack.c.l.b16 %v3252
    %v6319 = vunpack.c.h.b16 %v3252
    %v6320 = vunpack.c.l.b16 %v3253
    %v6321 = vunpack.c.h.b16 %v3253
    %v6322 = vunpack.c.l.b16 %v3254
    %v6323 = vunpack.c.h.b16 %v3254
    %v6324 = vunpack.c.l.b16 %v3255
    %v6325 = vunpack.c.h.b16 %v3255
    %v6326 = vunpack.c.l.b16 %v3256
    %v6327 = vunpack.c.h.b16 %v3256
    %v6328 = vunpack.c.l.b16 %v3257
    %v6329 = vunpack.c.h.b16 %v3257
    %v6330 = vunpack.c.l.b16 %v3258
    %v6331 = vunpack.c.h.b16 %v3258
    %v6332 = vunpack.c.l.b16 %v3259
    %v6333 = vunpack.c.h.b16 %v3259
    %v6334 = vunpack.c.l.b16 %v3260
    %v6335 = vunpack.c.h.b16 %v3260
    %v6336 = vunpack.c.l.b16 %v3261
    %v6337 = vunpack.c.h.b16 %v3261
    %v6338 = vunpack.c.l.b16 %v3262
    %v6339 = vunpack.c.h.b16 %v3262
    %v6340 = vunpack.c.l.b16 %v3263
    %v6341 = vunpack.c.h.b16 %v3263
    %v6342 = vunpack.c.l.b16 %v3264
    %v6343 = vunpack.c.h.b16 %v3264
    %v6344 = vunpack.c.l.b16 %v3265
    %v6345 = vunpack.c.h.b16 %v3265
    %v6346 = vunpack.c.l.b16 %v3266
    %v6347 = vunpack.c.h.b16 %v3266
    %v6348 = vunpack.c.l.b16 %v3267
    %v6349 = vunpack.c.h.b16 %v3267
    %v6350 = vunpack.c.l.b16 %v3268
    %v6351 = vunpack.c.h.b16 %v3268
    %v6352 = vunpack.c.l.b16 %v3269
    %v6353 = vunpack.c.h.b16 %v3269
    %v6354 = vunpack.c.l.b16 %v3270
    %v6355 = vunpack.c.h.b16 %v3270
    %v6356 = vunpack.c.l.b16 %v3271
    %v6357 = vunpack.c.h.b16 %v3271
    %v6358 = vunpack.c.l.b16 %v3272
    %v6359 = vunpack.c.h.b16 %v3272
    %v6360 = vunpack.c.l.b16 %v3273
    %v6361 = vunpack.c.h.b16 %v3273
    %v6362 = vunpack.c.l.b16 %v3274
    %v6363 = vunpack.c.h.b16 %v3274
    %v6364 = vunpack.c.l.b16 %v3275
    %v6365 = vunpack.c.h.b16 %v3275
    %v6366 = vunpack.c.l.b16 %v3276
    %v6367 = vunpack.c.h.b16 %v3276
    %v6368 = vunpack.c.l.b16 %v3277
    %v6369 = vunpack.c.h.b16 %v3277
    %v6370 = vunpack.c.l.b16 %v3278
    %v6371 = vunpack.c.h.b16 %v3278
    %v6372 = vunpack.c.l.b16 %v3279
    %v6373 = vunpack.c.h.b16 %v3279
    %v6374 = vpack.c.b16 %v4330, %v4326
    %v6375 = vpack.c.b16 %v4331, %v4327
    %v6376 = vpack.c.b16 %v4332, %v4328
    %v6377 = vpack.c.b16 %v4333, %v4329
    %v6378 = vpack.c.b16 %v4338, %v4334
    %v6379 = vpack.c.b16 %v4339, %v4335
    %v6380 = vpack.c.b16 %v4340, %v4336
    %v6381 = vpack.c.b16 %v4341, %v4337
    %v6382 = vpack.c.b16 %v4346, %v4342
    %v6383 = vpack.c.b16 %v4347, %v4343
    %v6384 = vpack.c.b16 %v4348, %v4344
    %v6385 = vpack.c.b16 %v4349, %v4345
    %v6386 = vpack.c.b16 %v4354, %v4350
    %v6387 = vpack.c.b16 %v4355, %v4351
    %v6388 = vpack.c.b16 %v4356, %v4352
    %v6389 = vpack.c.b16 %v4357, %v4353
    %v6390 = vpack.c.b16 %v4362, %v4358
    %v6391 = vpack.c.b16 %v4363, %v4359
    %v6392 = vpack.c.b16 %v4364, %v4360
    %v6393 = vpack.c.b16 %v4365, %v4361
    %v6394 = vpack.c.b16 %v4370, %v4366
    %v6395 = vpack.c.b16 %v4371, %v4367
    %v6396 = vpack.c.b16 %v4372, %v4368
    %v6397 = vpack.c.b16 %v4373, %v4369
    %v6398 = vpack.c.b16 %v4378, %v4374
    %v6399 = vpack.c.b16 %v4379, %v4375
    %v6400 = vpack.c.b16 %v4380, %v4376
    %v6401 = vpack.c.b16 %v4381, %v4377
    %v6402 = vpack.c.b16 %v4386, %v4382
    %v6403 = vpack.c.b16 %v4387, %v4383
    %v6404 = vpack.c.b16 %v4388, %v4384
    %v6405 = vpack.c.b16 %v4389, %v4385
    %v6406 = vpack.c.b16 %v4394, %v4390
    %v6407 = vpack.c.b16 %v4395, %v4391
    %v6408 = vpack.c.b16 %v4396, %v4392
    %v6409 = vpack.c.b16 %v4397, %v4393
    %v6410 = vpack.c.b16 %v4402, %v4398
    %v6411 = vpack.c.b16 %v4403, %v4399
    %v6412 = vpack.c.b16 %v4404, %v4400
    %v6413 = vpack.c.b16 %v4405, %v4401
    %v6414 = vpack.c.b16 %v4410, %v4406
    %v6415 = vpack.c.b16 %v4411, %v4407
    %v6416 = vpack.c.b16 %v4412, %v4408
    %v6417 = vpack.c.b16 %v4413, %v4409
    %v6418 = vpack.c.b16 %v4418, %v4414
    %v6419 = vpack.c.b16 %v4419, %v4415
    %v6420 = vpack.c.b16 %v4420, %v4416
    %v6421 = vpack.c.b16 %v4421, %v4417
    %v6422 = vpack.c.b16 %v4426, %v4422
    %v6423 = vpack.c.b16 %v4427, %v4423
    %v6424 = vpack.c.b16 %v4428, %v4424
    %v6425 = vpack.c.b16 %v4429, %v4425
    %v6426 = vpack.c.b16 %v4434, %v4430
    %v6427 = vpack.c.b16 %v4435, %v4431
    %v6428 = vpack.c.b16 %v4436, %v4432
    %v6429 = vpack.c.b16 %v4437, %v4433
    %v6430 = vpack.c.b16 %v4442, %v4438
    %v6431 = vpack.c.b16 %v4443, %v4439
    %v6432 = vpack.c.b16 %v4444, %v4440
    %v6433 = vpack.c.b16 %v4445, %v4441
    %v6434 = vpack.c.b16 %v4450, %v4446
    %v6435 = vpack.c.b16 %v4451, %v4447
    %v6436 = vpack.c.b16 %v4452, %v4448
    %v6437 = vpack.c.b16 %v4453, %v4449
    %v6438 = vpack.c.b16 %v4458, %v4454
    %v6439 = vpack.c.b16 %v4459, %v4455
    %v6440 = vpack.c.b16 %v4460, %v4456
    %v6441 = vpack.c.b16 %v4461, %v4457
    %v6442 = vpack.c.b16 %v4466, %v4462
    %v6443 = vpack.c.b16 %v4467, %v4463
    %v6444 = vpack.c.b16 %v4468, %v4464
    %v6445 = vpack.c.b16 %v4469, %v4465
    %v6446 = vpack.c.b16 %v4474, %v4470
    %v6447 = vpack.c.b16 %v4475, %v4471
    %v6448 = vpack.c.b16 %v4476, %v4472
    %v6449 = vpack.c.b16 %v4477, %v4473
    %v6450 = vpack.c.b16 %v4482, %v4478
    %v6451 = vpack.c.b16 %v4483, %v4479
    %v6452 = vpack.c.b16 %v4484, %v4480
    %v6453 = vpack.c.b16 %v4485, %v4481
    %v6454 = vpack.c.b16 %v4490, %v4486
    %v6455 = vpack.c.b16 %v4491, %v4487
    %v6456 = vpack.c.b16 %v4492, %v4488
    %v6457 = vpack.c.b16 %v4493, %v4489
    %v6458 = vpack.c.b16 %v4498, %v4494
    %v6459 = vpack.c.b16 %v4499, %v4495
    %v6460 = vpack.c.b16 %v4500, %v4496
    %v6461 = vpack.c.b16 %v4501, %v4497
    %v6462 = vpack.c.b16 %v4506, %v4502
    %v6463 = vpack.c.b16 %v4507, %v4503
    %v6464 = vpack.c.b16 %v4508, %v4504
    %v6465 = vpack.c.b16 %v4509, %v4505
    %v6466 = vpack.c.b16 %v4514, %v4510
    %v6467 = vpack.c.b16 %v4515, %v4511
    %v6468 = vpack.c.b16 %v4516, %v4512
    %v6469 = vpack.c.b16 %v4517, %v4513
    %v6470 = vpack.c.b16 %v4522, %v4518
    %v6471 = vpack.c.b16 %v4523, %v4519
    %v6472 = vpack.c.b16 %v4524, %v4520
    %v6473 = vpack.c.b16 %v4525, %v4521
    %v6474 = vpack.c.b16 %v4530, %v4526
    %v6475 = vpack.c.b16 %v4531, %v4527
    %v6476 = vpack.c.b16 %v4532, %v4528
    %v6477 = vpack.c.b16 %v4533, %v4529
    %v6478 = vpack.c.b16 %v4538, %v4534
    %v6479 = vpack.c.b16 %v4539, %v4535
    %v6480 = vpack.c.b16 %v4540, %v4536
    %v6481 = vpack.c.b16 %v4541, %v4537
    %v6482 = vpack.c.b16 %v4546, %v4542
    %v6483 = vpack.c.b16 %v4547, %v4543
    %v6484 = vpack.c.b16 %v4548, %v4544
    %v6485 = vpack.c.b16 %v4549, %v4545
    %v6486 = vpack.c.b16 %v4554, %v4550
    %v6487 = vpack.c.b16 %v4555, %v4551
    %v6488 = vpack.c.b16 %v4556, %v4552
    %v6489 = vpack.c.b16 %v4557, %v4553
    %v6490 = vpack.c.b16 %v4562, %v4558
    %v6491 = vpack.c.b16 %v4563, %v4559
    %v6492 = vpack.c.b16 %v4564, %v4560
    %v6493 = vpack.c.b16 %v4565, %v4561
    %v6494 = vpack.c.b16 %v4570, %v4566
    %v6495 = vpack.c.b16 %v4571, %v4567
    %v6496 = vpack.c.b16 %v4572, %v4568
    %v6497 = vpack.c.b16 %v4573, %v4569
    %v6498 = vpack.c.b16 %v4578, %v4574
    %v6499 = vpack.c.b16 %v4579, %v4575
    %v6500 = vpack.c.b16 %v4580, %v4576
    %v6501 = vpack.c.b16 %v4581, %v4577
    %v6502 = vpack.c.b16 %v4586, %v4582
    %v6503 = vpack.c.b16 %v4587, %v4583
    %v6504 = vpack.c.b16 %v4588, %v4584
    %v6505 = vpack.c.b16 %v4589, %v4585
    %v6506 = vpack.c.b16 %v4594, %v4590
    %v6507 = vpack.c.b16 %v4595, %v4591
    %v6508 = vpack.c.b16 %v4596, %v4592
    %v6509 = vpack.c.b16 %v4597, %v4593
    %v6510 = vpack.c.b16 %v4602, %v4598
    %v6511 = vpack.c.b16 %v4603, %v4599
    %v6512 = vpack.c.b16 %v4604, %v4600
    %v6513 = vpack.c.b16 %v4605, %v4601
    %v6514 = vpack.c.b16 %v4610, %v4606
    %v6515 = vpack.c.b16 %v4611, %v4607
    %v6516 = vpack.c.b16 %v4612, %v4608
    %v6517 = vpack.c.b16 %v4613, %v4609
    %v6518 = vpack.c.b16 %v4618, %v4614
    %v6519 = vpack.c.b16 %v4619, %v4615
    %v6520 = vpack.c.b16 %v4620, %v4616
    %v6521 = vpack.c.b16 %v4621, %v4617
    %v6522 = vpack.c.b16 %v4626, %v4622
    %v6523 = vpack.c.b16 %v4627, %v4623
    %v6524 = vpack.c.b16 %v4628, %v4624
    %v6525 = vpack.c.b16 %v4629, %v4625
    %v6526 = vpack.c.b16 %v4634, %v4630
    %v6527 = vpack.c.b16 %v4635, %v4631
    %v6528 = vpack.c.b16 %v4636, %v4632
    %v6529 = vpack.c.b16 %v4637, %v4633
    %v6530 = vpack.c.b16 %v4642, %v4638
    %v6531 = vpack.c.b16 %v4643, %v4639
    %v6532 = vpack.c.b16 %v4644, %v4640
    %v6533 = vpack.c.b16 %v4645, %v4641
    %v6534 = vpack.c.b16 %v4650, %v4646
    %v6535 = vpack.c.b16 %v4651, %v4647
    %v6536 = vpack.c.b16 %v4652, %v4648
    %v6537 = vpack.c.b16 %v4653, %v4649
    %v6538 = vpack.c.b16 %v4658, %v4654
    %v6539 = vpack.c.b16 %v4659, %v4655
    %v6540 = vpack.c.b16 %v4660, %v4656
    %v6541 = vpack.c.b16 %v4661, %v4657
    %v6542 = vpack.c.b16 %v4666, %v4662
    %v6543 = vpack.c.b16 %v4667, %v4663
    %v6544 = vpack.c.b16 %v4668, %v4664
    %v6545 = vpack.c.b16 %v4669, %v4665
    %v6546 = vpack.c.b16 %v4674, %v4670
    %v6547 = vpack.c.b16 %v4675, %v4671
    %v6548 = vpack.c.b16 %v4676, %v4672
    %v6549 = vpack.c.b16 %v4677, %v4673
    %v6550 = vpack.c.b16 %v4682, %v4678
    %v6551 = vpack.c.b16 %v4683, %v4679
    %v6552 = vpack.c.b16 %v4684, %v4680
    %v6553 = vpack.c.b16 %v4685, %v4681
    %v6554 = vpack.c.b16 %v4690, %v4686
    %v6555 = vpack.c.b16 %v4691, %v4687
    %v6556 = vpack.c.b16 %v4692, %v4688
    %v6557 = vpack.c.b16 %v4693, %v4689
    %v6558 = vpack.c.b16 %v4698, %v4694
    %v6559 = vpack.c.b16 %v4699, %v4695
    %v6560 = vpack.c.b16 %v4700, %v4696
    %v6561 = vpack.c.b16 %v4701, %v4697
    %v6562 = vpack.c.b16 %v4706, %v4702
    %v6563 = vpack.c.b16 %v4707, %v4703
    %v6564 = vpack.c.b16 %v4708, %v4704
    %v6565 = vpack.c.b16 %v4709, %v4705
    %v6566 = vpack.c.b16 %v4714, %v4710
    %v6567 = vpack.c.b16 %v4715, %v4711
    %v6568 = vpack.c.b16 %v4716, %v4712
    %v6569 = vpack.c.b16 %v4717, %v4713
    %v6570 = vpack.c.b16 %v4722, %v4718
    %v6571 = vpack.c.b16 %v4723, %v4719
    %v6572 = vpack.c.b16 %v4724, %v4720
    %v6573 = vpack.c.b16 %v4725, %v4721
    %v6574 = vpack.c.b16 %v4730, %v4726
    %v6575 = vpack.c.b16 %v4731, %v4727
    %v6576 = vpack.c.b16 %v4732, %v4728
    %v6577 = vpack.c.b16 %v4733, %v4729
    %v6578 = vpack.c.b16 %v4738, %v4734
    %v6579 = vpack.c.b16 %v4739, %v4735
    %v6580 = vpack.c.b16 %v4740, %v4736
    %v6581 = vpack.c.b16 %v4741, %v4737
    %v6582 = vpack.c.b16 %v4746, %v4742
    %v6583 = vpack.c.b16 %v4747, %v4743
    %v6584 = vpack.c.b16 %v4748, %v4744
    %v6585 = vpack.c.b16 %v4749, %v4745
    %v6586 = vpack.c.b16 %v4754, %v4750
    %v6587 = vpack.c.b16 %v4755, %v4751
    %v6588 = vpack.c.b16 %v4756, %v4752
    %v6589 = vpack.c.b16 %v4757, %v4753
    %v6590 = vpack.c.b16 %v4762, %v4758
    %v6591 = vpack.c.b16 %v4763, %v4759
    %v6592 = vpack.c.b16 %v4764, %v4760
    %v6593 = vpack.c.b16 %v4765, %v4761
    %v6594 = vpack.c.b16 %v4770, %v4766
    %v6595 = vpack.c.b16 %v4771, %v4767
    %v6596 = vpack.c.b16 %v4772, %v4768
    %v6597 = vpack.c.b16 %v4773, %v4769
    %v6598 = vpack.c.b16 %v4778, %v4774
    %v6599 = vpack.c.b16 %v4779, %v4775
    %v6600 = vpack.c.b16 %v4780, %v4776
    %v6601 = vpack.c.b16 %v4781, %v4777
    %v6602 = vpack.c.b16 %v4786, %v4782
    %v6603 = vpack.c.b16 %v4787, %v4783
    %v6604 = vpack.c.b16 %v4788, %v4784
    %v6605 = vpack.c.b16 %v4789, %v4785
    %v6606 = vpack.c.b16 %v4794, %v4790
    %v6607 = vpack.c.b16 %v4795, %v4791
    %v6608 = vpack.c.b16 %v4796, %v4792
    %v6609 = vpack.c.b16 %v4797, %v4793
    %v6610 = vpack.c.b16 %v4802, %v4798
    %v6611 = vpack.c.b16 %v4803, %v4799
    %v6612 = vpack.c.b16 %v4804, %v4800
    %v6613 = vpack.c.b16 %v4805, %v4801
    %v6614 = vpack.c.b16 %v4810, %v4806
    %v6615 = vpack.c.b16 %v4811, %v4807
    %v6616 = vpack.c.b16 %v4812, %v4808
    %v6617 = vpack.c.b16 %v4813, %v4809
    %v6618 = vpack.c.b16 %v4818, %v4814
    %v6619 = vpack.c.b16 %v4819, %v4815
    %v6620 = vpack.c.b16 %v4820, %v4816
    %v6621 = vpack.c.b16 %v4821, %v4817
    %v6622 = vpack.c.b16 %v4826, %v4822
    %v6623 = vpack.c.b16 %v4827, %v4823
    %v6624 = vpack.c.b16 %v4828, %v4824
    %v6625 = vpack.c.b16 %v4829, %v4825
    %v6626 = vpack.c.b16 %v4834, %v4830
    %v6627 = vpack.c.b16 %v4835, %v4831
    %v6628 = vpack.c.b16 %v4836, %v4832
    %v6629 = vpack.c.b16 %v4837, %v4833
    %v6630 = vpack.c.b16 %v4842, %v4838
    %v6631 = vpack.c.b16 %v4843, %v4839
    %v6632 = vpack.c.b16 %v4844, %v4840
    %v6633 = vpack.c.b16 %v4845, %v4841
    %v6634 = vpack.c.b16 %v4850, %v4846
    %v6635 = vpack.c.b16 %v4851, %v4847
    %v6636 = vpack.c.b16 %v4852, %v4848
    %v6637 = vpack.c.b16 %v4853, %v4849
    %v6638 = vpack.c.b16 %v4858, %v4854
    %v6639 = vpack.c.b16 %v4859, %v4855
    %v6640 = vpack.c.b16 %v4860, %v4856
    %v6641 = vpack.c.b16 %v4861, %v4857
    %v6642 = vpack.c.b16 %v4866, %v4862
    %v6643 = vpack.c.b16 %v4867, %v4863
    %v6644 = vpack.c.b16 %v4868, %v4864
    %v6645 = vpack.c.b16 %v4869, %v4865
    %v6646 = vpack.c.b16 %v4874, %v4870
    %v6647 = vpack.c.b16 %v4875, %v4871
    %v6648 = vpack.c.b16 %v4876, %v4872
    %v6649 = vpack.c.b16 %v4877, %v4873
    %v6650 = vpack.c.b16 %v4882, %v4878
    %v6651 = vpack.c.b16 %v4883, %v4879
    %v6652 = vpack.c.b16 %v4884, %v4880
    %v6653 = vpack.c.b16 %v4885, %v4881
    %v6654 = vpack.c.b16 %v4890, %v4886
    %v6655 = vpack.c.b16 %v4891, %v4887
    %v6656 = vpack.c.b16 %v4892, %v4888
    %v6657 = vpack.c.b16 %v4893, %v4889
    %v6658 = vpack.c.b16 %v4898, %v4894
    %v6659 = vpack.c.b16 %v4899, %v4895
    %v6660 = vpack.c.b16 %v4900, %v4896
    %v6661 = vpack.c.b16 %v4901, %v4897
    %v6662 = vpack.c.b16 %v4906, %v4902
    %v6663 = vpack.c.b16 %v4907, %v4903
    %v6664 = vpack.c.b16 %v4908, %v4904
    %v6665 = vpack.c.b16 %v4909, %v4905
    %v6666 = vpack.c.b16 %v4914, %v4910
    %v6667 = vpack.c.b16 %v4915, %v4911
    %v6668 = vpack.c.b16 %v4916, %v4912
    %v6669 = vpack.c.b16 %v4917, %v4913
    %v6670 = vpack.c.b16 %v4922, %v4918
    %v6671 = vpack.c.b16 %v4923, %v4919
    %v6672 = vpack.c.b16 %v4924, %v4920
    %v6673 = vpack.c.b16 %v4925, %v4921
    %v6674 = vpack.c.b16 %v4930, %v4926
    %v6675 = vpack.c.b16 %v4931, %v4927
    %v6676 = vpack.c.b16 %v4932, %v4928
    %v6677 = vpack.c.b16 %v4933, %v4929
    %v6678 = vpack.c.b16 %v4938, %v4934
    %v6679 = vpack.c.b16 %v4939, %v4935
    %v6680 = vpack.c.b16 %v4940, %v4936
    %v6681 = vpack.c.b16 %v4941, %v4937
    %v6682 = vpack.c.b16 %v4946, %v4942
    %v6683 = vpack.c.b16 %v4947, %v4943
    %v6684 = vpack.c.b16 %v4948, %v4944
    %v6685 = vpack.c.b16 %v4949, %v4945
    %v6686 = vpack.c.b16 %v4954, %v4950
    %v6687 = vpack.c.b16 %v4955, %v4951
    %v6688 = vpack.c.b16 %v4956, %v4952
    %v6689 = vpack.c.b16 %v4957, %v4953
    %v6690 = vpack.c.b16 %v4962, %v4958
    %v6691 = vpack.c.b16 %v4963, %v4959
    %v6692 = vpack.c.b16 %v4964, %v4960
    %v6693 = vpack.c.b16 %v4965, %v4961
    %v6694 = vpack.c.b16 %v4970, %v4966
    %v6695 = vpack.c.b16 %v4971, %v4967
    %v6696 = vpack.c.b16 %v4972, %v4968
    %v6697 = vpack.c.b16 %v4973, %v4969
    %v6698 = vpack.c.b16 %v4978, %v4974
    %v6699 = vpack.c.b16 %v4979, %v4975
    %v6700 = vpack.c.b16 %v4980, %v4976
    %v6701 = vpack.c.b16 %v4981, %v4977
    %v6702 = vpack.c.b16 %v4986, %v4982
    %v6703 = vpack.c.b16 %v4987, %v4983
    %v6704 = vpack.c.b16 %v4988, %v4984
    %v6705 = vpack.c.b16 %v4989, %v4985
    %v6706 = vpack.c.b16 %v4994, %v4990
    %v6707 = vpack.c.b16 %v4995, %v4991
    %v6708 = vpack.c.b16 %v4996, %v4992
    %v6709 = vpack.c.b16 %v4997, %v4993
    %v6710 = vpack.c.b16 %v5002, %v4998
    %v6711 = vpack.c.b16 %v5003, %v4999
    %v6712 = vpack.c.b16 %v5004, %v5000
    %v6713 = vpack.c.b16 %v5005, %v5001
    %v6714 = vpack.c.b16 %v5010, %v5006
    %v6715 = vpack.c.b16 %v5011, %v5007
    %v6716 = vpack.c.b16 %v5012, %v5008
    %v6717 = vpack.c.b16 %v5013, %v5009
    %v6718 = vpack.c.b16 %v5018, %v5014
    %v6719 = vpack.c.b16 %v5019, %v5015
    %v6720 = vpack.c.b16 %v5020, %v5016
    %v6721 = vpack.c.b16 %v5021, %v5017
    %v6722 = vpack.c.b16 %v5026, %v5022
    %v6723 = vpack.c.b16 %v5027, %v5023
    %v6724 = vpack.c.b16 %v5028, %v5024
    %v6725 = vpack.c.b16 %v5029, %v5025
    %v6726 = vpack.c.b16 %v5034, %v5030
    %v6727 = vpack.c.b16 %v5035, %v5031
    %v6728 = vpack.c.b16 %v5036, %v5032
    %v6729 = vpack.c.b16 %v5037, %v5033
    %v6730 = vpack.c.b16 %v5042, %v5038
    %v6731 = vpack.c.b16 %v5043, %v5039
    %v6732 = vpack.c.b16 %v5044, %v5040
    %v6733 = vpack.c.b16 %v5045, %v5041
    %v6734 = vpack.c.b16 %v5050, %v5046
    %v6735 = vpack.c.b16 %v5051, %v5047
    %v6736 = vpack.c.b16 %v5052, %v5048
    %v6737 = vpack.c.b16 %v5053, %v5049
    %v6738 = vpack.c.b16 %v5058, %v5054
    %v6739 = vpack.c.b16 %v5059, %v5055
    %v6740 = vpack.c.b16 %v5060, %v5056
    %v6741 = vpack.c.b16 %v5061, %v5057
    %v6742 = vpack.c.b16 %v5066, %v5062
    %v6743 = vpack.c.b16 %v5067, %v5063
    %v6744 = vpack.c.b16 %v5068, %v5064
    %v6745 = vpack.c.b16 %v5069, %v5065
    %v6746 = vpack.c.b16 %v5074, %v5070
    %v6747 = vpack.c.b16 %v5075, %v5071
    %v6748 = vpack.c.b16 %v5076, %v5072
    %v6749 = vpack.c.b16 %v5077, %v5073
    %v6750 = vpack.c.b16 %v5082, %v5078
    %v6751 = vpack.c.b16 %v5083, %v5079
    %v6752 = vpack.c.b16 %v5084, %v5080
    %v6753 = vpack.c.b16 %v5085, %v5081
    %v6754 = vpack.c.b16 %v5090, %v5086
    %v6755 = vpack.c.b16 %v5091, %v5087
    %v6756 = vpack.c.b16 %v5092, %v5088
    %v6757 = vpack.c.b16 %v5093, %v5089
    %v6758 = vpack.c.b16 %v5098, %v5094
    %v6759 = vpack.c.b16 %v5099, %v5095
    %v6760 = vpack.c.b16 %v5100, %v5096
    %v6761 = vpack.c.b16 %v5101, %v5097
    %v6762 = vpack.c.b16 %v5106, %v5102
    %v6763 = vpack.c.b16 %v5107, %v5103
    %v6764 = vpack.c.b16 %v5108, %v5104
    %v6765 = vpack.c.b16 %v5109, %v5105
    %v6766 = vpack.c.b16 %v5114, %v5110
    %v6767 = vpack.c.b16 %v5115, %v5111
    %v6768 = vpack.c.b16 %v5116, %v5112
    %v6769 = vpack.c.b16 %v5117, %v5113
    %v6770 = vpack.c.b16 %v5122, %v5118
    %v6771 = vpack.c.b16 %v5123, %v5119
    %v6772 = vpack.c.b16 %v5124, %v5120
    %v6773 = vpack.c.b16 %v5125, %v5121
    %v6774 = vpack.c.b16 %v5130, %v5126
    %v6775 = vpack.c.b16 %v5131, %v5127
    %v6776 = vpack.c.b16 %v5132, %v5128
    %v6777 = vpack.c.b16 %v5133, %v5129
    %v6778 = vpack.c.b16 %v5138, %v5134
    %v6779 = vpack.c.b16 %v5139, %v5135
    %v6780 = vpack.c.b16 %v5140, %v5136
    %v6781 = vpack.c.b16 %v5141, %v5137
    %v6782 = vpack.c.b16 %v5146, %v5142
    %v6783 = vpack.c.b16 %v5147, %v5143
    %v6784 = vpack.c.b16 %v5148, %v5144
    %v6785 = vpack.c.b16 %v5149, %v5145
    %v6786 = vpack.c.b16 %v5154, %v5150
    %v6787 = vpack.c.b16 %v5155, %v5151
    %v6788 = vpack.c.b16 %v5156, %v5152
    %v6789 = vpack.c.b16 %v5157, %v5153
    %v6790 = vpack.c.b16 %v5162, %v5158
    %v6791 = vpack.c.b16 %v5163, %v5159
    %v6792 = vpack.c.b16 %v5164, %v5160
    %v6793 = vpack.c.b16 %v5165, %v5161
    %v6794 = vpack.c.b16 %v5170, %v5166
    %v6795 = vpack.c.b16 %v5171, %v5167
    %v6796 = vpack.c.b16 %v5172, %v5168
    %v6797 = vpack.c.b16 %v5173, %v5169
    %v6798 = vpack.c.b16 %v5178, %v5174
    %v6799 = vpack.c.b16 %v5179, %v5175
    %v6800 = vpack.c.b16 %v5180, %v5176
    %v6801 = vpack.c.b16 %v5181, %v5177
    %v6802 = vpack.c.b16 %v5186, %v5182
    %v6803 = vpack.c.b16 %v5187, %v5183
    %v6804 = vpack.c.b16 %v5188, %v5184
    %v6805 = vpack.c.b16 %v5189, %v5185
    %v6806 = vpack.c.b16 %v5194, %v5190
    %v6807 = vpack.c.b16 %v5195, %v5191
    %v6808 = vpack.c.b16 %v5196, %v5192
    %v6809 = vpack.c.b16 %v5197, %v5193
    %v6810 = vpack.c.b16 %v5202, %v5198
    %v6811 = vpack.c.b16 %v5203, %v5199
    %v6812 = vpack.c.b16 %v5204, %v5200
    %v6813 = vpack.c.b16 %v5205, %v5201
    %v6814 = vpack.c.b16 %v5210, %v5206
    %v6815 = vpack.c.b16 %v5211, %v5207
    %v6816 = vpack.c.b16 %v5212, %v5208
    %v6817 = vpack.c.b16 %v5213, %v5209
    %v6818 = vpack.c.b16 %v5218, %v5214
    %v6819 = vpack.c.b16 %v5219, %v5215
    %v6820 = vpack.c.b16 %v5220, %v5216
    %v6821 = vpack.c.b16 %v5221, %v5217
    %v6822 = vpack.c.b16 %v5226, %v5222
    %v6823 = vpack.c.b16 %v5227, %v5223
    %v6824 = vpack.c.b16 %v5228, %v5224
    %v6825 = vpack.c.b16 %v5229, %v5225
    %v6826 = vpack.c.b16 %v5234, %v5230
    %v6827 = vpack.c.b16 %v5235, %v5231
    %v6828 = vpack.c.b16 %v5236, %v5232
    %v6829 = vpack.c.b16 %v5237, %v5233
    %v6830 = vpack.c.b16 %v5242, %v5238
    %v6831 = vpack.c.b16 %v5243, %v5239
    %v6832 = vpack.c.b16 %v5244, %v5240
    %v6833 = vpack.c.b16 %v5245, %v5241
    %v6834 = vpack.c.b16 %v5250, %v5246
    %v6835 = vpack.c.b16 %v5251, %v5247
    %v6836 = vpack.c.b16 %v5252, %v5248
    %v6837 = vpack.c.b16 %v5253, %v5249
    %v6838 = vpack.c.b16 %v5258, %v5254
    %v6839 = vpack.c.b16 %v5259, %v5255
    %v6840 = vpack.c.b16 %v5260, %v5256
    %v6841 = vpack.c.b16 %v5261, %v5257
    %v6842 = vpack.c.b16 %v5266, %v5262
    %v6843 = vpack.c.b16 %v5267, %v5263
    %v6844 = vpack.c.b16 %v5268, %v5264
    %v6845 = vpack.c.b16 %v5269, %v5265
    %v6846 = vpack.c.b16 %v5274, %v5270
    %v6847 = vpack.c.b16 %v5275, %v5271
    %v6848 = vpack.c.b16 %v5276, %v5272
    %v6849 = vpack.c.b16 %v5277, %v5273
    %v6850 = vpack.c.b16 %v5282, %v5278
    %v6851 = vpack.c.b16 %v5283, %v5279
    %v6852 = vpack.c.b16 %v5284, %v5280
    %v6853 = vpack.c.b16 %v5285, %v5281
    %v6854 = vpack.c.b16 %v5290, %v5286
    %v6855 = vpack.c.b16 %v5291, %v5287
    %v6856 = vpack.c.b16 %v5292, %v5288
    %v6857 = vpack.c.b16 %v5293, %v5289
    %v6858 = vpack.c.b16 %v5298, %v5294
    %v6859 = vpack.c.b16 %v5299, %v5295
    %v6860 = vpack.c.b16 %v5300, %v5296
    %v6861 = vpack.c.b16 %v5301, %v5297
    %v6862 = vpack.c.b16 %v5306, %v5302
    %v6863 = vpack.c.b16 %v5307, %v5303
    %v6864 = vpack.c.b16 %v5308, %v5304
    %v6865 = vpack.c.b16 %v5309, %v5305
    %v6866 = vpack.c.b16 %v5314, %v5310
    %v6867 = vpack.c.b16 %v5315, %v5311
    %v6868 = vpack.c.b16 %v5316, %v5312
    %v6869 = vpack.c.b16 %v5317, %v5313
    %v6870 = vpack.c.b16 %v5322, %v5318
    %v6871 = vpack.c.b16 %v5323, %v5319
    %v6872 = vpack.c.b16 %v5324, %v5320
    %v6873 = vpack.c.b16 %v5325, %v5321
    %v6874 = vpack.c.b16 %v5330, %v5326
    %v6875 = vpack.c.b16 %v5331, %v5327
    %v6876 = vpack.c.b16 %v5332, %v5328
    %v6877 = vpack.c.b16 %v5333, %v5329
    %v6878 = vpack.c.b16 %v5338, %v5334
    %v6879 = vpack.c.b16 %v5339, %v5335
    %v6880 = vpack.c.b16 %v5340, %v5336
    %v6881 = vpack.c.b16 %v5341, %v5337
    %v6882 = vpack.c.b16 %v5346, %v5342
    %v6883 = vpack.c.b16 %v5347, %v5343
    %v6884 = vpack.c.b16 %v5348, %v5344
    %v6885 = vpack.c.b16 %v5349, %v5345
    %v6886 = vpack.c.b16 %v5354, %v5350
    %v6887 = vpack.c.b16 %v5355, %v5351
    %v6888 = vpack.c.b16 %v5356, %v5352
    %v6889 = vpack.c.b16 %v5357, %v5353
    %v6890 = vpack.c.b16 %v5362, %v5358
    %v6891 = vpack.c.b16 %v5363, %v5359
    %v6892 = vpack.c.b16 %v5364, %v5360
    %v6893 = vpack.c.b16 %v5365, %v5361
    %v6894 = vpack.c.b16 %v5370, %v5366
    %v6895 = vpack.c.b16 %v5371, %v5367
    %v6896 = vpack.c.b16 %v5372, %v5368
    %v6897 = vpack.c.b16 %v5373, %v5369
    %v6898 = vpack.c.b16 %v5378, %v5374
    %v6899 = vpack.c.b16 %v5379, %v5375
    %v6900 = vpack.c.b16 %v5380, %v5376
    %v6901 = vpack.c.b16 %v5381, %v5377
    %v6902 = vpack.c.b16 %v5386, %v5382
    %v6903 = vpack.c.b16 %v5387, %v5383
    %v6904 = vpack.c.b16 %v5388, %v5384
    %v6905 = vpack.c.b16 %v5389, %v5385
    %v6906 = vpack.c.b16 %v5394, %v5390
    %v6907 = vpack.c.b16 %v5395, %v5391
    %v6908 = vpack.c.b16 %v5396, %v5392
    %v6909 = vpack.c.b16 %v5397, %v5393
    %v6910 = vpack.c.b16 %v5402, %v5398
    %v6911 = vpack.c.b16 %v5403, %v5399
    %v6912 = vpack.c.b16 %v5404, %v5400
    %v6913 = vpack.c.b16 %v5405, %v5401
    %v6914 = vpack.c.b16 %v5410, %v5406
    %v6915 = vpack.c.b16 %v5411, %v5407
    %v6916 = vpack.c.b16 %v5412, %v5408
    %v6917 = vpack.c.b16 %v5413, %v5409
    %v6918 = vpack.c.b16 %v5418, %v5414
    %v6919 = vpack.c.b16 %v5419, %v5415
    %v6920 = vpack.c.b16 %v5420, %v5416
    %v6921 = vpack.c.b16 %v5421, %v5417
    %v6922 = vpack.c.b16 %v5426, %v5422
    %v6923 = vpack.c.b16 %v5427, %v5423
    %v6924 = vpack.c.b16 %v5428, %v5424
    %v6925 = vpack.c.b16 %v5429, %v5425
    %v6926 = vpack.c.b16 %v5434, %v5430
    %v6927 = vpack.c.b16 %v5435, %v5431
    %v6928 = vpack.c.b16 %v5436, %v5432
    %v6929 = vpack.c.b16 %v5437, %v5433
    %v6930 = vpack.c.b16 %v5442, %v5438
    %v6931 = vpack.c.b16 %v5443, %v5439
    %v6932 = vpack.c.b16 %v5444, %v5440
    %v6933 = vpack.c.b16 %v5445, %v5441
    %v6934 = vpack.c.b16 %v5450, %v5446
    %v6935 = vpack.c.b16 %v5451, %v5447
    %v6936 = vpack.c.b16 %v5452, %v5448
    %v6937 = vpack.c.b16 %v5453, %v5449
    %v6938 = vpack.c.b16 %v5458, %v5454
    %v6939 = vpack.c.b16 %v5459, %v5455
    %v6940 = vpack.c.b16 %v5460, %v5456
    %v6941 = vpack.c.b16 %v5461, %v5457
    %v6942 = vpack.c.b16 %v5466, %v5462
    %v6943 = vpack.c.b16 %v5467, %v5463
    %v6944 = vpack.c.b16 %v5468, %v5464
    %v6945 = vpack.c.b16 %v5469, %v5465
    %v6946 = vpack.c.b16 %v5474, %v5470
    %v6947 = vpack.c.b16 %v5475, %v5471
    %v6948 = vpack.c.b16 %v5476, %v5472
    %v6949 = vpack.c.b16 %v5477, %v5473
    %v6950 = vpack.c.b16 %v5482, %v5478
    %v6951 = vpack.c.b16 %v5483, %v5479
    %v6952 = vpack.c.b16 %v5484, %v5480
    %v6953 = vpack.c.b16 %v5485, %v5481
    %v6954 = vpack.c.b16 %v5490, %v5486
    %v6955 = vpack.c.b16 %v5491, %v5487
    %v6956 = vpack.c.b16 %v5492, %v5488
    %v6957 = vpack.c.b16 %v5493, %v5489
    %v6958 = vpack.c.b16 %v5498, %v5494
    %v6959 = vpack.c.b16 %v5499, %v5495
    %v6960 = vpack.c.b16 %v5500, %v5496
    %v6961 = vpack.c.b16 %v5501, %v5497
    %v6962 = vpack.c.b16 %v5506, %v5502
    %v6963 = vpack.c.b16 %v5507, %v5503
    %v6964 = vpack.c.b16 %v5508, %v5504
    %v6965 = vpack.c.b16 %v5509, %v5505
    %v6966 = vpack.c.b16 %v5514, %v5510
    %v6967 = vpack.c.b16 %v5515, %v5511
    %v6968 = vpack.c.b16 %v5516, %v5512
    %v6969 = vpack.c.b16 %v5517, %v5513
    %v6970 = vpack.c.b16 %v5522, %v5518
    %v6971 = vpack.c.b16 %v5523, %v5519
    %v6972 = vpack.c.b16 %v5524, %v5520
    %v6973 = vpack.c.b16 %v5525, %v5521
    %v6974 = vpack.c.b16 %v5530, %v5526
    %v6975 = vpack.c.b16 %v5531, %v5527
    %v6976 = vpack.c.b16 %v5532, %v5528
    %v6977 = vpack.c.b16 %v5533, %v5529
    %v6978 = vpack.c.b16 %v5538, %v5534
    %v6979 = vpack.c.b16 %v5539, %v5535
    %v6980 = vpack.c.b16 %v5540, %v5536
    %v6981 = vpack.c.b16 %v5541, %v5537
    %v6982 = vpack.c.b16 %v5546, %v5542
    %v6983 = vpack.c.b16 %v5547, %v5543
    %v6984 = vpack.c.b16 %v5548, %v5544
    %v6985 = vpack.c.b16 %v5549, %v5545
    %v6986 = vpack.c.b16 %v5554, %v5550
    %v6987 = vpack.c.b16 %v5555, %v5551
    %v6988 = vpack.c.b16 %v5556, %v5552
    %v6989 = vpack.c.b16 %v5557, %v5553
    %v6990 = vpack.c.b16 %v5562, %v5558
    %v6991 = vpack.c.b16 %v5563, %v5559
    %v6992 = vpack.c.b16 %v5564, %v5560
    %v6993 = vpack.c.b16 %v5565, %v5561
    %v6994 = vpack.c.b16 %v5570, %v5566
    %v6995 = vpack.c.b16 %v5571, %v5567
    %v6996 = vpack.c.b16 %v5572, %v5568
    %v6997 = vpack.c.b16 %v5573, %v5569
    %v6998 = vpack.c.b16 %v5578, %v5574
    %v6999 = vpack.c.b16 %v5579, %v5575
    %v7000 = vpack.c.b16 %v5580, %v5576
    %v7001 = vpack.c.b16 %v5581, %v5577
    %v7002 = vpack.c.b16 %v5586, %v5582
    %v7003 = vpack.c.b16 %v5587, %v5583
    %v7004 = vpack.c.b16 %v5588, %v5584
    %v7005 = vpack.c.b16 %v5589, %v5585
    %v7006 = vpack.c.b16 %v5594, %v5590
    %v7007 = vpack.c.b16 %v5595, %v5591
    %v7008 = vpack.c.b16 %v5596, %v5592
    %v7009 = vpack.c.b16 %v5597, %v5593
    %v7010 = vpack.c.b16 %v5602, %v5598
    %v7011 = vpack.c.b16 %v5603, %v5599
    %v7012 = vpack.c.b16 %v5604, %v5600
    %v7013 = vpack.c.b16 %v5605, %v5601
    %v7014 = vpack.c.b16 %v5610, %v5606
    %v7015 = vpack.c.b16 %v5611, %v5607
    %v7016 = vpack.c.b16 %v5612, %v5608
    %v7017 = vpack.c.b16 %v5613, %v5609
    %v7018 = vpack.c.b16 %v5618, %v5614
    %v7019 = vpack.c.b16 %v5619, %v5615
    %v7020 = vpack.c.b16 %v5620, %v5616
    %v7021 = vpack.c.b16 %v5621, %v5617
    %v7022 = vpack.c.b16 %v5626, %v5622
    %v7023 = vpack.c.b16 %v5627, %v5623
    %v7024 = vpack.c.b16 %v5628, %v5624
    %v7025 = vpack.c.b16 %v5629, %v5625
    %v7026 = vpack.c.b16 %v5634, %v5630
    %v7027 = vpack.c.b16 %v5635, %v5631
    %v7028 = vpack.c.b16 %v5636, %v5632
    %v7029 = vpack.c.b16 %v5637, %v5633
    %v7030 = vpack.c.b16 %v5642, %v5638
    %v7031 = vpack.c.b16 %v5643, %v5639
    %v7032 = vpack.c.b16 %v5644, %v5640
    %v7033 = vpack.c.b16 %v5645, %v5641
    %v7034 = vpack.c.b16 %v5650, %v5646
    %v7035 = vpack.c.b16 %v5651, %v5647
    %v7036 = vpack.c.b16 %v5652, %v5648
    %v7037 = vpack.c.b16 %v5653, %v5649
    %v7038 = vpack.c.b16 %v5658, %v5654
    %v7039 = vpack.c.b16 %v5659, %v5655
    %v7040 = vpack.c.b16 %v5660, %v5656
    %v7041 = vpack.c.b16 %v5661, %v5657
    %v7042 = vpack.c.b16 %v5666, %v5662
    %v7043 = vpack.c.b16 %v5667, %v5663
    %v7044 = vpack.c.b16 %v5668, %v5664
    %v7045 = vpack.c.b16 %v5669, %v5665
    %v7046 = vpack.c.b16 %v5674, %v5670
    %v7047 = vpack.c.b16 %v5675, %v5671
    %v7048 = vpack.c.b16 %v5676, %v5672
    %v7049 = vpack.c.b16 %v5677, %v5673
    %v7050 = vpack.c.b16 %v5682, %v5678
    %v7051 = vpack.c.b16 %v5683, %v5679
    %v7052 = vpack.c.b16 %v5684, %v5680
    %v7053 = vpack.c.b16 %v5685, %v5681
    %v7054 = vpack.c.b16 %v5690, %v5686
    %v7055 = vpack.c.b16 %v5691, %v5687
    %v7056 = vpack.c.b16 %v5692, %v5688
    %v7057 = vpack.c.b16 %v5693, %v5689
    %v7058 = vpack.c.b16 %v5698, %v5694
    %v7059 = vpack.c.b16 %v5699, %v5695
    %v7060 = vpack.c.b16 %v5700, %v5696
    %v7061 = vpack.c.b16 %v5701, %v5697
    %v7062 = vpack.c.b16 %v5706, %v5702
    %v7063 = vpack.c.b16 %v5707, %v5703
    %v7064 = vpack.c.b16 %v5708, %v5704
    %v7065 = vpack.c.b16 %v5709, %v5705
    %v7066 = vpack.c.b16 %v5714, %v5710
    %v7067 = vpack.c.b16 %v5715, %v5711
    %v7068 = vpack.c.b16 %v5716, %v5712
    %v7069 = vpack.c.b16 %v5717, %v5713
    %v7070 = vpack.c.b16 %v5722, %v5718
    %v7071 = vpack.c.b16 %v5723, %v5719
    %v7072 = vpack.c.b16 %v5724, %v5720
    %v7073 = vpack.c.b16 %v5725, %v5721
    %v7074 = vpack.c.b16 %v5730, %v5726
    %v7075 = vpack.c.b16 %v5731, %v5727
    %v7076 = vpack.c.b16 %v5732, %v5728
    %v7077 = vpack.c.b16 %v5733, %v5729
    %v7078 = vpack.c.b16 %v5738, %v5734
    %v7079 = vpack.c.b16 %v5739, %v5735
    %v7080 = vpack.c.b16 %v5740, %v5736
    %v7081 = vpack.c.b16 %v5741, %v5737
    %v7082 = vpack.c.b16 %v5746, %v5742
    %v7083 = vpack.c.b16 %v5747, %v5743
    %v7084 = vpack.c.b16 %v5748, %v5744
    %v7085 = vpack.c.b16 %v5749, %v5745
    %v7086 = vpack.c.b16 %v5754, %v5750
    %v7087 = vpack.c.b16 %v5755, %v5751
    %v7088 = vpack.c.b16 %v5756, %v5752
    %v7089 = vpack.c.b16 %v5757, %v5753
    %v7090 = vpack.c.b16 %v5762, %v5758
    %v7091 = vpack.c.b16 %v5763, %v5759
    %v7092 = vpack.c.b16 %v5764, %v5760
    %v7093 = vpack.c.b16 %v5765, %v5761
    %v7094 = vpack.c.b16 %v5770, %v5766
    %v7095 = vpack.c.b16 %v5771, %v5767
    %v7096 = vpack.c.b16 %v5772, %v5768
    %v7097 = vpack.c.b16 %v5773, %v5769
    %v7098 = vpack.c.b16 %v5778, %v5774
    %v7099 = vpack.c.b16 %v5779, %v5775
    %v7100 = vpack.c.b16 %v5780, %v5776
    %v7101 = vpack.c.b16 %v5781, %v5777
    %v7102 = vpack.c.b16 %v5786, %v5782
    %v7103 = vpack.c.b16 %v5787, %v5783
    %v7104 = vpack.c.b16 %v5788, %v5784
    %v7105 = vpack.c.b16 %v5789, %v5785
    %v7106 = vpack.c.b16 %v5794, %v5790
    %v7107 = vpack.c.b16 %v5795, %v5791
    %v7108 = vpack.c.b16 %v5796, %v5792
    %v7109 = vpack.c.b16 %v5797, %v5793
    %v7110 = vpack.c.b16 %v5802, %v5798
    %v7111 = vpack.c.b16 %v5803, %v5799
    %v7112 = vpack.c.b16 %v5804, %v5800
    %v7113 = vpack.c.b16 %v5805, %v5801
    %v7114 = vpack.c.b16 %v5810, %v5806
    %v7115 = vpack.c.b16 %v5811, %v5807
    %v7116 = vpack.c.b16 %v5812, %v5808
    %v7117 = vpack.c.b16 %v5813, %v5809
    %v7118 = vpack.c.b16 %v5818, %v5814
    %v7119 = vpack.c.b16 %v5819, %v5815
    %v7120 = vpack.c.b16 %v5820, %v5816
    %v7121 = vpack.c.b16 %v5821, %v5817
    %v7122 = vpack.c.b16 %v5826, %v5822
    %v7123 = vpack.c.b16 %v5827, %v5823
    %v7124 = vpack.c.b16 %v5828, %v5824
    %v7125 = vpack.c.b16 %v5829, %v5825
    %v7126 = vpack.c.b16 %v5834, %v5830
    %v7127 = vpack.c.b16 %v5835, %v5831
    %v7128 = vpack.c.b16 %v5836, %v5832
    %v7129 = vpack.c.b16 %v5837, %v5833
    %v7130 = vpack.c.b16 %v5842, %v5838
    %v7131 = vpack.c.b16 %v5843, %v5839
    %v7132 = vpack.c.b16 %v5844, %v5840
    %v7133 = vpack.c.b16 %v5845, %v5841
    %v7134 = vpack.c.b16 %v5850, %v5846
    %v7135 = vpack.c.b16 %v5851, %v5847
    %v7136 = vpack.c.b16 %v5852, %v5848
    %v7137 = vpack.c.b16 %v5853, %v5849
    %v7138 = vpack.c.b16 %v5858, %v5854
    %v7139 = vpack.c.b16 %v5859, %v5855
    %v7140 = vpack.c.b16 %v5860, %v5856
    %v7141 = vpack.c.b16 %v5861, %v5857
    %v7142 = vpack.c.b16 %v5866, %v5862
    %v7143 = vpack.c.b16 %v5867, %v5863
    %v7144 = vpack.c.b16 %v5868, %v5864
    %v7145 = vpack.c.b16 %v5869, %v5865
    %v7146 = vpack.c.b16 %v5874, %v5870
    %v7147 = vpack.c.b16 %v5875, %v5871
    %v7148 = vpack.c.b16 %v5876, %v5872
    %v7149 = vpack.c.b16 %v5877, %v5873
    %v7150 = vpack.c.b16 %v5882, %v5878
    %v7151 = vpack.c.b16 %v5883, %v5879
    %v7152 = vpack.c.b16 %v5884, %v5880
    %v7153 = vpack.c.b16 %v5885, %v5881
    %v7154 = vpack.c.b16 %v5890, %v5886
    %v7155 = vpack.c.b16 %v5891, %v5887
    %v7156 = vpack.c.b16 %v5892, %v5888
    %v7157 = vpack.c.b16 %v5893, %v5889
    %v7158 = vpack.c.b16 %v5898, %v5894
    %v7159 = vpack.c.b16 %v5899, %v5895
    %v7160 = vpack.c.b16 %v5900, %v5896
    %v7161 = vpack.c.b16 %v5901, %v5897
    %v7162 = vpack.c.b16 %v5906, %v5902
    %v7163 = vpack.c.b16 %v5907, %v5903
    %v7164 = vpack.c.b16 %v5908, %v5904
    %v7165 = vpack.c.b16 %v5909, %v5905
    %v7166 = vpack.c.b16 %v5914, %v5910
    %v7167 = vpack.c.b16 %v5915, %v5911
    %v7168 = vpack.c.b16 %v5916, %v5912
    %v7169 = vpack.c.b16 %v5917, %v5913
    %v7170 = vpack.c.b16 %v5922, %v5918
    %v7171 = vpack.c.b16 %v5923, %v5919
    %v7172 = vpack.c.b16 %v5924, %v5920
    %v7173 = vpack.c.b16 %v5925, %v5921
    %v7174 = vpack.c.b16 %v5930, %v5926
    %v7175 = vpack.c.b16 %v5931, %v5927
    %v7176 = vpack.c.b16 %v5932, %v5928
    %v7177 = vpack.c.b16 %v5933, %v5929
    %v7178 = vpack.c.b16 %v5938, %v5934
    %v7179 = vpack.c.b16 %v5939, %v5935
    %v7180 = vpack.c.b16 %v5940, %v5936
    %v7181 = vpack.c.b16 %v5941, %v5937
    %v7182 = vpack.c.b16 %v5946, %v5942
    %v7183 = vpack.c.b16 %v5947, %v5943
    %v7184 = vpack.c.b16 %v5948, %v5944
    %v7185 = vpack.c.b16 %v5949, %v5945
    %v7186 = vpack.c.b16 %v5954, %v5950
    %v7187 = vpack.c.b16 %v5955, %v5951
    %v7188 = vpack.c.b16 %v5956, %v5952
    %v7189 = vpack.c.b16 %v5957, %v5953
    %v7190 = vpack.c.b16 %v5962, %v5958
    %v7191 = vpack.c.b16 %v5963, %v5959
    %v7192 = vpack.c.b16 %v5964, %v5960
    %v7193 = vpack.c.b16 %v5965, %v5961
    %v7194 = vpack.c.b16 %v5970, %v5966
    %v7195 = vpack.c.b16 %v5971, %v5967
    %v7196 = vpack.c.b16 %v5972, %v5968
    %v7197 = vpack.c.b16 %v5973, %v5969
    %v7198 = vpack.c.b16 %v5978, %v5974
    %v7199 = vpack.c.b16 %v5979, %v5975
    %v7200 = vpack.c.b16 %v5980, %v5976
    %v7201 = vpack.c.b16 %v5981, %v5977
    %v7202 = vpack.c.b16 %v5986, %v5982
    %v7203 = vpack.c.b16 %v5987, %v5983
    %v7204 = vpack.c.b16 %v5988, %v5984
    %v7205 = vpack.c.b16 %v5989, %v5985
    %v7206 = vpack.c.b16 %v5994, %v5990
    %v7207 = vpack.c.b16 %v5995, %v5991
    %v7208 = vpack.c.b16 %v5996, %v5992
    %v7209 = vpack.c.b16 %v5997, %v5993
    %v7210 = vpack.c.b16 %v6002, %v5998
    %v7211 = vpack.c.b16 %v6003, %v5999
    %v7212 = vpack.c.b16 %v6004, %v6000
    %v7213 = vpack.c.b16 %v6005, %v6001
    %v7214 = vpack.c.b16 %v6010, %v6006
    %v7215 = vpack.c.b16 %v6011, %v6007
    %v7216 = vpack.c.b16 %v6012, %v6008
    %v7217 = vpack.c.b16 %v6013, %v6009
    %v7218 = vpack.c.b16 %v6018, %v6014
    %v7219 = vpack.c.b16 %v6019, %v6015
    %v7220 = vpack.c.b16 %v6020, %v6016
    %v7221 = vpack.c.b16 %v6021, %v6017
    %v7222 = vpack.c.b16 %v6026, %v6022
    %v7223 = vpack.c.b16 %v6027, %v6023
    %v7224 = vpack.c.b16 %v6028, %v6024
    %v7225 = vpack.c.b16 %v6029, %v6025
    %v7226 = vpack.c.b16 %v6034, %v6030
    %v7227 = vpack.c.b16 %v6035, %v6031
    %v7228 = vpack.c.b16 %v6036, %v6032
    %v7229 = vpack.c.b16 %v6037, %v6033
    %v7230 = vpack.c.b16 %v6042, %v6038
    %v7231 = vpack.c.b16 %v6043, %v6039
    %v7232 = vpack.c.b16 %v6044, %v6040
    %v7233 = vpack.c.b16 %v6045, %v6041
    %v7234 = vpack.c.b16 %v6050, %v6046
    %v7235 = vpack.c.b16 %v6051, %v6047
    %v7236 = vpack.c.b16 %v6052, %v6048
    %v7237 = vpack.c.b16 %v6053, %v6049
    %v7238 = vpack.c.b16 %v6058, %v6054
    %v7239 = vpack.c.b16 %v6059, %v6055
    %v7240 = vpack.c.b16 %v6060, %v6056
    %v7241 = vpack.c.b16 %v6061, %v6057
    %v7242 = vpack.c.b16 %v6066, %v6062
    %v7243 = vpack.c.b16 %v6067, %v6063
    %v7244 = vpack.c.b16 %v6068, %v6064
    %v7245 = vpack.c.b16 %v6069, %v6065
    %v7246 = vpack.c.b16 %v6074, %v6070
    %v7247 = vpack.c.b16 %v6075, %v6071
    %v7248 = vpack.c.b16 %v6076, %v6072
    %v7249 = vpack.c.b16 %v6077, %v6073
    %v7250 = vpack.c.b16 %v6082, %v6078
    %v7251 = vpack.c.b16 %v6083, %v6079
    %v7252 = vpack.c.b16 %v6084, %v6080
    %v7253 = vpack.c.b16 %v6085, %v6081
    %v7254 = vpack.c.b16 %v6090, %v6086
    %v7255 = vpack.c.b16 %v6091, %v6087
    %v7256 = vpack.c.b16 %v6092, %v6088
    %v7257 = vpack.c.b16 %v6093, %v6089
    %v7258 = vpack.c.b16 %v6098, %v6094
    %v7259 = vpack.c.b16 %v6099, %v6095
    %v7260 = vpack.c.b16 %v6100, %v6096
    %v7261 = vpack.c.b16 %v6101, %v6097
    %v7262 = vpack.c.b16 %v6106, %v6102
    %v7263 = vpack.c.b16 %v6107, %v6103
    %v7264 = vpack.c.b16 %v6108, %v6104
    %v7265 = vpack.c.b16 %v6109, %v6105
    %v7266 = vpack.c.b16 %v6114, %v6110
    %v7267 = vpack.c.b16 %v6115, %v6111
    %v7268 = vpack.c.b16 %v6116, %v6112
    %v7269 = vpack.c.b16 %v6117, %v6113
    %v7270 = vpack.c.b16 %v6122, %v6118
    %v7271 = vpack.c.b16 %v6123, %v6119
    %v7272 = vpack.c.b16 %v6124, %v6120
    %v7273 = vpack.c.b16 %v6125, %v6121
    %v7274 = vpack.c.b16 %v6130, %v6126
    %v7275 = vpack.c.b16 %v6131, %v6127
    %v7276 = vpack.c.b16 %v6132, %v6128
    %v7277 = vpack.c.b16 %v6133, %v6129
    %v7278 = vpack.c.b16 %v6138, %v6134
    %v7279 = vpack.c.b16 %v6139, %v6135
    %v7280 = vpack.c.b16 %v6140, %v6136
    %v7281 = vpack.c.b16 %v6141, %v6137
    %v7282 = vpack.c.b16 %v6146, %v6142
    %v7283 = vpack.c.b16 %v6147, %v6143
    %v7284 = vpack.c.b16 %v6148, %v6144
    %v7285 = vpack.c.b16 %v6149, %v6145
    %v7286 = vpack.c.b16 %v6154, %v6150
    %v7287 = vpack.c.b16 %v6155, %v6151
    %v7288 = vpack.c.b16 %v6156, %v6152
    %v7289 = vpack.c.b16 %v6157, %v6153
    %v7290 = vpack.c.b16 %v6162, %v6158
    %v7291 = vpack.c.b16 %v6163, %v6159
    %v7292 = vpack.c.b16 %v6164, %v6160
    %v7293 = vpack.c.b16 %v6165, %v6161
    %v7294 = vpack.c.b16 %v6170, %v6166
    %v7295 = vpack.c.b16 %v6171, %v6167
    %v7296 = vpack.c.b16 %v6172, %v6168
    %v7297 = vpack.c.b16 %v6173, %v6169
    %v7298 = vpack.c.b16 %v6178, %v6174
    %v7299 = vpack.c.b16 %v6179, %v6175
    %v7300 = vpack.c.b16 %v6180, %v6176
    %v7301 = vpack.c.b16 %v6181, %v6177
    %v7302 = vpack.c.b16 %v6186, %v6182
    %v7303 = vpack.c.b16 %v6187, %v6183
    %v7304 = vpack.c.b16 %v6188, %v6184
    %v7305 = vpack.c.b16 %v6189, %v6185
    %v7306 = vpack.c.b16 %v6194, %v6190
    %v7307 = vpack.c.b16 %v6195, %v6191
    %v7308 = vpack.c.b16 %v6196, %v6192
    %v7309 = vpack.c.b16 %v6197, %v6193
    %v7310 = vpack.c.b16 %v6202, %v6198
    %v7311 = vpack.c.b16 %v6203, %v6199
    %v7312 = vpack.c.b16 %v6204, %v6200
    %v7313 = vpack.c.b16 %v6205, %v6201
    %v7314 = vpack.c.b16 %v6210, %v6206
    %v7315 = vpack.c.b16 %v6211, %v6207
    %v7316 = vpack.c.b16 %v6212, %v6208
    %v7317 = vpack.c.b16 %v6213, %v6209
    %v7318 = vpack.c.b16 %v6218, %v6214
    %v7319 = vpack.c.b16 %v6219, %v6215
    %v7320 = vpack.c.b16 %v6220, %v6216
    %v7321 = vpack.c.b16 %v6221, %v6217
    %v7322 = vpack.c.b16 %v6226, %v6222
    %v7323 = vpack.c.b16 %v6227, %v6223
    %v7324 = vpack.c.b16 %v6228, %v6224
    %v7325 = vpack.c.b16 %v6229, %v6225
    %v7326 = vpack.c.b16 %v6234, %v6230
    %v7327 = vpack.c.b16 %v6235, %v6231
    %v7328 = vpack.c.b16 %v6236, %v6232
    %v7329 = vpack.c.b16 %v6237, %v6233
    %v7330 = vpack.c.b16 %v6242, %v6238
    %v7331 = vpack.c.b16 %v6243, %v6239
    %v7332 = vpack.c.b16 %v6244, %v6240
    %v7333 = vpack.c.b16 %v6245, %v6241
    %v7334 = vpack.c.b16 %v6250, %v6246
    %v7335 = vpack.c.b16 %v6251, %v6247
    %v7336 = vpack.c.b16 %v6252, %v6248
    %v7337 = vpack.c.b16 %v6253, %v6249
    %v7338 = vpack.c.b16 %v6258, %v6254
    %v7339 = vpack.c.b16 %v6259, %v6255
    %v7340 = vpack.c.b16 %v6260, %v6256
    %v7341 = vpack.c.b16 %v6261, %v6257
    %v7342 = vpack.c.b16 %v6266, %v6262
    %v7343 = vpack.c.b16 %v6267, %v6263
    %v7344 = vpack.c.b16 %v6268, %v6264
    %v7345 = vpack.c.b16 %v6269, %v6265
    %v7346 = vpack.c.b16 %v6274, %v6270
    %v7347 = vpack.c.b16 %v6275, %v6271
    %v7348 = vpack.c.b16 %v6276, %v6272
    %v7349 = vpack.c.b16 %v6277, %v6273
    %v7350 = vpack.c.b16 %v6282, %v6278
    %v7351 = vpack.c.b16 %v6283, %v6279
    %v7352 = vpack.c.b16 %v6284, %v6280
    %v7353 = vpack.c.b16 %v6285, %v6281
    %v7354 = vpack.c.b16 %v6290, %v6286
    %v7355 = vpack.c.b16 %v6291, %v6287
    %v7356 = vpack.c.b16 %v6292, %v6288
    %v7357 = vpack.c.b16 %v6293, %v6289
    %v7358 = vpack.c.b16 %v6298, %v6294
    %v7359 = vpack.c.b16 %v6299, %v6295
    %v7360 = vpack.c.b16 %v6300, %v6296
    %v7361 = vpack.c.b16 %v6301, %v6297
    %v7362 = vpack.c.b16 %v6306, %v6302
    %v7363 = vpack.c.b16 %v6307, %v6303
    %v7364 = vpack.c.b16 %v6308, %v6304
    %v7365 = vpack.c.b16 %v6309, %v6305
    %v7366 = vpack.c.b16 %v6314, %v6310
    %v7367 = vpack.c.b16 %v6315, %v6311
    %v7368 = vpack.c.b16 %v6316, %v6312
    %v7369 = vpack.c.b16 %v6317, %v6313
    %v7370 = vpack.c.b16 %v6322, %v6318
    %v7371 = vpack.c.b16 %v6323, %v6319
    %v7372 = vpack.c.b16 %v6324, %v6320
    %v7373 = vpack.c.b16 %v6325, %v6321
    %v7374 = vpack.c.b16 %v6330, %v6326
    %v7375 = vpack.c.b16 %v6331, %v6327
    %v7376 = vpack.c.b16 %v6332, %v6328
    %v7377 = vpack.c.b16 %v6333, %v6329
    %v7378 = vpack.c.b16 %v6338, %v6334
    %v7379 = vpack.c.b16 %v6339, %v6335
    %v7380 = vpack.c.b16 %v6340, %v6336
    %v7381 = vpack.c.b16 %v6341, %v6337
    %v7382 = vpack.c.b16 %v6346, %v6342
    %v7383 = vpack.c.b16 %v6347, %v6343
    %v7384 = vpack.c.b16 %v6348, %v6344
    %v7385 = vpack.c.b16 %v6349, %v6345
    %v7386 = vpack.c.b16 %v6354, %v6350
    %v7387 = vpack.c.b16 %v6355, %v6351
    %v7388 = vpack.c.b16 %v6356, %v6352
    %v7389 = vpack.c.b16 %v6357, %v6353
    %v7390 = vpack.c.b16 %v6362, %v6358
    %v7391 = vpack.c.b16 %v6363, %v6359
    %v7392 = vpack.c.b16 %v6364, %v6360
    %v7393 = vpack.c.b16 %v6365, %v6361
    %v7394 = vpack.c.b16 %v6370, %v6366
    %v7395 = vpack.c.b16 %v6371, %v6367
    %v7396 = vpack.c.b16 %v6372, %v6368
    %v7397 = vpack.c.b16 %v6373, %v6369
    %8422 = vmatprep.subr.bf16.mxu0 %v6375
    %8423 = vmatpush1.bf16.msra.mxu0 %v6374
    %8424 = vmatprep.subr.bf16.mxu0 %v6379
    %8425 = vmatpush1.bf16.msra.mxu0 %v6378
    %8426 = vmatprep.subr.bf16.mxu0 %v6383
    %8427 = vmatpush1.bf16.msra.mxu0 %v6382
    %8428 = vmatprep.subr.bf16.mxu0 %v6387
    %8429 = vmatpush1.bf16.msra.mxu0 %v6386
    %8430 = vmatprep.subr.bf16.mxu0 %v6391
    %8431 = vmatpush1.bf16.msra.mxu0 %v6390
    %8432 = vmatprep.subr.bf16.mxu0 %v6395
    %8433 = vmatpush1.bf16.msra.mxu0 %v6394
    %8434 = vmatprep.subr.bf16.mxu0 %v6399
    %8435 = vmatpush1.bf16.msra.mxu0 %v6398
    %8436 = vmatprep.subr.bf16.mxu0 %v6403
    %8437 = vmatpush1.bf16.msra.mxu0 %v6402
    %8438 = vmatprep.subr.bf16.mxu0 %v6407
    %8439 = vmatpush1.bf16.msra.mxu0 %v6406
    %8440 = vmatprep.subr.bf16.mxu0 %v6411
    %8441 = vmatpush1.bf16.msra.mxu0 %v6410
    %8442 = vmatprep.subr.bf16.mxu0 %v6415
    %8443 = vmatpush1.bf16.msra.mxu0 %v6414
    %8444 = vmatprep.subr.bf16.mxu0 %v6419
    %8445 = vmatpush1.bf16.msra.mxu0 %v6418
    %8446 = vmatprep.subr.bf16.mxu0 %v6423
    %8447 = vmatpush1.bf16.msra.mxu0 %v6422
    %8448 = vmatprep.subr.bf16.mxu0 %v6427
    %8449 = vmatpush1.bf16.msra.mxu0 %v6426
    %8450 = vmatprep.subr.bf16.mxu0 %v6431
    %8451 = vmatpush1.bf16.msra.mxu0 %v6430
    %8452 = vmatprep.subr.bf16.mxu0 %v6435
    %8453 = vmatpush1.bf16.msra.mxu0 %v6434
    %8454 = vmatprep.mubr.bf16.mxu0 %v2225
    %8455 = vmatmul.mubr.bf16.gmra.mrb[0].mxu0 %v2224
    %v8456 = vpop.f32.mrb[0].mxu0
    %v8457 = vadd.f32 %v3285, %v8456
    %v8458 = vpop.f32.mrb[0].mxu0
    %v8459 = vadd.f32 %v3289, %v8458
    %v8460 = vpop.f32.mrb[0].mxu0
    %v8461 = vpop.f32.mrb[0].mxu0
    %8462 = vdwg.mxu0
    %8463 = vmatprep.subr.bf16.mxu0 %v6439
    %8464 = vmatpush1.bf16.msra.mxu0 %v6438
    %8465 = vmatprep.subr.bf16.mxu0 %v6443
    %8466 = vmatpush1.bf16.msra.mxu0 %v6442
    %8467 = vmatprep.subr.bf16.mxu0 %v6447
    %8468 = vmatpush1.bf16.msra.mxu0 %v6446
    %8469 = vmatprep.subr.bf16.mxu0 %v6451
    %8470 = vmatpush1.bf16.msra.mxu0 %v6450
    %8471 = vmatprep.subr.bf16.mxu0 %v6455
    %8472 = vmatpush1.bf16.msra.mxu0 %v6454
    %8473 = vmatprep.subr.bf16.mxu0 %v6459
    %8474 = vmatpush1.bf16.msra.mxu0 %v6458
    %8475 = vmatprep.subr.bf16.mxu0 %v6463
    %8476 = vmatpush1.bf16.msra.mxu0 %v6462
    %8477 = vmatprep.subr.bf16.mxu0 %v6467
    %8478 = vmatpush1.bf16.msra.mxu0 %v6466
    %8479 = vmatprep.subr.bf16.mxu0 %v6471
    %8480 = vmatpush1.bf16.msra.mxu0 %v6470
    %8481 = vmatprep.subr.bf16.mxu0 %v6475
    %8482 = vmatpush1.bf16.msra.mxu0 %v6474
    %8483 = vmatprep.subr.bf16.mxu0 %v6479
    %8484 = vmatpush1.bf16.msra.mxu0 %v6478
    %8485 = vmatprep.subr.bf16.mxu0 %v6483
    %8486 = vmatpush1.bf16.msra.mxu0 %v6482
    %8487 = vmatprep.subr.bf16.mxu0 %v6487
    %8488 = vmatpush1.bf16.msra.mxu0 %v6486
    %8489 = vmatprep.subr.bf16.mxu0 %v6491
    %8490 = vmatpush1.bf16.msra.mxu0 %v6490
    %8491 = vmatprep.subr.bf16.mxu0 %v6495
    %8492 = vmatpush1.bf16.msra.mxu0 %v6494
    %8493 = vmatprep.subr.bf16.mxu0 %v6499
    %8494 = vmatpush1.bf16.msra.mxu0 %v6498
    %8495 = vmatprep.mubr.bf16.mxu0 %v2227
    %8496 = vmatmul.mubr.bf16.gmra.mrb[0].mxu0 %v2226
    %v8497 = vpop.f32.mrb[0].mxu0
    %v8498 = vadd.f32 %v8457, %v8497
    %v8499 = vpop.f32.mrb[0].mxu0
    %v8500 = vadd.f32 %v8459, %v8499
    %v8501 = vpop.f32.mrb[0].mxu0
    %v8502 = vpop.f32.mrb[0].mxu0
    %8503 = vdwg.mxu0
    %8504 = vmatprep.subr.bf16.mxu0 %v6503
    %8505 = vmatpush1.bf16.msra.mxu0 %v6502
    %8506 = vmatprep.subr.bf16.mxu0 %v6507
    %8507 = vmatpush1.bf16.msra.mxu0 %v6506
    %8508 = vmatprep.subr.bf16.mxu0 %v6511
    %8509 = vmatpush1.bf16.msra.mxu0 %v6510
    %8510 = vmatprep.subr.bf16.mxu0 %v6515
    %8511 = vmatpush1.bf16.msra.mxu0 %v6514
    %8512 = vmatprep.subr.bf16.mxu0 %v6519
    %8513 = vmatpush1.bf16.msra.mxu0 %v6518
    %8514 = vmatprep.subr.bf16.mxu0 %v6523
    %8515 = vmatpush1.bf16.msra.mxu0 %v6522
    %8516 = vmatprep.subr.bf16.mxu0 %v6527
    %8517 = vmatpush1.bf16.msra.mxu0 %v6526
    %8518 = vmatprep.subr.bf16.mxu0 %v6531
    %8519 = vmatpush1.bf16.msra.mxu0 %v6530
    %8520 = vmatprep.subr.bf16.mxu0 %v6535
    %8521 = vmatpush1.bf16.msra.mxu0 %v6534
    %8522 = vmatprep.subr.bf16.mxu0 %v6539
    %8523 = vmatpush1.bf16.msra.mxu0 %v6538
    %8524 = vmatprep.subr.bf16.mxu0 %v6543
    %8525 = vmatpush1.bf16.msra.mxu0 %v6542
    %8526 = vmatprep.subr.bf16.mxu0 %v6547
    %8527 = vmatpush1.bf16.msra.mxu0 %v6546
    %8528 = vmatprep.subr.bf16.mxu0 %v6551
    %8529 = vmatpush1.bf16.msra.mxu0 %v6550
    %8530 = vmatprep.subr.bf16.mxu0 %v6555
    %8531 = vmatpush1.bf16.msra.mxu0 %v6554
    %8532 = vmatprep.subr.bf16.mxu0 %v6559
    %8533 = vmatpush1.bf16.msra.mxu0 %v6558
    %8534 = vmatprep.subr.bf16.mxu0 %v6563
    %8535 = vmatpush1.bf16.msra.mxu0 %v6562
    %8536 = vmatprep.mubr.bf16.mxu0 %v2229
    %8537 = vmatmul.mubr.bf16.gmra.mrb[0].mxu0 %v2228
    %v8538 = vpop.f32.mrb[0].mxu0
    %v8539 = vadd.f32 %v8498, %v8538
    %v8540 = vpop.f32.mrb[0].mxu0
    %v8541 = vadd.f32 %v8500, %v8540
    %v8542 = vpop.f32.mrb[0].mxu0
    %v8543 = vpop.f32.mrb[0].mxu0
    %8544 = vdwg.mxu0
    %8545 = vmatprep.subr.bf16.mxu0 %v6567
    %8546 = vmatpush1.bf16.msra.mxu0 %v6566
    %8547 = vmatprep.subr.bf16.mxu0 %v6571
    %8548 = vmatpush1.bf16.msra.mxu0 %v6570
    %8549 = vmatprep.subr.bf16.mxu0 %v6575
    %8550 = vmatpush1.bf16.msra.mxu0 %v6574
    %8551 = vmatprep.subr.bf16.mxu0 %v6579
    %8552 = vmatpush1.bf16.msra.mxu0 %v6578
    %8553 = vmatprep.subr.bf16.mxu0 %v6583
    %8554 = vmatpush1.bf16.msra.mxu0 %v6582
    %8555 = vmatprep.subr.bf16.mxu0 %v6587
    %8556 = vmatpush1.bf16.msra.mxu0 %v6586
    %8557 = vmatprep.subr.bf16.mxu0 %v6591
    %8558 = vmatpush1.bf16.msra.mxu0 %v6590
    %8559 = vmatprep.subr.bf16.mxu0 %v6595
    %8560 = vmatpush1.bf16.msra.mxu0 %v6594
    %8561 = vmatprep.subr.bf16.mxu0 %v6599
    %8562 = vmatpush1.bf16.msra.mxu0 %v6598
    %8563 = vmatprep.subr.bf16.mxu0 %v6603
    %8564 = vmatpush1.bf16.msra.mxu0 %v6602
    %8565 = vmatprep.subr.bf16.mxu0 %v6607
    %8566 = vmatpush1.bf16.msra.mxu0 %v6606
    %8567 = vmatprep.subr.bf16.mxu0 %v6611
    %8568 = vmatpush1.bf16.msra.mxu0 %v6610
    %8569 = vmatprep.subr.bf16.mxu0 %v6615
    %8570 = vmatpush1.bf16.msra.mxu0 %v6614
    %8571 = vmatprep.subr.bf16.mxu0 %v6619
    %8572 = vmatpush1.bf16.msra.mxu0 %v6618
    %8573 = vmatprep.subr.bf16.mxu0 %v6623
    %8574 = vmatpush1.bf16.msra.mxu0 %v6622
    %8575 = vmatprep.subr.bf16.mxu0 %v6627
    %8576 = vmatpush1.bf16.msra.mxu0 %v6626
    %8577 = vmatprep.mubr.bf16.mxu0 %v2231
    %8578 = vmatmul.mubr.bf16.gmra.mrb[0].mxu0 %v2230
    %v8579 = vpop.f32.mrb[0].mxu0
    %v8580 = vadd.f32 %v8539, %v8579
    %v8581 = vpop.f32.mrb[0].mxu0
    %v8582 = vadd.f32 %v8541, %v8581
    %v8583 = vpop.f32.mrb[0].mxu0
    %v8584 = vpop.f32.mrb[0].mxu0
    %8585 = vdwg.mxu0
    %8586 = vmatprep.subr.bf16.mxu0 %v6631
    %8587 = vmatpush1.bf16.msra.mxu0 %v6630
    %8588 = vmatprep.subr.bf16.mxu0 %v6635
    %8589 = vmatpush1.bf16.msra.mxu0 %v6634
    %8590 = vmatprep.subr.bf16.mxu0 %v6639
    %8591 = vmatpush1.bf16.msra.mxu0 %v6638
    %8592 = vmatprep.subr.bf16.mxu0 %v6643
    %8593 = vmatpush1.bf16.msra.mxu0 %v6642
    %8594 = vmatprep.subr.bf16.mxu0 %v6647
    %8595 = vmatpush1.bf16.msra.mxu0 %v6646
    %8596 = vmatprep.subr.bf16.mxu0 %v6651
    %8597 = vmatpush1.bf16.msra.mxu0 %v6650
    %8598 = vmatprep.subr.bf16.mxu0 %v6655
    %8599 = vmatpush1.bf16.msra.mxu0 %v6654
    %8600 = vmatprep.subr.bf16.mxu0 %v6659
    %8601 = vmatpush1.bf16.msra.mxu0 %v6658
    %8602 = vmatprep.subr.bf16.mxu0 %v6663
    %8603 = vmatpush1.bf16.msra.mxu0 %v6662
    %8604 = vmatprep.subr.bf16.mxu0 %v6667
    %8605 = vmatpush1.bf16.msra.mxu0 %v6666
    %8606 = vmatprep.subr.bf16.mxu0 %v6671
    %8607 = vmatpush1.bf16.msra.mxu0 %v6670
    %8608 = vmatprep.subr.bf16.mxu0 %v6675
    %8609 = vmatpush1.bf16.msra.mxu0 %v6674
    %8610 = vmatprep.subr.bf16.mxu0 %v6679
    %8611 = vmatpush1.bf16.msra.mxu0 %v6678
    %8612 = vmatprep.subr.bf16.mxu0 %v6683
    %8613 = vmatpush1.bf16.msra.mxu0 %v6682
    %8614 = vmatprep.subr.bf16.mxu0 %v6687
    %8615 = vmatpush1.bf16.msra.mxu0 %v6686
    %8616 = vmatprep.subr.bf16.mxu0 %v6691
    %8617 = vmatpush1.bf16.msra.mxu0 %v6690
    %8618 = vmatprep.mubr.bf16.mxu0 %v2233
    %8619 = vmatmul.mubr.bf16.gmra.mrb[0].mxu0 %v2232
    %v8620 = vpop.f32.mrb[0].mxu0
    %v8621 = vadd.f32 %v8580, %v8620
    %v8622 = vpop.f32.mrb[0].mxu0
    %v8623 = vadd.f32 %v8582, %v8622
    %v8624 = vpop.f32.mrb[0].mxu0
    %v8625 = vpop.f32.mrb[0].mxu0
    %8626 = vdwg.mxu0
    %8627 = vmatprep.subr.bf16.mxu0 %v6695
    %8628 = vmatpush1.bf16.msra.mxu0 %v6694
    %8629 = vmatprep.subr.bf16.mxu0 %v6699
    %8630 = vmatpush1.bf16.msra.mxu0 %v6698
    %8631 = vmatprep.subr.bf16.mxu0 %v6703
    %8632 = vmatpush1.bf16.msra.mxu0 %v6702
    %8633 = vmatprep.subr.bf16.mxu0 %v6707
    %8634 = vmatpush1.bf16.msra.mxu0 %v6706
    %8635 = vmatprep.subr.bf16.mxu0 %v6711
    %8636 = vmatpush1.bf16.msra.mxu0 %v6710
    %8637 = vmatprep.subr.bf16.mxu0 %v6715
    %8638 = vmatpush1.bf16.msra.mxu0 %v6714
    %8639 = vmatprep.subr.bf16.mxu0 %v6719
    %8640 = vmatpush1.bf16.msra.mxu0 %v6718
    %8641 = vmatprep.subr.bf16.mxu0 %v6723
    %8642 = vmatpush1.bf16.msra.mxu0 %v6722
    %8643 = vmatprep.subr.bf16.mxu0 %v6727
    %8644 = vmatpush1.bf16.msra.mxu0 %v6726
    %8645 = vmatprep.subr.bf16.mxu0 %v6731
    %8646 = vmatpush1.bf16.msra.mxu0 %v6730
    %8647 = vmatprep.subr.bf16.mxu0 %v6735
    %8648 = vmatpush1.bf16.msra.mxu0 %v6734
    %8649 = vmatprep.subr.bf16.mxu0 %v6739
    %8650 = vmatpush1.bf16.msra.mxu0 %v6738
    %8651 = vmatprep.subr.bf16.mxu0 %v6743
    %8652 = vmatpush1.bf16.msra.mxu0 %v6742
    %8653 = vmatprep.subr.bf16.mxu0 %v6747
    %8654 = vmatpush1.bf16.msra.mxu0 %v6746
    %8655 = vmatprep.subr.bf16.mxu0 %v6751
    %8656 = vmatpush1.bf16.msra.mxu0 %v6750
    %8657 = vmatprep.subr.bf16.mxu0 %v6755
    %8658 = vmatpush1.bf16.msra.mxu0 %v6754
    %8659 = vmatprep.mubr.bf16.mxu0 %v2235
    %8660 = vmatmul.mubr.bf16.gmra.mrb[0].mxu0 %v2234
    %v8661 = vpop.f32.mrb[0].mxu0
    %v8662 = vadd.f32 %v8621, %v8661
    %v8663 = vpop.f32.mrb[0].mxu0
    %v8664 = vadd.f32 %v8623, %v8663
    %v8665 = vpop.f32.mrb[0].mxu0
    %v8666 = vpop.f32.mrb[0].mxu0
    %8667 = vdwg.mxu0
    %8668 = vmatprep.subr.bf16.mxu0 %v6759
    %8669 = vmatpush1.bf16.msra.mxu0 %v6758
    %8670 = vmatprep.subr.bf16.mxu0 %v6763
    %8671 = vmatpush1.bf16.msra.mxu0 %v6762
    %8672 = vmatprep.subr.bf16.mxu0 %v6767
    %8673 = vmatpush1.bf16.msra.mxu0 %v6766
    %8674 = vmatprep.subr.bf16.mxu0 %v6771
    %8675 = vmatpush1.bf16.msra.mxu0 %v6770
    %8676 = vmatprep.subr.bf16.mxu0 %v6775
    %8677 = vmatpush1.bf16.msra.mxu0 %v6774
    %8678 = vmatprep.subr.bf16.mxu0 %v6779
    %8679 = vmatpush1.bf16.msra.mxu0 %v6778
    %8680 = vmatprep.subr.bf16.mxu0 %v6783
    %8681 = vmatpush1.bf16.msra.mxu0 %v6782
    %8682 = vmatprep.subr.bf16.mxu0 %v6787
    %8683 = vmatpush1.bf16.msra.mxu0 %v6786
    %8684 = vmatprep.subr.bf16.mxu0 %v6791
    %8685 = vmatpush1.bf16.msra.mxu0 %v6790
    %8686 = vmatprep.subr.bf16.mxu0 %v6795
    %8687 = vmatpush1.bf16.msra.mxu0 %v6794
    %8688 = vmatprep.subr.bf16.mxu0 %v6799
    %8689 = vmatpush1.bf16.msra.mxu0 %v6798
    %8690 = vmatprep.subr.bf16.mxu0 %v6803
    %8691 = vmatpush1.bf16.msra.mxu0 %v6802
    %8692 = vmatprep.subr.bf16.mxu0 %v6807
    %8693 = vmatpush1.bf16.msra.mxu0 %v6806
    %8694 = vmatprep.subr.bf16.mxu0 %v6811
    %8695 = vmatpush1.bf16.msra.mxu0 %v6810
    %8696 = vmatprep.subr.bf16.mxu0 %v6815
    %8697 = vmatpush1.bf16.msra.mxu0 %v6814
    %8698 = vmatprep.subr.bf16.mxu0 %v6819
    %8699 = vmatpush1.bf16.msra.mxu0 %v6818
    %8700 = vmatprep.mubr.bf16.mxu0 %v2237
    %8701 = vmatmul.mubr.bf16.gmra.mrb[0].mxu0 %v2236
    %v8702 = vpop.f32.mrb[0].mxu0
    %v8703 = vadd.f32 %v8662, %v8702
    %v8704 = vpop.f32.mrb[0].mxu0
    %v8705 = vadd.f32 %v8664, %v8704
    %v8706 = vpop.f32.mrb[0].mxu0
    %v8707 = vpop.f32.mrb[0].mxu0
    %8708 = vdwg.mxu0
    %8709 = vmatprep.subr.bf16.mxu0 %v6823
    %8710 = vmatpush1.bf16.msra.mxu0 %v6822
    %8711 = vmatprep.subr.bf16.mxu0 %v6827
    %8712 = vmatpush1.bf16.msra.mxu0 %v6826
    %8713 = vmatprep.subr.bf16.mxu0 %v6831
    %8714 = vmatpush1.bf16.msra.mxu0 %v6830
    %8715 = vmatprep.subr.bf16.mxu0 %v6835
    %8716 = vmatpush1.bf16.msra.mxu0 %v6834
    %8717 = vmatprep.subr.bf16.mxu0 %v6839
    %8718 = vmatpush1.bf16.msra.mxu0 %v6838
    %8719 = vmatprep.subr.bf16.mxu0 %v6843
    %8720 = vmatpush1.bf16.msra.mxu0 %v6842
    %8721 = vmatprep.subr.bf16.mxu0 %v6847
    %8722 = vmatpush1.bf16.msra.mxu0 %v6846
    %8723 = vmatprep.subr.bf16.mxu0 %v6851
    %8724 = vmatpush1.bf16.msra.mxu0 %v6850
    %8725 = vmatprep.subr.bf16.mxu0 %v6855
    %8726 = vmatpush1.bf16.msra.mxu0 %v6854
    %8727 = vmatprep.subr.bf16.mxu0 %v6859
    %8728 = vmatpush1.bf16.msra.mxu0 %v6858
    %8729 = vmatprep.subr.bf16.mxu0 %v6863
    %8730 = vmatpush1.bf16.msra.mxu0 %v6862
    %8731 = vmatprep.subr.bf16.mxu0 %v6867
    %8732 = vmatpush1.bf16.msra.mxu0 %v6866
    %8733 = vmatprep.subr.bf16.mxu0 %v6871
    %8734 = vmatpush1.bf16.msra.mxu0 %v6870
    %8735 = vmatprep.subr.bf16.mxu0 %v6875
    %8736 = vmatpush1.bf16.msra.mxu0 %v6874
    %8737 = vmatprep.subr.bf16.mxu0 %v6879
    %8738 = vmatpush1.bf16.msra.mxu0 %v6878
    %8739 = vmatprep.subr.bf16.mxu0 %v6883
    %8740 = vmatpush1.bf16.msra.mxu0 %v6882
    %8741 = vmatprep.mubr.bf16.mxu0 %v2239
    %8742 = vmatmul.mubr.bf16.gmra.mrb[0].mxu0 %v2238
    %v8743 = vpop.f32.mrb[0].mxu0
    %v8744 = vadd.f32 %v8703, %v8743
    %v8745 = vpop.f32.mrb[0].mxu0
    %v8746 = vadd.f32 %v8705, %v8745
    %v8747 = vpop.f32.mrb[0].mxu0
    %v8748 = vpop.f32.mrb[0].mxu0
    %8749 = vdwg.mxu0
    %8750 = vmatprep.subr.bf16.mxu0 %v6887
    %8751 = vmatpush1.bf16.msra.mxu0 %v6886
    %8752 = vmatprep.subr.bf16.mxu0 %v6891
    %8753 = vmatpush1.bf16.msra.mxu0 %v6890
    %8754 = vmatprep.subr.bf16.mxu0 %v6895
    %8755 = vmatpush1.bf16.msra.mxu0 %v6894
    %8756 = vmatprep.subr.bf16.mxu0 %v6899
    %8757 = vmatpush1.bf16.msra.mxu0 %v6898
    %8758 = vmatprep.subr.bf16.mxu0 %v6903
    %8759 = vmatpush1.bf16.msra.mxu0 %v6902
    %8760 = vmatprep.subr.bf16.mxu0 %v6907
    %8761 = vmatpush1.bf16.msra.mxu0 %v6906
    %8762 = vmatprep.subr.bf16.mxu0 %v6911
    %8763 = vmatpush1.bf16.msra.mxu0 %v6910
    %8764 = vmatprep.subr.bf16.mxu0 %v6915
    %8765 = vmatpush1.bf16.msra.mxu0 %v6914
    %8766 = vmatprep.subr.bf16.mxu0 %v6919
    %8767 = vmatpush1.bf16.msra.mxu0 %v6918
    %8768 = vmatprep.subr.bf16.mxu0 %v6923
    %8769 = vmatpush1.bf16.msra.mxu0 %v6922
    %8770 = vmatprep.subr.bf16.mxu0 %v6927
    %8771 = vmatpush1.bf16.msra.mxu0 %v6926
    %8772 = vmatprep.subr.bf16.mxu0 %v6931
    %8773 = vmatpush1.bf16.msra.mxu0 %v6930
    %8774 = vmatprep.subr.bf16.mxu0 %v6935
    %8775 = vmatpush1.bf16.msra.mxu0 %v6934
    %8776 = vmatprep.subr.bf16.mxu0 %v6939
    %8777 = vmatpush1.bf16.msra.mxu0 %v6938
    %8778 = vmatprep.subr.bf16.mxu0 %v6943
    %8779 = vmatpush1.bf16.msra.mxu0 %v6942
    %8780 = vmatprep.subr.bf16.mxu0 %v6947
    %8781 = vmatpush1.bf16.msra.mxu0 %v6946
    %8782 = vmatprep.mubr.bf16.mxu0 %v2241
    %8783 = vmatmul.mubr.bf16.gmra.mrb[0].mxu0 %v2240
    %v8784 = vpop.f32.mrb[0].mxu0
    %v8785 = vadd.f32 %v8744, %v8784
    %v8786 = vpop.f32.mrb[0].mxu0
    %v8787 = vadd.f32 %v8746, %v8786
    %v8788 = vpop.f32.mrb[0].mxu0
    %v8789 = vpop.f32.mrb[0].mxu0
    %8790 = vdwg.mxu0
    %8791 = vmatprep.subr.bf16.mxu0 %v6951
    %8792 = vmatpush1.bf16.msra.mxu0 %v6950
    %8793 = vmatprep.subr.bf16.mxu0 %v6955
    %8794 = vmatpush1.bf16.msra.mxu0 %v6954
    %8795 = vmatprep.subr.bf16.mxu0 %v6959
    %8796 = vmatpush1.bf16.msra.mxu0 %v6958
    %8797 = vmatprep.subr.bf16.mxu0 %v6963
    %8798 = vmatpush1.bf16.msra.mxu0 %v6962
    %8799 = vmatprep.subr.bf16.mxu0 %v6967
    %8800 = vmatpush1.bf16.msra.mxu0 %v6966
    %8801 = vmatprep.subr.bf16.mxu0 %v6971
    %8802 = vmatpush1.bf16.msra.mxu0 %v6970
    %8803 = vmatprep.subr.bf16.mxu0 %v6975
    %8804 = vmatpush1.bf16.msra.mxu0 %v6974
    %8805 = vmatprep.subr.bf16.mxu0 %v6979
    %8806 = vmatpush1.bf16.msra.mxu0 %v6978
    %8807 = vmatprep.subr.bf16.mxu0 %v6983
    %8808 = vmatpush1.bf16.msra.mxu0 %v6982
    %8809 = vmatprep.subr.bf16.mxu0 %v6987
    %8810 = vmatpush1.bf16.msra.mxu0 %v6986
    %8811 = vmatprep.subr.bf16.mxu0 %v6991
    %8812 = vmatpush1.bf16.msra.mxu0 %v6990
    %8813 = vmatprep.subr.bf16.mxu0 %v6995
    %8814 = vmatpush1.bf16.msra.mxu0 %v6994
    %8815 = vmatprep.subr.bf16.mxu0 %v6999
    %8816 = vmatpush1.bf16.msra.mxu0 %v6998
    %8817 = vmatprep.subr.bf16.mxu0 %v7003
    %8818 = vmatpush1.bf16.msra.mxu0 %v7002
    %8819 = vmatprep.subr.bf16.mxu0 %v7007
    %8820 = vmatpush1.bf16.msra.mxu0 %v7006
    %8821 = vmatprep.subr.bf16.mxu0 %v7011
    %8822 = vmatpush1.bf16.msra.mxu0 %v7010
    %8823 = vmatprep.mubr.bf16.mxu0 %v2243
    %8824 = vmatmul.mubr.bf16.gmra.mrb[0].mxu0 %v2242
    %v8825 = vpop.f32.mrb[0].mxu0
    %v8826 = vadd.f32 %v8785, %v8825
    %v8827 = vpop.f32.mrb[0].mxu0
    %v8828 = vadd.f32 %v8787, %v8827
    %v8829 = vpop.f32.mrb[0].mxu0
    %v8830 = vpop.f32.mrb[0].mxu0
    %8831 = vdwg.mxu0
    %8832 = vmatprep.subr.bf16.mxu0 %v7015
    %8833 = vmatpush1.bf16.msra.mxu0 %v7014
    %8834 = vmatprep.subr.bf16.mxu0 %v7019
    %8835 = vmatpush1.bf16.msra.mxu0 %v7018
    %8836 = vmatprep.subr.bf16.mxu0 %v7023
    %8837 = vmatpush1.bf16.msra.mxu0 %v7022
    %8838 = vmatprep.subr.bf16.mxu0 %v7027
    %8839 = vmatpush1.bf16.msra.mxu0 %v7026
    %8840 = vmatprep.subr.bf16.mxu0 %v7031
    %8841 = vmatpush1.bf16.msra.mxu0 %v7030
    %8842 = vmatprep.subr.bf16.mxu0 %v7035
    %8843 = vmatpush1.bf16.msra.mxu0 %v7034
    %8844 = vmatprep.subr.bf16.mxu0 %v7039
    %8845 = vmatpush1.bf16.msra.mxu0 %v7038
    %8846 = vmatprep.subr.bf16.mxu0 %v7043
    %8847 = vmatpush1.bf16.msra.mxu0 %v7042
    %8848 = vmatprep.subr.bf16.mxu0 %v7047
    %8849 = vmatpush1.bf16.msra.mxu0 %v7046
    %8850 = vmatprep.subr.bf16.mxu0 %v7051
    %8851 = vmatpush1.bf16.msra.mxu0 %v7050
    %8852 = vmatprep.subr.bf16.mxu0 %v7055
    %8853 = vmatpush1.bf16.msra.mxu0 %v7054
    %8854 = vmatprep.subr.bf16.mxu0 %v7059
    %8855 = vmatpush1.bf16.msra.mxu0 %v7058
    %8856 = vmatprep.subr.bf16.mxu0 %v7063
    %8857 = vmatpush1.bf16.msra.mxu0 %v7062
    %8858 = vmatprep.subr.bf16.mxu0 %v7067
    %8859 = vmatpush1.bf16.msra.mxu0 %v7066
    %8860 = vmatprep.subr.bf16.mxu0 %v7071
    %8861 = vmatpush1.bf16.msra.mxu0 %v7070
    %8862 = vmatprep.subr.bf16.mxu0 %v7075
    %8863 = vmatpush1.bf16.msra.mxu0 %v7074
    %8864 = vmatprep.mubr.bf16.mxu0 %v2245
    %8865 = vmatmul.mubr.bf16.gmra.mrb[0].mxu0 %v2244
    %v8866 = vpop.f32.mrb[0].mxu0
    %v8867 = vadd.f32 %v8826, %v8866
    %v8868 = vpop.f32.mrb[0].mxu0
    %v8869 = vadd.f32 %v8828, %v8868
    %v8870 = vpop.f32.mrb[0].mxu0
    %v8871 = vpop.f32.mrb[0].mxu0
    %8872 = vdwg.mxu0
    %8873 = vmatprep.subr.bf16.mxu0 %v7079
    %8874 = vmatpush1.bf16.msra.mxu0 %v7078
    %8875 = vmatprep.subr.bf16.mxu0 %v7083
    %8876 = vmatpush1.bf16.msra.mxu0 %v7082
    %8877 = vmatprep.subr.bf16.mxu0 %v7087
    %8878 = vmatpush1.bf16.msra.mxu0 %v7086
    %8879 = vmatprep.subr.bf16.mxu0 %v7091
    %8880 = vmatpush1.bf16.msra.mxu0 %v7090
    %8881 = vmatprep.subr.bf16.mxu0 %v7095
    %8882 = vmatpush1.bf16.msra.mxu0 %v7094
    %8883 = vmatprep.subr.bf16.mxu0 %v7099
    %8884 = vmatpush1.bf16.msra.mxu0 %v7098
    %8885 = vmatprep.subr.bf16.mxu0 %v7103
    %8886 = vmatpush1.bf16.msra.mxu0 %v7102
    %8887 = vmatprep.subr.bf16.mxu0 %v7107
    %8888 = vmatpush1.bf16.msra.mxu0 %v7106
    %8889 = vmatprep.subr.bf16.mxu0 %v7111
    %8890 = vmatpush1.bf16.msra.mxu0 %v7110
    %8891 = vmatprep.subr.bf16.mxu0 %v7115
    %8892 = vmatpush1.bf16.msra.mxu0 %v7114
    %8893 = vmatprep.subr.bf16.mxu0 %v7119
    %8894 = vmatpush1.bf16.msra.mxu0 %v7118
    %8895 = vmatprep.subr.bf16.mxu0 %v7123
    %8896 = vmatpush1.bf16.msra.mxu0 %v7122
    %8897 = vmatprep.subr.bf16.mxu0 %v7127
    %8898 = vmatpush1.bf16.msra.mxu0 %v7126
    %8899 = vmatprep.subr.bf16.mxu0 %v7131
    %8900 = vmatpush1.bf16.msra.mxu0 %v7130
    %8901 = vmatprep.subr.bf16.mxu0 %v7135
    %8902 = vmatpush1.bf16.msra.mxu0 %v7134
    %8903 = vmatprep.subr.bf16.mxu0 %v7139
    %8904 = vmatpush1.bf16.msra.mxu0 %v7138
    %8905 = vmatprep.mubr.bf16.mxu0 %v2247
    %8906 = vmatmul.mubr.bf16.gmra.mrb[0].mxu0 %v2246
    %v8907 = vpop.f32.mrb[0].mxu0
    %v8908 = vadd.f32 %v8867, %v8907
    %v8909 = vpop.f32.mrb[0].mxu0
    %v8910 = vadd.f32 %v8869, %v8909
    %v8911 = vpop.f32.mrb[0].mxu0
    %v8912 = vpop.f32.mrb[0].mxu0
    %8913 = vdwg.mxu0
    %8914 = vmatprep.subr.bf16.mxu0 %v7143
    %8915 = vmatpush1.bf16.msra.mxu0 %v7142
    %8916 = vmatprep.subr.bf16.mxu0 %v7147
    %8917 = vmatpush1.bf16.msra.mxu0 %v7146
    %8918 = vmatprep.subr.bf16.mxu0 %v7151
    %8919 = vmatpush1.bf16.msra.mxu0 %v7150
    %8920 = vmatprep.subr.bf16.mxu0 %v7155
    %8921 = vmatpush1.bf16.msra.mxu0 %v7154
    %8922 = vmatprep.subr.bf16.mxu0 %v7159
    %8923 = vmatpush1.bf16.msra.mxu0 %v7158
    %8924 = vmatprep.subr.bf16.mxu0 %v7163
    %8925 = vmatpush1.bf16.msra.mxu0 %v7162
    %8926 = vmatprep.subr.bf16.mxu0 %v7167
    %8927 = vmatpush1.bf16.msra.mxu0 %v7166
    %8928 = vmatprep.subr.bf16.mxu0 %v7171
    %8929 = vmatpush1.bf16.msra.mxu0 %v7170
    %8930 = vmatprep.subr.bf16.mxu0 %v7175
    %8931 = vmatpush1.bf16.msra.mxu0 %v7174
    %8932 = vmatprep.subr.bf16.mxu0 %v7179
    %8933 = vmatpush1.bf16.msra.mxu0 %v7178
    %8934 = vmatprep.subr.bf16.mxu0 %v7183
    %8935 = vmatpush1.bf16.msra.mxu0 %v7182
    %8936 = vmatprep.subr.bf16.mxu0 %v7187
    %8937 = vmatpush1.bf16.msra.mxu0 %v7186
    %8938 = vmatprep.subr.bf16.mxu0 %v7191
    %8939 = vmatpush1.bf16.msra.mxu0 %v7190
    %8940 = vmatprep.subr.bf16.mxu0 %v7195
    %8941 = vmatpush1.bf16.msra.mxu0 %v7194
    %8942 = vmatprep.subr.bf16.mxu0 %v7199
    %8943 = vmatpush1.bf16.msra.mxu0 %v7198
    %8944 = vmatprep.subr.bf16.mxu0 %v7203
    %8945 = vmatpush1.bf16.msra.mxu0 %v7202
    %8946 = vmatprep.mubr.bf16.mxu0 %v2249
    %8947 = vmatmul.mubr.bf16.gmra.mrb[0].mxu0 %v2248
    %v8948 = vpop.f32.mrb[0].mxu0
    %v8949 = vadd.f32 %v8908, %v8948
    %v8950 = vpop.f32.mrb[0].mxu0
    %v8951 = vadd.f32 %v8910, %v8950
    %v8952 = vpop.f32.mrb[0].mxu0
    %v8953 = vpop.f32.mrb[0].mxu0
    %8954 = vdwg.mxu0
    %8955 = vmatprep.subr.bf16.mxu0 %v7207
    %8956 = vmatpush1.bf16.msra.mxu0 %v7206
    %8957 = vmatprep.subr.bf16.mxu0 %v7211
    %8958 = vmatpush1.bf16.msra.mxu0 %v7210
    %8959 = vmatprep.subr.bf16.mxu0 %v7215
    %8960 = vmatpush1.bf16.msra.mxu0 %v7214
    %8961 = vmatprep.subr.bf16.mxu0 %v7219
    %8962 = vmatpush1.bf16.msra.mxu0 %v7218
    %8963 = vmatprep.subr.bf16.mxu0 %v7223
    %8964 = vmatpush1.bf16.msra.mxu0 %v7222
    %8965 = vmatprep.subr.bf16.mxu0 %v7227
    %8966 = vmatpush1.bf16.msra.mxu0 %v7226
    %8967 = vmatprep.subr.bf16.mxu0 %v7231
    %8968 = vmatpush1.bf16.msra.mxu0 %v7230
    %8969 = vmatprep.subr.bf16.mxu0 %v7235
    %8970 = vmatpush1.bf16.msra.mxu0 %v7234
    %8971 = vmatprep.subr.bf16.mxu0 %v7239
    %8972 = vmatpush1.bf16.msra.mxu0 %v7238
    %8973 = vmatprep.subr.bf16.mxu0 %v7243
    %8974 = vmatpush1.bf16.msra.mxu0 %v7242
    %8975 = vmatprep.subr.bf16.mxu0 %v7247
    %8976 = vmatpush1.bf16.msra.mxu0 %v7246
    %8977 = vmatprep.subr.bf16.mxu0 %v7251
    %8978 = vmatpush1.bf16.msra.mxu0 %v7250
    %8979 = vmatprep.subr.bf16.mxu0 %v7255
    %8980 = vmatpush1.bf16.msra.mxu0 %v7254
    %8981 = vmatprep.subr.bf16.mxu0 %v7259
    %8982 = vmatpush1.bf16.msra.mxu0 %v7258
    %8983 = vmatprep.subr.bf16.mxu0 %v7263
    %8984 = vmatpush1.bf16.msra.mxu0 %v7262
    %8985 = vmatprep.subr.bf16.mxu0 %v7267
    %8986 = vmatpush1.bf16.msra.mxu0 %v7266
    %8987 = vmatprep.mubr.bf16.mxu0 %v2251
    %8988 = vmatmul.mubr.bf16.gmra.mrb[0].mxu0 %v2250
    %v8989 = vpop.f32.mrb[0].mxu0
    %v8990 = vadd.f32 %v8949, %v8989
    %v8991 = vpop.f32.mrb[0].mxu0
    %v8992 = vadd.f32 %v8951, %v8991
    %v8993 = vpop.f32.mrb[0].mxu0
    %v8994 = vpop.f32.mrb[0].mxu0
    %8995 = vdwg.mxu0
    %8996 = vmatprep.subr.bf16.mxu0 %v7271
    %8997 = vmatpush1.bf16.msra.mxu0 %v7270
    %8998 = vmatprep.subr.bf16.mxu0 %v7275
    %8999 = vmatpush1.bf16.msra.mxu0 %v7274
    %9000 = vmatprep.subr.bf16.mxu0 %v7279
    %9001 = vmatpush1.bf16.msra.mxu0 %v7278
    %9002 = vmatprep.subr.bf16.mxu0 %v7283
    %9003 = vmatpush1.bf16.msra.mxu0 %v7282
    %9004 = vmatprep.subr.bf16.mxu0 %v7287
    %9005 = vmatpush1.bf16.msra.mxu0 %v7286
    %9006 = vmatprep.subr.bf16.mxu0 %v7291
    %9007 = vmatpush1.bf16.msra.mxu0 %v7290
    %9008 = vmatprep.subr.bf16.mxu0 %v7295
    %9009 = vmatpush1.bf16.msra.mxu0 %v7294
    %9010 = vmatprep.subr.bf16.mxu0 %v7299
    %9011 = vmatpush1.bf16.msra.mxu0 %v7298
    %9012 = vmatprep.subr.bf16.mxu0 %v7303
    %9013 = vmatpush1.bf16.msra.mxu0 %v7302
    %9014 = vmatprep.subr.bf16.mxu0 %v7307
    %9015 = vmatpush1.bf16.msra.mxu0 %v7306
    %9016 = vmatprep.subr.bf16.mxu0 %v7311
    %9017 = vmatpush1.bf16.msra.mxu0 %v7310
    %9018 = vmatprep.subr.bf16.mxu0 %v7315
    %9019 = vmatpush1.bf16.msra.mxu0 %v7314
    %9020 = vmatprep.subr.bf16.mxu0 %v7319
    %9021 = vmatpush1.bf16.msra.mxu0 %v7318
    %9022 = vmatprep.subr.bf16.mxu0 %v7323
    %9023 = vmatpush1.bf16.msra.mxu0 %v7322
    %9024 = vmatprep.subr.bf16.mxu0 %v7327
    %9025 = vmatpush1.bf16.msra.mxu0 %v7326
    %9026 = vmatprep.subr.bf16.mxu0 %v7331
    %9027 = vmatpush1.bf16.msra.mxu0 %v7330
    %9028 = vmatprep.mubr.bf16.mxu0 %v2253
    %9029 = vmatmul.mubr.bf16.gmra.mrb[0].mxu0 %v2252
    %v9030 = vpop.f32.mrb[0].mxu0
    %v9031 = vadd.f32 %v8990, %v9030
    %v9032 = vpop.f32.mrb[0].mxu0
    %v9033 = vadd.f32 %v8992, %v9032
    %v9034 = vpop.f32.mrb[0].mxu0
    %v9035 = vpop.f32.mrb[0].mxu0
    %9036 = vdwg.mxu0
    %9037 = vmatprep.subr.bf16.mxu0 %v7335
    %9038 = vmatpush1.bf16.msra.mxu0 %v7334
    %9039 = vmatprep.subr.bf16.mxu0 %v7339
    %9040 = vmatpush1.bf16.msra.mxu0 %v7338
    %9041 = vmatprep.subr.bf16.mxu0 %v7343
    %9042 = vmatpush1.bf16.msra.mxu0 %v7342
    %9043 = vmatprep.subr.bf16.mxu0 %v7347
    %9044 = vmatpush1.bf16.msra.mxu0 %v7346
    %9045 = vmatprep.subr.bf16.mxu0 %v7351
    %9046 = vmatpush1.bf16.msra.mxu0 %v7350
    %9047 = vmatprep.subr.bf16.mxu0 %v7355
    %9048 = vmatpush1.bf16.msra.mxu0 %v7354
    %9049 = vmatprep.subr.bf16.mxu0 %v7359
    %9050 = vmatpush1.bf16.msra.mxu0 %v7358
    %9051 = vmatprep.subr.bf16.mxu0 %v7363
    %9052 = vmatpush1.bf16.msra.mxu0 %v7362
    %9053 = vmatprep.subr.bf16.mxu0 %v7367
    %9054 = vmatpush1.bf16.msra.mxu0 %v7366
    %9055 = vmatprep.subr.bf16.mxu0 %v7371
    %9056 = vmatpush1.bf16.msra.mxu0 %v7370
    %9057 = vmatprep.subr.bf16.mxu0 %v7375
    %9058 = vmatpush1.bf16.msra.mxu0 %v7374
    %9059 = vmatprep.subr.bf16.mxu0 %v7379
    %9060 = vmatpush1.bf16.msra.mxu0 %v7378
    %9061 = vmatprep.subr.bf16.mxu0 %v7383
    %9062 = vmatpush1.bf16.msra.mxu0 %v7382
    %9063 = vmatprep.subr.bf16.mxu0 %v7387
    %9064 = vmatpush1.bf16.msra.mxu0 %v7386
    %9065 = vmatprep.subr.bf16.mxu0 %v7391
    %9066 = vmatpush1.bf16.msra.mxu0 %v7390
    %9067 = vmatprep.subr.bf16.mxu0 %v7395
    %9068 = vmatpush1.bf16.msra.mxu0 %v7394
    %9069 = vmatprep.mubr.bf16.mxu0 %v2255
    %9070 = vmatmul.mubr.bf16.gmra.mrb[0].mxu0 %v2254
    %v9071 = vpop.f32.mrb[0].mxu0
    %v9072 = vadd.f32 %v9031, %v9071
    %v9073 = vpop.f32.mrb[0].mxu0
    %v9074 = vadd.f32 %v9033, %v9073
    %v9075 = vpop.f32.mrb[0].mxu0
    %v9076 = vpop.f32.mrb[0].mxu0
    %9077 = vdwg.mxu0
    %9078 = vmatprep.subr.bf16.mxu0 %v6377
    %9079 = vmatpush1.bf16.msra.mxu0 %v6376
    %9080 = vmatprep.subr.bf16.mxu0 %v6381
    %9081 = vmatpush1.bf16.msra.mxu0 %v6380
    %9082 = vmatprep.subr.bf16.mxu0 %v6385
    %9083 = vmatpush1.bf16.msra.mxu0 %v6384
    %9084 = vmatprep.subr.bf16.mxu0 %v6389
    %9085 = vmatpush1.bf16.msra.mxu0 %v6388
    %9086 = vmatprep.subr.bf16.mxu0 %v6393
    %9087 = vmatpush1.bf16.msra.mxu0 %v6392
    %9088 = vmatprep.subr.bf16.mxu0 %v6397
    %9089 = vmatpush1.bf16.msra.mxu0 %v6396
    %9090 = vmatprep.subr.bf16.mxu0 %v6401
    %9091 = vmatpush1.bf16.msra.mxu0 %v6400
    %9092 = vmatprep.subr.bf16.mxu0 %v6405
    %9093 = vmatpush1.bf16.msra.mxu0 %v6404
    %9094 = vmatprep.subr.bf16.mxu0 %v6409
    %9095 = vmatpush1.bf16.msra.mxu0 %v6408
    %9096 = vmatprep.subr.bf16.mxu0 %v6413
    %9097 = vmatpush1.bf16.msra.mxu0 %v6412
    %9098 = vmatprep.subr.bf16.mxu0 %v6417
    %9099 = vmatpush1.bf16.msra.mxu0 %v6416
    %9100 = vmatprep.subr.bf16.mxu0 %v6421
    %9101 = vmatpush1.bf16.msra.mxu0 %v6420
    %9102 = vmatprep.subr.bf16.mxu0 %v6425
    %9103 = vmatpush1.bf16.msra.mxu0 %v6424
    %9104 = vmatprep.subr.bf16.mxu0 %v6429
    %9105 = vmatpush1.bf16.msra.mxu0 %v6428
    %9106 = vmatprep.subr.bf16.mxu0 %v6433
    %9107 = vmatpush1.bf16.msra.mxu0 %v6432
    %9108 = vmatprep.subr.bf16.mxu0 %v6437
    %9109 = vmatpush1.bf16.msra.mxu0 %v6436
    %9110 = vmatprep.mubr.bf16.mxu0 %v2225
    %9111 = vmatmul.mubr.bf16.gmra.mrb[0].mxu0 %v2224
    %v9112 = vpop.f32.mrb[0].mxu0
    %v9113 = vadd.f32 %v3293, %v9112
    %v9114 = vpop.f32.mrb[0].mxu0
    %v9115 = vadd.f32 %v3297, %v9114
    %v9116 = vpop.f32.mrb[0].mxu0
    %v9117 = vpop.f32.mrb[0].mxu0
    %9118 = vdwg.mxu0
    %9119 = vmatprep.subr.bf16.mxu0 %v6441
    %9120 = vmatpush1.bf16.msra.mxu0 %v6440
    %9121 = vmatprep.subr.bf16.mxu0 %v6445
    %9122 = vmatpush1.bf16.msra.mxu0 %v6444
    %9123 = vmatprep.subr.bf16.mxu0 %v6449
    %9124 = vmatpush1.bf16.msra.mxu0 %v6448
    %9125 = vmatprep.subr.bf16.mxu0 %v6453
    %9126 = vmatpush1.bf16.msra.mxu0 %v6452
    %9127 = vmatprep.subr.bf16.mxu0 %v6457
    %9128 = vmatpush1.bf16.msra.mxu0 %v6456
    %9129 = vmatprep.subr.bf16.mxu0 %v6461
    %9130 = vmatpush1.bf16.msra.mxu0 %v6460
    %9131 = vmatprep.subr.bf16.mxu0 %v6465
    %9132 = vmatpush1.bf16.msra.mxu0 %v6464
    %9133 = vmatprep.subr.bf16.mxu0 %v6469
    %9134 = vmatpush1.bf16.msra.mxu0 %v6468
    %9135 = vmatprep.subr.bf16.mxu0 %v6473
    %9136 = vmatpush1.bf16.msra.mxu0 %v6472
    %9137 = vmatprep.subr.bf16.mxu0 %v6477
    %9138 = vmatpush1.bf16.msra.mxu0 %v6476
    %9139 = vmatprep.subr.bf16.mxu0 %v6481
    %9140 = vmatpush1.bf16.msra.mxu0 %v6480
    %9141 = vmatprep.subr.bf16.mxu0 %v6485
    %9142 = vmatpush1.bf16.msra.mxu0 %v6484
    %9143 = vmatprep.subr.bf16.mxu0 %v6489
    %9144 = vmatpush1.bf16.msra.mxu0 %v6488
    %9145 = vmatprep.subr.bf16.mxu0 %v6493
    %9146 = vmatpush1.bf16.msra.mxu0 %v6492
    %9147 = vmatprep.subr.bf16.mxu0 %v6497
    %9148 = vmatpush1.bf16.msra.mxu0 %v6496
    %9149 = vmatprep.subr.bf16.mxu0 %v6501
    %9150 = vmatpush1.bf16.msra.mxu0 %v6500
    %9151 = vmatprep.mubr.bf16.mxu0 %v2227
    %9152 = vmatmul.mubr.bf16.gmra.mrb[0].mxu0 %v2226
    %v9153 = vpop.f32.mrb[0].mxu0
    %v9154 = vadd.f32 %v9113, %v9153
    %v9155 = vpop.f32.mrb[0].mxu0
    %v9156 = vadd.f32 %v9115, %v9155
    %v9157 = vpop.f32.mrb[0].mxu0
    %v9158 = vpop.f32.mrb[0].mxu0
    %9159 = vdwg.mxu0
    %9160 = vmatprep.subr.bf16.mxu0 %v6505
    %9161 = vmatpush1.bf16.msra.mxu0 %v6504
    %9162 = vmatprep.subr.bf16.mxu0 %v6509
    %9163 = vmatpush1.bf16.msra.mxu0 %v6508
    %9164 = vmatprep.subr.bf16.mxu0 %v6513
    %9165 = vmatpush1.bf16.msra.mxu0 %v6512
    %9166 = vmatprep.subr.bf16.mxu0 %v6517
    %9167 = vmatpush1.bf16.msra.mxu0 %v6516
    %9168 = vmatprep.subr.bf16.mxu0 %v6521
    %9169 = vmatpush1.bf16.msra.mxu0 %v6520
    %9170 = vmatprep.subr.bf16.mxu0 %v6525
    %9171 = vmatpush1.bf16.msra.mxu0 %v6524
    %9172 = vmatprep.subr.bf16.mxu0 %v6529
    %9173 = vmatpush1.bf16.msra.mxu0 %v6528
    %9174 = vmatprep.subr.bf16.mxu0 %v6533
    %9175 = vmatpush1.bf16.msra.mxu0 %v6532
    %9176 = vmatprep.subr.bf16.mxu0 %v6537
    %9177 = vmatpush1.bf16.msra.mxu0 %v6536
    %9178 = vmatprep.subr.bf16.mxu0 %v6541
    %9179 = vmatpush1.bf16.msra.mxu0 %v6540
    %9180 = vmatprep.subr.bf16.mxu0 %v6545
    %9181 = vmatpush1.bf16.msra.mxu0 %v6544
    %9182 = vmatprep.subr.bf16.mxu0 %v6549
    %9183 = vmatpush1.bf16.msra.mxu0 %v6548
    %9184 = vmatprep.subr.bf16.mxu0 %v6553
    %9185 = vmatpush1.bf16.msra.mxu0 %v6552
    %9186 = vmatprep.subr.bf16.mxu0 %v6557
    %9187 = vmatpush1.bf16.msra.mxu0 %v6556
    %9188 = vmatprep.subr.bf16.mxu0 %v6561
    %9189 = vmatpush1.bf16.msra.mxu0 %v6560
    %9190 = vmatprep.subr.bf16.mxu0 %v6565
    %9191 = vmatpush1.bf16.msra.mxu0 %v6564
    %9192 = vmatprep.mubr.bf16.mxu0 %v2229
    %9193 = vmatmul.mubr.bf16.gmra.mrb[0].mxu0 %v2228
    %v9194 = vpop.f32.mrb[0].mxu0
    %v9195 = vadd.f32 %v9154, %v9194
    %v9196 = vpop.f32.mrb[0].mxu0
    %v9197 = vadd.f32 %v9156, %v9196
    %v9198 = vpop.f32.mrb[0].mxu0
    %v9199 = vpop.f32.mrb[0].mxu0
    %9200 = vdwg.mxu0
    %9201 = vmatprep.subr.bf16.mxu0 %v6569
    %9202 = vmatpush1.bf16.msra.mxu0 %v6568
    %9203 = vmatprep.subr.bf16.mxu0 %v6573
    %9204 = vmatpush1.bf16.msra.mxu0 %v6572
    %9205 = vmatprep.subr.bf16.mxu0 %v6577
    %9206 = vmatpush1.bf16.msra.mxu0 %v6576
    %9207 = vmatprep.subr.bf16.mxu0 %v6581
    %9208 = vmatpush1.bf16.msra.mxu0 %v6580
    %9209 = vmatprep.subr.bf16.mxu0 %v6585
    %9210 = vmatpush1.bf16.msra.mxu0 %v6584
    %9211 = vmatprep.subr.bf16.mxu0 %v6589
    %9212 = vmatpush1.bf16.msra.mxu0 %v6588
    %9213 = vmatprep.subr.bf16.mxu0 %v6593
    %9214 = vmatpush1.bf16.msra.mxu0 %v6592
    %9215 = vmatprep.subr.bf16.mxu0 %v6597
    %9216 = vmatpush1.bf16.msra.mxu0 %v6596
    %9217 = vmatprep.subr.bf16.mxu0 %v6601
    %9218 = vmatpush1.bf16.msra.mxu0 %v6600
    %9219 = vmatprep.subr.bf16.mxu0 %v6605
    %9220 = vmatpush1.bf16.msra.mxu0 %v6604
    %9221 = vmatprep.subr.bf16.mxu0 %v6609
    %9222 = vmatpush1.bf16.msra.mxu0 %v6608
    %9223 = vmatprep.subr.bf16.mxu0 %v6613
    %9224 = vmatpush1.bf16.msra.mxu0 %v6612
    %9225 = vmatprep.subr.bf16.mxu0 %v6617
    %9226 = vmatpush1.bf16.msra.mxu0 %v6616
    %9227 = vmatprep.subr.bf16.mxu0 %v6621
    %9228 = vmatpush1.bf16.msra.mxu0 %v6620
    %9229 = vmatprep.subr.bf16.mxu0 %v6625
    %9230 = vmatpush1.bf16.msra.mxu0 %v6624
    %9231 = vmatprep.subr.bf16.mxu0 %v6629
    %9232 = vmatpush1.bf16.msra.mxu0 %v6628
    %9233 = vmatprep.mubr.bf16.mxu0 %v2231
    %9234 = vmatmul.mubr.bf16.gmra.mrb[0].mxu0 %v2230
    %v9235 = vpop.f32.mrb[0].mxu0
    %v9236 = vadd.f32 %v9195, %v9235
    %v9237 = vpop.f32.mrb[0].mxu0
    %v9238 = vadd.f32 %v9197, %v9237
    %v9239 = vpop.f32.mrb[0].mxu0
    %v9240 = vpop.f32.mrb[0].mxu0
    %9241 = vdwg.mxu0
    %9242 = vmatprep.subr.bf16.mxu0 %v6633
    %9243 = vmatpush1.bf16.msra.mxu0 %v6632
    %9244 = vmatprep.subr.bf16.mxu0 %v6637
    %9245 = vmatpush1.bf16.msra.mxu0 %v6636
    %9246 = vmatprep.subr.bf16.mxu0 %v6641
    %9247 = vmatpush1.bf16.msra.mxu0 %v6640
    %9248 = vmatprep.subr.bf16.mxu0 %v6645
    %9249 = vmatpush1.bf16.msra.mxu0 %v6644
    %9250 = vmatprep.subr.bf16.mxu0 %v6649
    %9251 = vmatpush1.bf16.msra.mxu0 %v6648
    %9252 = vmatprep.subr.bf16.mxu0 %v6653
    %9253 = vmatpush1.bf16.msra.mxu0 %v6652
    %9254 = vmatprep.subr.bf16.mxu0 %v6657
    %9255 = vmatpush1.bf16.msra.mxu0 %v6656
    %9256 = vmatprep.subr.bf16.mxu0 %v6661
    %9257 = vmatpush1.bf16.msra.mxu0 %v6660
    %9258 = vmatprep.subr.bf16.mxu0 %v6665
    %9259 = vmatpush1.bf16.msra.mxu0 %v6664
    %9260 = vmatprep.subr.bf16.mxu0 %v6669
    %9261 = vmatpush1.bf16.msra.mxu0 %v6668
    %9262 = vmatprep.subr.bf16.mxu0 %v6673
    %9263 = vmatpush1.bf16.msra.mxu0 %v6672
    %9264 = vmatprep.subr.bf16.mxu0 %v6677
    %9265 = vmatpush1.bf16.msra.mxu0 %v6676
    %9266 = vmatprep.subr.bf16.mxu0 %v6681
    %9267 = vmatpush1.bf16.msra.mxu0 %v6680
    %9268 = vmatprep.subr.bf16.mxu0 %v6685
    %9269 = vmatpush1.bf16.msra.mxu0 %v6684
    %9270 = vmatprep.subr.bf16.mxu0 %v6689
    %9271 = vmatpush1.bf16.msra.mxu0 %v6688
    %9272 = vmatprep.subr.bf16.mxu0 %v6693
    %9273 = vmatpush1.bf16.msra.mxu0 %v6692
    %9274 = vmatprep.mubr.bf16.mxu0 %v2233
    %9275 = vmatmul.mubr.bf16.gmra.mrb[0].mxu0 %v2232
    %v9276 = vpop.f32.mrb[0].mxu0
    %v9277 = vadd.f32 %v9236, %v9276
    %v9278 = vpop.f32.mrb[0].mxu0
    %v9279 = vadd.f32 %v9238, %v9278
    %v9280 = vpop.f32.mrb[0].mxu0
    %v9281 = vpop.f32.mrb[0].mxu0
    %9282 = vdwg.mxu0
    %9283 = vmatprep.subr.bf16.mxu0 %v6697
    %9284 = vmatpush1.bf16.msra.mxu0 %v6696
    %9285 = vmatprep.subr.bf16.mxu0 %v6701
    %9286 = vmatpush1.bf16.msra.mxu0 %v6700
    %9287 = vmatprep.subr.bf16.mxu0 %v6705
    %9288 = vmatpush1.bf16.msra.mxu0 %v6704
    %9289 = vmatprep.subr.bf16.mxu0 %v6709
    %9290 = vmatpush1.bf16.msra.mxu0 %v6708
    %9291 = vmatprep.subr.bf16.mxu0 %v6713
    %9292 = vmatpush1.bf16.msra.mxu0 %v6712
    %9293 = vmatprep.subr.bf16.mxu0 %v6717
    %9294 = vmatpush1.bf16.msra.mxu0 %v6716
    %9295 = vmatprep.subr.bf16.mxu0 %v6721
    %9296 = vmatpush1.bf16.msra.mxu0 %v6720
    %9297 = vmatprep.subr.bf16.mxu0 %v6725
    %9298 = vmatpush1.bf16.msra.mxu0 %v6724
    %9299 = vmatprep.subr.bf16.mxu0 %v6729
    %9300 = vmatpush1.bf16.msra.mxu0 %v6728
    %9301 = vmatprep.subr.bf16.mxu0 %v6733
    %9302 = vmatpush1.bf16.msra.mxu0 %v6732
    %9303 = vmatprep.subr.bf16.mxu0 %v6737
    %9304 = vmatpush1.bf16.msra.mxu0 %v6736
    %9305 = vmatprep.subr.bf16.mxu0 %v6741
    %9306 = vmatpush1.bf16.msra.mxu0 %v6740
    %9307 = vmatprep.subr.bf16.mxu0 %v6745
    %9308 = vmatpush1.bf16.msra.mxu0 %v6744
    %9309 = vmatprep.subr.bf16.mxu0 %v6749
    %9310 = vmatpush1.bf16.msra.mxu0 %v6748
    %9311 = vmatprep.subr.bf16.mxu0 %v6753
    %9312 = vmatpush1.bf16.msra.mxu0 %v6752
    %9313 = vmatprep.subr.bf16.mxu0 %v6757
    %9314 = vmatpush1.bf16.msra.mxu0 %v6756
    %9315 = vmatprep.mubr.bf16.mxu0 %v2235
    %9316 = vmatmul.mubr.bf16.gmra.mrb[0].mxu0 %v2234
    %v9317 = vpop.f32.mrb[0].mxu0
    %v9318 = vadd.f32 %v9277, %v9317
    %v9319 = vpop.f32.mrb[0].mxu0
    %v9320 = vadd.f32 %v9279, %v9319
    %v9321 = vpop.f32.mrb[0].mxu0
    %v9322 = vpop.f32.mrb[0].mxu0
    %9323 = vdwg.mxu0
    %9324 = vmatprep.subr.bf16.mxu0 %v6761
    %9325 = vmatpush1.bf16.msra.mxu0 %v6760
    %9326 = vmatprep.subr.bf16.mxu0 %v6765
    %9327 = vmatpush1.bf16.msra.mxu0 %v6764
    %9328 = vmatprep.subr.bf16.mxu0 %v6769
    %9329 = vmatpush1.bf16.msra.mxu0 %v6768
    %9330 = vmatprep.subr.bf16.mxu0 %v6773
    %9331 = vmatpush1.bf16.msra.mxu0 %v6772
    %9332 = vmatprep.subr.bf16.mxu0 %v6777
    %9333 = vmatpush1.bf16.msra.mxu0 %v6776
    %9334 = vmatprep.subr.bf16.mxu0 %v6781
    %9335 = vmatpush1.bf16.msra.mxu0 %v6780
    %9336 = vmatprep.subr.bf16.mxu0 %v6785
    %9337 = vmatpush1.bf16.msra.mxu0 %v6784
    %9338 = vmatprep.subr.bf16.mxu0 %v6789
    %9339 = vmatpush1.bf16.msra.mxu0 %v6788
    %9340 = vmatprep.subr.bf16.mxu0 %v6793
    %9341 = vmatpush1.bf16.msra.mxu0 %v6792
    %9342 = vmatprep.subr.bf16.mxu0 %v6797
    %9343 = vmatpush1.bf16.msra.mxu0 %v6796
    %9344 = vmatprep.subr.bf16.mxu0 %v6801
    %9345 = vmatpush1.bf16.msra.mxu0 %v6800
    %9346 = vmatprep.subr.bf16.mxu0 %v6805
    %9347 = vmatpush1.bf16.msra.mxu0 %v6804
    %9348 = vmatprep.subr.bf16.mxu0 %v6809
    %9349 = vmatpush1.bf16.msra.mxu0 %v6808
    %9350 = vmatprep.subr.bf16.mxu0 %v6813
    %9351 = vmatpush1.bf16.msra.mxu0 %v6812
    %9352 = vmatprep.subr.bf16.mxu0 %v6817
    %9353 = vmatpush1.bf16.msra.mxu0 %v6816
    %9354 = vmatprep.subr.bf16.mxu0 %v6821
    %9355 = vmatpush1.bf16.msra.mxu0 %v6820
    %9356 = vmatprep.mubr.bf16.mxu0 %v2237
    %9357 = vmatmul.mubr.bf16.gmra.mrb[0].mxu0 %v2236
    %v9358 = vpop.f32.mrb[0].mxu0
    %v9359 = vadd.f32 %v9318, %v9358
    %v9360 = vpop.f32.mrb[0].mxu0
    %v9361 = vadd.f32 %v9320, %v9360
    %v9362 = vpop.f32.mrb[0].mxu0
    %v9363 = vpop.f32.mrb[0].mxu0
    %9364 = vdwg.mxu0
    %9365 = vmatprep.subr.bf16.mxu0 %v6825
    %9366 = vmatpush1.bf16.msra.mxu0 %v6824
    %9367 = vmatprep.subr.bf16.mxu0 %v6829
    %9368 = vmatpush1.bf16.msra.mxu0 %v6828
    %9369 = vmatprep.subr.bf16.mxu0 %v6833
    %9370 = vmatpush1.bf16.msra.mxu0 %v6832
    %9371 = vmatprep.subr.bf16.mxu0 %v6837
    %9372 = vmatpush1.bf16.msra.mxu0 %v6836
    %9373 = vmatprep.subr.bf16.mxu0 %v6841
    %9374 = vmatpush1.bf16.msra.mxu0 %v6840
    %9375 = vmatprep.subr.bf16.mxu0 %v6845
    %9376 = vmatpush1.bf16.msra.mxu0 %v6844
    %9377 = vmatprep.subr.bf16.mxu0 %v6849
    %9378 = vmatpush1.bf16.msra.mxu0 %v6848
    %9379 = vmatprep.subr.bf16.mxu0 %v6853
    %9380 = vmatpush1.bf16.msra.mxu0 %v6852
    %9381 = vmatprep.subr.bf16.mxu0 %v6857
    %9382 = vmatpush1.bf16.msra.mxu0 %v6856
    %9383 = vmatprep.subr.bf16.mxu0 %v6861
    %9384 = vmatpush1.bf16.msra.mxu0 %v6860
    %9385 = vmatprep.subr.bf16.mxu0 %v6865
    %9386 = vmatpush1.bf16.msra.mxu0 %v6864
    %9387 = vmatprep.subr.bf16.mxu0 %v6869
    %9388 = vmatpush1.bf16.msra.mxu0 %v6868
    %9389 = vmatprep.subr.bf16.mxu0 %v6873
    %9390 = vmatpush1.bf16.msra.mxu0 %v6872
    %9391 = vmatprep.subr.bf16.mxu0 %v6877
    %9392 = vmatpush1.bf16.msra.mxu0 %v6876
    %9393 = vmatprep.subr.bf16.mxu0 %v6881
    %9394 = vmatpush1.bf16.msra.mxu0 %v6880
    %9395 = vmatprep.subr.bf16.mxu0 %v6885
    %9396 = vmatpush1.bf16.msra.mxu0 %v6884
    %9397 = vmatprep.mubr.bf16.mxu0 %v2239
    %9398 = vmatmul.mubr.bf16.gmra.mrb[0].mxu0 %v2238
    %v9399 = vpop.f32.mrb[0].mxu0
    %v9400 = vadd.f32 %v9359, %v9399
    %v9401 = vpop.f32.mrb[0].mxu0
    %v9402 = vadd.f32 %v9361, %v9401
    %v9403 = vpop.f32.mrb[0].mxu0
    %v9404 = vpop.f32.mrb[0].mxu0
    %9405 = vdwg.mxu0
    %9406 = vmatprep.subr.bf16.mxu0 %v6889
    %9407 = vmatpush1.bf16.msra.mxu0 %v6888
    %9408 = vmatprep.subr.bf16.mxu0 %v6893
    %9409 = vmatpush1.bf16.msra.mxu0 %v6892
    %9410 = vmatprep.subr.bf16.mxu0 %v6897
    %9411 = vmatpush1.bf16.msra.mxu0 %v6896
    %9412 = vmatprep.subr.bf16.mxu0 %v6901
    %9413 = vmatpush1.bf16.msra.mxu0 %v6900
    %9414 = vmatprep.subr.bf16.mxu0 %v6905
    %9415 = vmatpush1.bf16.msra.mxu0 %v6904
    %9416 = vmatprep.subr.bf16.mxu0 %v6909
    %9417 = vmatpush1.bf16.msra.mxu0 %v6908
    %9418 = vmatprep.subr.bf16.mxu0 %v6913
    %9419 = vmatpush1.bf16.msra.mxu0 %v6912
    %9420 = vmatprep.subr.bf16.mxu0 %v6917
    %9421 = vmatpush1.bf16.msra.mxu0 %v6916
    %9422 = vmatprep.subr.bf16.mxu0 %v6921
    %9423 = vmatpush1.bf16.msra.mxu0 %v6920
    %9424 = vmatprep.subr.bf16.mxu0 %v6925
    %9425 = vmatpush1.bf16.msra.mxu0 %v6924
    %9426 = vmatprep.subr.bf16.mxu0 %v6929
    %9427 = vmatpush1.bf16.msra.mxu0 %v6928
    %9428 = vmatprep.subr.bf16.mxu0 %v6933
    %9429 = vmatpush1.bf16.msra.mxu0 %v6932
    %9430 = vmatprep.subr.bf16.mxu0 %v6937
    %9431 = vmatpush1.bf16.msra.mxu0 %v6936
    %9432 = vmatprep.subr.bf16.mxu0 %v6941
    %9433 = vmatpush1.bf16.msra.mxu0 %v6940
    %9434 = vmatprep.subr.bf16.mxu0 %v6945
    %9435 = vmatpush1.bf16.msra.mxu0 %v6944
    %9436 = vmatprep.subr.bf16.mxu0 %v6949
    %9437 = vmatpush1.bf16.msra.mxu0 %v6948
    %9438 = vmatprep.mubr.bf16.mxu0 %v2241
    %9439 = vmatmul.mubr.bf16.gmra.mrb[0].mxu0 %v2240
    %v9440 = vpop.f32.mrb[0].mxu0
    %v9441 = vadd.f32 %v9400, %v9440
    %v9442 = vpop.f32.mrb[0].mxu0
    %v9443 = vadd.f32 %v9402, %v9442
    %v9444 = vpop.f32.mrb[0].mxu0
    %v9445 = vpop.f32.mrb[0].mxu0
    %9446 = vdwg.mxu0
    %9447 = vmatprep.subr.bf16.mxu0 %v6953
    %9448 = vmatpush1.bf16.msra.mxu0 %v6952
    %9449 = vmatprep.subr.bf16.mxu0 %v6957
    %9450 = vmatpush1.bf16.msra.mxu0 %v6956
    %9451 = vmatprep.subr.bf16.mxu0 %v6961
    %9452 = vmatpush1.bf16.msra.mxu0 %v6960
    %9453 = vmatprep.subr.bf16.mxu0 %v6965
    %9454 = vmatpush1.bf16.msra.mxu0 %v6964
    %9455 = vmatprep.subr.bf16.mxu0 %v6969
    %9456 = vmatpush1.bf16.msra.mxu0 %v6968
    %9457 = vmatprep.subr.bf16.mxu0 %v6973
    %9458 = vmatpush1.bf16.msra.mxu0 %v6972
    %9459 = vmatprep.subr.bf16.mxu0 %v6977
    %9460 = vmatpush1.bf16.msra.mxu0 %v6976
    %9461 = vmatprep.subr.bf16.mxu0 %v6981
    %9462 = vmatpush1.bf16.msra.mxu0 %v6980
    %9463 = vmatprep.subr.bf16.mxu0 %v6985
    %9464 = vmatpush1.bf16.msra.mxu0 %v6984
    %9465 = vmatprep.subr.bf16.mxu0 %v6989
    %9466 = vmatpush1.bf16.msra.mxu0 %v6988
    %9467 = vmatprep.subr.bf16.mxu0 %v6993
    %9468 = vmatpush1.bf16.msra.mxu0 %v6992
    %9469 = vmatprep.subr.bf16.mxu0 %v6997
    %9470 = vmatpush1.bf16.msra.mxu0 %v6996
    %9471 = vmatprep.subr.bf16.mxu0 %v7001
    %9472 = vmatpush1.bf16.msra.mxu0 %v7000
    %9473 = vmatprep.subr.bf16.mxu0 %v7005
    %9474 = vmatpush1.bf16.msra.mxu0 %v7004
    %9475 = vmatprep.subr.bf16.mxu0 %v7009
    %9476 = vmatpush1.bf16.msra.mxu0 %v7008
    %9477 = vmatprep.subr.bf16.mxu0 %v7013
    %9478 = vmatpush1.bf16.msra.mxu0 %v7012
    %9479 = vmatprep.mubr.bf16.mxu0 %v2243
    %9480 = vmatmul.mubr.bf16.gmra.mrb[0].mxu0 %v2242
    %v9481 = vpop.f32.mrb[0].mxu0
    %v9482 = vadd.f32 %v9441, %v9481
    %v9483 = vpop.f32.mrb[0].mxu0
    %v9484 = vadd.f32 %v9443, %v9483
    %v9485 = vpop.f32.mrb[0].mxu0
    %v9486 = vpop.f32.mrb[0].mxu0
    %9487 = vdwg.mxu0
    %9488 = vmatprep.subr.bf16.mxu0 %v7017
    %9489 = vmatpush1.bf16.msra.mxu0 %v7016
    %9490 = vmatprep.subr.bf16.mxu0 %v7021
    %9491 = vmatpush1.bf16.msra.mxu0 %v7020
    %9492 = vmatprep.subr.bf16.mxu0 %v7025
    %9493 = vmatpush1.bf16.msra.mxu0 %v7024
    %9494 = vmatprep.subr.bf16.mxu0 %v7029
    %9495 = vmatpush1.bf16.msra.mxu0 %v7028
    %9496 = vmatprep.subr.bf16.mxu0 %v7033
    %9497 = vmatpush1.bf16.msra.mxu0 %v7032
    %9498 = vmatprep.subr.bf16.mxu0 %v7037
    %9499 = vmatpush1.bf16.msra.mxu0 %v7036
    %9500 = vmatprep.subr.bf16.mxu0 %v7041
    %9501 = vmatpush1.bf16.msra.mxu0 %v7040
    %9502 = vmatprep.subr.bf16.mxu0 %v7045
    %9503 = vmatpush1.bf16.msra.mxu0 %v7044
    %9504 = vmatprep.subr.bf16.mxu0 %v7049
    %9505 = vmatpush1.bf16.msra.mxu0 %v7048
    %9506 = vmatprep.subr.bf16.mxu0 %v7053
    %9507 = vmatpush1.bf16.msra.mxu0 %v7052
    %9508 = vmatprep.subr.bf16.mxu0 %v7057
    %9509 = vmatpush1.bf16.msra.mxu0 %v7056
    %9510 = vmatprep.subr.bf16.mxu0 %v7061
    %9511 = vmatpush1.bf16.msra.mxu0 %v7060
    %9512 = vmatprep.subr.bf16.mxu0 %v7065
    %9513 = vmatpush1.bf16.msra.mxu0 %v7064
    %9514 = vmatprep.subr.bf16.mxu0 %v7069
    %9515 = vmatpush1.bf16.msra.mxu0 %v7068
    %9516 = vmatprep.subr.bf16.mxu0 %v7073
    %9517 = vmatpush1.bf16.msra.mxu0 %v7072
    %9518 = vmatprep.subr.bf16.mxu0 %v7077
    %9519 = vmatpush1.bf16.msra.mxu0 %v7076
    %9520 = vmatprep.mubr.bf16.mxu0 %v2245
    %9521 = vmatmul.mubr.bf16.gmra.mrb[0].mxu0 %v2244
    %v9522 = vpop.f32.mrb[0].mxu0
    %v9523 = vadd.f32 %v9482, %v9522
    %v9524 = vpop.f32.mrb[0].mxu0
    %v9525 = vadd.f32 %v9484, %v9524
    %v9526 = vpop.f32.mrb[0].mxu0
    %v9527 = vpop.f32.mrb[0].mxu0
    %9528 = vdwg.mxu0
    %9529 = vmatprep.subr.bf16.mxu0 %v7081
    %9530 = vmatpush1.bf16.msra.mxu0 %v7080
    %9531 = vmatprep.subr.bf16.mxu0 %v7085
    %9532 = vmatpush1.bf16.msra.mxu0 %v7084
    %9533 = vmatprep.subr.bf16.mxu0 %v7089
    %9534 = vmatpush1.bf16.msra.mxu0 %v7088
    %9535 = vmatprep.subr.bf16.mxu0 %v7093
    %9536 = vmatpush1.bf16.msra.mxu0 %v7092
    %9537 = vmatprep.subr.bf16.mxu0 %v7097
    %9538 = vmatpush1.bf16.msra.mxu0 %v7096
    %9539 = vmatprep.subr.bf16.mxu0 %v7101
    %9540 = vmatpush1.bf16.msra.mxu0 %v7100
    %9541 = vmatprep.subr.bf16.mxu0 %v7105
    %9542 = vmatpush1.bf16.msra.mxu0 %v7104
    %9543 = vmatprep.subr.bf16.mxu0 %v7109
    %9544 = vmatpush1.bf16.msra.mxu0 %v7108
    %9545 = vmatprep.subr.bf16.mxu0 %v7113
    %9546 = vmatpush1.bf16.msra.mxu0 %v7112
    %9547 = vmatprep.subr.bf16.mxu0 %v7117
    %9548 = vmatpush1.bf16.msra.mxu0 %v7116
    %9549 = vmatprep.subr.bf16.mxu0 %v7121
    %9550 = vmatpush1.bf16.msra.mxu0 %v7120
    %9551 = vmatprep.subr.bf16.mxu0 %v7125
    %9552 = vmatpush1.bf16.msra.mxu0 %v7124
    %9553 = vmatprep.subr.bf16.mxu0 %v7129
    %9554 = vmatpush1.bf16.msra.mxu0 %v7128
    %9555 = vmatprep.subr.bf16.mxu0 %v7133
    %9556 = vmatpush1.bf16.msra.mxu0 %v7132
    %9557 = vmatprep.subr.bf16.mxu0 %v7137
    %9558 = vmatpush1.bf16.msra.mxu0 %v7136
    %9559 = vmatprep.subr.bf16.mxu0 %v7141
    %9560 = vmatpush1.bf16.msra.mxu0 %v7140
    %9561 = vmatprep.mubr.bf16.mxu0 %v2247
    %9562 = vmatmul.mubr.bf16.gmra.mrb[0].mxu0 %v2246
    %v9563 = vpop.f32.mrb[0].mxu0
    %v9564 = vadd.f32 %v9523, %v9563
    %v9565 = vpop.f32.mrb[0].mxu0
    %v9566 = vadd.f32 %v9525, %v9565
    %v9567 = vpop.f32.mrb[0].mxu0
    %v9568 = vpop.f32.mrb[0].mxu0
    %9569 = vdwg.mxu0
    %9570 = vmatprep.subr.bf16.mxu0 %v7145
    %9571 = vmatpush1.bf16.msra.mxu0 %v7144
    %9572 = vmatprep.subr.bf16.mxu0 %v7149
    %9573 = vmatpush1.bf16.msra.mxu0 %v7148
    %9574 = vmatprep.subr.bf16.mxu0 %v7153
    %9575 = vmatpush1.bf16.msra.mxu0 %v7152
    %9576 = vmatprep.subr.bf16.mxu0 %v7157
    %9577 = vmatpush1.bf16.msra.mxu0 %v7156
    %9578 = vmatprep.subr.bf16.mxu0 %v7161
    %9579 = vmatpush1.bf16.msra.mxu0 %v7160
    %9580 = vmatprep.subr.bf16.mxu0 %v7165
    %9581 = vmatpush1.bf16.msra.mxu0 %v7164
    %9582 = vmatprep.subr.bf16.mxu0 %v7169
    %9583 = vmatpush1.bf16.msra.mxu0 %v7168
    %9584 = vmatprep.subr.bf16.mxu0 %v7173
    %9585 = vmatpush1.bf16.msra.mxu0 %v7172
    %9586 = vmatprep.subr.bf16.mxu0 %v7177
    %9587 = vmatpush1.bf16.msra.mxu0 %v7176
    %9588 = vmatprep.subr.bf16.mxu0 %v7181
    %9589 = vmatpush1.bf16.msra.mxu0 %v7180
    %9590 = vmatprep.subr.bf16.mxu0 %v7185
    %9591 = vmatpush1.bf16.msra.mxu0 %v7184
    %9592 = vmatprep.subr.bf16.mxu0 %v7189
    %9593 = vmatpush1.bf16.msra.mxu0 %v7188
    %9594 = vmatprep.subr.bf16.mxu0 %v7193
    %9595 = vmatpush1.bf16.msra.mxu0 %v7192
    %9596 = vmatprep.subr.bf16.mxu0 %v7197
    %9597 = vmatpush1.bf16.msra.mxu0 %v7196
    %9598 = vmatprep.subr.bf16.mxu0 %v7201
    %9599 = vmatpush1.bf16.msra.mxu0 %v7200
    %9600 = vmatprep.subr.bf16.mxu0 %v7205
    %9601 = vmatpush1.bf16.msra.mxu0 %v7204
    %9602 = vmatprep.mubr.bf16.mxu0 %v2249
    %9603 = vmatmul.mubr.bf16.gmra.mrb[0].mxu0 %v2248
    %v9604 = vpop.f32.mrb[0].mxu0
    %v9605 = vadd.f32 %v9564, %v9604
    %v9606 = vpop.f32.mrb[0].mxu0
    %v9607 = vadd.f32 %v9566, %v9606
    %v9608 = vpop.f32.mrb[0].mxu0
    %v9609 = vpop.f32.mrb[0].mxu0
    %9610 = vdwg.mxu0
    %9611 = vmatprep.subr.bf16.mxu0 %v7209
    %9612 = vmatpush1.bf16.msra.mxu0 %v7208
    %9613 = vmatprep.subr.bf16.mxu0 %v7213
    %9614 = vmatpush1.bf16.msra.mxu0 %v7212
    %9615 = vmatprep.subr.bf16.mxu0 %v7217
    %9616 = vmatpush1.bf16.msra.mxu0 %v7216
    %9617 = vmatprep.subr.bf16.mxu0 %v7221
    %9618 = vmatpush1.bf16.msra.mxu0 %v7220
    %9619 = vmatprep.subr.bf16.mxu0 %v7225
    %9620 = vmatpush1.bf16.msra.mxu0 %v7224
    %9621 = vmatprep.subr.bf16.mxu0 %v7229
    %9622 = vmatpush1.bf16.msra.mxu0 %v7228
    %9623 = vmatprep.subr.bf16.mxu0 %v7233
    %9624 = vmatpush1.bf16.msra.mxu0 %v7232
    %9625 = vmatprep.subr.bf16.mxu0 %v7237
    %9626 = vmatpush1.bf16.msra.mxu0 %v7236
    %9627 = vmatprep.subr.bf16.mxu0 %v7241
    %9628 = vmatpush1.bf16.msra.mxu0 %v7240
    %9629 = vmatprep.subr.bf16.mxu0 %v7245
    %9630 = vmatpush1.bf16.msra.mxu0 %v7244
    %9631 = vmatprep.subr.bf16.mxu0 %v7249
    %9632 = vmatpush1.bf16.msra.mxu0 %v7248
    %9633 = vmatprep.subr.bf16.mxu0 %v7253
    %9634 = vmatpush1.bf16.msra.mxu0 %v7252
    %9635 = vmatprep.subr.bf16.mxu0 %v7257
    %9636 = vmatpush1.bf16.msra.mxu0 %v7256
    %9637 = vmatprep.subr.bf16.mxu0 %v7261
    %9638 = vmatpush1.bf16.msra.mxu0 %v7260
    %9639 = vmatprep.subr.bf16.mxu0 %v7265
    %9640 = vmatpush1.bf16.msra.mxu0 %v7264
    %9641 = vmatprep.subr.bf16.mxu0 %v7269
    %9642 = vmatpush1.bf16.msra.mxu0 %v7268
    %9643 = vmatprep.mubr.bf16.mxu0 %v2251
    %9644 = vmatmul.mubr.bf16.gmra.mrb[0].mxu0 %v2250
    %v9645 = vpop.f32.mrb[0].mxu0
    %v9646 = vadd.f32 %v9605, %v9645
    %v9647 = vpop.f32.mrb[0].mxu0
    %v9648 = vadd.f32 %v9607, %v9647
    %v9649 = vpop.f32.mrb[0].mxu0
    %v9650 = vpop.f32.mrb[0].mxu0
    %9651 = vdwg.mxu0
    %9652 = vmatprep.subr.bf16.mxu0 %v7273
    %9653 = vmatpush1.bf16.msra.mxu0 %v7272
    %9654 = vmatprep.subr.bf16.mxu0 %v7277
    %9655 = vmatpush1.bf16.msra.mxu0 %v7276
    %9656 = vmatprep.subr.bf16.mxu0 %v7281
    %9657 = vmatpush1.bf16.msra.mxu0 %v7280
    %9658 = vmatprep.subr.bf16.mxu0 %v7285
    %9659 = vmatpush1.bf16.msra.mxu0 %v7284
    %9660 = vmatprep.subr.bf16.mxu0 %v7289
    %9661 = vmatpush1.bf16.msra.mxu0 %v7288
    %9662 = vmatprep.subr.bf16.mxu0 %v7293
    %9663 = vmatpush1.bf16.msra.mxu0 %v7292
    %9664 = vmatprep.subr.bf16.mxu0 %v7297
    %9665 = vmatpush1.bf16.msra.mxu0 %v7296
    %9666 = vmatprep.subr.bf16.mxu0 %v7301
    %9667 = vmatpush1.bf16.msra.mxu0 %v7300
    %9668 = vmatprep.subr.bf16.mxu0 %v7305
    %9669 = vmatpush1.bf16.msra.mxu0 %v7304
    %9670 = vmatprep.subr.bf16.mxu0 %v7309
    %9671 = vmatpush1.bf16.msra.mxu0 %v7308
    %9672 = vmatprep.subr.bf16.mxu0 %v7313
    %9673 = vmatpush1.bf16.msra.mxu0 %v7312
    %9674 = vmatprep.subr.bf16.mxu0 %v7317
    %9675 = vmatpush1.bf16.msra.mxu0 %v7316
    %9676 = vmatprep.subr.bf16.mxu0 %v7321
    %9677 = vmatpush1.bf16.msra.mxu0 %v7320
    %9678 = vmatprep.subr.bf16.mxu0 %v7325
    %9679 = vmatpush1.bf16.msra.mxu0 %v7324
    %9680 = vmatprep.subr.bf16.mxu0 %v7329
    %9681 = vmatpush1.bf16.msra.mxu0 %v7328
    %9682 = vmatprep.subr.bf16.mxu0 %v7333
    %9683 = vmatpush1.bf16.msra.mxu0 %v7332
    %9684 = vmatprep.mubr.bf16.mxu0 %v2253
    %9685 = vmatmul.mubr.bf16.gmra.mrb[0].mxu0 %v2252
    %v9686 = vpop.f32.mrb[0].mxu0
    %v9687 = vadd.f32 %v9646, %v9686
    %v9688 = vpop.f32.mrb[0].mxu0
    %v9689 = vadd.f32 %v9648, %v9688
    %v9690 = vpop.f32.mrb[0].mxu0
    %v9691 = vpop.f32.mrb[0].mxu0
    %9692 = vdwg.mxu0
    %9693 = vmatprep.subr.bf16.mxu0 %v7337
    %9694 = vmatpush1.bf16.msra.mxu0 %v7336
    %9695 = vmatprep.subr.bf16.mxu0 %v7341
    %9696 = vmatpush1.bf16.msra.mxu0 %v7340
    %9697 = vmatprep.subr.bf16.mxu0 %v7345
    %9698 = vmatpush1.bf16.msra.mxu0 %v7344
    %9699 = vmatprep.subr.bf16.mxu0 %v7349
    %9700 = vmatpush1.bf16.msra.mxu0 %v7348
    %9701 = vmatprep.subr.bf16.mxu0 %v7353
    %9702 = vmatpush1.bf16.msra.mxu0 %v7352
    %9703 = vmatprep.subr.bf16.mxu0 %v7357
    %9704 = vmatpush1.bf16.msra.mxu0 %v7356
    %9705 = vmatprep.subr.bf16.mxu0 %v7361
    %9706 = vmatpush1.bf16.msra.mxu0 %v7360
    %9707 = vmatprep.subr.bf16.mxu0 %v7365
    %9708 = vmatpush1.bf16.msra.mxu0 %v7364
    %9709 = vmatprep.subr.bf16.mxu0 %v7369
    %9710 = vmatpush1.bf16.msra.mxu0 %v7368
    %9711 = vmatprep.subr.bf16.mxu0 %v7373
    %9712 = vmatpush1.bf16.msra.mxu0 %v7372
    %9713 = vmatprep.subr.bf16.mxu0 %v7377
    %9714 = vmatpush1.bf16.msra.mxu0 %v7376
    %9715 = vmatprep.subr.bf16.mxu0 %v7381
    %9716 = vmatpush1.bf16.msra.mxu0 %v7380
    %9717 = vmatprep.subr.bf16.mxu0 %v7385
    %9718 = vmatpush1.bf16.msra.mxu0 %v7384
    %9719 = vmatprep.subr.bf16.mxu0 %v7389
    %9720 = vmatpush1.bf16.msra.mxu0 %v7388
    %9721 = vmatprep.subr.bf16.mxu0 %v7393
    %9722 = vmatpush1.bf16.msra.mxu0 %v7392
    %9723 = vmatprep.subr.bf16.mxu0 %v7397
    %9724 = vmatpush1.bf16.msra.mxu0 %v7396
    %9725 = vmatprep.mubr.bf16.mxu0 %v2255
    %9726 = vmatmul.mubr.bf16.gmra.mrb[0].mxu0 %v2254
    %v9727 = vpop.f32.mrb[0].mxu0
    %v9728 = vadd.f32 %v9687, %v9727
    %v9729 = vpop.f32.mrb[0].mxu0
    %v9730 = vadd.f32 %v9689, %v9729
    %v9731 = vpop.f32.mrb[0].mxu0
    %v9732 = vpop.f32.mrb[0].mxu0
    %9733 = vdwg.mxu0
    %v9734 = vmax.f32 %v9072, 0.0
    %v9735 = vmax.f32 %v9074, 0.0
    %v9736 = vmax.f32 %v9728, 0.0
    %v9737 = vmax.f32 %v9730, 0.0
    %v9738 = vpack.c.bf16 %v9734, %v9734
    %v9739 = vpack.c.bf16 %v9735, %v9735
    %v9740 = vpack.c.bf16 %v9736, %v9736
    %v9741 = vpack.c.bf16 %v9737, %v9737
    %v9742 = vld [vmem:[%s5] sm:$0xf]
    %v9743 = vld [vmem:[%s5 + $0x4] sm:$0xf]
    %v9744 = vld [vmem:[%s5 + $0x8] sm:$0xf]
    %v9745 = vld [vmem:[%s5 + $0xc] sm:$0xf]
    %v9746 = vld [vmem:[%s5 + $0x10] sm:$0xf]
    %v9747 = vld [vmem:[%s5 + $0x14] sm:$0xf]
    %v9748 = vld [vmem:[%s5 + $0x18] sm:$0xf]
    %v9749 = vld [vmem:[%s5 + $0x1c] sm:$0xf]
    %v9750 = vld [vmem:[%s5 + $0x20] sm:$0xf]
    %v9751 = vld [vmem:[%s5 + $0x24] sm:$0xf]
    %v9752 = vld [vmem:[%s5 + $0x28] sm:$0xf]
    %v9753 = vld [vmem:[%s5 + $0x2c] sm:$0xf]
    %v9754 = vld [vmem:[%s5 + $0x30] sm:$0xf]
    %v9755 = vld [vmem:[%s5 + $0x34] sm:$0xf]
    %v9756 = vld [vmem:[%s5 + $0x38] sm:$0xf]
    %v9757 = vld [vmem:[%s5 + $0x3c] sm:$0xf]
    %v9758 = vld [vmem:[%s5 + $0x40] sm:$0xf]
    %v9759 = vld [vmem:[%s5 + $0x44] sm:$0xf]
    %v9760 = vld [vmem:[%s5 + $0x48] sm:$0xf]
    %v9761 = vld [vmem:[%s5 + $0x4c] sm:$0xf]
    %v9762 = vld [vmem:[%s5 + $0x50] sm:$0xf]
    %v9763 = vld [vmem:[%s5 + $0x54] sm:$0xf]
    %v9764 = vld [vmem:[%s5 + $0x58] sm:$0xf]
    %v9765 = vld [vmem:[%s5 + $0x5c] sm:$0xf]
    %v9766 = vld [vmem:[%s5 + $0x60] sm:$0xf]
    %v9767 = vld [vmem:[%s5 + $0x64] sm:$0xf]
    %v9768 = vld [vmem:[%s5 + $0x68] sm:$0xf]
    %v9769 = vld [vmem:[%s5 + $0x6c] sm:$0xf]
    %v9770 = vld [vmem:[%s5 + $0x70] sm:$0xf]
    %v9771 = vld [vmem:[%s5 + $0x74] sm:$0xf]
    %v9772 = vld [vmem:[%s5 + $0x78] sm:$0xf]
    %v9773 = vld [vmem:[%s5 + $0x7c] sm:$0xf]
    %v9774 = vld [vmem:[%s5 + $0x80] sm:$0xf]
    %v9775 = vld [vmem:[%s5 + $0x84] sm:$0xf]
    %v9776 = vld [vmem:[%s5 + $0x88] sm:$0xf]
    %v9777 = vld [vmem:[%s5 + $0x8c] sm:$0xf]
    %v9778 = vld [vmem:[%s5 + $0x90] sm:$0xf]
    %v9779 = vld [vmem:[%s5 + $0x94] sm:$0xf]
    %v9780 = vld [vmem:[%s5 + $0x98] sm:$0xf]
    %v9781 = vld [vmem:[%s5 + $0x9c] sm:$0xf]
    %v9782 = vld [vmem:[%s5 + $0xa0] sm:$0xf]
    %v9783 = vld [vmem:[%s5 + $0xa4] sm:$0xf]
    %v9784 = vld [vmem:[%s5 + $0xa8] sm:$0xf]
    %v9785 = vld [vmem:[%s5 + $0xac] sm:$0xf]
    %v9786 = vld [vmem:[%s5 + $0xb0] sm:$0xf]
    %v9787 = vld [vmem:[%s5 + $0xb4] sm:$0xf]
    %v9788 = vld [vmem:[%s5 + $0xb8] sm:$0xf]
    %v9789 = vld [vmem:[%s5 + $0xbc] sm:$0xf]
    %v9790 = vld [vmem:[%s5 + $0xc0] sm:$0xf]
    %v9791 = vld [vmem:[%s5 + $0xc4] sm:$0xf]
    %v9792 = vld [vmem:[%s5 + $0xc8] sm:$0xf]
    %v9793 = vld [vmem:[%s5 + $0xcc] sm:$0xf]
    %v9794 = vld [vmem:[%s5 + $0xd0] sm:$0xf]
    %v9795 = vld [vmem:[%s5 + $0xd4] sm:$0xf]
    %v9796 = vld [vmem:[%s5 + $0xd8] sm:$0xf]
    %v9797 = vld [vmem:[%s5 + $0xdc] sm:$0xf]
    %v9798 = vld [vmem:[%s5 + $0xe0] sm:$0xf]
    %v9799 = vld [vmem:[%s5 + $0xe4] sm:$0xf]
    %v9800 = vld [vmem:[%s5 + $0xe8] sm:$0xf]
    %v9801 = vld [vmem:[%s5 + $0xec] sm:$0xf]
    %v9802 = vld [vmem:[%s5 + $0xf0] sm:$0xf]
    %v9803 = vld [vmem:[%s5 + $0xf4] sm:$0xf]
    %v9804 = vld [vmem:[%s5 + $0xf8] sm:$0xf]
    %v9805 = vld [vmem:[%s5 + $0xfc] sm:$0xf]
    %v9806 = vld [vmem:[%s6] sm:$0x1]
    %v9808 = vlaneseq
    %v9809 = vshrl.u32 %v9808, 7
    %v9810 = vsub.s32 0, %v9809
    %v9811 = vrot.slane %v9806, %v9810
    %v9877 = vunpack.c.l.b16 %v9742
    %v9878 = vunpack.c.l.b16 %v9743
    %v9879 = vunpack.c.l.b16 %v9744
    %v9880 = vunpack.c.l.b16 %v9745
    %v9881 = vunpack.c.l.b16 %v9746
    %v9882 = vunpack.c.l.b16 %v9747
    %v9883 = vunpack.c.l.b16 %v9748
    %v9884 = vunpack.c.l.b16 %v9749
    %v9885 = vunpack.c.l.b16 %v9750
    %v9886 = vunpack.c.l.b16 %v9751
    %v9887 = vunpack.c.l.b16 %v9752
    %v9888 = vunpack.c.l.b16 %v9753
    %v9889 = vunpack.c.l.b16 %v9754
    %v9890 = vunpack.c.l.b16 %v9755
    %v9891 = vunpack.c.l.b16 %v9756
    %v9892 = vunpack.c.l.b16 %v9757
    %v9893 = vunpack.c.l.b16 %v9758
    %v9894 = vunpack.c.l.b16 %v9759
    %v9895 = vunpack.c.l.b16 %v9760
    %v9896 = vunpack.c.l.b16 %v9761
    %v9897 = vunpack.c.l.b16 %v9762
    %v9898 = vunpack.c.l.b16 %v9763
    %v9899 = vunpack.c.l.b16 %v9764
    %v9900 = vunpack.c.l.b16 %v9765
    %v9901 = vunpack.c.l.b16 %v9766
    %v9902 = vunpack.c.l.b16 %v9767
    %v9903 = vunpack.c.l.b16 %v9768
    %v9904 = vunpack.c.l.b16 %v9769
    %v9905 = vunpack.c.l.b16 %v9770
    %v9906 = vunpack.c.l.b16 %v9771
    %v9907 = vunpack.c.l.b16 %v9772
    %v9908 = vunpack.c.l.b16 %v9773
    %v9909 = vunpack.c.l.b16 %v9774
    %v9910 = vunpack.c.l.b16 %v9775
    %v9911 = vunpack.c.l.b16 %v9776
    %v9912 = vunpack.c.l.b16 %v9777
    %v9913 = vunpack.c.l.b16 %v9778
    %v9914 = vunpack.c.l.b16 %v9779
    %v9915 = vunpack.c.l.b16 %v9780
    %v9916 = vunpack.c.l.b16 %v9781
    %v9917 = vunpack.c.l.b16 %v9782
    %v9918 = vunpack.c.l.b16 %v9783
    %v9919 = vunpack.c.l.b16 %v9784
    %v9920 = vunpack.c.l.b16 %v9785
    %v9921 = vunpack.c.l.b16 %v9786
    %v9922 = vunpack.c.l.b16 %v9787
    %v9923 = vunpack.c.l.b16 %v9788
    %v9924 = vunpack.c.l.b16 %v9789
    %v9925 = vunpack.c.l.b16 %v9790
    %v9926 = vunpack.c.l.b16 %v9791
    %v9927 = vunpack.c.l.b16 %v9792
    %v9928 = vunpack.c.l.b16 %v9793
    %v9929 = vunpack.c.l.b16 %v9794
    %v9930 = vunpack.c.l.b16 %v9795
    %v9931 = vunpack.c.l.b16 %v9796
    %v9932 = vunpack.c.l.b16 %v9797
    %v9933 = vunpack.c.l.b16 %v9798
    %v9934 = vunpack.c.l.b16 %v9799
    %v9935 = vunpack.c.l.b16 %v9800
    %v9936 = vunpack.c.l.b16 %v9801
    %v9937 = vunpack.c.l.b16 %v9802
    %v9938 = vunpack.c.l.b16 %v9803
    %v9939 = vunpack.c.l.b16 %v9804
    %v9940 = vunpack.c.l.b16 %v9805
    %v9941 = vpack.c.b16 %v9878, %v9877
    %v9942 = vpack.c.b16 %v9880, %v9879
    %v9943 = vpack.c.b16 %v9882, %v9881
    %v9944 = vpack.c.b16 %v9884, %v9883
    %v9945 = vpack.c.b16 %v9886, %v9885
    %v9946 = vpack.c.b16 %v9888, %v9887
    %v9947 = vpack.c.b16 %v9890, %v9889
    %v9948 = vpack.c.b16 %v9892, %v9891
    %v9949 = vpack.c.b16 %v9894, %v9893
    %v9950 = vpack.c.b16 %v9896, %v9895
    %v9951 = vpack.c.b16 %v9898, %v9897
    %v9952 = vpack.c.b16 %v9900, %v9899
    %v9953 = vpack.c.b16 %v9902, %v9901
    %v9954 = vpack.c.b16 %v9904, %v9903
    %v9955 = vpack.c.b16 %v9906, %v9905
    %v9956 = vpack.c.b16 %v9908, %v9907
    %v9957 = vpack.c.b16 %v9910, %v9909
    %v9958 = vpack.c.b16 %v9912, %v9911
    %v9959 = vpack.c.b16 %v9914, %v9913
    %v9960 = vpack.c.b16 %v9916, %v9915
    %v9961 = vpack.c.b16 %v9918, %v9917
    %v9962 = vpack.c.b16 %v9920, %v9919
    %v9963 = vpack.c.b16 %v9922, %v9921
    %v9964 = vpack.c.b16 %v9924, %v9923
    %v9965 = vpack.c.b16 %v9926, %v9925
    %v9966 = vpack.c.b16 %v9928, %v9927
    %v9967 = vpack.c.b16 %v9930, %v9929
    %v9968 = vpack.c.b16 %v9932, %v9931
    %v9969 = vpack.c.b16 %v9934, %v9933
    %v9970 = vpack.c.b16 %v9936, %v9935
    %v9971 = vpack.c.b16 %v9938, %v9937
    %v9972 = vpack.c.b16 %v9940, %v9939
    %10005 = vmatprep.subr.bf16.mxu0 0
    %10006 = vmatpush1.bf16.msra.mxu0 %v9941
    %10007 = vmatprep.subr.bf16.mxu0 0
    %10008 = vmatpush1.bf16.msra.mxu0 %v9942
    %10009 = vmatprep.subr.bf16.mxu0 0
    %10010 = vmatpush1.bf16.msra.mxu0 %v9943
    %10011 = vmatprep.subr.bf16.mxu0 0
    %10012 = vmatpush1.bf16.msra.mxu0 %v9944
    %10013 = vmatprep.subr.bf16.mxu0 0
    %10014 = vmatpush1.bf16.msra.mxu0 %v9945
    %10015 = vmatprep.subr.bf16.mxu0 0
    %10016 = vmatpush1.bf16.msra.mxu0 %v9946
    %10017 = vmatprep.subr.bf16.mxu0 0
    %10018 = vmatpush1.bf16.msra.mxu0 %v9947
    %10019 = vmatprep.subr.bf16.mxu0 0
    %10020 = vmatpush1.bf16.msra.mxu0 %v9948
    %10021 = vmatprep.subr.bf16.mxu0 0
    %10022 = vmatpush1.bf16.msra.mxu0 %v9949
    %10023 = vmatprep.subr.bf16.mxu0 0
    %10024 = vmatpush1.bf16.msra.mxu0 %v9950
    %10025 = vmatprep.subr.bf16.mxu0 0
    %10026 = vmatpush1.bf16.msra.mxu0 %v9951
    %10027 = vmatprep.subr.bf16.mxu0 0
    %10028 = vmatpush1.bf16.msra.mxu0 %v9952
    %10029 = vmatprep.subr.bf16.mxu0 0
    %10030 = vmatpush1.bf16.msra.mxu0 %v9953
    %10031 = vmatprep.subr.bf16.mxu0 0
    %10032 = vmatpush1.bf16.msra.mxu0 %v9954
    %10033 = vmatprep.subr.bf16.mxu0 0
    %10034 = vmatpush1.bf16.msra.mxu0 %v9955
    %10035 = vmatprep.subr.bf16.mxu0 0
    %10036 = vmatpush1.bf16.msra.mxu0 %v9956
    %10037 = vmatprep.mubr.bf16.mxu0 %v9739
    %10038 = vmatmul.mubr.bf16.gmra.mrb[0].mxu0 %v9738
    %v10039 = vpop.f32.mrb[0].mxu0
    %v10040 = vadd.f32 %v9811, %v10039
    %v10041 = vpop.f32.mrb[0].mxu0
    %v10042 = vpop.f32.mrb[0].mxu0
    %v10043 = vpop.f32.mrb[0].mxu0
    %10044 = vdwg.mxu0
    %10045 = vmatprep.subr.bf16.mxu0 0
    %10046 = vmatpush1.bf16.msra.mxu0 %v9957
    %10047 = vmatprep.subr.bf16.mxu0 0
    %10048 = vmatpush1.bf16.msra.mxu0 %v9958
    %10049 = vmatprep.subr.bf16.mxu0 0
    %10050 = vmatpush1.bf16.msra.mxu0 %v9959
    %10051 = vmatprep.subr.bf16.mxu0 0
    %10052 = vmatpush1.bf16.msra.mxu0 %v9960
    %10053 = vmatprep.subr.bf16.mxu0 0
    %10054 = vmatpush1.bf16.msra.mxu0 %v9961
    %10055 = vmatprep.subr.bf16.mxu0 0
    %10056 = vmatpush1.bf16.msra.mxu0 %v9962
    %10057 = vmatprep.subr.bf16.mxu0 0
    %10058 = vmatpush1.bf16.msra.mxu0 %v9963
    %10059 = vmatprep.subr.bf16.mxu0 0
    %10060 = vmatpush1.bf16.msra.mxu0 %v9964
    %10061 = vmatprep.subr.bf16.mxu0 0
    %10062 = vmatpush1.bf16.msra.mxu0 %v9965
    %10063 = vmatprep.subr.bf16.mxu0 0
    %10064 = vmatpush1.bf16.msra.mxu0 %v9966
    %10065 = vmatprep.subr.bf16.mxu0 0
    %10066 = vmatpush1.bf16.msra.mxu0 %v9967
    %10067 = vmatprep.subr.bf16.mxu0 0
    %10068 = vmatpush1.bf16.msra.mxu0 %v9968
    %10069 = vmatprep.subr.bf16.mxu0 0
    %10070 = vmatpush1.bf16.msra.mxu0 %v9969
    %10071 = vmatprep.subr.bf16.mxu0 0
    %10072 = vmatpush1.bf16.msra.mxu0 %v9970
    %10073 = vmatprep.subr.bf16.mxu0 0
    %10074 = vmatpush1.bf16.msra.mxu0 %v9971
    %10075 = vmatprep.subr.bf16.mxu0 0
    %10076 = vmatpush1.bf16.msra.mxu0 %v9972
    %10077 = vmatprep.mubr.bf16.mxu0 %v9741
    %10078 = vmatmul.mubr.bf16.gmra.mrb[0].mxu0 %v9740
    %v10079 = vpop.f32.mrb[0].mxu0
    %v10080 = vadd.f32 %v10040, %v10079
    %v10081 = vpop.f32.mrb[0].mxu0
    %v10082 = vpop.f32.mrb[0].mxu0
    %v10083 = vpop.f32.mrb[0].mxu0
    %10084 = vdwg.mxu0
    %10085 = vst [vmem:[#allocation3] sm:$0x3] %v10080
    // Predicated region
    $region30: #{cnn_forward.3} parent=1 // pred_check
      _
    $region31: #{cnn_forward.3} parent=1 // pred_check_branch
      %10087 = sbr.rel (0) target = $region33
    $region32: #{cnn_forward.3} parent=1 // pred_region
      %s10089 = ssub.s32 32, 32
      %10090 = vsyncadd [#allocation4], %s10089
      %s10092 = sshll.u32 [#allocation3], 4
      %s10093 = int_to_ptr.vmem [resolvable:$true] %s10092
      %10095 = dma.vmem_to_hbm [thread:$0]  %s10093, 32, %s7, [#allocation4]
    $region33: #{cnn_forward.3} parent=1 // pred_fallthru
      _
    // Predicated region
    $region34: #{cnn_forward.3} parent=1 // pred_check
      _
    $region35: #{cnn_forward.3} parent=1 // pred_check_branch
      %10097 = sbr.rel (0) target = $region37
    $region36: #{cnn_forward.3} parent=1 // pred_region
      %10098 = dma.done [#allocation4], 32
    $region37: #{cnn_forward.3} parent=1 // pred_fallthru
      _
    %10099 = vsyncpa [#allocation4], 1

</llo_original>
